<compile_context>
chip_gen: v7x
topology: tpu7x:2x2x1
jax: 0.10.0
libtpu: 0.0.40
codegen_flags: <defaults>
</compile_context>

<pallas_src>
import functools

import jax
import jax.numpy as jnp
from jax.experimental import pallas as pl
from jax.experimental.pallas import tpu as pltpu

EPS = 1e-5
CIN_PAD = 8           # conv1 K=3 padded to 8 (review item 8)
VMEM_LIMIT = 32 * 1024 * 1024


# --------------------------------------------------------------------------
# small helpers (plain JAX, tiny tensors)
# --------------------------------------------------------------------------
def _round_up(x, m):
    return (x + m - 1) // m * m


def _bn_scale_shift(total_sum, total_sq, count, gamma, beta):
    """BN(y) = y * scale + shift   (training-mode batch stats, biased var)."""
    mean = total_sum / count
    var = jnp.maximum(total_sq / count - mean * mean, 0.0)
    scale = gamma * jax.lax.rsqrt(var + EPS)
    shift = beta - mean * scale
    return scale, shift


def _fold_into_next(scale, shift, w_next, b_next):
    """(y*scale + shift) @ W + b  ==  y @ (scale[:,None]*W) + (shift@W + b)."""
    return scale[:, None] * w_next, shift @ w_next + b_next


# --------------------------------------------------------------------------
# Kernel 1: BN1 statistics.  relu(conv1(h)) stays in VMEM; only per-tile
# sum / sum-of-squares (masked to valid rows) are written.
# --------------------------------------------------------------------------
def _bn1_stats_kernel(h_ref, w1_ref, b1_ref, sum_ref, sq_ref, *, tm, m_valid):
    i = pl.program_id(0)
    a1 = jnp.dot(h_ref[...], w1_ref[...], preferred_element_type=jnp.float32)
    a1 = jnp.maximum(a1 + b1_ref[...], 0.0)
    # 0/1 mask row (padded rows excluded); the sum reductions run on the MXU.
    col = jax.lax.broadcasted_iota(jnp.int32, (1, tm), 1) + i * tm
    mrow = (col < m_valid).astype(jnp.float32)
    sum_ref[0] = jnp.dot(mrow, a1, preferred_element_type=jnp.float32)
    sq_ref[0] = jnp.dot(mrow, a1 * a1, preferred_element_type=jnp.float32)


# --------------------------------------------------------------------------
# Kernel 2: BN2 statistics.  conv1 is recomputed in-register from the tiny
# (tm, 8) input; no activation is written to HBM.
# --------------------------------------------------------------------------
def _bn2_stats_kernel(h_ref, w1_ref, b1_ref, w2_ref, b2_ref,
                      sum_ref, sq_ref, *, tm, m_valid):
    i = pl.program_id(0)
    a1 = jnp.maximum(
        jnp.dot(h_ref[...], w1_ref[...],
                preferred_element_type=jnp.float32) + b1_ref[...], 0.0)
    a2 = jnp.maximum(
        jnp.dot(a1.astype(jnp.bfloat16), w2_ref[...],
                preferred_element_type=jnp.float32) + b2_ref[...], 0.0)
    col = jax.lax.broadcasted_iota(jnp.int32, (1, tm), 1) + i * tm
    mrow = (col < m_valid).astype(jnp.float32)
    sum_ref[0] = jnp.dot(mrow, a2, preferred_element_type=jnp.float32)
    sq_ref[0] = jnp.dot(mrow, a2 * a2, preferred_element_type=jnp.float32)


def conv_stats(h_rows, convs, *, m_valid, tm):
    """Per-channel sum / sumsq of the LAST ReLU activation of the conv chain
    `convs` (list of (w_bf16, bias_f32_row)) over the valid rows of h_rows
    (zero-padded to a multiple of tm).  Activations never leave VMEM."""
    m_pad, cin = h_rows.shape
    nt = m_pad // tm
    cout = convs[-1][0].shape[1]
    kern = _bn1_stats_kernel if len(convs) == 1 else _bn2_stats_kernel
    kern = functools.partial(kern, tm=tm, m_valid=m_valid)

    in_specs = [pl.BlockSpec((tm, cin), lambda i: (i, 0))]
    args = [h_rows]
    for (w, bias) in convs:                      # weights stay VMEM-resident
        in_specs.append(pl.BlockSpec(w.shape, lambda i: (0, 0)))
        in_specs.append(pl.BlockSpec(bias.shape, lambda i: (0, 0)))
        args += [w, bias]

    psum, psq = pl.pallas_call(
        kern,
        out_shape=(jax.ShapeDtypeStruct((nt, 1, cout), jnp.float32),
                   jax.ShapeDtypeStruct((nt, 1, cout), jnp.float32)),
        grid=(nt,),
        in_specs=in_specs,
        out_specs=(pl.BlockSpec((1, 1, cout), lambda i: (i, 0, 0)),
                   pl.BlockSpec((1, 1, cout), lambda i: (i, 0, 0))),
        compiler_params=pltpu.CompilerParams(
            dimension_semantics=("parallel",),
            vmem_limit_bytes=VMEM_LIMIT),
    )(*args)
    # TODO(synk): combine per-tile partials in f64 / Welford if E[x^2]-E[x]^2
    # cancellation ever matters for very large point clouds.
    return jnp.sum(psum, axis=(0, 1)), jnp.sum(psq, axis=(0, 1))


# --------------------------------------------------------------------------
# Kernel 3: fused conv1 -> conv2 -> conv3 (+ReLU, BN folded) + BN3-stat
# accumulation + point-axis max/min pool.  Grid = (batch, cout-tile,
# point-tile); accumulators are resident output blocks across the point axis.
# The (B*N, 1024) activation never touches HBM.
# --------------------------------------------------------------------------
def _conv_pool_kernel(h_ref, w1_ref, b1_ref, w2_ref, b2_ref, w3_ref, b3_ref,
                      max_ref, min_ref, sum_ref, sq_ref, *, tn, n_valid):
    jp = pl.program_id(2)

    a1 = jnp.maximum(
        jnp.dot(h_ref[0], w1_ref[...],
                preferred_element_type=jnp.float32) + b1_ref[...], 0.0)
    a2 = jnp.maximum(
        jnp.dot(a1.astype(jnp.bfloat16), w2_ref[...],
                preferred_element_type=jnp.float32) + b2_ref[...], 0.0)
    a3 = jnp.maximum(
        jnp.dot(a2.astype(jnp.bfloat16), w3_ref[...],
                preferred_element_type=jnp.float32) + b3_ref[...], 0.0)

    base = jp * tn
    mrow = ((jax.lax.broadcasted_iota(jnp.int32, (1, tn), 1) + base)
            < n_valid).astype(jnp.float32)                       # (1, tn)
    mcol = (jax.lax.broadcasted_iota(jnp.int32, (tn, 1), 0) + base) < n_valid

    # sums via MXU (mask handles padded rows); max/min via masked XLU reduce.
    t_sum = jnp.dot(mrow, a3, preferred_element_type=jnp.float32)
    t_sq = jnp.dot(mrow, a3 * a3, preferred_element_type=jnp.float32)
    t_max = jnp.max(jnp.where(mcol, a3, -jnp.inf), axis=0, keepdims=True)
    t_min = jnp.min(jnp.where(mcol, a3, jnp.inf), axis=0, keepdims=True)

    @pl.when(jp == 0)
    def _():
        max_ref[0] = jnp.full(max_ref.shape[1:], -jnp.inf, jnp.float32)
        min_ref[0] = jnp.full(min_ref.shape[1:], jnp.inf, jnp.float32)
        sum_ref[0] = jnp.zeros(sum_ref.shape[1:], jnp.float32)
        sq_ref[0] = jnp.zeros(sq_ref.shape[1:], jnp.float32)

    max_ref[0] = jnp.maximum(max_ref[0], t_max)
    min_ref[0] = jnp.minimum(min_ref[0], t_min)
    sum_ref[0] = sum_ref[0] + t_sum
    sq_ref[0] = sq_ref[0] + t_sq


def conv_pool(h_bnc, w1, b1, w2, b2, w3, b3, *, n_valid, tn, cout_tile):
    b, n_pad, cin = h_bnc.shape
    cout = w3.shape[1]
    n_pt = n_pad // tn
    tc = cout_tile if cout % cout_tile == 0 else cout
    n_ct = cout // tc
    kern = functools.partial(_conv_pool_kernel, tn=tn, n_valid=n_valid)
    shp = jax.ShapeDtypeStruct((b, 1, cout), jnp.float32)
    mx, mn, ps, pq = pl.pallas_call(
        kern,
        out_shape=(shp, shp, shp, shp),
        grid=(b, n_ct, n_pt),
        in_specs=[
            pl.BlockSpec((1, tn, cin), lambda i, jc, jp: (i, jp, 0)),
            pl.BlockSpec(w1.shape, lambda i, jc, jp: (0, 0)),
            pl.BlockSpec(b1.shape, lambda i, jc, jp: (0, 0)),
            pl.BlockSpec(w2.shape, lambda i, jc, jp: (0, 0)),
            pl.BlockSpec(b2.shape, lambda i, jc, jp: (0, 0)),
            pl.BlockSpec((w3.shape[0], tc), lambda i, jc, jp: (0, jc)),
            pl.BlockSpec((1, tc), lambda i, jc, jp: (0, jc)),
        ],
        out_specs=tuple(
            pl.BlockSpec((1, 1, tc), lambda i, jc, jp: (i, 0, jc))
            for _ in range(4)),
        compiler_params=pltpu.CompilerParams(
            dimension_semantics=("parallel", "parallel", "arbitrary"),
            vmem_limit_bytes=VMEM_LIMIT),
    )(h_bnc, w1, b1, w2, b2, w3, b3)
    return (mx[:, 0, :], mn[:, 0, :],
            jnp.sum(ps, axis=(0, 1)), jnp.sum(pq, axis=(0, 1)))


# --------------------------------------------------------------------------
# Kernel 4: fused FC head  linear1+BN4 -> linear2+BN5 -> linear3 (+identity).
# Single gridless pallas_call; B rows only, all weights resident in VMEM.
# --------------------------------------------------------------------------
def _fc_head_kernel(x_ref, w4_ref, b4_ref, g4_ref, be4_ref,
                    w5_ref, b5_ref, g5_ref, be5_ref,
                    w6_ref, b6_ref, o_ref):
    def relu_bn(h, w_ref, b_ref, g_ref, be_ref):
        y = jnp.dot(h.astype(jnp.bfloat16), w_ref[...],
                    preferred_element_type=jnp.float32)
        y = jnp.maximum(y + b_ref[...], 0.0)
        mean = jnp.mean(y, axis=0, keepdims=True)
        var = jnp.mean((y - mean) ** 2, axis=0, keepdims=True)
        return (y - mean) * jax.lax.rsqrt(var + EPS) * g_ref[...] + be_ref[...]

    h = relu_bn(x_ref[...], w4_ref, b4_ref, g4_ref, be4_ref)     # (B, 512)
    h = relu_bn(h, w5_ref, b5_ref, g5_ref, be5_ref)              # (B, 256)
    o_ref[...] = jnp.dot(h.astype(jnp.bfloat16), w6_ref[...],
                         preferred_element_type=jnp.float32) + b6_ref[...]


def fc_head(pooled, p, iden_flat):
    bsz = pooled.shape[0]
    cout = p["w6"].shape[1]
    return pl.pallas_call(
        _fc_head_kernel,
        out_shape=jax.ShapeDtypeStruct((bsz, cout), jnp.float32),
    )(pooled,
      p["w4"], p["b4"], p["g4"], p["be4"],
      p["w5"], p["b5"], p["g5"], p["be5"],
      p["w6"], p["b6"] + iden_flat.reshape(1, -1))


# --------------------------------------------------------------------------
# One-time parameter preprocessing (outside the per-call path).
# --------------------------------------------------------------------------
def prepare_params(p):
    q = {}
    w1 = jnp.zeros((CIN_PAD, p["w1"].shape[1]), jnp.float32)
    w1 = w1.at[: p["w1"].shape[0]].set(p["w1"])          # zero-pad K=3 -> 8
    q["w1"] = w1.astype(jnp.bfloat16)
    q["b1"] = p["b1"].reshape(1, -1).astype(jnp.float32)
    q["g1"], q["be1"] = p["g1"], p["be1"]
    # conv2/conv3 weights stay f32: BN folding multiplies them at run time.
    q["w2"], q["b2"], q["g2"], q["be2"] = p["w2"], p["b2"], p["g2"], p["be2"]
    q["w3"], q["b3"], q["g3"], q["be3"] = p["w3"], p["b3"], p["g3"], p["be3"]
    for li in (4, 5):
        q[f"w{li}"] = p[f"w{li}"].astype(jnp.bfloat16)
        q[f"b{li}"] = p[f"b{li}"].reshape(1, -1)
        q[f"g{li}"] = p[f"g{li}"].reshape(1, -1)
        q[f"be{li}"] = p[f"be{li}"].reshape(1, -1)
    q["w6"] = p["w6"].astype(jnp.bfloat16)
    q["b6"] = p["b6"].reshape(1, -1)
    return q


# --------------------------------------------------------------------------
# Full TNet forward (glue is tiny plain-JAX: transposes, padding, BN folding).
# --------------------------------------------------------------------------
def tnet_forward(x, p, init_dim=3, *, row_tile=2048, point_tile=512,
                 cout_tile=512):
    # x: (B, 3, N) -- PyTorch NCL layout.  N is assumed == num_point (the
    # module's MaxPool1d(kernel_size=num_point) pools the whole point axis).
    b, c, n = x.shape
    m = b * n

    # channel-last, channel dim zero-padded 3 -> 8, bf16 (matmul operand).
    h_bnc = jnp.transpose(x, (0, 2, 1)).astype(jnp.bfloat16)
    h_bnc = jnp.pad(h_bnc, ((0, 0), (0, 0), (0, CIN_PAD - c)))

    # ---- row-tiled stats passes: conv1/conv2 activations stay in VMEM -----
    tm = min(_round_up(row_tile, 8), _round_up(m, 8))
    m_pad = _round_up(m, tm)
    h_rows = h_bnc.reshape(m, CIN_PAD)
    if m_pad != m:
        h_rows = jnp.pad(h_rows, ((0, m_pad - m), (0, 0)))

    sm1, sq1 = conv_stats(h_rows, [(p["w1"], p["b1"])], m_valid=m, tm=tm)
    sc1, sh1 = _bn_scale_shift(sm1, sq1, m, p["g1"], p["be1"])

    w2f, b2f = _fold_into_next(sc1, sh1, p["w2"], p["b2"])
    w2f, b2f = w2f.astype(jnp.bfloat16), b2f.reshape(1, -1)
    sm2, sq2 = conv_stats(h_rows, [(p["w1"], p["b1"]), (w2f, b2f)],
                          m_valid=m, tm=tm)
    sc2, sh2 = _bn_scale_shift(sm2, sq2, m, p["g2"], p["be2"])

    # ---- fused conv1->conv2->conv3 + ReLU + BN3 stats + max/min pool ------
    w3f, b3f = _fold_into_next(sc2, sh2, p["w3"], p["b3"])
    w3f, b3f = w3f.astype(jnp.bfloat16), b3f.reshape(1, -1)

    tn = min(_round_up(point_tile, 8), _round_up(n, 8))
    n_pad = _round_up(n, tn)
    h_pts = h_bnc if n_pad == n else jnp.pad(
        h_bnc, ((0, 0), (0, n_pad - n), (0, 0)))

    mx, mn, sm3, sq3 = conv_pool(h_pts, p["w1"], p["b1"], w2f, b2f, w3f, b3f,
                                 n_valid=n, tn=tn, cout_tile=cout_tile)
    sc3, sh3 = _bn_scale_shift(sm3, sq3, m, p["g3"], p["be3"])
    # max over points commutes with the per-channel affine up to sign(scale).
    pooled = jnp.where(sc3 >= 0.0, sc3 * mx, sc3 * mn) + sh3      # (B, 1024)

    # ---- fused FC head: linear1+BN4 -> linear2+BN5 -> linear3 + identity --
    iden_flat = jnp.eye(init_dim, dtype=jnp.float32).reshape(-1)
    out = fc_head(pooled, p, iden_flat)                           # (B, 9)
    return out.reshape(b, init_dim, init_dim)


# --------------------------------------------------------------------------
# Plain-JAX reference mirroring the kernel math (bf16 matmul operands, f32
# stats, BN after ReLU) WITHOUT tiling, masking or the max/min pooling trick,
# so it independently checks the fused algebra and the Pallas plumbing.
# --------------------------------------------------------------------------
def ref_forward(x, p, init_dim=3):
    b, c, n = x.shape
    m = b * n
    h = jnp.transpose(x, (0, 2, 1)).reshape(m, c).astype(jnp.bfloat16)

    def stage(h16, w_f32, bias_f32):
        y = jnp.dot(h16, w_f32.astype(jnp.bfloat16),
                    preferred_element_type=jnp.float32) + bias_f32
        y = jnp.maximum(y, 0.0)
        return y, jnp.sum(y, axis=0), jnp.sum(y * y, axis=0)

    y1, s1, q1 = stage(h, p["w1"], p["b1"])
    sc1, sh1 = _bn_scale_shift(s1, q1, m, p["g1"], p["be1"])

    w2f, b2f = _fold_into_next(sc1, sh1, p["w2"], p["b2"])
    y2, s2, q2 = stage(y1.astype(jnp.bfloat16), w2f, b2f)
    sc2, sh2 = _bn_scale_shift(s2, q2, m, p["g2"], p["be2"])

    w3f, b3f = _fold_into_next(sc2, sh2, p["w3"], p["b3"])
    y3, s3, q3 = stage(y2.astype(jnp.bfloat16), w3f, b3f)
    sc3, sh3 = _bn_scale_shift(s3, q3, m, p["g3"], p["be3"])
    z3 = y3 * sc3 + sh3                          # direct BN (no max/min trick)
    pooled = jnp.max(z3.reshape(b, n, -1), axis=1)

    def relu_bn(hh, w_f32, bias, g, be):
        y = jnp.dot(hh.astype(jnp.bfloat16), w_f32.astype(jnp.bfloat16),
                    preferred_element_type=jnp.float32) + bias
        y = jnp.maximum(y, 0.0)
        mean = jnp.mean(y, axis=0, keepdims=True)
        var = jnp.mean((y - mean) ** 2, axis=0, keepdims=True)
        return (y - mean) * jax.lax.rsqrt(var + EPS) * g + be

    hh = relu_bn(pooled, p["w4"], p["b4"], p["g4"], p["be4"])
    hh = relu_bn(hh, p["w5"], p["b5"], p["g5"], p["be5"])
    out = jnp.dot(hh.astype(jnp.bfloat16), p["w6"].astype(jnp.bfloat16),
                  preferred_element_type=jnp.float32) + p["b6"]
    return out.reshape(b, init_dim, init_dim) + jnp.eye(init_dim,
                                                        dtype=jnp.float32)


# --------------------------------------------------------------------------
def make_params(key, init_dim=3, max_dim=1024):
    dims = [(3, 64), (64, 128), (128, max_dim), (max_dim, 512), (512, 256),
            (256, init_dim * init_dim)]
    p = {}
    keys = jax.random.split(key, 4 * len(dims))
    ki = 0
    for li, (cin, cout) in enumerate(dims, start=1):
        scale = 1.0 / jnp.sqrt(jnp.float32(cin))
        p[f"w{li}"] = jax.random.normal(keys[ki], (cin, cout), jnp.float32) * scale
        ki += 1
        p[f"b{li}"] = jax.random.normal(keys[ki], (cout,), jnp.float32) * 0.01
        ki += 1
        if li <= 5:   # BN affine params (layers 1..5)
            p[f"g{li}"] = 1.0 + 0.1 * jax.random.normal(keys[ki], (cout,),
                                                        jnp.float32)
            ki += 1
            p[f"be{li}"] = 0.1 * jax.random.normal(keys[ki], (cout,),
                                                   jnp.float32)
            ki += 1
        else:
            ki += 2
    return p


if __name__ == "__main__":
    key = jax.random.PRNGKey(0)
    kx, kp = jax.random.split(key)

    # Small shapes; N deliberately NOT a multiple of the tile so the
    # cdiv-padding + masking path is exercised.
    B, INIT_DIM, NUM_POINT, MAX_DIM = 4, 3, 200, 1024
    x = jax.random.normal(kx, (B, INIT_DIM, NUM_POINT), jnp.float32)
    params = make_params(kp, init_dim=INIT_DIM, max_dim=MAX_DIM)
    prm = prepare_params(params)       # one-time: pad conv1, pre-cast FC bf16

    # Small tiles so the test exercises multi-tile grids, row/point padding,
    # the cout-parallel axis and resident-output accumulation.
    fwd = jax.jit(functools.partial(tnet_forward, init_dim=INIT_DIM,
                                    row_tile=256, point_tile=64,
                                    cout_tile=512))
    out = jax.block_until_ready(fwd(x, prm))
    ref = jax.block_until_ready(
        jax.jit(functools.partial(ref_forward, init_dim=INIT_DIM))(x, params))

    assert out.shape == (B, INIT_DIM, INIT_DIM), out.shape
    err = float(jnp.max(jnp.abs(out - ref)))
    assert err < 3e-2, f"max abs err {err}"
    print("KERNEL_OK")
</pallas_src>

<mosaic_0001>
module attributes {stable_mosaic.version = 11 : i64} {
  func.func @_bn1_stats_kernel(%arg0: i32, %arg1: memref<256x8xbf16, #tpu.memory_space<vmem>>, %arg2: memref<8x64xbf16, #tpu.memory_space<vmem>>, %arg3: memref<1x64xf32, #tpu.memory_space<vmem>>, %arg4: memref<1x1x64xf32, #tpu.memory_space<vmem>>, %arg5: memref<1x1x64xf32, #tpu.memory_space<vmem>>) attributes {dimension_semantics = [#tpu.dimension_semantics<parallel>], iteration_bounds = array<i64: 4>, scalar_prefetch = 0 : i64, scratch_operands = 0 : i64, tpu.core_type = #tpu.core_type<tc>, window_params = [{transform_indices = @transform_0, window_bounds = array<i64: 256, 8>}, {pipeline_mode = #tpu.pipeline_mode<synchronous>, transform_indices = @transform_1, window_bounds = array<i64: 8, 64>}, {pipeline_mode = #tpu.pipeline_mode<synchronous>, transform_indices = @transform_2, window_bounds = array<i64: 1, 64>}, {transform_indices = @transform_3, window_bounds = array<i64: 1, 1, 64>}, {transform_indices = @transform_4, window_bounds = array<i64: 1, 1, 64>}]} {
    %c0 = arith.constant 0 : index
    %c0_0 = arith.constant 0 : index
    %0 = vector.load %arg1[%c0, %c0_0] : memref<256x8xbf16, #tpu.memory_space<vmem>>, vector<256x8xbf16>
    %c0_1 = arith.constant 0 : index
    %c0_2 = arith.constant 0 : index
    %1 = vector.load %arg2[%c0_1, %c0_2] : memref<8x64xbf16, #tpu.memory_space<vmem>>, vector<8x64xbf16>
    %cst = arith.constant dense<0.000000e+00> : vector<256x64xf32>
    %2 = tpu.matmul %0, %1, %cst {dimension_numbers = #tpu.dot_dimension_numbers<[1], [0], [0], [1], [0, 0, 1, 1], [], []>} : vector<256x8xbf16>, vector<8x64xbf16>, vector<256x64xf32> -> vector<256x64xf32>
    %c0_3 = arith.constant 0 : index
    %c0_4 = arith.constant 0 : index
    %3 = vector.load %arg3[%c0_3, %c0_4] : memref<1x64xf32, #tpu.memory_space<vmem>>, vector<1x64xf32>
    %4 = vector.broadcast %3 : vector<1x64xf32> to vector<256x64xf32>
    %5 = arith.addf %2, %4 : vector<256x64xf32>
    %cst_5 = arith.constant 0.000000e+00 : f32
    %6 = vector.broadcast %cst_5 : f32 to vector<256x64xf32>
    %7 = arith.maximumf %5, %6 : vector<256x64xf32>
    %8 = tpu.iota {dimensions = array<i32: 1>} : vector<1x256xi32>
    %c256_i32 = arith.constant 256 : i32
    %9 = arith.muli %arg0, %c256_i32 : i32
    %10 = vector.broadcast %9 : i32 to vector<1x256xi32>
    %11 = arith.addi %8, %10 : vector<1x256xi32>
    %c800_i32 = arith.constant 800 : i32
    %12 = vector.broadcast %c800_i32 : i32 to vector<1x256xi32>
    %13 = arith.cmpi slt, %11, %12 : vector<1x256xi32>
    %14 = arith.extui %13 : vector<1x256xi1> to vector<1x256xi32>
    %15 = arith.sitofp %14 : vector<1x256xi32> to vector<1x256xf32>
    %cst_6 = arith.constant dense<0.000000e+00> : vector<1x64xf32>
    %16 = tpu.matmul %15, %7, %cst_6 {dimension_numbers = #tpu.dot_dimension_numbers<[1], [0], [0], [1], [0, 0, 1, 1], [], []>} : vector<1x256xf32>, vector<256x64xf32>, vector<1x64xf32> -> vector<1x64xf32>
    %c0_7 = arith.constant 0 : index
    %c0_8 = arith.constant 0 : index
    %c0_9 = arith.constant 0 : index
    %17 = vector.load %arg4[%c0_7, %c0_8, %c0_9] : memref<1x1x64xf32, #tpu.memory_space<vmem>>, vector<1x1x64xf32>
    %18 = vector.shape_cast %17 : vector<1x1x64xf32> to vector<1x64xf32>
    %19 = vector.shape_cast %16 : vector<1x64xf32> to vector<1x1x64xf32>
    tpu.vector_store %arg4[%c0_7, %c0_8, %c0_9], %19 {strides = array<i32>} : memref<1x1x64xf32, #tpu.memory_space<vmem>>, vector<1x1x64xf32>,
    %20 = arith.mulf %7, %7 : vector<256x64xf32>
    %cst_10 = arith.constant dense<0.000000e+00> : vector<1x64xf32>
    %21 = tpu.matmul %15, %20, %cst_10 {dimension_numbers = #tpu.dot_dimension_numbers<[1], [0], [0], [1], [0, 0, 1, 1], [], []>} : vector<1x256xf32>, vector<256x64xf32>, vector<1x64xf32> -> vector<1x64xf32>
    %c0_11 = arith.constant 0 : index
    %c0_12 = arith.constant 0 : index
    %c0_13 = arith.constant 0 : index
    %22 = vector.load %arg5[%c0_11, %c0_12, %c0_13] : memref<1x1x64xf32, #tpu.memory_space<vmem>>, vector<1x1x64xf32>
    %23 = vector.shape_cast %22 : vector<1x1x64xf32> to vector<1x64xf32>
    %24 = vector.shape_cast %21 : vector<1x64xf32> to vector<1x1x64xf32>
    tpu.vector_store %arg5[%c0_11, %c0_12, %c0_13], %24 {strides = array<i32>} : memref<1x1x64xf32, #tpu.memory_space<vmem>>, vector<1x1x64xf32>,
    return
  }
  func.func @transform_0(%arg0: i32) -> (i32, i32) {
    %c0_i32 = arith.constant 0 : i32
    %c0_i32_0 = arith.constant 0 : i32
    return %arg0, %c0_i32 : i32, i32
  }
  func.func @transform_1(%arg0: i32) -> (i32, i32) {
    %c0_i32 = arith.constant 0 : i32
    %c0_i32_0 = arith.constant 0 : i32
    %c0_i32_1 = arith.constant 0 : i32
    return %c0_i32, %c0_i32_0 : i32, i32
  }
  func.func @transform_2(%arg0: i32) -> (i32, i32) {
    %c0_i32 = arith.constant 0 : i32
    %c0_i32_0 = arith.constant 0 : i32
    %c0_i32_1 = arith.constant 0 : i32
    return %c0_i32, %c0_i32_0 : i32, i32
  }
  func.func @transform_3(%arg0: i32) -> (i32, i32, i32) {
    %c0_i32 = arith.constant 0 : i32
    %c0_i32_0 = arith.constant 0 : i32
    %c0_i32_1 = arith.constant 0 : i32
    return %arg0, %c0_i32, %c0_i32_0 : i32, i32, i32
  }
  func.func @transform_4(%arg0: i32) -> (i32, i32, i32) {
    %c0_i32 = arith.constant 0 : i32
    %c0_i32_0 = arith.constant 0 : i32
    %c0_i32_1 = arith.constant 0 : i32
    return %arg0, %c0_i32, %c0_i32_0 : i32, i32, i32
  }
}

module attributes {stable_mosaic.version = 11 : i64} {
  func.func @_bn2_stats_kernel(%arg0: i32, %arg1: memref<256x8xbf16, #tpu.memory_space<vmem>>, %arg2: memref<8x64xbf16, #tpu.memory_space<vmem>>, %arg3: memref<1x64xf32, #tpu.memory_space<vmem>>, %arg4: memref<64x128xbf16, #tpu.memory_space<vmem>>, %arg5: memref<1x128xf32, #tpu.memory_space<vmem>>, %arg6: memref<1x1x128xf32, #tpu.memory_space<vmem>>, %arg7: memref<1x1x128xf32, #tpu.memory_space<vmem>>) attributes {dimension_semantics = [#tpu.dimension_semantics<parallel>], iteration_bounds = array<i64: 4>, scalar_prefetch = 0 : i64, scratch_operands = 0 : i64, tpu.core_type = #tpu.core_type<tc>, window_params = [{transform_indices = @transform_0, window_bounds = array<i64: 256, 8>}, {pipeline_mode = #tpu.pipeline_mode<synchronous>, transform_indices = @transform_1, window_bounds = array<i64: 8, 64>}, {pipeline_mode = #tpu.pipeline_mode<synchronous>, transform_indices = @transform_2, window_bounds = array<i64: 1, 64>}, {pipeline_mode = #tpu.pipeline_mode<synchronous>, transform_indices = @transform_3, window_bounds = array<i64: 64, 128>}, {pipeline_mode = #tpu.pipeline_mode<synchronous>, transform_indices = @transform_4, window_bounds = array<i64: 1, 128>}, {transform_indices = @transform_5, window_bounds = array<i64: 1, 1, 128>}, {transform_indices = @transform_6, window_bounds = array<i64: 1, 1, 128>}]} {
    %c0 = arith.constant 0 : index
    %c0_0 = arith.constant 0 : index
    %0 = vector.load %arg1[%c0, %c0_0] : memref<256x8xbf16, #tpu.memory_space<vmem>>, vector<256x8xbf16>
    %c0_1 = arith.constant 0 : index
    %c0_2 = arith.constant 0 : index
    %1 = vector.load %arg2[%c0_1, %c0_2] : memref<8x64xbf16, #tpu.memory_space<vmem>>, vector<8x64xbf16>
    %cst = arith.constant dense<0.000000e+00> : vector<256x64xf32>
    %2 = tpu.matmul %0, %1, %cst {dimension_numbers = #tpu.dot_dimension_numbers<[1], [0], [0], [1], [0, 0, 1, 1], [], []>} : vector<256x8xbf16>, vector<8x64xbf16>, vector<256x64xf32> -> vector<256x64xf32>
    %c0_3 = arith.constant 0 : index
    %c0_4 = arith.constant 0 : index
    %3 = vector.load %arg3[%c0_3, %c0_4] : memref<1x64xf32, #tpu.memory_space<vmem>>, vector<1x64xf32>
    %4 = vector.broadcast %3 : vector<1x64xf32> to vector<256x64xf32>
    %5 = arith.addf %2, %4 : vector<256x64xf32>
    %cst_5 = arith.constant 0.000000e+00 : f32
    %6 = vector.broadcast %cst_5 : f32 to vector<256x64xf32>
    %7 = arith.maximumf %5, %6 : vector<256x64xf32>
    %8 = arith.truncf %7 : vector<256x64xf32> to vector<256x64xbf16>
    %c0_6 = arith.constant 0 : index
    %c0_7 = arith.constant 0 : index
    %9 = vector.load %arg4[%c0_6, %c0_7] : memref<64x128xbf16, #tpu.memory_space<vmem>>, vector<64x128xbf16>
    %cst_8 = arith.constant dense<0.000000e+00> : vector<256x128xf32>
    %10 = tpu.matmul %8, %9, %cst_8 {dimension_numbers = #tpu.dot_dimension_numbers<[1], [0], [0], [1], [0, 0, 1, 1], [], []>} : vector<256x64xbf16>, vector<64x128xbf16>, vector<256x128xf32> -> vector<256x128xf32>
    %c0_9 = arith.constant 0 : index
    %c0_10 = arith.constant 0 : index
    %11 = vector.load %arg5[%c0_9, %c0_10] : memref<1x128xf32, #tpu.memory_space<vmem>>, vector<1x128xf32>
    %12 = vector.broadcast %11 : vector<1x128xf32> to vector<256x128xf32>
    %13 = arith.addf %10, %12 : vector<256x128xf32>
    %cst_11 = arith.constant 0.000000e+00 : f32
    %14 = vector.broadcast %cst_11 : f32 to vector<256x128xf32>
    %15 = arith.maximumf %13, %14 : vector<256x128xf32>
    %16 = tpu.iota {dimensions = array<i32: 1>} : vector<1x256xi32>
    %c256_i32 = arith.constant 256 : i32
    %17 = arith.muli %arg0, %c256_i32 : i32
    %18 = vector.broadcast %17 : i32 to vector<1x256xi32>
    %19 = arith.addi %16, %18 : vector<1x256xi32>
    %c800_i32 = arith.constant 800 : i32
    %20 = vector.broadcast %c800_i32 : i32 to vector<1x256xi32>
    %21 = arith.cmpi slt, %19, %20 : vector<1x256xi32>
    %22 = arith.extui %21 : vector<1x256xi1> to vector<1x256xi32>
    %23 = arith.sitofp %22 : vector<1x256xi32> to vector<1x256xf32>
    %cst_12 = arith.constant dense<0.000000e+00> : vector<1x128xf32>
    %24 = tpu.matmul %23, %15, %cst_12 {dimension_numbers = #tpu.dot_dimension_numbers<[1], [0], [0], [1], [0, 0, 1, 1], [], []>} : vector<1x256xf32>, vector<256x128xf32>, vector<1x128xf32> -> vector<1x128xf32>
    %c0_13 = arith.constant 0 : index
    %c0_14 = arith.constant 0 : index
    %c0_15 = arith.constant 0 : index
    %25 = vector.load %arg6[%c0_13, %c0_14, %c0_15] : memref<1x1x128xf32, #tpu.memory_space<vmem>>, vector<1x1x128xf32>
    %26 = vector.shape_cast %25 : vector<1x1x128xf32> to vector<1x128xf32>
    %27 = vector.shape_cast %24 : vector<1x128xf32> to vector<1x1x128xf32>
    tpu.vector_store %arg6[%c0_13, %c0_14, %c0_15], %27 {strides = array<i32>} : memref<1x1x128xf32, #tpu.memory_space<vmem>>, vector<1x1x128xf32>,
    %28 = arith.mulf %15, %15 : vector<256x128xf32>
    %cst_16 = arith.constant dense<0.000000e+00> : vector<1x128xf32>
    %29 = tpu.matmul %23, %28, %cst_16 {dimension_numbers = #tpu.dot_dimension_numbers<[1], [0], [0], [1], [0, 0, 1, 1], [], []>} : vector<1x256xf32>, vector<256x128xf32>, vector<1x128xf32> -> vector<1x128xf32>
    %c0_17 = arith.constant 0 : index
    %c0_18 = arith.constant 0 : index
    %c0_19 = arith.constant 0 : index
    %30 = vector.load %arg7[%c0_17, %c0_18, %c0_19] : memref<1x1x128xf32, #tpu.memory_space<vmem>>, vector<1x1x128xf32>
    %31 = vector.shape_cast %30 : vector<1x1x128xf32> to vector<1x128xf32>
    %32 = vector.shape_cast %29 : vector<1x128xf32> to vector<1x1x128xf32>
    tpu.vector_store %arg7[%c0_17, %c0_18, %c0_19], %32 {strides = array<i32>} : memref<1x1x128xf32, #tpu.memory_space<vmem>>, vector<1x1x128xf32>,
    return
  }
  func.func @transform_0(%arg0: i32) -> (i32, i32) {
    %c0_i32 = arith.constant 0 : i32
    %c0_i32_0 = arith.constant 0 : i32
    return %arg0, %c0_i32 : i32, i32
  }
  func.func @transform_1(%arg0: i32) -> (i32, i32) {
    %c0_i32 = arith.constant 0 : i32
    %c0_i32_0 = arith.constant 0 : i32
    %c0_i32_1 = arith.constant 0 : i32
    return %c0_i32, %c0_i32_0 : i32, i32
  }
  func.func @transform_2(%arg0: i32) -> (i32, i32) {
    %c0_i32 = arith.constant 0 : i32
    %c0_i32_0 = arith.constant 0 : i32
    %c0_i32_1 = arith.constant 0 : i32
    return %c0_i32, %c0_i32_0 : i32, i32
  }
  func.func @transform_3(%arg0: i32) -> (i32, i32) {
    %c0_i32 = arith.constant 0 : i32
    %c0_i32_0 = arith.constant 0 : i32
    %c0_i32_1 = arith.constant 0 : i32
    return %c0_i32, %c0_i32_0 : i32, i32
  }
  func.func @transform_4(%arg0: i32) -> (i32, i32) {
    %c0_i32 = arith.constant 0 : i32
    %c0_i32_0 = arith.constant 0 : i32
    %c0_i32_1 = arith.constant 0 : i32
    return %c0_i32, %c0_i32_0 : i32, i32
  }
  func.func @transform_5(%arg0: i32) -> (i32, i32, i32) {
    %c0_i32 = arith.constant 0 : i32
    %c0_i32_0 = arith.constant 0 : i32
    %c0_i32_1 = arith.constant 0 : i32
    return %arg0, %c0_i32, %c0_i32_0 : i32, i32, i32
  }
  func.func @transform_6(%arg0: i32) -> (i32, i32, i32) {
    %c0_i32 = arith.constant 0 : i32
    %c0_i32_0 = arith.constant 0 : i32
    %c0_i32_1 = arith.constant 0 : i32
    return %arg0, %c0_i32, %c0_i32_0 : i32, i32, i32
  }
}

module attributes {stable_mosaic.version = 11 : i64} {
  func.func @_conv_pool_kernel(%arg0: i32, %arg1: i32, %arg2: i32, %arg3: memref<1x64x8xbf16, #tpu.memory_space<vmem>>, %arg4: memref<8x64xbf16, #tpu.memory_space<vmem>>, %arg5: memref<1x64xf32, #tpu.memory_space<vmem>>, %arg6: memref<64x128xbf16, #tpu.memory_space<vmem>>, %arg7: memref<1x128xf32, #tpu.memory_space<vmem>>, %arg8: memref<128x512xbf16, #tpu.memory_space<vmem>>, %arg9: memref<1x512xf32, #tpu.memory_space<vmem>>, %arg10: memref<1x1x512xf32, #tpu.memory_space<vmem>>, %arg11: memref<1x1x512xf32, #tpu.memory_space<vmem>>, %arg12: memref<1x1x512xf32, #tpu.memory_space<vmem>>, %arg13: memref<1x1x512xf32, #tpu.memory_space<vmem>>) attributes {dimension_semantics = [#tpu.dimension_semantics<parallel>, #tpu.dimension_semantics<parallel>, #tpu.dimension_semantics<arbitrary>], iteration_bounds = array<i64: 4, 2, 4>, scalar_prefetch = 0 : i64, scratch_operands = 0 : i64, tpu.core_type = #tpu.core_type<tc>, window_params = [{transform_indices = @transform_0, window_bounds = array<i64: 1, 64, 8>}, {pipeline_mode = #tpu.pipeline_mode<synchronous>, transform_indices = @transform_1, window_bounds = array<i64: 8, 64>}, {pipeline_mode = #tpu.pipeline_mode<synchronous>, transform_indices = @transform_2, window_bounds = array<i64: 1, 64>}, {pipeline_mode = #tpu.pipeline_mode<synchronous>, transform_indices = @transform_3, window_bounds = array<i64: 64, 128>}, {pipeline_mode = #tpu.pipeline_mode<synchronous>, transform_indices = @transform_4, window_bounds = array<i64: 1, 128>}, {transform_indices = @transform_5, window_bounds = array<i64: 128, 512>}, {transform_indices = @transform_6, window_bounds = array<i64: 1, 512>}, {transform_indices = @transform_7, window_bounds = array<i64: 1, 1, 512>}, {transform_indices = @transform_8, window_bounds = array<i64: 1, 1, 512>}, {transform_indices = @transform_9, window_bounds = array<i64: 1, 1, 512>}, {transform_indices = @transform_10, window_bounds = array<i64: 1, 1, 512>}]} {
    %c0 = arith.constant 0 : index
    %c0_0 = arith.constant 0 : index
    %c0_1 = arith.constant 0 : index
    %0 = vector.load %arg3[%c0, %c0_0, %c0_1] : memref<1x64x8xbf16, #tpu.memory_space<vmem>>, vector<1x64x8xbf16>
    %1 = vector.shape_cast %0 : vector<1x64x8xbf16> to vector<64x8xbf16>
    %c0_2 = arith.constant 0 : index
    %c0_3 = arith.constant 0 : index
    %2 = vector.load %arg4[%c0_2, %c0_3] : memref<8x64xbf16, #tpu.memory_space<vmem>>, vector<8x64xbf16>
    %cst = arith.constant dense<0.000000e+00> : vector<64x64xf32>
    %3 = tpu.matmul %1, %2, %cst {dimension_numbers = #tpu.dot_dimension_numbers<[1], [0], [0], [1], [0, 0, 1, 1], [], []>} : vector<64x8xbf16>, vector<8x64xbf16>, vector<64x64xf32> -> vector<64x64xf32>
    %c0_4 = arith.constant 0 : index
    %c0_5 = arith.constant 0 : index
    %4 = vector.load %arg5[%c0_4, %c0_5] : memref<1x64xf32, #tpu.memory_space<vmem>>, vector<1x64xf32>
    %5 = vector.broadcast %4 : vector<1x64xf32> to vector<64x64xf32>
    %6 = arith.addf %3, %5 : vector<64x64xf32>
    %cst_6 = arith.constant 0.000000e+00 : f32
    %7 = vector.broadcast %cst_6 : f32 to vector<64x64xf32>
    %8 = arith.maximumf %6, %7 : vector<64x64xf32>
    %9 = arith.truncf %8 : vector<64x64xf32> to vector<64x64xbf16>
    %c0_7 = arith.constant 0 : index
    %c0_8 = arith.constant 0 : index
    %10 = vector.load %arg6[%c0_7, %c0_8] : memref<64x128xbf16, #tpu.memory_space<vmem>>, vector<64x128xbf16>
    %cst_9 = arith.constant dense<0.000000e+00> : vector<64x128xf32>
    %11 = tpu.matmul %9, %10, %cst_9 {dimension_numbers = #tpu.dot_dimension_numbers<[1], [0], [0], [1], [0, 0, 1, 1], [], []>} : vector<64x64xbf16>, vector<64x128xbf16>, vector<64x128xf32> -> vector<64x128xf32>
    %c0_10 = arith.constant 0 : index
    %c0_11 = arith.constant 0 : index
    %12 = vector.load %arg7[%c0_10, %c0_11] : memref<1x128xf32, #tpu.memory_space<vmem>>, vector<1x128xf32>
    %13 = vector.broadcast %12 : vector<1x128xf32> to vector<64x128xf32>
    %14 = arith.addf %11, %13 : vector<64x128xf32>
    %cst_12 = arith.constant 0.000000e+00 : f32
    %15 = vector.broadcast %cst_12 : f32 to vector<64x128xf32>
    %16 = arith.maximumf %14, %15 : vector<64x128xf32>
    %17 = arith.truncf %16 : vector<64x128xf32> to vector<64x128xbf16>
    %c0_13 = arith.constant 0 : index
    %c0_14 = arith.constant 0 : index
    %18 = vector.load %arg8[%c0_13, %c0_14] : memref<128x512xbf16, #tpu.memory_space<vmem>>, vector<128x512xbf16>
    %cst_15 = arith.constant dense<0.000000e+00> : vector<64x512xf32>
    %19 = tpu.matmul %17, %18, %cst_15 {dimension_numbers = #tpu.dot_dimension_numbers<[1], [0], [0], [1], [0, 0, 1, 1], [], []>} : vector<64x128xbf16>, vector<128x512xbf16>, vector<64x512xf32> -> vector<64x512xf32>
    %c0_16 = arith.constant 0 : index
    %c0_17 = arith.constant 0 : index
    %20 = vector.load %arg9[%c0_16, %c0_17] : memref<1x512xf32, #tpu.memory_space<vmem>>, vector<1x512xf32>
    %21 = vector.broadcast %20 : vector<1x512xf32> to vector<64x512xf32>
    %22 = arith.addf %19, %21 : vector<64x512xf32>
    %cst_18 = arith.constant 0.000000e+00 : f32
    %23 = vector.broadcast %cst_18 : f32 to vector<64x512xf32>
    %24 = arith.maximumf %22, %23 : vector<64x512xf32>
    %c64_i32 = arith.constant 64 : i32
    %25 = arith.muli %arg2, %c64_i32 : i32
    %26 = tpu.iota {dimensions = array<i32: 1>} : vector<1x64xi32>
    %27 = vector.broadcast %25 : i32 to vector<1x64xi32>
    %28 = arith.addi %26, %27 : vector<1x64xi32>
    %c200_i32 = arith.constant 200 : i32
    %29 = vector.broadcast %c200_i32 : i32 to vector<1x64xi32>
    %30 = arith.cmpi slt, %28, %29 : vector<1x64xi32>
    %31 = arith.extui %30 : vector<1x64xi1> to vector<1x64xi32>
    %32 = arith.sitofp %31 : vector<1x64xi32> to vector<1x64xf32>
    %33 = tpu.iota {dimensions = array<i32: 0>} : vector<64x1xi32>
    %34 = vector.broadcast %25 : i32 to vector<64x1xi32>
    %35 = arith.addi %33, %34 : vector<64x1xi32>
    %c200_i32_19 = arith.constant 200 : i32
    %36 = vector.broadcast %c200_i32_19 : i32 to vector<64x1xi32>
    %37 = arith.cmpi slt, %35, %36 : vector<64x1xi32>
    %cst_20 = arith.constant dense<0.000000e+00> : vector<1x512xf32>
    %38 = tpu.matmul %32, %24, %cst_20 {dimension_numbers = #tpu.dot_dimension_numbers<[1], [0], [0], [1], [0, 0, 1, 1], [], []>} : vector<1x64xf32>, vector<64x512xf32>, vector<1x512xf32> -> vector<1x512xf32>
    %39 = arith.mulf %24, %24 : vector<64x512xf32>
    %cst_21 = arith.constant dense<0.000000e+00> : vector<1x512xf32>
    %40 = tpu.matmul %32, %39, %cst_21 {dimension_numbers = #tpu.dot_dimension_numbers<[1], [0], [0], [1], [0, 0, 1, 1], [], []>} : vector<1x64xf32>, vector<64x512xf32>, vector<1x512xf32> -> vector<1x512xf32>
    %cst_22 = arith.constant 0xFF800000 : f32
    %41 = vector.shape_cast %37 : vector<64x1xi1> to vector<64x1xi1>
    %42 = vector.broadcast %41 : vector<64x1xi1> to vector<64x512xi1>
    %43 = vector.broadcast %cst_22 : f32 to vector<64x512xf32>
    %44 = arith.select %42, %24, %43 : vector<64x512xi1>, vector<64x512xf32>
    %cst_23 = arith.constant dense<0xFF800000> : vector<512xf32>
    %45 = vector.multi_reduction <maximumf>, %44, %cst_23 [0] : vector<64x512xf32> to vector<512xf32>
    %46 = vector.shape_cast %45 : vector<512xf32> to vector<1x512xf32>
    %cst_24 = arith.constant 0x7F800000 : f32
    %47 = vector.shape_cast %37 : vector<64x1xi1> to vector<64x1xi1>
    %48 = vector.broadcast %47 : vector<64x1xi1> to vector<64x512xi1>
    %49 = vector.broadcast %cst_24 : f32 to vector<64x512xf32>
    %50 = arith.select %48, %24, %49 : vector<64x512xi1>, vector<64x512xf32>
    %cst_25 = arith.constant dense<0x7F800000> : vector<512xf32>
    %51 = vector.multi_reduction <minimumf>, %50, %cst_25 [0] : vector<64x512xf32> to vector<512xf32>
    %52 = vector.shape_cast %51 : vector<512xf32> to vector<1x512xf32>
    %c0_i32 = arith.constant 0 : i32
    %53 = arith.cmpi eq, %arg2, %c0_i32 : i32
    %54 = arith.extui %53 : i1 to i32
    %c0_i32_26 = arith.constant 0 : i32
    %55 = arith.cmpi ne, %54, %c0_i32_26 : i32
    scf.if %55 {
      %cst_51 = arith.constant 0xFF800000 : f32
      %80 = vector.broadcast %cst_51 : f32 to vector<1x512xf32>
      %c0_52 = arith.constant 0 : index
      %c0_53 = arith.constant 0 : index
      %c0_54 = arith.constant 0 : index
      %81 = vector.load %arg10[%c0_52, %c0_53, %c0_54] : memref<1x1x512xf32, #tpu.memory_space<vmem>>, vector<1x1x512xf32>
      %82 = vector.shape_cast %81 : vector<1x1x512xf32> to vector<1x512xf32>
      %83 = vector.shape_cast %80 : vector<1x512xf32> to vector<1x1x512xf32>
      tpu.vector_store %arg10[%c0_52, %c0_53, %c0_54], %83 {strides = array<i32>} : memref<1x1x512xf32, #tpu.memory_space<vmem>>, vector<1x1x512xf32>,
      %cst_55 = arith.constant 0x7F800000 : f32
      %84 = vector.broadcast %cst_55 : f32 to vector<1x512xf32>
      %c0_56 = arith.constant 0 : index
      %c0_57 = arith.constant 0 : index
      %c0_58 = arith.constant 0 : index
      %85 = vector.load %arg11[%c0_56, %c0_57, %c0_58] : memref<1x1x512xf32, #tpu.memory_space<vmem>>, vector<1x1x512xf32>
      %86 = vector.shape_cast %85 : vector<1x1x512xf32> to vector<1x512xf32>
      %87 = vector.shape_cast %84 : vector<1x512xf32> to vector<1x1x512xf32>
      tpu.vector_store %arg11[%c0_56, %c0_57, %c0_58], %87 {strides = array<i32>} : memref<1x1x512xf32, #tpu.memory_space<vmem>>, vector<1x1x512xf32>,
      %cst_59 = arith.constant 0.000000e+00 : f32
      %88 = vector.broadcast %cst_59 : f32 to vector<1x512xf32>
      %c0_60 = arith.constant 0 : index
      %c0_61 = arith.constant 0 : index
      %c0_62 = arith.constant 0 : index
      %89 = vector.load %arg12[%c0_60, %c0_61, %c0_62] : memref<1x1x512xf32, #tpu.memory_space<vmem>>, vector<1x1x512xf32>
      %90 = vector.shape_cast %89 : vector<1x1x512xf32> to vector<1x512xf32>
      %91 = vector.shape_cast %88 : vector<1x512xf32> to vector<1x1x512xf32>
      tpu.vector_store %arg12[%c0_60, %c0_61, %c0_62], %91 {strides = array<i32>} : memref<1x1x512xf32, #tpu.memory_space<vmem>>, vector<1x1x512xf32>,
      %cst_63 = arith.constant 0.000000e+00 : f32
      %92 = vector.broadcast %cst_63 : f32 to vector<1x512xf32>
      %c0_64 = arith.constant 0 : index
      %c0_65 = arith.constant 0 : index
      %c0_66 = arith.constant 0 : index
      %93 = vector.load %arg13[%c0_64, %c0_65, %c0_66] : memref<1x1x512xf32, #tpu.memory_space<vmem>>, vector<1x1x512xf32>
      %94 = vector.shape_cast %93 : vector<1x1x512xf32> to vector<1x512xf32>
      %95 = vector.shape_cast %92 : vector<1x512xf32> to vector<1x1x512xf32>
      tpu.vector_store %arg13[%c0_64, %c0_65, %c0_66], %95 {strides = array<i32>} : memref<1x1x512xf32, #tpu.memory_space<vmem>>, vector<1x1x512xf32>,
    } else {
    }
    %c0_27 = arith.constant 0 : index
    %c0_28 = arith.constant 0 : index
    %c0_29 = arith.constant 0 : index
    %56 = vector.load %arg10[%c0_27, %c0_28, %c0_29] : memref<1x1x512xf32, #tpu.memory_space<vmem>>, vector<1x1x512xf32>
    %57 = vector.shape_cast %56 : vector<1x1x512xf32> to vector<1x512xf32>
    %58 = arith.maximumf %57, %46 : vector<1x512xf32>
    %c0_30 = arith.constant 0 : index
    %c0_31 = arith.constant 0 : index
    %c0_32 = arith.constant 0 : index
    %59 = vector.load %arg10[%c0_30, %c0_31, %c0_32] : memref<1x1x512xf32, #tpu.memory_space<vmem>>, vector<1x1x512xf32>
    %60 = vector.shape_cast %59 : vector<1x1x512xf32> to vector<1x512xf32>
    %61 = vector.shape_cast %58 : vector<1x512xf32> to vector<1x1x512xf32>
    tpu.vector_store %arg10[%c0_30, %c0_31, %c0_32], %61 {strides = array<i32>} : memref<1x1x512xf32, #tpu.memory_space<vmem>>, vector<1x1x512xf32>,
    %c0_33 = arith.constant 0 : index
    %c0_34 = arith.constant 0 : index
    %c0_35 = arith.constant 0 : index
    %62 = vector.load %arg11[%c0_33, %c0_34, %c0_35] : memref<1x1x512xf32, #tpu.memory_space<vmem>>, vector<1x1x512xf32>
    %63 = vector.shape_cast %62 : vector<1x1x512xf32> to vector<1x512xf32>
    %64 = arith.minimumf %63, %52 : vector<1x512xf32>
    %c0_36 = arith.constant 0 : index
    %c0_37 = arith.constant 0 : index
    %c0_38 = arith.constant 0 : index
    %65 = vector.load %arg11[%c0_36, %c0_37, %c0_38] : memref<1x1x512xf32, #tpu.memory_space<vmem>>, vector<1x1x512xf32>
    %66 = vector.shape_cast %65 : vector<1x1x512xf32> to vector<1x512xf32>
    %67 = vector.shape_cast %64 : vector<1x512xf32> to vector<1x1x512xf32>
    tpu.vector_store %arg11[%c0_36, %c0_37, %c0_38], %67 {strides = array<i32>} : memref<1x1x512xf32, #tpu.memory_space<vmem>>, vector<1x1x512xf32>,
    %c0_39 = arith.constant 0 : index
    %c0_40 = arith.constant 0 : index
    %c0_41 = arith.constant 0 : index
    %68 = vector.load %arg12[%c0_39, %c0_40, %c0_41] : memref<1x1x512xf32, #tpu.memory_space<vmem>>, vector<1x1x512xf32>
    %69 = vector.shape_cast %68 : vector<1x1x512xf32> to vector<1x512xf32>
    %70 = arith.addf %69, %38 : vector<1x512xf32>
    %c0_42 = arith.constant 0 : index
    %c0_43 = arith.constant 0 : index
    %c0_44 = arith.constant 0 : index
    %71 = vector.load %arg12[%c0_42, %c0_43, %c0_44] : memref<1x1x512xf32, #tpu.memory_space<vmem>>, vector<1x1x512xf32>
    %72 = vector.shape_cast %71 : vector<1x1x512xf32> to vector<1x512xf32>
    %73 = vector.shape_cast %70 : vector<1x512xf32> to vector<1x1x512xf32>
    tpu.vector_store %arg12[%c0_42, %c0_43, %c0_44], %73 {strides = array<i32>} : memref<1x1x512xf32, #tpu.memory_space<vmem>>, vector<1x1x512xf32>,
    %c0_45 = arith.constant 0 : index
    %c0_46 = arith.constant 0 : index
    %c0_47 = arith.constant 0 : index
    %74 = vector.load %arg13[%c0_45, %c0_46, %c0_47] : memref<1x1x512xf32, #tpu.memory_space<vmem>>, vector<1x1x512xf32>
    %75 = vector.shape_cast %74 : vector<1x1x512xf32> to vector<1x512xf32>
    %76 = arith.addf %75, %40 : vector<1x512xf32>
    %c0_48 = arith.constant 0 : index
    %c0_49 = arith.constant 0 : index
    %c0_50 = arith.constant 0 : index
    %77 = vector.load %arg13[%c0_48, %c0_49, %c0_50] : memref<1x1x512xf32, #tpu.memory_space<vmem>>, vector<1x1x512xf32>
    %78 = vector.shape_cast %77 : vector<1x1x512xf32> to vector<1x512xf32>
    %79 = vector.shape_cast %76 : vector<1x512xf32> to vector<1x1x512xf32>
    tpu.vector_store %arg13[%c0_48, %c0_49, %c0_50], %79 {strides = array<i32>} : memref<1x1x512xf32, #tpu.memory_space<vmem>>, vector<1x1x512xf32>,
    return
  }
  func.func @transform_0(%arg0: i32, %arg1: i32, %arg2: i32) -> (i32, i32, i32) {
    %c0_i32 = arith.constant 0 : i32
    %c0_i32_0 = arith.constant 0 : i32
    return %arg0, %arg2, %c0_i32 : i32, i32, i32
  }
  func.func @transform_1(%arg0: i32, %arg1: i32, %arg2: i32) -> (i32, i32) {
    %c0_i32 = arith.constant 0 : i32
    %c0_i32_0 = arith.constant 0 : i32
    %c0_i32_1 = arith.constant 0 : i32
    return %c0_i32, %c0_i32_0 : i32, i32
  }
  func.func @transform_2(%arg0: i32, %arg1: i32, %arg2: i32) -> (i32, i32) {
    %c0_i32 = arith.constant 0 : i32
    %c0_i32_0 = arith.constant 0 : i32
    %c0_i32_1 = arith.constant 0 : i32
    return %c0_i32, %c0_i32_0 : i32, i32
  }
  func.func @transform_3(%arg0: i32, %arg1: i32, %arg2: i32) -> (i32, i32) {
    %c0_i32 = arith.constant 0 : i32
    %c0_i32_0 = arith.constant 0 : i32
    %c0_i32_1 = arith.constant 0 : i32
    return %c0_i32, %c0_i32_0 : i32, i32
  }
  func.func @transform_4(%arg0: i32, %arg1: i32, %arg2: i32) -> (i32, i32) {
    %c0_i32 = arith.constant 0 : i32
    %c0_i32_0 = arith.constant 0 : i32
    %c0_i32_1 = arith.constant 0 : i32
    return %c0_i32, %c0_i32_0 : i32, i32
  }
  func.func @transform_5(%arg0: i32, %arg1: i32, %arg2: i32) -> (i32, i32) {
    %c0_i32 = arith.constant 0 : i32
    %c0_i32_0 = arith.constant 0 : i32
    return %c0_i32, %arg1 : i32, i32
  }
  func.func @transform_6(%arg0: i32, %arg1: i32, %arg2: i32) -> (i32, i32) {
    %c0_i32 = arith.constant 0 : i32
    %c0_i32_0 = arith.constant 0 : i32
    return %c0_i32, %arg1 : i32, i32
  }
  func.func @transform_7(%arg0: i32, %arg1: i32, %arg2: i32) -> (i32, i32, i32) {
    %c0_i32 = arith.constant 0 : i32
    %c0_i32_0 = arith.constant 0 : i32
    return %arg0, %c0_i32, %arg1 : i32, i32, i32
  }
  func.func @transform_8(%arg0: i32, %arg1: i32, %arg2: i32) -> (i32, i32, i32) {
    %c0_i32 = arith.constant 0 : i32
    %c0_i32_0 = arith.constant 0 : i32
    return %arg0, %c0_i32, %arg1 : i32, i32, i32
  }
  func.func @transform_9(%arg0: i32, %arg1: i32, %arg2: i32) -> (i32, i32, i32) {
    %c0_i32 = arith.constant 0 : i32
    %c0_i32_0 = arith.constant 0 : i32
    return %arg0, %c0_i32, %arg1 : i32, i32, i32
  }
  func.func @transform_10(%arg0: i32, %arg1: i32, %arg2: i32) -> (i32, i32, i32) {
    %c0_i32 = arith.constant 0 : i32
    %c0_i32_0 = arith.constant 0 : i32
    return %arg0, %c0_i32, %arg1 : i32, i32, i32
  }
}

module attributes {stable_mosaic.version = 11 : i64} {
  func.func @_fc_head_kernel(%arg0: memref<4x1024xf32, #tpu.memory_space<vmem>>, %arg1: memref<1024x512xbf16, #tpu.memory_space<vmem>>, %arg2: memref<1x512xf32, #tpu.memory_space<vmem>>, %arg3: memref<1x512xf32, #tpu.memory_space<vmem>>, %arg4: memref<1x512xf32, #tpu.memory_space<vmem>>, %arg5: memref<512x256xbf16, #tpu.memory_space<vmem>>, %arg6: memref<1x256xf32, #tpu.memory_space<vmem>>, %arg7: memref<1x256xf32, #tpu.memory_space<vmem>>, %arg8: memref<1x256xf32, #tpu.memory_space<vmem>>, %arg9: memref<256x9xbf16, #tpu.memory_space<vmem>>, %arg10: memref<1x9xf32, #tpu.memory_space<vmem>>, %arg11: memref<4x9xf32, #tpu.memory_space<vmem>>) attributes {dimension_semantics = [], scalar_prefetch = 0 : i64, scratch_operands = 0 : i64, tpu.core_type = #tpu.core_type<tc>} {
    %c0 = arith.constant 0 : index
    %c0_0 = arith.constant 0 : index
    %0 = vector.load %arg0[%c0, %c0_0] : memref<4x1024xf32, #tpu.memory_space<vmem>>, vector<4x1024xf32>
    %1 = arith.truncf %0 : vector<4x1024xf32> to vector<4x1024xbf16>
    %c0_1 = arith.constant 0 : index
    %c0_2 = arith.constant 0 : index
    %2 = vector.load %arg1[%c0_1, %c0_2] : memref<1024x512xbf16, #tpu.memory_space<vmem>>, vector<1024x512xbf16>
    %cst = arith.constant dense<0.000000e+00> : vector<4x512xf32>
    %3 = tpu.matmul %1, %2, %cst {dimension_numbers = #tpu.dot_dimension_numbers<[1], [0], [0], [1], [0, 0, 1, 1], [], []>} : vector<4x1024xbf16>, vector<1024x512xbf16>, vector<4x512xf32> -> vector<4x512xf32>
    %c0_3 = arith.constant 0 : index
    %c0_4 = arith.constant 0 : index
    %4 = vector.load %arg2[%c0_3, %c0_4] : memref<1x512xf32, #tpu.memory_space<vmem>>, vector<1x512xf32>
    %5 = vector.broadcast %4 : vector<1x512xf32> to vector<4x512xf32>
    %6 = arith.addf %3, %5 : vector<4x512xf32>
    %cst_5 = arith.constant 0.000000e+00 : f32
    %7 = vector.broadcast %cst_5 : f32 to vector<4x512xf32>
    %8 = arith.maximumf %6, %7 : vector<4x512xf32>
    %cst_6 = arith.constant dense<0.000000e+00> : vector<512xf32>
    %9 = vector.multi_reduction <add>, %8, %cst_6 [0] : vector<4x512xf32> to vector<512xf32>
    %10 = vector.shape_cast %9 : vector<512xf32> to vector<1x512xf32>
    %cst_7 = arith.constant 4.000000e+00 : f32
    %11 = vector.broadcast %cst_7 : f32 to vector<1x512xf32>
    %12 = arith.divf %10, %11 : vector<1x512xf32>
    %13 = vector.broadcast %12 : vector<1x512xf32> to vector<4x512xf32>
    %14 = arith.subf %8, %13 : vector<4x512xf32>
    %15 = arith.mulf %14, %14 : vector<4x512xf32>
    %cst_8 = arith.constant dense<0.000000e+00> : vector<512xf32>
    %16 = vector.multi_reduction <add>, %15, %cst_8 [0] : vector<4x512xf32> to vector<512xf32>
    %17 = vector.shape_cast %16 : vector<512xf32> to vector<1x512xf32>
    %cst_9 = arith.constant 4.000000e+00 : f32
    %18 = vector.broadcast %cst_9 : f32 to vector<1x512xf32>
    %19 = arith.divf %17, %18 : vector<1x512xf32>
    %20 = vector.broadcast %12 : vector<1x512xf32> to vector<4x512xf32>
    %21 = arith.subf %8, %20 : vector<4x512xf32>
    %cst_10 = arith.constant 9.99999974E-6 : f32
    %22 = vector.broadcast %cst_10 : f32 to vector<1x512xf32>
    %23 = arith.addf %19, %22 : vector<1x512xf32>
    %24 = math.rsqrt %23 : vector<1x512xf32>
    %25 = vector.broadcast %24 : vector<1x512xf32> to vector<4x512xf32>
    %26 = arith.mulf %21, %25 : vector<4x512xf32>
    %c0_11 = arith.constant 0 : index
    %c0_12 = arith.constant 0 : index
    %27 = vector.load %arg3[%c0_11, %c0_12] : memref<1x512xf32, #tpu.memory_space<vmem>>, vector<1x512xf32>
    %28 = vector.broadcast %27 : vector<1x512xf32> to vector<4x512xf32>
    %29 = arith.mulf %26, %28 : vector<4x512xf32>
    %c0_13 = arith.constant 0 : index
    %c0_14 = arith.constant 0 : index
    %30 = vector.load %arg4[%c0_13, %c0_14] : memref<1x512xf32, #tpu.memory_space<vmem>>, vector<1x512xf32>
    %31 = vector.broadcast %30 : vector<1x512xf32> to vector<4x512xf32>
    %32 = arith.addf %29, %31 : vector<4x512xf32>
    %33 = arith.truncf %32 : vector<4x512xf32> to vector<4x512xbf16>
    %c0_15 = arith.constant 0 : index
    %c0_16 = arith.constant 0 : index
    %34 = vector.load %arg5[%c0_15, %c0_16] : memref<512x256xbf16, #tpu.memory_space<vmem>>, vector<512x256xbf16>
    %cst_17 = arith.constant dense<0.000000e+00> : vector<4x256xf32>
    %35 = tpu.matmul %33, %34, %cst_17 {dimension_numbers = #tpu.dot_dimension_numbers<[1], [0], [0], [1], [0, 0, 1, 1], [], []>} : vector<4x512xbf16>, vector<512x256xbf16>, vector<4x256xf32> -> vector<4x256xf32>
    %c0_18 = arith.constant 0 : index
    %c0_19 = arith.constant 0 : index
    %36 = vector.load %arg6[%c0_18, %c0_19] : memref<1x256xf32, #tpu.memory_space<vmem>>, vector<1x256xf32>
    %37 = vector.broadcast %36 : vector<1x256xf32> to vector<4x256xf32>
    %38 = arith.addf %35, %37 : vector<4x256xf32>
    %cst_20 = arith.constant 0.000000e+00 : f32
    %39 = vector.broadcast %cst_20 : f32 to vector<4x256xf32>
    %40 = arith.maximumf %38, %39 : vector<4x256xf32>
    %cst_21 = arith.constant dense<0.000000e+00> : vector<256xf32>
    %41 = vector.multi_reduction <add>, %40, %cst_21 [0] : vector<4x256xf32> to vector<256xf32>
    %42 = vector.shape_cast %41 : vector<256xf32> to vector<1x256xf32>
    %cst_22 = arith.constant 4.000000e+00 : f32
    %43 = vector.broadcast %cst_22 : f32 to vector<1x256xf32>
    %44 = arith.divf %42, %43 : vector<1x256xf32>
    %45 = vector.broadcast %44 : vector<1x256xf32> to vector<4x256xf32>
    %46 = arith.subf %40, %45 : vector<4x256xf32>
    %47 = arith.mulf %46, %46 : vector<4x256xf32>
    %cst_23 = arith.constant dense<0.000000e+00> : vector<256xf32>
    %48 = vector.multi_reduction <add>, %47, %cst_23 [0] : vector<4x256xf32> to vector<256xf32>
    %49 = vector.shape_cast %48 : vector<256xf32> to vector<1x256xf32>
    %cst_24 = arith.constant 4.000000e+00 : f32
    %50 = vector.broadcast %cst_24 : f32 to vector<1x256xf32>
    %51 = arith.divf %49, %50 : vector<1x256xf32>
    %52 = vector.broadcast %44 : vector<1x256xf32> to vector<4x256xf32>
    %53 = arith.subf %40, %52 : vector<4x256xf32>
    %cst_25 = arith.constant 9.99999974E-6 : f32
    %54 = vector.broadcast %cst_25 : f32 to vector<1x256xf32>
    %55 = arith.addf %51, %54 : vector<1x256xf32>
    %56 = math.rsqrt %55 : vector<1x256xf32>
    %57 = vector.broadcast %56 : vector<1x256xf32> to vector<4x256xf32>
    %58 = arith.mulf %53, %57 : vector<4x256xf32>
    %c0_26 = arith.constant 0 : index
    %c0_27 = arith.constant 0 : index
    %59 = vector.load %arg7[%c0_26, %c0_27] : memref<1x256xf32, #tpu.memory_space<vmem>>, vector<1x256xf32>
    %60 = vector.broadcast %59 : vector<1x256xf32> to vector<4x256xf32>
    %61 = arith.mulf %58, %60 : vector<4x256xf32>
    %c0_28 = arith.constant 0 : index
    %c0_29 = arith.constant 0 : index
    %62 = vector.load %arg8[%c0_28, %c0_29] : memref<1x256xf32, #tpu.memory_space<vmem>>, vector<1x256xf32>
    %63 = vector.broadcast %62 : vector<1x256xf32> to vector<4x256xf32>
    %64 = arith.addf %61, %63 : vector<4x256xf32>
    %65 = arith.truncf %64 : vector<4x256xf32> to vector<4x256xbf16>
    %c0_30 = arith.constant 0 : index
    %c0_31 = arith.constant 0 : index
    %66 = vector.load %arg9[%c0_30, %c0_31] : memref<256x9xbf16, #tpu.memory_space<vmem>>, vector<256x9xbf16>
    %cst_32 = arith.constant dense<0.000000e+00> : vector<4x9xf32>
    %67 = tpu.matmul %65, %66, %cst_32 {dimension_numbers = #tpu.dot_dimension_numbers<[1], [0], [0], [1], [0, 0, 1, 1], [], []>} : vector<4x256xbf16>, vector<256x9xbf16>, vector<4x9xf32> -> vector<4x9xf32>
    %c0_33 = arith.constant 0 : index
    %c0_34 = arith.constant 0 : index
    %68 = vector.load %arg10[%c0_33, %c0_34] : memref<1x9xf32, #tpu.memory_space<vmem>>, vector<1x9xf32>
    %69 = vector.broadcast %68 : vector<1x9xf32> to vector<4x9xf32>
    %70 = arith.addf %67, %69 : vector<4x9xf32>
    %c0_35 = arith.constant 0 : index
    %c0_36 = arith.constant 0 : index
    %71 = vector.load %arg11[%c0_35, %c0_36] : memref<4x9xf32, #tpu.memory_space<vmem>>, vector<4x9xf32>
    tpu.vector_store %arg11[%c0_35, %c0_36], %70 {strides = array<i32>} : memref<4x9xf32, #tpu.memory_space<vmem>>, vector<4x9xf32>,
    return
  }
}

</mosaic_0001>

<llo_original>
// kernel: tnet_forward.5
$region0: #{tnet_forward.5}
  #allocation0 [shape = 'u32[]', space=smem, size = 0x4, offset = 0x4, fixed_abs, tag = 'smem constant byte address 0x4 - core index']
  #allocation1 [shape = 'u32[144,128]{1,0:T(1,128)}', space=vmem, size = 0x12000, scoped, tag = 'internal scratch']
  %s0 = inlined_call_operand.vmem [shape: bf16[1024,8], index: 0, kind: input, shape index: {}]
  %s1 = inlined_call_operand.vmem [shape: bf16[8,64], index: 1, kind: input, shape index: {}]
  %s2 = inlined_call_operand.vmem [shape: f32[1,64], index: 2, kind: input, shape index: {}]
  %s3 = inlined_call_operand.vmem [shape: bf16[64,128], index: 3, kind: input, shape index: {}]
  %s4 = inlined_call_operand.vmem [shape: f32[1,128], index: 4, kind: input, shape index: {}]
  %s5 = inlined_call_operand.vmem [shape: f32[4,1,128], index: 5, kind: output, shape index: {0}]
  %s6 = inlined_call_operand.vmem [shape: f32[4,1,128], index: 6, kind: output, shape index: {1}]
  %7 = xla_tuple %s5, %s6
  %s8 = sld [smem:[#allocation0]]
  $region61: #{tnet_forward.5} parent=0
    _
  %s10 = ssub.s32 1, %s8
  %s11 = scalar_select 0, %s10, %s8
  loop: start=0, step=1, limit=6
  $region2: #{tnet_forward.5} parent=0 // loop_pre_header
    _
  $region3: #{tnet_forward.5} parent=0 // loop_header
    %s13 = sphi 0, %s17
    %p14 = scmp.ge.s32.totalorder %s13, 6
    %s23 = sphi 0, %s25
    %s26 = sphi 0, %s23
    %s27 = sphi 0, %s26
    %s43 = sphi 0, %s27
    %s47 = sphi 0, %s47
    %s49 = sphi 0, %s47
    %s50 = sphi 0, %s49
    %s64 = sphi 0, %s50
    %s68 = sphi 0, %s68
    %s70 = sphi 0, %s68
    %s71 = sphi 0, %s70
    %s85 = sphi 0, %s71
    %s89 = sphi 0, %s89
    %s91 = sphi 0, %s89
    %s92 = sphi 0, %s91
    %s106 = sphi 0, %s92
    %s110 = sphi 0, %s110
    %s112 = sphi 0, %s110
    %s113 = sphi 0, %s112
    %s127 = sphi 0, %s113
    %s133 = sphi 0, %s135
    %s136 = sphi 0, %s133
    %s137 = sphi 0, %s136
    %s153 = sphi 0, %s137
    %s159 = sphi 0, %s161
    %s162 = sphi 0, %s159
    %s163 = sphi 0, %s162
    %s179 = sphi 0, %s163
  $region4: #{tnet_forward.5} parent=0 // loop_header_branch
    %16 = sbr.rel (%p14) target = $region8
  $region5: #{tnet_forward.5} parent=0 // loop_body
    %s18 = ssub.s32 %s13, 1
    %s19 = ssub.s32 %s13, 2
    %s20 = sadd.s32 %s13, 1
    %s21 = ssub.s32 %s13, %s20
    %p22 = scmp.eq.s32.totalorder %s21, 0
    %s24 = sadd.s32 %s23, 1
    %s25 = scalar_select %p22, %s23, %s24
    %p28 = pneg %p22
    %p29 = scmp.eq.s32.totalorder %s13, 3
    %p30 = por %p28, %p29
    %p31 = scmp.ne.s32.totalorder %s23, %s26
    %p32 = scmp.eq.s32.totalorder %s13, 0
    %p33 = por %p31, %p32
    %p34 = scmp.ne.s32.totalorder %s23, %s26
    %p35 = scmp.eq.s32.totalorder %s18, 3
    %p36 = por %p34, %p35
    %p37 = scmp.ne.s32.totalorder %s26, %s27
    %p38 = scmp.eq.s32.totalorder %s18, 0
    %p39 = por %p37, %p38
    %p40 = scmp.ne.s32.totalorder %s26, %s27
    %p41 = scmp.eq.s32.totalorder %s19, 3
    %p42 = por %p40, %p41
    %p44 = scmp.ne.s32.totalorder %s27, %s43
    %p45 = scmp.eq.s32.totalorder %s19, 0
    %p46 = por %p44, %p45
    %s48 = sadd.s32 %s47, 1
    %p51 = scmp.eq.s32.totalorder %s13, 3
    %p52 = scmp.ne.s32.totalorder %s47, %s49
    %p53 = scmp.eq.s32.totalorder %s13, 0
    %p54 = por %p52, %p53
    %p55 = scmp.ne.s32.totalorder %s47, %s49
    %p56 = scmp.eq.s32.totalorder %s18, 3
    %p57 = por %p55, %p56
    %p58 = scmp.ne.s32.totalorder %s49, %s50
    %p59 = scmp.eq.s32.totalorder %s18, 0
    %p60 = por %p58, %p59
    %p61 = scmp.ne.s32.totalorder %s49, %s50
    %p62 = scmp.eq.s32.totalorder %s19, 3
    %p63 = por %p61, %p62
    %p65 = scmp.ne.s32.totalorder %s50, %s64
    %p66 = scmp.eq.s32.totalorder %s19, 0
    %p67 = por %p65, %p66
    %s69 = sadd.s32 %s68, 1
    %p72 = scmp.eq.s32.totalorder %s13, 3
    %p73 = scmp.ne.s32.totalorder %s68, %s70
    %p74 = scmp.eq.s32.totalorder %s13, 0
    %p75 = por %p73, %p74
    %p76 = scmp.ne.s32.totalorder %s68, %s70
    %p77 = scmp.eq.s32.totalorder %s18, 3
    %p78 = por %p76, %p77
    %p79 = scmp.ne.s32.totalorder %s70, %s71
    %p80 = scmp.eq.s32.totalorder %s18, 0
    %p81 = por %p79, %p80
    %p82 = scmp.ne.s32.totalorder %s70, %s71
    %p83 = scmp.eq.s32.totalorder %s19, 3
    %p84 = por %p82, %p83
    %p86 = scmp.ne.s32.totalorder %s71, %s85
    %p87 = scmp.eq.s32.totalorder %s19, 0
    %p88 = por %p86, %p87
    %s90 = sadd.s32 %s89, 1
    %p93 = scmp.eq.s32.totalorder %s13, 3
    %p94 = scmp.ne.s32.totalorder %s89, %s91
    %p95 = scmp.eq.s32.totalorder %s13, 0
    %p96 = por %p94, %p95
    %p97 = scmp.ne.s32.totalorder %s89, %s91
    %p98 = scmp.eq.s32.totalorder %s18, 3
    %p99 = por %p97, %p98
    %p100 = scmp.ne.s32.totalorder %s91, %s92
    %p101 = scmp.eq.s32.totalorder %s18, 0
    %p102 = por %p100, %p101
    %p103 = scmp.ne.s32.totalorder %s91, %s92
    %p104 = scmp.eq.s32.totalorder %s19, 3
    %p105 = por %p103, %p104
    %p107 = scmp.ne.s32.totalorder %s92, %s106
    %p108 = scmp.eq.s32.totalorder %s19, 0
    %p109 = por %p107, %p108
    %s111 = sadd.s32 %s110, 1
    %p114 = scmp.eq.s32.totalorder %s13, 3
    %p115 = scmp.ne.s32.totalorder %s110, %s112
    %p116 = scmp.eq.s32.totalorder %s13, 0
    %p117 = por %p115, %p116
    %p118 = scmp.ne.s32.totalorder %s110, %s112
    %p119 = scmp.eq.s32.totalorder %s18, 3
    %p120 = por %p118, %p119
    %p121 = scmp.ne.s32.totalorder %s112, %s113
    %p122 = scmp.eq.s32.totalorder %s18, 0
    %p123 = por %p121, %p122
    %p124 = scmp.ne.s32.totalorder %s112, %s113
    %p125 = scmp.eq.s32.totalorder %s19, 3
    %p126 = por %p124, %p125
    %p128 = scmp.ne.s32.totalorder %s113, %s127
    %p129 = scmp.eq.s32.totalorder %s19, 0
    %p130 = por %p128, %p129
    %s131 = ssub.s32 %s13, %s20
    %p132 = scmp.eq.s32.totalorder %s131, 0
    %s134 = sadd.s32 %s133, 1
    %s135 = scalar_select %p132, %s133, %s134
    %p138 = pneg %p132
    %p139 = scmp.eq.s32.totalorder %s13, 3
    %p140 = por %p138, %p139
    %p141 = scmp.ne.s32.totalorder %s133, %s136
    %p142 = scmp.eq.s32.totalorder %s13, 0
    %p143 = por %p141, %p142
    %p144 = scmp.ne.s32.totalorder %s133, %s136
    %p145 = scmp.eq.s32.totalorder %s18, 3
    %p146 = por %p144, %p145
    %p147 = scmp.ne.s32.totalorder %s136, %s137
    %p148 = scmp.eq.s32.totalorder %s18, 0
    %p149 = por %p147, %p148
    %p150 = scmp.ne.s32.totalorder %s136, %s137
    %p151 = scmp.eq.s32.totalorder %s19, 3
    %p152 = por %p150, %p151
    %p154 = scmp.ne.s32.totalorder %s137, %s153
    %p155 = scmp.eq.s32.totalorder %s19, 0
    %p156 = por %p154, %p155
    %s157 = ssub.s32 %s13, %s20
    %p158 = scmp.eq.s32.totalorder %s157, 0
    %s160 = sadd.s32 %s159, 1
    %s161 = scalar_select %p158, %s159, %s160
    %p164 = pneg %p158
    %p165 = scmp.eq.s32.totalorder %s13, 3
    %p166 = por %p164, %p165
    %p167 = scmp.ne.s32.totalorder %s159, %s162
    %p168 = scmp.eq.s32.totalorder %s13, 0
    %p169 = por %p167, %p168
    %p170 = scmp.ne.s32.totalorder %s159, %s162
    %p171 = scmp.eq.s32.totalorder %s18, 3
    %p172 = por %p170, %p171
    %p173 = scmp.ne.s32.totalorder %s162, %s163
    %p174 = scmp.eq.s32.totalorder %s18, 0
    %p175 = por %p173, %p174
    %p176 = scmp.ne.s32.totalorder %s162, %s163
    %p177 = scmp.eq.s32.totalorder %s19, 3
    %p178 = por %p176, %p177
    %p180 = scmp.ne.s32.totalorder %s163, %s179
    %p181 = scmp.eq.s32.totalorder %s19, 0
    %p182 = por %p180, %p181
    %p183 = scmp.le.s32.totalorder 1, %s13
    %p184 = scmp.lt.s32.totalorder %s13, 5
    %p185 = pnand %p183, %p184
    %p186 = pneg %p185
    // Predicated region
    $region9: #{tnet_forward.5} parent=5 // pred_check
      _
    $region10: #{tnet_forward.5} parent=5 // pred_check_branch
      %188 = sbr.rel (%p185) target = $region12
    $region11: #{tnet_forward.5} parent=5 // pred_region
      %s189 = ssub.s32 %s13, 1
      // Predicated region
      $region13: #{tnet_forward.5} parent=11 // pred_check
        %p190 = pneg %p60
      $region14: #{tnet_forward.5} parent=11 // pred_check_branch
        %192 = sbr.rel (%p190) target = $region16
      $region15: #{tnet_forward.5} parent=11 // pred_region
        _
      $region16: #{tnet_forward.5} parent=11 // pred_fallthru
        _
      // Predicated region
      $region17: #{tnet_forward.5} parent=11 // pred_check
        %p193 = pneg %p81
      $region18: #{tnet_forward.5} parent=11 // pred_check_branch
        %195 = sbr.rel (%p193) target = $region20
      $region19: #{tnet_forward.5} parent=11 // pred_region
        _
      $region20: #{tnet_forward.5} parent=11 // pred_fallthru
        _
      // Predicated region
      $region21: #{tnet_forward.5} parent=11 // pred_check
        %p196 = pneg %p102
      $region22: #{tnet_forward.5} parent=11 // pred_check_branch
        %198 = sbr.rel (%p196) target = $region24
      $region23: #{tnet_forward.5} parent=11 // pred_region
        _
      $region24: #{tnet_forward.5} parent=11 // pred_fallthru
        _
      // Predicated region
      $region25: #{tnet_forward.5} parent=11 // pred_check
        %p199 = pneg %p123
      $region26: #{tnet_forward.5} parent=11 // pred_check_branch
        %201 = sbr.rel (%p199) target = $region28
      $region27: #{tnet_forward.5} parent=11 // pred_region
        _
      $region28: #{tnet_forward.5} parent=11 // pred_fallthru
        _
    $region12: #{tnet_forward.5} parent=5 // pred_fallthru
      _
    %p202 = scmp.lt.s32.totalorder %s13, 4
    // Predicated region
    $region29: #{tnet_forward.5} parent=5 // pred_check
      %p203 = pneg %p202
    $region30: #{tnet_forward.5} parent=5 // pred_check_branch
      %205 = sbr.rel (%p203) target = $region32
    $region31: #{tnet_forward.5} parent=5 // pred_region
      // Predicated region
      $region33: #{tnet_forward.5} parent=31 // pred_check
        %p206 = pneg %p33
      $region34: #{tnet_forward.5} parent=31 // pred_check_branch
        %208 = sbr.rel (%p206) target = $region36
      $region35: #{tnet_forward.5} parent=31 // pred_region
        %s209 = smul.u32 32, %s13
        %p210 = scmp.lt.s32.totalorder %s209, 127
        %s211 = scalar_select %p210, %s209, 127
        %s212 = smul.addr %s211, 4
        %s213 = scalar_lea.vmem %s0, %s212
        %s214 = smul.u32 32, %s13
      $region36: #{tnet_forward.5} parent=31 // pred_fallthru
        _
    $region32: #{tnet_forward.5} parent=5 // pred_fallthru
      _
    %p215 = scmp.le.s32.totalorder 1, %s13
    %p216 = scmp.lt.s32.totalorder %s13, 5
    %p217 = pnand %p215, %p216
    %p218 = pneg %p217
    // Predicated region
    $region37: #{tnet_forward.5} parent=5 // pred_check
      _
    $region38: #{tnet_forward.5} parent=5 // pred_check_branch
      %220 = sbr.rel (%p217) target = $region40
    $region39: #{tnet_forward.5} parent=5 // pred_region
      %s221 = ssub.s32 %s13, 1
      %s222 = smul.u32 32, %s18
      %p223 = scmp.lt.s32.totalorder %s222, 127
      %s224 = scalar_select %p223, %s222, 127
      %s225 = smul.addr %s224, 4
      %s226 = scalar_lea.vmem %s0, %s225
      %p227 = pneg %p39
      %p228 = pneg %p36
      %p229 = pneg %p60
      %p230 = pneg %p57
      %p231 = pneg %p81
      %p232 = pneg %p78
      %p233 = pneg %p102
      %p234 = pneg %p99
      %p235 = pneg %p123
      %p236 = pneg %p120
      %p237 = pneg %p149
      %p238 = pneg %p146
      %p239 = scmp.lt.s32.totalorder %s18, 3
      %s240 = scalar_select %p239, %s18, 3
      %s241 = scalar_lea.vmem %s5, %s240
      %p242 = pneg %p175
      %p243 = pneg %p172
      %p244 = scmp.lt.s32.totalorder %s18, 3
      %s245 = scalar_select %p244, %s18, 3
      %s246 = scalar_lea.vmem %s6, %s245
      %s247 = smul.u32 32, %s18
      %p248 = scmp.lt.s32.totalorder %s247, 127
      %s249 = scalar_select %p248, %s247, 127
      %s250 = smul.addr %s249, 4
      %s251 = scalar_lea.vmem %s0, %s250
      %s252 = smul.u32 32, %s18
      %p253 = scmp.lt.s32.totalorder %s18, 3
      %s254 = scalar_select %p253, %s18, 3
      %s255 = scalar_lea.vmem %s5, %s254
      %p256 = scmp.lt.s32.totalorder %s18, 3
      %s257 = scalar_select %p256, %s18, 3
      %s258 = scalar_lea.vmem %s6, %s257
      %v260 = vld [vmem:[%s251] sm:$0xf]
      %v261 = vld [vmem:[%s251 + $0x4] sm:$0xf]
      %v262 = vld [vmem:[%s251 + $0x8] sm:$0xf]
      %v263 = vld [vmem:[%s251 + $0xc] sm:$0xf]
      %v264 = vld [vmem:[%s251 + $0x10] sm:$0xf]
      %v265 = vld [vmem:[%s251 + $0x14] sm:$0xf]
      %v266 = vld [vmem:[%s251 + $0x18] sm:$0xf]
      %v267 = vld [vmem:[%s251 + $0x1c] sm:$0xf]
      %v268 = vld [vmem:[%s251 + $0x20] sm:$0xf]
      %v269 = vld [vmem:[%s251 + $0x24] sm:$0xf]
      %v270 = vld [vmem:[%s251 + $0x28] sm:$0xf]
      %v271 = vld [vmem:[%s251 + $0x2c] sm:$0xf]
      %v272 = vld [vmem:[%s251 + $0x30] sm:$0xf]
      %v273 = vld [vmem:[%s251 + $0x34] sm:$0xf]
      %v274 = vld [vmem:[%s251 + $0x38] sm:$0xf]
      %v275 = vld [vmem:[%s251 + $0x3c] sm:$0xf]
      %v276 = vld [vmem:[%s251 + $0x40] sm:$0xf]
      %v277 = vld [vmem:[%s251 + $0x44] sm:$0xf]
      %v278 = vld [vmem:[%s251 + $0x48] sm:$0xf]
      %v279 = vld [vmem:[%s251 + $0x4c] sm:$0xf]
      %v280 = vld [vmem:[%s251 + $0x50] sm:$0xf]
      %v281 = vld [vmem:[%s251 + $0x54] sm:$0xf]
      %v282 = vld [vmem:[%s251 + $0x58] sm:$0xf]
      %v283 = vld [vmem:[%s251 + $0x5c] sm:$0xf]
      %v284 = vld [vmem:[%s251 + $0x60] sm:$0xf]
      %v285 = vld [vmem:[%s251 + $0x64] sm:$0xf]
      %v286 = vld [vmem:[%s251 + $0x68] sm:$0xf]
      %v287 = vld [vmem:[%s251 + $0x6c] sm:$0xf]
      %v288 = vld [vmem:[%s251 + $0x70] sm:$0xf]
      %v289 = vld [vmem:[%s251 + $0x74] sm:$0xf]
      %v290 = vld [vmem:[%s251 + $0x78] sm:$0xf]
      %v291 = vld [vmem:[%s251 + $0x7c] sm:$0xf]
      %v292 = vld [vmem:[%s1] sm:$0xf]
      %v293 = vld [vmem:[%s2] sm:$0x1]
      %v295 = vlaneseq
      %v296 = vshrl.u32 %v295, 7
      %v297 = vsub.s32 0, %v296
      %v298 = vrot.slane %v293, %v297
      %v332 = vunpack.c.l.b16 %v260
      %v333 = vunpack.c.l.b16 %v261
      %v334 = vunpack.c.l.b16 %v262
      %v335 = vunpack.c.l.b16 %v263
      %v336 = vunpack.c.l.b16 %v264
      %v337 = vunpack.c.l.b16 %v265
      %v338 = vunpack.c.l.b16 %v266
      %v339 = vunpack.c.l.b16 %v267
      %v340 = vunpack.c.l.b16 %v268
      %v341 = vunpack.c.l.b16 %v269
      %v342 = vunpack.c.l.b16 %v270
      %v343 = vunpack.c.l.b16 %v271
      %v344 = vunpack.c.l.b16 %v272
      %v345 = vunpack.c.l.b16 %v273
      %v346 = vunpack.c.l.b16 %v274
      %v347 = vunpack.c.l.b16 %v275
      %v348 = vunpack.c.l.b16 %v276
      %v349 = vunpack.c.l.b16 %v277
      %v350 = vunpack.c.l.b16 %v278
      %v351 = vunpack.c.l.b16 %v279
      %v352 = vunpack.c.l.b16 %v280
      %v353 = vunpack.c.l.b16 %v281
      %v354 = vunpack.c.l.b16 %v282
      %v355 = vunpack.c.l.b16 %v283
      %v356 = vunpack.c.l.b16 %v284
      %v357 = vunpack.c.l.b16 %v285
      %v358 = vunpack.c.l.b16 %v286
      %v359 = vunpack.c.l.b16 %v287
      %v360 = vunpack.c.l.b16 %v288
      %v361 = vunpack.c.l.b16 %v289
      %v362 = vunpack.c.l.b16 %v290
      %v363 = vunpack.c.l.b16 %v291
      %v364 = vpack.c.b16 %v333, %v332
      %v365 = vpack.c.b16 %v335, %v334
      %v366 = vpack.c.b16 %v337, %v336
      %v367 = vpack.c.b16 %v339, %v338
      %v368 = vpack.c.b16 %v341, %v340
      %v369 = vpack.c.b16 %v343, %v342
      %v370 = vpack.c.b16 %v345, %v344
      %v371 = vpack.c.b16 %v347, %v346
      %v372 = vpack.c.b16 %v349, %v348
      %v373 = vpack.c.b16 %v351, %v350
      %v374 = vpack.c.b16 %v353, %v352
      %v375 = vpack.c.b16 %v355, %v354
      %v376 = vpack.c.b16 %v357, %v356
      %v377 = vpack.c.b16 %v359, %v358
      %v378 = vpack.c.b16 %v361, %v360
      %v379 = vpack.c.b16 %v363, %v362
      %vm380 = vcmask 64512
      %v382 = vsel %vm380, %v364, 0
      %v385 = vsel %vm380, %v365, 0
      %v388 = vsel %vm380, %v366, 0
      %v391 = vsel %vm380, %v367, 0
      %v394 = vsel %vm380, %v368, 0
      %v397 = vsel %vm380, %v369, 0
      %v400 = vsel %vm380, %v370, 0
      %v403 = vsel %vm380, %v371, 0
      %v406 = vsel %vm380, %v372, 0
      %v409 = vsel %vm380, %v373, 0
      %v412 = vsel %vm380, %v374, 0
      %v415 = vsel %vm380, %v375, 0
      %v418 = vsel %vm380, %v376, 0
      %v421 = vsel %vm380, %v377, 0
      %v424 = vsel %vm380, %v378, 0
      %v427 = vsel %vm380, %v379, 0
      %vm429 = vcmask 1043456
      %v431 = vsel %vm429, %v292, 0
      %433 = vmatprep.subr.bf16.mxu0 0
      %434 = vmatpush1.bf16.msra.mxu0 %v431
      %435 = vmatprep.subr.bf16.mxu0 0
      %436 = vmatpush1.bf16.msra.mxu0 0
      %437 = vmatprep.subr.bf16.mxu0 0
      %438 = vmatpush1.bf16.msra.mxu0 0
      %439 = vmatprep.subr.bf16.mxu0 0
      %440 = vmatpush1.bf16.msra.mxu0 0
      %441 = vmatprep.subr.bf16.mxu0 0
      %442 = vmatpush1.bf16.msra.mxu0 0
      %443 = vmatprep.subr.bf16.mxu0 0
      %444 = vmatpush1.bf16.msra.mxu0 0
      %445 = vmatprep.subr.bf16.mxu0 0
      %446 = vmatpush1.bf16.msra.mxu0 0
      %447 = vmatprep.subr.bf16.mxu0 0
      %448 = vmatpush1.bf16.msra.mxu0 0
      %449 = vmatprep.subr.bf16.mxu0 0
      %450 = vmatpush1.bf16.msra.mxu0 0
      %451 = vmatprep.subr.bf16.mxu0 0
      %452 = vmatpush1.bf16.msra.mxu0 0
      %453 = vmatprep.subr.bf16.mxu0 0
      %454 = vmatpush1.bf16.msra.mxu0 0
      %455 = vmatprep.subr.bf16.mxu0 0
      %456 = vmatpush1.bf16.msra.mxu0 0
      %457 = vmatprep.subr.bf16.mxu0 0
      %458 = vmatpush1.bf16.msra.mxu0 0
      %459 = vmatprep.subr.bf16.mxu0 0
      %460 = vmatpush1.bf16.msra.mxu0 0
      %461 = vmatprep.subr.bf16.mxu0 0
      %462 = vmatpush1.bf16.msra.mxu0 0
      %463 = vmatprep.subr.bf16.mxu0 0
      %464 = vmatpush1.bf16.msra.mxu0 0
      %465 = vmatprep.mubr.bf16.mxu0 0
      %466 = vmatmul.mubr.bf16.gmra.mrb[0].mxu0 %v382
      %v467 = vpop.f32.mrb[0].mxu0
      %v468 = vadd.f32 %v298, %v467
      %v469 = vpop.f32.mrb[0].mxu0
      %v470 = vpop.f32.mrb[0].mxu0
      %v471 = vadd.f32 %v298, %v470
      %v472 = vpop.f32.mrb[0].mxu0
      %473 = vmatprep.mubr.bf16.mxu0 0
      %474 = vmatmul.mubr.bf16.gmra.mrb[0].mxu0 %v385
      %v475 = vpop.f32.mrb[0].mxu0
      %v476 = vadd.f32 %v298, %v475
      %v477 = vpop.f32.mrb[0].mxu0
      %v478 = vpop.f32.mrb[0].mxu0
      %v479 = vadd.f32 %v298, %v478
      %v480 = vpop.f32.mrb[0].mxu0
      %481 = vmatprep.mubr.bf16.mxu0 0
      %482 = vmatmul.mubr.bf16.gmra.mrb[0].mxu0 %v388
      %v483 = vpop.f32.mrb[0].mxu0
      %v484 = vadd.f32 %v298, %v483
      %v485 = vpop.f32.mrb[0].mxu0
      %v486 = vpop.f32.mrb[0].mxu0
      %v487 = vadd.f32 %v298, %v486
      %v488 = vpop.f32.mrb[0].mxu0
      %489 = vmatprep.mubr.bf16.mxu0 0
      %490 = vmatmul.mubr.bf16.gmra.mrb[0].mxu0 %v391
      %v491 = vpop.f32.mrb[0].mxu0
      %v492 = vadd.f32 %v298, %v491
      %v493 = vpop.f32.mrb[0].mxu0
      %v494 = vpop.f32.mrb[0].mxu0
      %v495 = vadd.f32 %v298, %v494
      %v496 = vpop.f32.mrb[0].mxu0
      %497 = vmatprep.mubr.bf16.mxu0 0
      %498 = vmatmul.mubr.bf16.gmra.mrb[0].mxu0 %v394
      %v499 = vpop.f32.mrb[0].mxu0
      %v500 = vadd.f32 %v298, %v499
      %v501 = vpop.f32.mrb[0].mxu0
      %v502 = vpop.f32.mrb[0].mxu0
      %v503 = vadd.f32 %v298, %v502
      %v504 = vpop.f32.mrb[0].mxu0
      %505 = vmatprep.mubr.bf16.mxu0 0
      %506 = vmatmul.mubr.bf16.gmra.mrb[0].mxu0 %v397
      %v507 = vpop.f32.mrb[0].mxu0
      %v508 = vadd.f32 %v298, %v507
      %v509 = vpop.f32.mrb[0].mxu0
      %v510 = vpop.f32.mrb[0].mxu0
      %v511 = vadd.f32 %v298, %v510
      %v512 = vpop.f32.mrb[0].mxu0
      %513 = vmatprep.mubr.bf16.mxu0 0
      %514 = vmatmul.mubr.bf16.gmra.mrb[0].mxu0 %v400
      %v515 = vpop.f32.mrb[0].mxu0
      %v516 = vadd.f32 %v298, %v515
      %v517 = vpop.f32.mrb[0].mxu0
      %v518 = vpop.f32.mrb[0].mxu0
      %v519 = vadd.f32 %v298, %v518
      %v520 = vpop.f32.mrb[0].mxu0
      %521 = vmatprep.mubr.bf16.mxu0 0
      %522 = vmatmul.mubr.bf16.gmra.mrb[0].mxu0 %v403
      %v523 = vpop.f32.mrb[0].mxu0
      %v524 = vadd.f32 %v298, %v523
      %v525 = vpop.f32.mrb[0].mxu0
      %v526 = vpop.f32.mrb[0].mxu0
      %v527 = vadd.f32 %v298, %v526
      %v528 = vpop.f32.mrb[0].mxu0
      %529 = vmatprep.mubr.bf16.mxu0 0
      %530 = vmatmul.mubr.bf16.gmra.mrb[0].mxu0 %v406
      %v531 = vpop.f32.mrb[0].mxu0
      %v532 = vadd.f32 %v298, %v531
      %v533 = vpop.f32.mrb[0].mxu0
      %v534 = vpop.f32.mrb[0].mxu0
      %v535 = vadd.f32 %v298, %v534
      %v536 = vpop.f32.mrb[0].mxu0
      %537 = vmatprep.mubr.bf16.mxu0 0
      %538 = vmatmul.mubr.bf16.gmra.mrb[0].mxu0 %v409
      %v539 = vpop.f32.mrb[0].mxu0
      %v540 = vadd.f32 %v298, %v539
      %v541 = vpop.f32.mrb[0].mxu0
      %v542 = vpop.f32.mrb[0].mxu0
      %v543 = vadd.f32 %v298, %v542
      %v544 = vpop.f32.mrb[0].mxu0
      %545 = vmatprep.mubr.bf16.mxu0 0
      %546 = vmatmul.mubr.bf16.gmra.mrb[0].mxu0 %v412
      %v547 = vpop.f32.mrb[0].mxu0
      %v548 = vadd.f32 %v298, %v547
      %v549 = vpop.f32.mrb[0].mxu0
      %v550 = vpop.f32.mrb[0].mxu0
      %v551 = vadd.f32 %v298, %v550
      %v552 = vpop.f32.mrb[0].mxu0
      %553 = vmatprep.mubr.bf16.mxu0 0
      %554 = vmatmul.mubr.bf16.gmra.mrb[0].mxu0 %v415
      %v555 = vpop.f32.mrb[0].mxu0
      %v556 = vadd.f32 %v298, %v555
      %v557 = vpop.f32.mrb[0].mxu0
      %v558 = vpop.f32.mrb[0].mxu0
      %v559 = vadd.f32 %v298, %v558
      %v560 = vpop.f32.mrb[0].mxu0
      %561 = vmatprep.mubr.bf16.mxu0 0
      %562 = vmatmul.mubr.bf16.gmra.mrb[0].mxu0 %v418
      %v563 = vpop.f32.mrb[0].mxu0
      %v564 = vadd.f32 %v298, %v563
      %v565 = vpop.f32.mrb[0].mxu0
      %v566 = vpop.f32.mrb[0].mxu0
      %v567 = vadd.f32 %v298, %v566
      %v568 = vpop.f32.mrb[0].mxu0
      %569 = vmatprep.mubr.bf16.mxu0 0
      %570 = vmatmul.mubr.bf16.gmra.mrb[0].mxu0 %v421
      %v571 = vpop.f32.mrb[0].mxu0
      %v572 = vadd.f32 %v298, %v571
      %v573 = vpop.f32.mrb[0].mxu0
      %v574 = vpop.f32.mrb[0].mxu0
      %v575 = vadd.f32 %v298, %v574
      %v576 = vpop.f32.mrb[0].mxu0
      %577 = vmatprep.mubr.bf16.mxu0 0
      %578 = vmatmul.mubr.bf16.gmra.mrb[0].mxu0 %v424
      %v579 = vpop.f32.mrb[0].mxu0
      %v580 = vadd.f32 %v298, %v579
      %v581 = vpop.f32.mrb[0].mxu0
      %v582 = vpop.f32.mrb[0].mxu0
      %v583 = vadd.f32 %v298, %v582
      %v584 = vpop.f32.mrb[0].mxu0
      %585 = vmatprep.mubr.bf16.mxu0 0
      %586 = vmatmul.mubr.bf16.gmra.mrb[0].mxu0 %v427
      %v587 = vpop.f32.mrb[0].mxu0
      %v588 = vadd.f32 %v298, %v587
      %v589 = vpop.f32.mrb[0].mxu0
      %v590 = vpop.f32.mrb[0].mxu0
      %v591 = vadd.f32 %v298, %v590
      %v592 = vpop.f32.mrb[0].mxu0
      %593 = vdwg.mxu0
      %v594 = vmax.f32 %v468, 0.0
      %v595 = vmax.f32 %v471, 0.0
      %v596 = vmax.f32 %v476, 0.0
      %v597 = vmax.f32 %v479, 0.0
      %v598 = vmax.f32 %v484, 0.0
      %v599 = vmax.f32 %v487, 0.0
      %v600 = vmax.f32 %v492, 0.0
      %v601 = vmax.f32 %v495, 0.0
      %v602 = vmax.f32 %v500, 0.0
      %v603 = vmax.f32 %v503, 0.0
      %v604 = vmax.f32 %v508, 0.0
      %v605 = vmax.f32 %v511, 0.0
      %v606 = vmax.f32 %v516, 0.0
      %v607 = vmax.f32 %v519, 0.0
      %v608 = vmax.f32 %v524, 0.0
      %v609 = vmax.f32 %v527, 0.0
      %v610 = vmax.f32 %v532, 0.0
      %v611 = vmax.f32 %v535, 0.0
      %v612 = vmax.f32 %v540, 0.0
      %v613 = vmax.f32 %v543, 0.0
      %v614 = vmax.f32 %v548, 0.0
      %v615 = vmax.f32 %v551, 0.0
      %v616 = vmax.f32 %v556, 0.0
      %v617 = vmax.f32 %v559, 0.0
      %v618 = vmax.f32 %v564, 0.0
      %v619 = vmax.f32 %v567, 0.0
      %v620 = vmax.f32 %v572, 0.0
      %v621 = vmax.f32 %v575, 0.0
      %v622 = vmax.f32 %v580, 0.0
      %v623 = vmax.f32 %v583, 0.0
      %v624 = vmax.f32 %v588, 0.0
      %v625 = vmax.f32 %v591, 0.0
      %v626 = vpack.c.bf16 %v595, %v594
      %v627 = vpack.c.bf16 %v597, %v596
      %v628 = vpack.c.bf16 %v599, %v598
      %v629 = vpack.c.bf16 %v601, %v600
      %v630 = vpack.c.bf16 %v603, %v602
      %v631 = vpack.c.bf16 %v605, %v604
      %v632 = vpack.c.bf16 %v607, %v606
      %v633 = vpack.c.bf16 %v609, %v608
      %v634 = vpack.c.bf16 %v611, %v610
      %v635 = vpack.c.bf16 %v613, %v612
      %v636 = vpack.c.bf16 %v615, %v614
      %v637 = vpack.c.bf16 %v617, %v616
      %v638 = vpack.c.bf16 %v619, %v618
      %v639 = vpack.c.bf16 %v621, %v620
      %v640 = vpack.c.bf16 %v623, %v622
      %v641 = vpack.c.bf16 %v625, %v624
      %v642 = vld [vmem:[%s3] sm:$0xf]
      %v643 = vld [vmem:[%s3 + $0x4] sm:$0xf]
      %v644 = vld [vmem:[%s3 + $0x8] sm:$0xf]
      %v645 = vld [vmem:[%s3 + $0xc] sm:$0xf]
      %v646 = vld [vmem:[%s3 + $0x10] sm:$0xf]
      %v647 = vld [vmem:[%s3 + $0x14] sm:$0xf]
      %v648 = vld [vmem:[%s3 + $0x18] sm:$0xf]
      %v649 = vld [vmem:[%s3 + $0x1c] sm:$0xf]
      %v650 = vld [vmem:[%s4] sm:$0x1]
      %v652 = vlaneseq
      %v653 = vshrl.u32 %v652, 7
      %v654 = vsub.s32 0, %v653
      %v655 = vrot.slane %v650, %v654
      %v665 = vunpack.c.l.b16 %v642
      %v666 = vunpack.c.l.b16 %v643
      %v667 = vunpack.c.l.b16 %v644
      %v668 = vunpack.c.l.b16 %v645
      %v669 = vunpack.c.l.b16 %v646
      %v670 = vunpack.c.l.b16 %v647
      %v671 = vunpack.c.l.b16 %v648
      %v672 = vunpack.c.l.b16 %v649
      %v673 = vpack.c.b16 %v666, %v665
      %v674 = vpack.c.b16 %v668, %v667
      %v675 = vpack.c.b16 %v670, %v669
      %v676 = vpack.c.b16 %v672, %v671
      %vm681 = vcmask 523264
      %v683 = vsel %vm681, %v626, 0
      %v686 = vsel %vm681, %v627, 0
      %v689 = vsel %vm681, %v628, 0
      %v692 = vsel %vm681, %v629, 0
      %v695 = vsel %vm681, %v630, 0
      %v698 = vsel %vm681, %v631, 0
      %v701 = vsel %vm681, %v632, 0
      %v704 = vsel %vm681, %v633, 0
      %v707 = vsel %vm681, %v634, 0
      %v710 = vsel %vm681, %v635, 0
      %v713 = vsel %vm681, %v636, 0
      %v716 = vsel %vm681, %v637, 0
      %v719 = vsel %vm681, %v638, 0
      %v722 = vsel %vm681, %v639, 0
      %v725 = vsel %vm681, %v640, 0
      %v728 = vsel %vm681, %v641, 0
      %730 = vmatprep.subr.bf16.mxu0 0
      %731 = vmatpush1.bf16.msra.mxu0 %v673
      %732 = vmatprep.subr.bf16.mxu0 0
      %733 = vmatpush1.bf16.msra.mxu0 %v674
      %734 = vmatprep.subr.bf16.mxu0 0
      %735 = vmatpush1.bf16.msra.mxu0 %v675
      %736 = vmatprep.subr.bf16.mxu0 0
      %737 = vmatpush1.bf16.msra.mxu0 %v676
      %738 = vmatprep.subr.bf16.mxu0 0
      %739 = vmatpush1.bf16.msra.mxu0 0
      %740 = vmatprep.subr.bf16.mxu0 0
      %741 = vmatpush1.bf16.msra.mxu0 0
      %742 = vmatprep.subr.bf16.mxu0 0
      %743 = vmatpush1.bf16.msra.mxu0 0
      %744 = vmatprep.subr.bf16.mxu0 0
      %745 = vmatpush1.bf16.msra.mxu0 0
      %746 = vmatprep.subr.bf16.mxu0 0
      %747 = vmatpush1.bf16.msra.mxu0 0
      %748 = vmatprep.subr.bf16.mxu0 0
      %749 = vmatpush1.bf16.msra.mxu0 0
      %750 = vmatprep.subr.bf16.mxu0 0
      %751 = vmatpush1.bf16.msra.mxu0 0
      %752 = vmatprep.subr.bf16.mxu0 0
      %753 = vmatpush1.bf16.msra.mxu0 0
      %754 = vmatprep.subr.bf16.mxu0 0
      %755 = vmatpush1.bf16.msra.mxu0 0
      %756 = vmatprep.subr.bf16.mxu0 0
      %757 = vmatpush1.bf16.msra.mxu0 0
      %758 = vmatprep.subr.bf16.mxu0 0
      %759 = vmatpush1.bf16.msra.mxu0 0
      %760 = vmatprep.subr.bf16.mxu0 0
      %761 = vmatpush1.bf16.msra.mxu0 0
      %762 = vmatprep.mubr.bf16.mxu0 0
      %763 = vmatmul.mubr.bf16.gmra.mrb[0].mxu0 %v683
      %v764 = vpop.f32.mrb[0].mxu0
      %v765 = vadd.f32 %v655, %v764
      %v766 = vpop.f32.mrb[0].mxu0
      %v767 = vpop.f32.mrb[0].mxu0
      %v768 = vadd.f32 %v655, %v767
      %v769 = vpop.f32.mrb[0].mxu0
      %770 = vmatprep.mubr.bf16.mxu0 0
      %771 = vmatmul.mubr.bf16.gmra.mrb[0].mxu0 %v686
      %v772 = vpop.f32.mrb[0].mxu0
      %v773 = vadd.f32 %v655, %v772
      %v774 = vpop.f32.mrb[0].mxu0
      %v775 = vpop.f32.mrb[0].mxu0
      %v776 = vadd.f32 %v655, %v775
      %v777 = vpop.f32.mrb[0].mxu0
      %778 = vmatprep.mubr.bf16.mxu0 0
      %779 = vmatmul.mubr.bf16.gmra.mrb[0].mxu0 %v689
      %v780 = vpop.f32.mrb[0].mxu0
      %v781 = vadd.f32 %v655, %v780
      %v782 = vpop.f32.mrb[0].mxu0
      %v783 = vpop.f32.mrb[0].mxu0
      %v784 = vadd.f32 %v655, %v783
      %v785 = vpop.f32.mrb[0].mxu0
      %786 = vmatprep.mubr.bf16.mxu0 0
      %787 = vmatmul.mubr.bf16.gmra.mrb[0].mxu0 %v692
      %v788 = vpop.f32.mrb[0].mxu0
      %v789 = vadd.f32 %v655, %v788
      %v790 = vpop.f32.mrb[0].mxu0
      %v791 = vpop.f32.mrb[0].mxu0
      %v792 = vadd.f32 %v655, %v791
      %v793 = vpop.f32.mrb[0].mxu0
      %794 = vmatprep.mubr.bf16.mxu0 0
      %795 = vmatmul.mubr.bf16.gmra.mrb[0].mxu0 %v695
      %v796 = vpop.f32.mrb[0].mxu0
      %v797 = vadd.f32 %v655, %v796
      %v798 = vpop.f32.mrb[0].mxu0
      %v799 = vpop.f32.mrb[0].mxu0
      %v800 = vadd.f32 %v655, %v799
      %v801 = vpop.f32.mrb[0].mxu0
      %802 = vmatprep.mubr.bf16.mxu0 0
      %803 = vmatmul.mubr.bf16.gmra.mrb[0].mxu0 %v698
      %v804 = vpop.f32.mrb[0].mxu0
      %v805 = vadd.f32 %v655, %v804
      %v806 = vpop.f32.mrb[0].mxu0
      %v807 = vpop.f32.mrb[0].mxu0
      %v808 = vadd.f32 %v655, %v807
      %v809 = vpop.f32.mrb[0].mxu0
      %810 = vmatprep.mubr.bf16.mxu0 0
      %811 = vmatmul.mubr.bf16.gmra.mrb[0].mxu0 %v701
      %v812 = vpop.f32.mrb[0].mxu0
      %v813 = vadd.f32 %v655, %v812
      %v814 = vpop.f32.mrb[0].mxu0
      %v815 = vpop.f32.mrb[0].mxu0
      %v816 = vadd.f32 %v655, %v815
      %v817 = vpop.f32.mrb[0].mxu0
      %818 = vmatprep.mubr.bf16.mxu0 0
      %819 = vmatmul.mubr.bf16.gmra.mrb[0].mxu0 %v704
      %v820 = vpop.f32.mrb[0].mxu0
      %v821 = vadd.f32 %v655, %v820
      %v822 = vpop.f32.mrb[0].mxu0
      %v823 = vpop.f32.mrb[0].mxu0
      %v824 = vadd.f32 %v655, %v823
      %v825 = vpop.f32.mrb[0].mxu0
      %826 = vmatprep.mubr.bf16.mxu0 0
      %827 = vmatmul.mubr.bf16.gmra.mrb[0].mxu0 %v707
      %v828 = vpop.f32.mrb[0].mxu0
      %v829 = vadd.f32 %v655, %v828
      %v830 = vpop.f32.mrb[0].mxu0
      %v831 = vpop.f32.mrb[0].mxu0
      %v832 = vadd.f32 %v655, %v831
      %v833 = vpop.f32.mrb[0].mxu0
      %834 = vmatprep.mubr.bf16.mxu0 0
      %835 = vmatmul.mubr.bf16.gmra.mrb[0].mxu0 %v710
      %v836 = vpop.f32.mrb[0].mxu0
      %v837 = vadd.f32 %v655, %v836
      %v838 = vpop.f32.mrb[0].mxu0
      %v839 = vpop.f32.mrb[0].mxu0
      %v840 = vadd.f32 %v655, %v839
      %v841 = vpop.f32.mrb[0].mxu0
      %842 = vmatprep.mubr.bf16.mxu0 0
      %843 = vmatmul.mubr.bf16.gmra.mrb[0].mxu0 %v713
      %v844 = vpop.f32.mrb[0].mxu0
      %v845 = vadd.f32 %v655, %v844
      %v846 = vpop.f32.mrb[0].mxu0
      %v847 = vpop.f32.mrb[0].mxu0
      %v848 = vadd.f32 %v655, %v847
      %v849 = vpop.f32.mrb[0].mxu0
      %850 = vmatprep.mubr.bf16.mxu0 0
      %851 = vmatmul.mubr.bf16.gmra.mrb[0].mxu0 %v716
      %v852 = vpop.f32.mrb[0].mxu0
      %v853 = vadd.f32 %v655, %v852
      %v854 = vpop.f32.mrb[0].mxu0
      %v855 = vpop.f32.mrb[0].mxu0
      %v856 = vadd.f32 %v655, %v855
      %v857 = vpop.f32.mrb[0].mxu0
      %858 = vmatprep.mubr.bf16.mxu0 0
      %859 = vmatmul.mubr.bf16.gmra.mrb[0].mxu0 %v719
      %v860 = vpop.f32.mrb[0].mxu0
      %v861 = vadd.f32 %v655, %v860
      %v862 = vpop.f32.mrb[0].mxu0
      %v863 = vpop.f32.mrb[0].mxu0
      %v864 = vadd.f32 %v655, %v863
      %v865 = vpop.f32.mrb[0].mxu0
      %866 = vmatprep.mubr.bf16.mxu0 0
      %867 = vmatmul.mubr.bf16.gmra.mrb[0].mxu0 %v722
      %v868 = vpop.f32.mrb[0].mxu0
      %v869 = vadd.f32 %v655, %v868
      %v870 = vpop.f32.mrb[0].mxu0
      %v871 = vpop.f32.mrb[0].mxu0
      %v872 = vadd.f32 %v655, %v871
      %v873 = vpop.f32.mrb[0].mxu0
      %874 = vmatprep.mubr.bf16.mxu0 0
      %875 = vmatmul.mubr.bf16.gmra.mrb[0].mxu0 %v725
      %v876 = vpop.f32.mrb[0].mxu0
      %v877 = vadd.f32 %v655, %v876
      %v878 = vpop.f32.mrb[0].mxu0
      %v879 = vpop.f32.mrb[0].mxu0
      %v880 = vadd.f32 %v655, %v879
      %v881 = vpop.f32.mrb[0].mxu0
      %882 = vmatprep.mubr.bf16.mxu0 0
      %883 = vmatmul.mubr.bf16.gmra.mrb[0].mxu0 %v728
      %v884 = vpop.f32.mrb[0].mxu0
      %v885 = vadd.f32 %v655, %v884
      %v886 = vpop.f32.mrb[0].mxu0
      %v887 = vpop.f32.mrb[0].mxu0
      %v888 = vadd.f32 %v655, %v887
      %v889 = vpop.f32.mrb[0].mxu0
      %890 = vdwg.mxu0
      %v891 = vmax.f32 %v765, 0.0
      %v892 = vmax.f32 %v768, 0.0
      %v893 = vmax.f32 %v773, 0.0
      %v894 = vmax.f32 %v776, 0.0
      %v895 = vmax.f32 %v781, 0.0
      %v896 = vmax.f32 %v784, 0.0
      %v897 = vmax.f32 %v789, 0.0
      %v898 = vmax.f32 %v792, 0.0
      %v899 = vmax.f32 %v797, 0.0
      %v900 = vmax.f32 %v800, 0.0
      %v901 = vmax.f32 %v805, 0.0
      %v902 = vmax.f32 %v808, 0.0
      %v903 = vmax.f32 %v813, 0.0
      %v904 = vmax.f32 %v816, 0.0
      %v905 = vmax.f32 %v821, 0.0
      %v906 = vmax.f32 %v824, 0.0
      %v907 = vmax.f32 %v829, 0.0
      %v908 = vmax.f32 %v832, 0.0
      %v909 = vmax.f32 %v837, 0.0
      %v910 = vmax.f32 %v840, 0.0
      %v911 = vmax.f32 %v845, 0.0
      %v912 = vmax.f32 %v848, 0.0
      %v913 = vmax.f32 %v853, 0.0
      %v914 = vmax.f32 %v856, 0.0
      %v915 = vmax.f32 %v861, 0.0
      %v916 = vmax.f32 %v864, 0.0
      %v917 = vmax.f32 %v869, 0.0
      %v918 = vmax.f32 %v872, 0.0
      %v919 = vmax.f32 %v877, 0.0
      %v920 = vmax.f32 %v880, 0.0
      %v921 = vmax.f32 %v885, 0.0
      %v922 = vmax.f32 %v888, 0.0
      %v923 = vlaneseq
      %v924 = vand.u32 %v923, 127
      %v925 = vadd.s32 %v924, 128
      %s926 = smul.u32 %s18, 256
      %v927 = vstv %s926
      %v928 = vadd.s32 %v924, %v927
      %v929 = vadd.s32 %v925, %v927
      %vm930 = vcmp.lt.s32.totalorder %v928, 800
      %vm931 = vcmp.lt.s32.totalorder %v929, 800
      %v932 = vsel %vm930, 1, 0
      %v933 = vsel %vm931, 1, 0
      %v934 = vcvt.s32.f32 %v932
      %v935 = vcvt.s32.f32 %v933
      %936 = vmatprep.subr.mxu0 0.0
      %937 = vmatpush1.msra.mxu0 %v891
      %938 = vmatprep.subr.mxu0 0.0
      %939 = vmatpush1.msra.mxu0 %v892
      %940 = vmatprep.subr.mxu0 0.0
      %941 = vmatpush1.msra.mxu0 %v893
      %942 = vmatprep.subr.mxu0 0.0
      %943 = vmatpush1.msra.mxu0 %v894
      %944 = vmatprep.subr.mxu0 0.0
      %945 = vmatpush1.msra.mxu0 %v895
      %946 = vmatprep.subr.mxu0 0.0
      %947 = vmatpush1.msra.mxu0 %v896
      %948 = vmatprep.subr.mxu0 0.0
      %949 = vmatpush1.msra.mxu0 %v897
      %950 = vmatprep.subr.mxu0 0.0
      %951 = vmatpush1.msra.mxu0 %v898
      %952 = vmatprep.subr.mxu0 0.0
      %953 = vmatpush1.msra.mxu0 %v899
      %954 = vmatprep.subr.mxu0 0.0
      %955 = vmatpush1.msra.mxu0 %v900
      %956 = vmatprep.subr.mxu0 0.0
      %957 = vmatpush1.msra.mxu0 %v901
      %958 = vmatprep.subr.mxu0 0.0
      %959 = vmatpush1.msra.mxu0 %v902
      %960 = vmatprep.subr.mxu0 0.0
      %961 = vmatpush1.msra.mxu0 %v903
      %962 = vmatprep.subr.mxu0 0.0
      %963 = vmatpush1.msra.mxu0 %v904
      %964 = vmatprep.subr.mxu0 0.0
      %965 = vmatpush1.msra.mxu0 %v905
      %966 = vmatprep.subr.mxu0 0.0
      %967 = vmatpush1.msra.mxu0 %v906
      %968 = vmatprep.subr.mxu0 0.0
      %969 = vmatpush1.msra.mxu0 %v907
      %970 = vmatprep.subr.mxu0 0.0
      %971 = vmatpush1.msra.mxu0 %v908
      %972 = vmatprep.subr.mxu0 0.0
      %973 = vmatpush1.msra.mxu0 %v909
      %974 = vmatprep.subr.mxu0 0.0
      %975 = vmatpush1.msra.mxu0 %v910
      %976 = vmatprep.subr.mxu0 0.0
      %977 = vmatpush1.msra.mxu0 %v911
      %978 = vmatprep.subr.mxu0 0.0
      %979 = vmatpush1.msra.mxu0 %v912
      %980 = vmatprep.subr.mxu0 0.0
      %981 = vmatpush1.msra.mxu0 %v913
      %982 = vmatprep.subr.mxu0 0.0
      %983 = vmatpush1.msra.mxu0 %v914
      %984 = vmatprep.subr.mxu0 0.0
      %985 = vmatpush1.msra.mxu0 %v915
      %986 = vmatprep.subr.mxu0 0.0
      %987 = vmatpush1.msra.mxu0 %v916
      %988 = vmatprep.subr.mxu0 0.0
      %989 = vmatpush1.msra.mxu0 %v917
      %990 = vmatprep.subr.mxu0 0.0
      %991 = vmatpush1.msra.mxu0 %v918
      %992 = vmatprep.subr.mxu0 0.0
      %993 = vmatpush1.msra.mxu0 %v919
      %994 = vmatprep.subr.mxu0 0.0
      %995 = vmatpush1.msra.mxu0 %v920
      %996 = vmatprep.subr.mxu0 0.0
      %997 = vmatpush1.msra.mxu0 %v921
      %998 = vmatprep.subr.mxu0 0.0
      %999 = vmatpush1.msra.mxu0 %v922
      %1000 = vmatprep.mubr.f32.mxu0 %v935
      %1001 = vmatmul.mubr.f32.gmra.mrb[0].mxu0 %v934
      %v1002 = vpop.f32.mrb[0].mxu0
      %v1003 = vadd.f32 0.0, %v1002
      %v1004 = vpop.f32.mrb[0].mxu0
      %1005 = vdwg.mxu0
      %1006 = vst [vmem:[%s255] sm:$0x1] %v1003
      %v1007 = vmul.f32 %v891, %v891
      %v1008 = vmul.f32 %v892, %v892
      %v1009 = vmul.f32 %v893, %v893
      %v1010 = vmul.f32 %v894, %v894
      %v1011 = vmul.f32 %v895, %v895
      %v1012 = vmul.f32 %v896, %v896
      %v1013 = vmul.f32 %v897, %v897
      %v1014 = vmul.f32 %v898, %v898
      %v1015 = vmul.f32 %v899, %v899
      %v1016 = vmul.f32 %v900, %v900
      %v1017 = vmul.f32 %v901, %v901
      %v1018 = vmul.f32 %v902, %v902
      %v1019 = vmul.f32 %v903, %v903
      %v1020 = vmul.f32 %v904, %v904
      %v1021 = vmul.f32 %v905, %v905
      %v1022 = vmul.f32 %v906, %v906
      %v1023 = vmul.f32 %v907, %v907
      %v1024 = vmul.f32 %v908, %v908
      %v1025 = vmul.f32 %v909, %v909
      %v1026 = vmul.f32 %v910, %v910
      %v1027 = vmul.f32 %v911, %v911
      %v1028 = vmul.f32 %v912, %v912
      %v1029 = vmul.f32 %v913, %v913
      %v1030 = vmul.f32 %v914, %v914
      %v1031 = vmul.f32 %v915, %v915
      %v1032 = vmul.f32 %v916, %v916
      %v1033 = vmul.f32 %v917, %v917
      %v1034 = vmul.f32 %v918, %v918
      %v1035 = vmul.f32 %v919, %v919
      %v1036 = vmul.f32 %v920, %v920
      %v1037 = vmul.f32 %v921, %v921
      %v1038 = vmul.f32 %v922, %v922
      %1039 = vmatprep.subr.mxu0 0.0
      %1040 = vmatpush1.msra.mxu0 %v1007
      %1041 = vmatprep.subr.mxu0 0.0
      %1042 = vmatpush1.msra.mxu0 %v1008
      %1043 = vmatprep.subr.mxu0 0.0
      %1044 = vmatpush1.msra.mxu0 %v1009
      %1045 = vmatprep.subr.mxu0 0.0
      %1046 = vmatpush1.msra.mxu0 %v1010
      %1047 = vmatprep.subr.mxu0 0.0
      %1048 = vmatpush1.msra.mxu0 %v1011
      %1049 = vmatprep.subr.mxu0 0.0
      %1050 = vmatpush1.msra.mxu0 %v1012
      %1051 = vmatprep.subr.mxu0 0.0
      %1052 = vmatpush1.msra.mxu0 %v1013
      %1053 = vmatprep.subr.mxu0 0.0
      %1054 = vmatpush1.msra.mxu0 %v1014
      %1055 = vmatprep.subr.mxu0 0.0
      %1056 = vmatpush1.msra.mxu0 %v1015
      %1057 = vmatprep.subr.mxu0 0.0
      %1058 = vmatpush1.msra.mxu0 %v1016
      %1059 = vmatprep.subr.mxu0 0.0
      %1060 = vmatpush1.msra.mxu0 %v1017
      %1061 = vmatprep.subr.mxu0 0.0
      %1062 = vmatpush1.msra.mxu0 %v1018
      %1063 = vmatprep.subr.mxu0 0.0
      %1064 = vmatpush1.msra.mxu0 %v1019
      %1065 = vmatprep.subr.mxu0 0.0
      %1066 = vmatpush1.msra.mxu0 %v1020
      %1067 = vmatprep.subr.mxu0 0.0
      %1068 = vmatpush1.msra.mxu0 %v1021
      %1069 = vmatprep.subr.mxu0 0.0
      %1070 = vmatpush1.msra.mxu0 %v1022
      %1071 = vmatprep.subr.mxu0 0.0
      %1072 = vmatpush1.msra.mxu0 %v1023
      %1073 = vmatprep.subr.mxu0 0.0
      %1074 = vmatpush1.msra.mxu0 %v1024
      %1075 = vmatprep.subr.mxu0 0.0
      %1076 = vmatpush1.msra.mxu0 %v1025
      %1077 = vmatprep.subr.mxu0 0.0
      %1078 = vmatpush1.msra.mxu0 %v1026
      %1079 = vmatprep.subr.mxu0 0.0
      %1080 = vmatpush1.msra.mxu0 %v1027
      %1081 = vmatprep.subr.mxu0 0.0
      %1082 = vmatpush1.msra.mxu0 %v1028
      %1083 = vmatprep.subr.mxu0 0.0
      %1084 = vmatpush1.msra.mxu0 %v1029
      %1085 = vmatprep.subr.mxu0 0.0
      %1086 = vmatpush1.msra.mxu0 %v1030
      %1087 = vmatprep.subr.mxu0 0.0
      %1088 = vmatpush1.msra.mxu0 %v1031
      %1089 = vmatprep.subr.mxu0 0.0
      %1090 = vmatpush1.msra.mxu0 %v1032
      %1091 = vmatprep.subr.mxu0 0.0
      %1092 = vmatpush1.msra.mxu0 %v1033
      %1093 = vmatprep.subr.mxu0 0.0
      %1094 = vmatpush1.msra.mxu0 %v1034
      %1095 = vmatprep.subr.mxu0 0.0
      %1096 = vmatpush1.msra.mxu0 %v1035
      %1097 = vmatprep.subr.mxu0 0.0
      %1098 = vmatpush1.msra.mxu0 %v1036
      %1099 = vmatprep.subr.mxu0 0.0
      %1100 = vmatpush1.msra.mxu0 %v1037
      %1101 = vmatprep.subr.mxu0 0.0
      %1102 = vmatpush1.msra.mxu0 %v1038
      %1103 = vmatprep.mubr.f32.mxu0 %v935
      %1104 = vmatmul.mubr.f32.gmra.mrb[0].mxu0 %v934
      %v1105 = vpop.f32.mrb[0].mxu0
      %v1106 = vadd.f32 0.0, %v1105
      %v1107 = vpop.f32.mrb[0].mxu0
      %1108 = vdwg.mxu0
      %1109 = vst [vmem:[%s258] sm:$0x1] %v1106
      %p1110 = scmp.lt.s32.totalorder %s18, 3
      %s1111 = scalar_select %p1110, %s18, 3
      %s1112 = scalar_lea.vmem %s5, %s1111
      %p1113 = scmp.lt.s32.totalorder %s18, 3
      %s1114 = scalar_select %p1113, %s18, 3
      %s1115 = scalar_lea.vmem %s6, %s1114
      // Predicated region
      $region41: #{tnet_forward.5} parent=39 // pred_check
        %p1116 = pneg %p146
      $region42: #{tnet_forward.5} parent=39 // pred_check_branch
        %1118 = sbr.rel (%p1116) target = $region44
      $region43: #{tnet_forward.5} parent=39 // pred_region
        _
      $region44: #{tnet_forward.5} parent=39 // pred_fallthru
        _
      // Predicated region
      $region45: #{tnet_forward.5} parent=39 // pred_check
        %p1119 = pneg %p172
      $region46: #{tnet_forward.5} parent=39 // pred_check_branch
        %1121 = sbr.rel (%p1119) target = $region48
      $region47: #{tnet_forward.5} parent=39 // pred_region
        _
      $region48: #{tnet_forward.5} parent=39 // pred_fallthru
        _
    $region40: #{tnet_forward.5} parent=5 // pred_fallthru
      _
    %p1122 = scmp.le.s32.totalorder 2, %s13
    // Predicated region
    $region49: #{tnet_forward.5} parent=5 // pred_check
      %p1123 = pneg %p1122
    $region50: #{tnet_forward.5} parent=5 // pred_check_branch
      %1125 = sbr.rel (%p1123) target = $region52
    $region51: #{tnet_forward.5} parent=5 // pred_region
      %s1126 = ssub.s32 %s13, 2
      // Predicated region
      $region53: #{tnet_forward.5} parent=51 // pred_check
        %p1127 = pneg %p152
      $region54: #{tnet_forward.5} parent=51 // pred_check_branch
        %1129 = sbr.rel (%p1127) target = $region56
      $region55: #{tnet_forward.5} parent=51 // pred_region
        %p1130 = scmp.lt.s32.totalorder %s19, 3
        %s1131 = scalar_select %p1130, %s19, 3
        %s1132 = scalar_lea.vmem %s5, %s1131
      $region56: #{tnet_forward.5} parent=51 // pred_fallthru
        _
      // Predicated region
      $region57: #{tnet_forward.5} parent=51 // pred_check
        %p1133 = pneg %p178
      $region58: #{tnet_forward.5} parent=51 // pred_check_branch
        %1135 = sbr.rel (%p1133) target = $region60
      $region59: #{tnet_forward.5} parent=51 // pred_region
        %p1136 = scmp.lt.s32.totalorder %s19, 3
        %s1137 = scalar_select %p1136, %s19, 3
        %s1138 = scalar_lea.vmem %s6, %s1137
      $region60: #{tnet_forward.5} parent=51 // pred_fallthru
        _
    $region52: #{tnet_forward.5} parent=5 // pred_fallthru
      _
  $region6: #{tnet_forward.5} parent=0 // loop_footer
    %s17 = sadd.s32 1, %s13
  $region7: #{tnet_forward.5} parent=0 // loop_footer_branch
    %12 = sbr.rel target = $region3
  $region8: #{tnet_forward.5} parent=0 // loop_exit
    _

// kernel: tnet_forward.4
$region0: #{tnet_forward.4}
  #allocation0 [shape = 'u32[]', space=smem, size = 0x4, offset = 0x4, fixed_abs, tag = 'smem constant byte address 0x4 - core index']
  #allocation1 [shape = 'u32[144,128]{1,0:T(1,128)}', space=vmem, size = 0x12000, scoped, tag = 'internal scratch']
  %s0 = inlined_call_operand.vmem [shape: bf16[1024,8], index: 0, kind: input, shape index: {}]
  %s1 = inlined_call_operand.vmem [shape: bf16[8,64], index: 1, kind: input, shape index: {}]
  %s2 = inlined_call_operand.vmem [shape: f32[1,64], index: 2, kind: input, shape index: {}]
  %s3 = inlined_call_operand.vmem [shape: f32[4,1,64], index: 3, kind: output, shape index: {0}]
  %s4 = inlined_call_operand.vmem [shape: f32[4,1,64], index: 4, kind: output, shape index: {1}]
  %5 = xla_tuple %s3, %s4
  %s6 = sld [smem:[#allocation0]]
  $region53: #{tnet_forward.4} parent=0
    _
  %s8 = ssub.s32 1, %s6
  %s9 = scalar_select 0, %s8, %s6
  loop: start=0, step=1, limit=6
  $region2: #{tnet_forward.4} parent=0 // loop_pre_header
    _
  $region3: #{tnet_forward.4} parent=0 // loop_header
    %s11 = sphi 0, %s15
    %p12 = scmp.ge.s32.totalorder %s11, 6
    %s21 = sphi 0, %s23
    %s24 = sphi 0, %s21
    %s25 = sphi 0, %s24
    %s41 = sphi 0, %s25
    %s45 = sphi 0, %s45
    %s47 = sphi 0, %s45
    %s48 = sphi 0, %s47
    %s62 = sphi 0, %s48
    %s66 = sphi 0, %s66
    %s68 = sphi 0, %s66
    %s69 = sphi 0, %s68
    %s83 = sphi 0, %s69
    %s89 = sphi 0, %s91
    %s92 = sphi 0, %s89
    %s93 = sphi 0, %s92
    %s109 = sphi 0, %s93
    %s115 = sphi 0, %s117
    %s118 = sphi 0, %s115
    %s119 = sphi 0, %s118
    %s135 = sphi 0, %s119
  $region4: #{tnet_forward.4} parent=0 // loop_header_branch
    %14 = sbr.rel (%p12) target = $region8
  $region5: #{tnet_forward.4} parent=0 // loop_body
    %s16 = ssub.s32 %s11, 1
    %s17 = ssub.s32 %s11, 2
    %s18 = sadd.s32 %s11, 1
    %s19 = ssub.s32 %s11, %s18
    %p20 = scmp.eq.s32.totalorder %s19, 0
    %s22 = sadd.s32 %s21, 1
    %s23 = scalar_select %p20, %s21, %s22
    %p26 = pneg %p20
    %p27 = scmp.eq.s32.totalorder %s11, 3
    %p28 = por %p26, %p27
    %p29 = scmp.ne.s32.totalorder %s21, %s24
    %p30 = scmp.eq.s32.totalorder %s11, 0
    %p31 = por %p29, %p30
    %p32 = scmp.ne.s32.totalorder %s21, %s24
    %p33 = scmp.eq.s32.totalorder %s16, 3
    %p34 = por %p32, %p33
    %p35 = scmp.ne.s32.totalorder %s24, %s25
    %p36 = scmp.eq.s32.totalorder %s16, 0
    %p37 = por %p35, %p36
    %p38 = scmp.ne.s32.totalorder %s24, %s25
    %p39 = scmp.eq.s32.totalorder %s17, 3
    %p40 = por %p38, %p39
    %p42 = scmp.ne.s32.totalorder %s25, %s41
    %p43 = scmp.eq.s32.totalorder %s17, 0
    %p44 = por %p42, %p43
    %s46 = sadd.s32 %s45, 1
    %p49 = scmp.eq.s32.totalorder %s11, 3
    %p50 = scmp.ne.s32.totalorder %s45, %s47
    %p51 = scmp.eq.s32.totalorder %s11, 0
    %p52 = por %p50, %p51
    %p53 = scmp.ne.s32.totalorder %s45, %s47
    %p54 = scmp.eq.s32.totalorder %s16, 3
    %p55 = por %p53, %p54
    %p56 = scmp.ne.s32.totalorder %s47, %s48
    %p57 = scmp.eq.s32.totalorder %s16, 0
    %p58 = por %p56, %p57
    %p59 = scmp.ne.s32.totalorder %s47, %s48
    %p60 = scmp.eq.s32.totalorder %s17, 3
    %p61 = por %p59, %p60
    %p63 = scmp.ne.s32.totalorder %s48, %s62
    %p64 = scmp.eq.s32.totalorder %s17, 0
    %p65 = por %p63, %p64
    %s67 = sadd.s32 %s66, 1
    %p70 = scmp.eq.s32.totalorder %s11, 3
    %p71 = scmp.ne.s32.totalorder %s66, %s68
    %p72 = scmp.eq.s32.totalorder %s11, 0
    %p73 = por %p71, %p72
    %p74 = scmp.ne.s32.totalorder %s66, %s68
    %p75 = scmp.eq.s32.totalorder %s16, 3
    %p76 = por %p74, %p75
    %p77 = scmp.ne.s32.totalorder %s68, %s69
    %p78 = scmp.eq.s32.totalorder %s16, 0
    %p79 = por %p77, %p78
    %p80 = scmp.ne.s32.totalorder %s68, %s69
    %p81 = scmp.eq.s32.totalorder %s17, 3
    %p82 = por %p80, %p81
    %p84 = scmp.ne.s32.totalorder %s69, %s83
    %p85 = scmp.eq.s32.totalorder %s17, 0
    %p86 = por %p84, %p85
    %s87 = ssub.s32 %s11, %s18
    %p88 = scmp.eq.s32.totalorder %s87, 0
    %s90 = sadd.s32 %s89, 1
    %s91 = scalar_select %p88, %s89, %s90
    %p94 = pneg %p88
    %p95 = scmp.eq.s32.totalorder %s11, 3
    %p96 = por %p94, %p95
    %p97 = scmp.ne.s32.totalorder %s89, %s92
    %p98 = scmp.eq.s32.totalorder %s11, 0
    %p99 = por %p97, %p98
    %p100 = scmp.ne.s32.totalorder %s89, %s92
    %p101 = scmp.eq.s32.totalorder %s16, 3
    %p102 = por %p100, %p101
    %p103 = scmp.ne.s32.totalorder %s92, %s93
    %p104 = scmp.eq.s32.totalorder %s16, 0
    %p105 = por %p103, %p104
    %p106 = scmp.ne.s32.totalorder %s92, %s93
    %p107 = scmp.eq.s32.totalorder %s17, 3
    %p108 = por %p106, %p107
    %p110 = scmp.ne.s32.totalorder %s93, %s109
    %p111 = scmp.eq.s32.totalorder %s17, 0
    %p112 = por %p110, %p111
    %s113 = ssub.s32 %s11, %s18
    %p114 = scmp.eq.s32.totalorder %s113, 0
    %s116 = sadd.s32 %s115, 1
    %s117 = scalar_select %p114, %s115, %s116
    %p120 = pneg %p114
    %p121 = scmp.eq.s32.totalorder %s11, 3
    %p122 = por %p120, %p121
    %p123 = scmp.ne.s32.totalorder %s115, %s118
    %p124 = scmp.eq.s32.totalorder %s11, 0
    %p125 = por %p123, %p124
    %p126 = scmp.ne.s32.totalorder %s115, %s118
    %p127 = scmp.eq.s32.totalorder %s16, 3
    %p128 = por %p126, %p127
    %p129 = scmp.ne.s32.totalorder %s118, %s119
    %p130 = scmp.eq.s32.totalorder %s16, 0
    %p131 = por %p129, %p130
    %p132 = scmp.ne.s32.totalorder %s118, %s119
    %p133 = scmp.eq.s32.totalorder %s17, 3
    %p134 = por %p132, %p133
    %p136 = scmp.ne.s32.totalorder %s119, %s135
    %p137 = scmp.eq.s32.totalorder %s17, 0
    %p138 = por %p136, %p137
    %p139 = scmp.le.s32.totalorder 1, %s11
    %p140 = scmp.lt.s32.totalorder %s11, 5
    %p141 = pnand %p139, %p140
    %p142 = pneg %p141
    // Predicated region
    $region9: #{tnet_forward.4} parent=5 // pred_check
      _
    $region10: #{tnet_forward.4} parent=5 // pred_check_branch
      %144 = sbr.rel (%p141) target = $region12
    $region11: #{tnet_forward.4} parent=5 // pred_region
      %s145 = ssub.s32 %s11, 1
      // Predicated region
      $region13: #{tnet_forward.4} parent=11 // pred_check
        %p146 = pneg %p58
      $region14: #{tnet_forward.4} parent=11 // pred_check_branch
        %148 = sbr.rel (%p146) target = $region16
      $region15: #{tnet_forward.4} parent=11 // pred_region
        _
      $region16: #{tnet_forward.4} parent=11 // pred_fallthru
        _
      // Predicated region
      $region17: #{tnet_forward.4} parent=11 // pred_check
        %p149 = pneg %p79
      $region18: #{tnet_forward.4} parent=11 // pred_check_branch
        %151 = sbr.rel (%p149) target = $region20
      $region19: #{tnet_forward.4} parent=11 // pred_region
        _
      $region20: #{tnet_forward.4} parent=11 // pred_fallthru
        _
    $region12: #{tnet_forward.4} parent=5 // pred_fallthru
      _
    %p152 = scmp.lt.s32.totalorder %s11, 4
    // Predicated region
    $region21: #{tnet_forward.4} parent=5 // pred_check
      %p153 = pneg %p152
    $region22: #{tnet_forward.4} parent=5 // pred_check_branch
      %155 = sbr.rel (%p153) target = $region24
    $region23: #{tnet_forward.4} parent=5 // pred_region
      // Predicated region
      $region25: #{tnet_forward.4} parent=23 // pred_check
        %p156 = pneg %p31
      $region26: #{tnet_forward.4} parent=23 // pred_check_branch
        %158 = sbr.rel (%p156) target = $region28
      $region27: #{tnet_forward.4} parent=23 // pred_region
        %s159 = smul.u32 32, %s11
        %p160 = scmp.lt.s32.totalorder %s159, 127
        %s161 = scalar_select %p160, %s159, 127
        %s162 = smul.addr %s161, 4
        %s163 = scalar_lea.vmem %s0, %s162
        %s164 = smul.u32 32, %s11
      $region28: #{tnet_forward.4} parent=23 // pred_fallthru
        _
    $region24: #{tnet_forward.4} parent=5 // pred_fallthru
      _
    %p165 = scmp.le.s32.totalorder 1, %s11
    %p166 = scmp.lt.s32.totalorder %s11, 5
    %p167 = pnand %p165, %p166
    %p168 = pneg %p167
    // Predicated region
    $region29: #{tnet_forward.4} parent=5 // pred_check
      _
    $region30: #{tnet_forward.4} parent=5 // pred_check_branch
      %170 = sbr.rel (%p167) target = $region32
    $region31: #{tnet_forward.4} parent=5 // pred_region
      %s171 = ssub.s32 %s11, 1
      %s172 = smul.u32 32, %s16
      %p173 = scmp.lt.s32.totalorder %s172, 127
      %s174 = scalar_select %p173, %s172, 127
      %s175 = smul.addr %s174, 4
      %s176 = scalar_lea.vmem %s0, %s175
      %p177 = pneg %p37
      %p178 = pneg %p34
      %p179 = pneg %p58
      %p180 = pneg %p55
      %p181 = pneg %p79
      %p182 = pneg %p76
      %p183 = pneg %p105
      %p184 = pneg %p102
      %p185 = scmp.lt.s32.totalorder %s16, 3
      %s186 = scalar_select %p185, %s16, 3
      %s187 = scalar_lea.vmem %s3, %s186
      %p188 = pneg %p131
      %p189 = pneg %p128
      %p190 = scmp.lt.s32.totalorder %s16, 3
      %s191 = scalar_select %p190, %s16, 3
      %s192 = scalar_lea.vmem %s4, %s191
      %s193 = smul.u32 32, %s16
      %p194 = scmp.lt.s32.totalorder %s193, 127
      %s195 = scalar_select %p194, %s193, 127
      %s196 = smul.addr %s195, 4
      %s197 = scalar_lea.vmem %s0, %s196
      %s198 = smul.u32 32, %s16
      %p199 = scmp.lt.s32.totalorder %s16, 3
      %s200 = scalar_select %p199, %s16, 3
      %s201 = scalar_lea.vmem %s3, %s200
      %p202 = scmp.lt.s32.totalorder %s16, 3
      %s203 = scalar_select %p202, %s16, 3
      %s204 = scalar_lea.vmem %s4, %s203
      %v206 = vld [vmem:[%s197] sm:$0xf]
      %v207 = vld [vmem:[%s197 + $0x4] sm:$0xf]
      %v208 = vld [vmem:[%s197 + $0x8] sm:$0xf]
      %v209 = vld [vmem:[%s197 + $0xc] sm:$0xf]
      %v210 = vld [vmem:[%s197 + $0x10] sm:$0xf]
      %v211 = vld [vmem:[%s197 + $0x14] sm:$0xf]
      %v212 = vld [vmem:[%s197 + $0x18] sm:$0xf]
      %v213 = vld [vmem:[%s197 + $0x1c] sm:$0xf]
      %v214 = vld [vmem:[%s197 + $0x20] sm:$0xf]
      %v215 = vld [vmem:[%s197 + $0x24] sm:$0xf]
      %v216 = vld [vmem:[%s197 + $0x28] sm:$0xf]
      %v217 = vld [vmem:[%s197 + $0x2c] sm:$0xf]
      %v218 = vld [vmem:[%s197 + $0x30] sm:$0xf]
      %v219 = vld [vmem:[%s197 + $0x34] sm:$0xf]
      %v220 = vld [vmem:[%s197 + $0x38] sm:$0xf]
      %v221 = vld [vmem:[%s197 + $0x3c] sm:$0xf]
      %v222 = vld [vmem:[%s197 + $0x40] sm:$0xf]
      %v223 = vld [vmem:[%s197 + $0x44] sm:$0xf]
      %v224 = vld [vmem:[%s197 + $0x48] sm:$0xf]
      %v225 = vld [vmem:[%s197 + $0x4c] sm:$0xf]
      %v226 = vld [vmem:[%s197 + $0x50] sm:$0xf]
      %v227 = vld [vmem:[%s197 + $0x54] sm:$0xf]
      %v228 = vld [vmem:[%s197 + $0x58] sm:$0xf]
      %v229 = vld [vmem:[%s197 + $0x5c] sm:$0xf]
      %v230 = vld [vmem:[%s197 + $0x60] sm:$0xf]
      %v231 = vld [vmem:[%s197 + $0x64] sm:$0xf]
      %v232 = vld [vmem:[%s197 + $0x68] sm:$0xf]
      %v233 = vld [vmem:[%s197 + $0x6c] sm:$0xf]
      %v234 = vld [vmem:[%s197 + $0x70] sm:$0xf]
      %v235 = vld [vmem:[%s197 + $0x74] sm:$0xf]
      %v236 = vld [vmem:[%s197 + $0x78] sm:$0xf]
      %v237 = vld [vmem:[%s197 + $0x7c] sm:$0xf]
      %v238 = vld [vmem:[%s1] sm:$0xf]
      %v239 = vld [vmem:[%s2] sm:$0x1]
      %v241 = vlaneseq
      %v242 = vshrl.u32 %v241, 7
      %v243 = vsub.s32 0, %v242
      %v244 = vrot.slane %v239, %v243
      %v278 = vunpack.c.l.b16 %v206
      %v279 = vunpack.c.l.b16 %v207
      %v280 = vunpack.c.l.b16 %v208
      %v281 = vunpack.c.l.b16 %v209
      %v282 = vunpack.c.l.b16 %v210
      %v283 = vunpack.c.l.b16 %v211
      %v284 = vunpack.c.l.b16 %v212
      %v285 = vunpack.c.l.b16 %v213
      %v286 = vunpack.c.l.b16 %v214
      %v287 = vunpack.c.l.b16 %v215
      %v288 = vunpack.c.l.b16 %v216
      %v289 = vunpack.c.l.b16 %v217
      %v290 = vunpack.c.l.b16 %v218
      %v291 = vunpack.c.l.b16 %v219
      %v292 = vunpack.c.l.b16 %v220
      %v293 = vunpack.c.l.b16 %v221
      %v294 = vunpack.c.l.b16 %v222
      %v295 = vunpack.c.l.b16 %v223
      %v296 = vunpack.c.l.b16 %v224
      %v297 = vunpack.c.l.b16 %v225
      %v298 = vunpack.c.l.b16 %v226
      %v299 = vunpack.c.l.b16 %v227
      %v300 = vunpack.c.l.b16 %v228
      %v301 = vunpack.c.l.b16 %v229
      %v302 = vunpack.c.l.b16 %v230
      %v303 = vunpack.c.l.b16 %v231
      %v304 = vunpack.c.l.b16 %v232
      %v305 = vunpack.c.l.b16 %v233
      %v306 = vunpack.c.l.b16 %v234
      %v307 = vunpack.c.l.b16 %v235
      %v308 = vunpack.c.l.b16 %v236
      %v309 = vunpack.c.l.b16 %v237
      %v310 = vpack.c.b16 %v279, %v278
      %v311 = vpack.c.b16 %v281, %v280
      %v312 = vpack.c.b16 %v283, %v282
      %v313 = vpack.c.b16 %v285, %v284
      %v314 = vpack.c.b16 %v287, %v286
      %v315 = vpack.c.b16 %v289, %v288
      %v316 = vpack.c.b16 %v291, %v290
      %v317 = vpack.c.b16 %v293, %v292
      %v318 = vpack.c.b16 %v295, %v294
      %v319 = vpack.c.b16 %v297, %v296
      %v320 = vpack.c.b16 %v299, %v298
      %v321 = vpack.c.b16 %v301, %v300
      %v322 = vpack.c.b16 %v303, %v302
      %v323 = vpack.c.b16 %v305, %v304
      %v324 = vpack.c.b16 %v307, %v306
      %v325 = vpack.c.b16 %v309, %v308
      %vm326 = vcmask 64512
      %v328 = vsel %vm326, %v310, 0
      %v331 = vsel %vm326, %v311, 0
      %v334 = vsel %vm326, %v312, 0
      %v337 = vsel %vm326, %v313, 0
      %v340 = vsel %vm326, %v314, 0
      %v343 = vsel %vm326, %v315, 0
      %v346 = vsel %vm326, %v316, 0
      %v349 = vsel %vm326, %v317, 0
      %v352 = vsel %vm326, %v318, 0
      %v355 = vsel %vm326, %v319, 0
      %v358 = vsel %vm326, %v320, 0
      %v361 = vsel %vm326, %v321, 0
      %v364 = vsel %vm326, %v322, 0
      %v367 = vsel %vm326, %v323, 0
      %v370 = vsel %vm326, %v324, 0
      %v373 = vsel %vm326, %v325, 0
      %vm375 = vcmask 1043456
      %v377 = vsel %vm375, %v238, 0
      %379 = vmatprep.subr.bf16.mxu0 0
      %380 = vmatpush1.bf16.msra.mxu0 %v377
      %381 = vmatprep.subr.bf16.mxu0 0
      %382 = vmatpush1.bf16.msra.mxu0 0
      %383 = vmatprep.subr.bf16.mxu0 0
      %384 = vmatpush1.bf16.msra.mxu0 0
      %385 = vmatprep.subr.bf16.mxu0 0
      %386 = vmatpush1.bf16.msra.mxu0 0
      %387 = vmatprep.subr.bf16.mxu0 0
      %388 = vmatpush1.bf16.msra.mxu0 0
      %389 = vmatprep.subr.bf16.mxu0 0
      %390 = vmatpush1.bf16.msra.mxu0 0
      %391 = vmatprep.subr.bf16.mxu0 0
      %392 = vmatpush1.bf16.msra.mxu0 0
      %393 = vmatprep.subr.bf16.mxu0 0
      %394 = vmatpush1.bf16.msra.mxu0 0
      %395 = vmatprep.subr.bf16.mxu0 0
      %396 = vmatpush1.bf16.msra.mxu0 0
      %397 = vmatprep.subr.bf16.mxu0 0
      %398 = vmatpush1.bf16.msra.mxu0 0
      %399 = vmatprep.subr.bf16.mxu0 0
      %400 = vmatpush1.bf16.msra.mxu0 0
      %401 = vmatprep.subr.bf16.mxu0 0
      %402 = vmatpush1.bf16.msra.mxu0 0
      %403 = vmatprep.subr.bf16.mxu0 0
      %404 = vmatpush1.bf16.msra.mxu0 0
      %405 = vmatprep.subr.bf16.mxu0 0
      %406 = vmatpush1.bf16.msra.mxu0 0
      %407 = vmatprep.subr.bf16.mxu0 0
      %408 = vmatpush1.bf16.msra.mxu0 0
      %409 = vmatprep.subr.bf16.mxu0 0
      %410 = vmatpush1.bf16.msra.mxu0 0
      %411 = vmatprep.mubr.bf16.mxu0 0
      %412 = vmatmul.mubr.bf16.gmra.mrb[0].mxu0 %v328
      %v413 = vpop.f32.mrb[0].mxu0
      %v414 = vadd.f32 %v244, %v413
      %v415 = vpop.f32.mrb[0].mxu0
      %v416 = vpop.f32.mrb[0].mxu0
      %v417 = vadd.f32 %v244, %v416
      %v418 = vpop.f32.mrb[0].mxu0
      %419 = vmatprep.mubr.bf16.mxu0 0
      %420 = vmatmul.mubr.bf16.gmra.mrb[0].mxu0 %v331
      %v421 = vpop.f32.mrb[0].mxu0
      %v422 = vadd.f32 %v244, %v421
      %v423 = vpop.f32.mrb[0].mxu0
      %v424 = vpop.f32.mrb[0].mxu0
      %v425 = vadd.f32 %v244, %v424
      %v426 = vpop.f32.mrb[0].mxu0
      %427 = vmatprep.mubr.bf16.mxu0 0
      %428 = vmatmul.mubr.bf16.gmra.mrb[0].mxu0 %v334
      %v429 = vpop.f32.mrb[0].mxu0
      %v430 = vadd.f32 %v244, %v429
      %v431 = vpop.f32.mrb[0].mxu0
      %v432 = vpop.f32.mrb[0].mxu0
      %v433 = vadd.f32 %v244, %v432
      %v434 = vpop.f32.mrb[0].mxu0
      %435 = vmatprep.mubr.bf16.mxu0 0
      %436 = vmatmul.mubr.bf16.gmra.mrb[0].mxu0 %v337
      %v437 = vpop.f32.mrb[0].mxu0
      %v438 = vadd.f32 %v244, %v437
      %v439 = vpop.f32.mrb[0].mxu0
      %v440 = vpop.f32.mrb[0].mxu0
      %v441 = vadd.f32 %v244, %v440
      %v442 = vpop.f32.mrb[0].mxu0
      %443 = vmatprep.mubr.bf16.mxu0 0
      %444 = vmatmul.mubr.bf16.gmra.mrb[0].mxu0 %v340
      %v445 = vpop.f32.mrb[0].mxu0
      %v446 = vadd.f32 %v244, %v445
      %v447 = vpop.f32.mrb[0].mxu0
      %v448 = vpop.f32.mrb[0].mxu0
      %v449 = vadd.f32 %v244, %v448
      %v450 = vpop.f32.mrb[0].mxu0
      %451 = vmatprep.mubr.bf16.mxu0 0
      %452 = vmatmul.mubr.bf16.gmra.mrb[0].mxu0 %v343
      %v453 = vpop.f32.mrb[0].mxu0
      %v454 = vadd.f32 %v244, %v453
      %v455 = vpop.f32.mrb[0].mxu0
      %v456 = vpop.f32.mrb[0].mxu0
      %v457 = vadd.f32 %v244, %v456
      %v458 = vpop.f32.mrb[0].mxu0
      %459 = vmatprep.mubr.bf16.mxu0 0
      %460 = vmatmul.mubr.bf16.gmra.mrb[0].mxu0 %v346
      %v461 = vpop.f32.mrb[0].mxu0
      %v462 = vadd.f32 %v244, %v461
      %v463 = vpop.f32.mrb[0].mxu0
      %v464 = vpop.f32.mrb[0].mxu0
      %v465 = vadd.f32 %v244, %v464
      %v466 = vpop.f32.mrb[0].mxu0
      %467 = vmatprep.mubr.bf16.mxu0 0
      %468 = vmatmul.mubr.bf16.gmra.mrb[0].mxu0 %v349
      %v469 = vpop.f32.mrb[0].mxu0
      %v470 = vadd.f32 %v244, %v469
      %v471 = vpop.f32.mrb[0].mxu0
      %v472 = vpop.f32.mrb[0].mxu0
      %v473 = vadd.f32 %v244, %v472
      %v474 = vpop.f32.mrb[0].mxu0
      %475 = vmatprep.mubr.bf16.mxu0 0
      %476 = vmatmul.mubr.bf16.gmra.mrb[0].mxu0 %v352
      %v477 = vpop.f32.mrb[0].mxu0
      %v478 = vadd.f32 %v244, %v477
      %v479 = vpop.f32.mrb[0].mxu0
      %v480 = vpop.f32.mrb[0].mxu0
      %v481 = vadd.f32 %v244, %v480
      %v482 = vpop.f32.mrb[0].mxu0
      %483 = vmatprep.mubr.bf16.mxu0 0
      %484 = vmatmul.mubr.bf16.gmra.mrb[0].mxu0 %v355
      %v485 = vpop.f32.mrb[0].mxu0
      %v486 = vadd.f32 %v244, %v485
      %v487 = vpop.f32.mrb[0].mxu0
      %v488 = vpop.f32.mrb[0].mxu0
      %v489 = vadd.f32 %v244, %v488
      %v490 = vpop.f32.mrb[0].mxu0
      %491 = vmatprep.mubr.bf16.mxu0 0
      %492 = vmatmul.mubr.bf16.gmra.mrb[0].mxu0 %v358
      %v493 = vpop.f32.mrb[0].mxu0
      %v494 = vadd.f32 %v244, %v493
      %v495 = vpop.f32.mrb[0].mxu0
      %v496 = vpop.f32.mrb[0].mxu0
      %v497 = vadd.f32 %v244, %v496
      %v498 = vpop.f32.mrb[0].mxu0
      %499 = vmatprep.mubr.bf16.mxu0 0
      %500 = vmatmul.mubr.bf16.gmra.mrb[0].mxu0 %v361
      %v501 = vpop.f32.mrb[0].mxu0
      %v502 = vadd.f32 %v244, %v501
      %v503 = vpop.f32.mrb[0].mxu0
      %v504 = vpop.f32.mrb[0].mxu0
      %v505 = vadd.f32 %v244, %v504
      %v506 = vpop.f32.mrb[0].mxu0
      %507 = vmatprep.mubr.bf16.mxu0 0
      %508 = vmatmul.mubr.bf16.gmra.mrb[0].mxu0 %v364
      %v509 = vpop.f32.mrb[0].mxu0
      %v510 = vadd.f32 %v244, %v509
      %v511 = vpop.f32.mrb[0].mxu0
      %v512 = vpop.f32.mrb[0].mxu0
      %v513 = vadd.f32 %v244, %v512
      %v514 = vpop.f32.mrb[0].mxu0
      %515 = vmatprep.mubr.bf16.mxu0 0
      %516 = vmatmul.mubr.bf16.gmra.mrb[0].mxu0 %v367
      %v517 = vpop.f32.mrb[0].mxu0
      %v518 = vadd.f32 %v244, %v517
      %v519 = vpop.f32.mrb[0].mxu0
      %v520 = vpop.f32.mrb[0].mxu0
      %v521 = vadd.f32 %v244, %v520
      %v522 = vpop.f32.mrb[0].mxu0
      %523 = vmatprep.mubr.bf16.mxu0 0
      %524 = vmatmul.mubr.bf16.gmra.mrb[0].mxu0 %v370
      %v525 = vpop.f32.mrb[0].mxu0
      %v526 = vadd.f32 %v244, %v525
      %v527 = vpop.f32.mrb[0].mxu0
      %v528 = vpop.f32.mrb[0].mxu0
      %v529 = vadd.f32 %v244, %v528
      %v530 = vpop.f32.mrb[0].mxu0
      %531 = vmatprep.mubr.bf16.mxu0 0
      %532 = vmatmul.mubr.bf16.gmra.mrb[0].mxu0 %v373
      %v533 = vpop.f32.mrb[0].mxu0
      %v534 = vadd.f32 %v244, %v533
      %v535 = vpop.f32.mrb[0].mxu0
      %v536 = vpop.f32.mrb[0].mxu0
      %v537 = vadd.f32 %v244, %v536
      %v538 = vpop.f32.mrb[0].mxu0
      %539 = vdwg.mxu0
      %v540 = vmax.f32 %v414, 0.0
      %v541 = vmax.f32 %v417, 0.0
      %v542 = vmax.f32 %v422, 0.0
      %v543 = vmax.f32 %v425, 0.0
      %v544 = vmax.f32 %v430, 0.0
      %v545 = vmax.f32 %v433, 0.0
      %v546 = vmax.f32 %v438, 0.0
      %v547 = vmax.f32 %v441, 0.0
      %v548 = vmax.f32 %v446, 0.0
      %v549 = vmax.f32 %v449, 0.0
      %v550 = vmax.f32 %v454, 0.0
      %v551 = vmax.f32 %v457, 0.0
      %v552 = vmax.f32 %v462, 0.0
      %v553 = vmax.f32 %v465, 0.0
      %v554 = vmax.f32 %v470, 0.0
      %v555 = vmax.f32 %v473, 0.0
      %v556 = vmax.f32 %v478, 0.0
      %v557 = vmax.f32 %v481, 0.0
      %v558 = vmax.f32 %v486, 0.0
      %v559 = vmax.f32 %v489, 0.0
      %v560 = vmax.f32 %v494, 0.0
      %v561 = vmax.f32 %v497, 0.0
      %v562 = vmax.f32 %v502, 0.0
      %v563 = vmax.f32 %v505, 0.0
      %v564 = vmax.f32 %v510, 0.0
      %v565 = vmax.f32 %v513, 0.0
      %v566 = vmax.f32 %v518, 0.0
      %v567 = vmax.f32 %v521, 0.0
      %v568 = vmax.f32 %v526, 0.0
      %v569 = vmax.f32 %v529, 0.0
      %v570 = vmax.f32 %v534, 0.0
      %v571 = vmax.f32 %v537, 0.0
      %v572 = vlaneseq
      %v573 = vand.u32 %v572, 127
      %v574 = vadd.s32 %v573, 128
      %s575 = smul.u32 %s16, 256
      %v576 = vstv %s575
      %v577 = vadd.s32 %v573, %v576
      %v578 = vadd.s32 %v574, %v576
      %vm579 = vcmp.lt.s32.totalorder %v577, 800
      %vm580 = vcmp.lt.s32.totalorder %v578, 800
      %v581 = vsel %vm579, 1, 0
      %v582 = vsel %vm580, 1, 0
      %v583 = vcvt.s32.f32 %v581
      %v584 = vcvt.s32.f32 %v582
      %585 = vmatprep.subr.mxu0 0.0
      %586 = vmatpush1.msra.mxu0 %v540
      %587 = vmatprep.subr.mxu0 0.0
      %588 = vmatpush1.msra.mxu0 %v541
      %589 = vmatprep.subr.mxu0 0.0
      %590 = vmatpush1.msra.mxu0 %v542
      %591 = vmatprep.subr.mxu0 0.0
      %592 = vmatpush1.msra.mxu0 %v543
      %593 = vmatprep.subr.mxu0 0.0
      %594 = vmatpush1.msra.mxu0 %v544
      %595 = vmatprep.subr.mxu0 0.0
      %596 = vmatpush1.msra.mxu0 %v545
      %597 = vmatprep.subr.mxu0 0.0
      %598 = vmatpush1.msra.mxu0 %v546
      %599 = vmatprep.subr.mxu0 0.0
      %600 = vmatpush1.msra.mxu0 %v547
      %601 = vmatprep.subr.mxu0 0.0
      %602 = vmatpush1.msra.mxu0 %v548
      %603 = vmatprep.subr.mxu0 0.0
      %604 = vmatpush1.msra.mxu0 %v549
      %605 = vmatprep.subr.mxu0 0.0
      %606 = vmatpush1.msra.mxu0 %v550
      %607 = vmatprep.subr.mxu0 0.0
      %608 = vmatpush1.msra.mxu0 %v551
      %609 = vmatprep.subr.mxu0 0.0
      %610 = vmatpush1.msra.mxu0 %v552
      %611 = vmatprep.subr.mxu0 0.0
      %612 = vmatpush1.msra.mxu0 %v553
      %613 = vmatprep.subr.mxu0 0.0
      %614 = vmatpush1.msra.mxu0 %v554
      %615 = vmatprep.subr.mxu0 0.0
      %616 = vmatpush1.msra.mxu0 %v555
      %617 = vmatprep.subr.mxu0 0.0
      %618 = vmatpush1.msra.mxu0 %v556
      %619 = vmatprep.subr.mxu0 0.0
      %620 = vmatpush1.msra.mxu0 %v557
      %621 = vmatprep.subr.mxu0 0.0
      %622 = vmatpush1.msra.mxu0 %v558
      %623 = vmatprep.subr.mxu0 0.0
      %624 = vmatpush1.msra.mxu0 %v559
      %625 = vmatprep.subr.mxu0 0.0
      %626 = vmatpush1.msra.mxu0 %v560
      %627 = vmatprep.subr.mxu0 0.0
      %628 = vmatpush1.msra.mxu0 %v561
      %629 = vmatprep.subr.mxu0 0.0
      %630 = vmatpush1.msra.mxu0 %v562
      %631 = vmatprep.subr.mxu0 0.0
      %632 = vmatpush1.msra.mxu0 %v563
      %633 = vmatprep.subr.mxu0 0.0
      %634 = vmatpush1.msra.mxu0 %v564
      %635 = vmatprep.subr.mxu0 0.0
      %636 = vmatpush1.msra.mxu0 %v565
      %637 = vmatprep.subr.mxu0 0.0
      %638 = vmatpush1.msra.mxu0 %v566
      %639 = vmatprep.subr.mxu0 0.0
      %640 = vmatpush1.msra.mxu0 %v567
      %641 = vmatprep.subr.mxu0 0.0
      %642 = vmatpush1.msra.mxu0 %v568
      %643 = vmatprep.subr.mxu0 0.0
      %644 = vmatpush1.msra.mxu0 %v569
      %645 = vmatprep.subr.mxu0 0.0
      %646 = vmatpush1.msra.mxu0 %v570
      %647 = vmatprep.subr.mxu0 0.0
      %648 = vmatpush1.msra.mxu0 %v571
      %649 = vmatprep.mubr.f32.mxu0 %v584
      %650 = vmatmul.mubr.f32.gmra.mrb[0].mxu0 %v583
      %v651 = vpop.f32.mrb[0].mxu0
      %v652 = vadd.f32 0.0, %v651
      %v653 = vpop.f32.mrb[0].mxu0
      %654 = vdwg.mxu0
      %vm655 = vcmask 516096
      %656 = vst.msk [vmem:[%s201] sm:$0x1] %vm655, %v652
      %v657 = vmul.f32 %v540, %v540
      %v658 = vmul.f32 %v541, %v541
      %v659 = vmul.f32 %v542, %v542
      %v660 = vmul.f32 %v543, %v543
      %v661 = vmul.f32 %v544, %v544
      %v662 = vmul.f32 %v545, %v545
      %v663 = vmul.f32 %v546, %v546
      %v664 = vmul.f32 %v547, %v547
      %v665 = vmul.f32 %v548, %v548
      %v666 = vmul.f32 %v549, %v549
      %v667 = vmul.f32 %v550, %v550
      %v668 = vmul.f32 %v551, %v551
      %v669 = vmul.f32 %v552, %v552
      %v670 = vmul.f32 %v553, %v553
      %v671 = vmul.f32 %v554, %v554
      %v672 = vmul.f32 %v555, %v555
      %v673 = vmul.f32 %v556, %v556
      %v674 = vmul.f32 %v557, %v557
      %v675 = vmul.f32 %v558, %v558
      %v676 = vmul.f32 %v559, %v559
      %v677 = vmul.f32 %v560, %v560
      %v678 = vmul.f32 %v561, %v561
      %v679 = vmul.f32 %v562, %v562
      %v680 = vmul.f32 %v563, %v563
      %v681 = vmul.f32 %v564, %v564
      %v682 = vmul.f32 %v565, %v565
      %v683 = vmul.f32 %v566, %v566
      %v684 = vmul.f32 %v567, %v567
      %v685 = vmul.f32 %v568, %v568
      %v686 = vmul.f32 %v569, %v569
      %v687 = vmul.f32 %v570, %v570
      %v688 = vmul.f32 %v571, %v571
      %689 = vmatprep.subr.mxu0 0.0
      %690 = vmatpush1.msra.mxu0 %v657
      %691 = vmatprep.subr.mxu0 0.0
      %692 = vmatpush1.msra.mxu0 %v658
      %693 = vmatprep.subr.mxu0 0.0
      %694 = vmatpush1.msra.mxu0 %v659
      %695 = vmatprep.subr.mxu0 0.0
      %696 = vmatpush1.msra.mxu0 %v660
      %697 = vmatprep.subr.mxu0 0.0
      %698 = vmatpush1.msra.mxu0 %v661
      %699 = vmatprep.subr.mxu0 0.0
      %700 = vmatpush1.msra.mxu0 %v662
      %701 = vmatprep.subr.mxu0 0.0
      %702 = vmatpush1.msra.mxu0 %v663
      %703 = vmatprep.subr.mxu0 0.0
      %704 = vmatpush1.msra.mxu0 %v664
      %705 = vmatprep.subr.mxu0 0.0
      %706 = vmatpush1.msra.mxu0 %v665
      %707 = vmatprep.subr.mxu0 0.0
      %708 = vmatpush1.msra.mxu0 %v666
      %709 = vmatprep.subr.mxu0 0.0
      %710 = vmatpush1.msra.mxu0 %v667
      %711 = vmatprep.subr.mxu0 0.0
      %712 = vmatpush1.msra.mxu0 %v668
      %713 = vmatprep.subr.mxu0 0.0
      %714 = vmatpush1.msra.mxu0 %v669
      %715 = vmatprep.subr.mxu0 0.0
      %716 = vmatpush1.msra.mxu0 %v670
      %717 = vmatprep.subr.mxu0 0.0
      %718 = vmatpush1.msra.mxu0 %v671
      %719 = vmatprep.subr.mxu0 0.0
      %720 = vmatpush1.msra.mxu0 %v672
      %721 = vmatprep.subr.mxu0 0.0
      %722 = vmatpush1.msra.mxu0 %v673
      %723 = vmatprep.subr.mxu0 0.0
      %724 = vmatpush1.msra.mxu0 %v674
      %725 = vmatprep.subr.mxu0 0.0
      %726 = vmatpush1.msra.mxu0 %v675
      %727 = vmatprep.subr.mxu0 0.0
      %728 = vmatpush1.msra.mxu0 %v676
      %729 = vmatprep.subr.mxu0 0.0
      %730 = vmatpush1.msra.mxu0 %v677
      %731 = vmatprep.subr.mxu0 0.0
      %732 = vmatpush1.msra.mxu0 %v678
      %733 = vmatprep.subr.mxu0 0.0
      %734 = vmatpush1.msra.mxu0 %v679
      %735 = vmatprep.subr.mxu0 0.0
      %736 = vmatpush1.msra.mxu0 %v680
      %737 = vmatprep.subr.mxu0 0.0
      %738 = vmatpush1.msra.mxu0 %v681
      %739 = vmatprep.subr.mxu0 0.0
      %740 = vmatpush1.msra.mxu0 %v682
      %741 = vmatprep.subr.mxu0 0.0
      %742 = vmatpush1.msra.mxu0 %v683
      %743 = vmatprep.subr.mxu0 0.0
      %744 = vmatpush1.msra.mxu0 %v684
      %745 = vmatprep.subr.mxu0 0.0
      %746 = vmatpush1.msra.mxu0 %v685
      %747 = vmatprep.subr.mxu0 0.0
      %748 = vmatpush1.msra.mxu0 %v686
      %749 = vmatprep.subr.mxu0 0.0
      %750 = vmatpush1.msra.mxu0 %v687
      %751 = vmatprep.subr.mxu0 0.0
      %752 = vmatpush1.msra.mxu0 %v688
      %753 = vmatprep.mubr.f32.mxu0 %v584
      %754 = vmatmul.mubr.f32.gmra.mrb[0].mxu0 %v583
      %v755 = vpop.f32.mrb[0].mxu0
      %v756 = vadd.f32 0.0, %v755
      %v757 = vpop.f32.mrb[0].mxu0
      %758 = vdwg.mxu0
      %759 = vst.msk [vmem:[%s204] sm:$0x1] %vm655, %v756
      %p760 = scmp.lt.s32.totalorder %s16, 3
      %s761 = scalar_select %p760, %s16, 3
      %s762 = scalar_lea.vmem %s3, %s761
      %p763 = scmp.lt.s32.totalorder %s16, 3
      %s764 = scalar_select %p763, %s16, 3
      %s765 = scalar_lea.vmem %s4, %s764
      // Predicated region
      $region33: #{tnet_forward.4} parent=31 // pred_check
        %p766 = pneg %p102
      $region34: #{tnet_forward.4} parent=31 // pred_check_branch
        %768 = sbr.rel (%p766) target = $region36
      $region35: #{tnet_forward.4} parent=31 // pred_region
        _
      $region36: #{tnet_forward.4} parent=31 // pred_fallthru
        _
      // Predicated region
      $region37: #{tnet_forward.4} parent=31 // pred_check
        %p769 = pneg %p128
      $region38: #{tnet_forward.4} parent=31 // pred_check_branch
        %771 = sbr.rel (%p769) target = $region40
      $region39: #{tnet_forward.4} parent=31 // pred_region
        _
      $region40: #{tnet_forward.4} parent=31 // pred_fallthru
        _
    $region32: #{tnet_forward.4} parent=5 // pred_fallthru
      _
    %p772 = scmp.le.s32.totalorder 2, %s11
    // Predicated region
    $region41: #{tnet_forward.4} parent=5 // pred_check
      %p773 = pneg %p772
    $region42: #{tnet_forward.4} parent=5 // pred_check_branch
      %775 = sbr.rel (%p773) target = $region44
    $region43: #{tnet_forward.4} parent=5 // pred_region
      %s776 = ssub.s32 %s11, 2
      // Predicated region
      $region45: #{tnet_forward.4} parent=43 // pred_check
        %p777 = pneg %p108
      $region46: #{tnet_forward.4} parent=43 // pred_check_branch
        %779 = sbr.rel (%p777) target = $region48
      $region47: #{tnet_forward.4} parent=43 // pred_region
        %p780 = scmp.lt.s32.totalorder %s17, 3
        %s781 = scalar_select %p780, %s17, 3
        %s782 = scalar_lea.vmem %s3, %s781
      $region48: #{tnet_forward.4} parent=43 // pred_fallthru
        _
      // Predicated region
      $region49: #{tnet_forward.4} parent=43 // pred_check
        %p783 = pneg %p134
      $region50: #{tnet_forward.4} parent=43 // pred_check_branch
        %785 = sbr.rel (%p783) target = $region52
      $region51: #{tnet_forward.4} parent=43 // pred_region
        %p786 = scmp.lt.s32.totalorder %s17, 3
        %s787 = scalar_select %p786, %s17, 3
        %s788 = scalar_lea.vmem %s4, %s787
      $region52: #{tnet_forward.4} parent=43 // pred_fallthru
        _
    $region44: #{tnet_forward.4} parent=5 // pred_fallthru
      _
  $region6: #{tnet_forward.4} parent=0 // loop_footer
    %s15 = sadd.s32 1, %s11
  $region7: #{tnet_forward.4} parent=0 // loop_footer_branch
    %10 = sbr.rel target = $region3
  $region8: #{tnet_forward.4} parent=0 // loop_exit
    _

// kernel: tnet_forward.6
$region0: #{tnet_forward.6}
  #allocation0 [shape = 'u32[]', space=smem, size = 0x4, offset = 0x4, fixed_abs, tag = 'smem constant byte address 0x4 - core index']
  #allocation1 [shape = 'u32[144,128]{1,0:T(1,128)}', space=vmem, size = 0x12000, scoped, tag = 'internal scratch']
  %s0 = inlined_call_operand.vmem [shape: bf16[4,256,8], index: 0, kind: input, shape index: {}]
  %s1 = inlined_call_operand.vmem [shape: bf16[8,64], index: 1, kind: input, shape index: {}]
  %s2 = inlined_call_operand.vmem [shape: f32[1,64], index: 2, kind: input, shape index: {}]
  %s3 = inlined_call_operand.vmem [shape: bf16[64,128], index: 3, kind: input, shape index: {}]
  %s4 = inlined_call_operand.vmem [shape: f32[1,128], index: 4, kind: input, shape index: {}]
  %s5 = inlined_call_operand.vmem [shape: bf16[128,1024], index: 5, kind: input, shape index: {}]
  %s6 = inlined_call_operand.vmem [shape: f32[1,1024], index: 6, kind: input, shape index: {}]
  %s7 = inlined_call_operand.vmem [shape: f32[4,1,1024], index: 7, kind: output, shape index: {0}]
  %s8 = inlined_call_operand.vmem [shape: f32[4,1,1024], index: 8, kind: output, shape index: {1}]
  %s9 = inlined_call_operand.vmem [shape: f32[4,1,1024], index: 9, kind: output, shape index: {2}]
  %s10 = inlined_call_operand.vmem [shape: f32[4,1,1024], index: 10, kind: output, shape index: {3}]
  %11 = xla_tuple %s7, %s8, %s9, %s10
  %s12 = sld [smem:[#allocation0]]
  $region112: #{tnet_forward.6} parent=0
    _
  %s14 = ssub.s32 1, %s12
  %s15 = scalar_select 0, %s14, %s12
  $region1: #{tnet_forward.6} parent=0
    #allocation2 [shape = 'u8[262144]{0}', space=vmem, size = 0x40000, scoped, tag = 'input window, operand 5']
    loop: start=0, step=1, limit=34
    $region2: #{tnet_forward.6} parent=1 // loop_pre_header
      _
    $region3: #{tnet_forward.6} parent=1 // loop_header
      %s17 = sphi 0, %s21
      %p18 = scmp.ge.s32.totalorder %s17, 34
      %s24 = sphi 0, %s43
      %s25 = sphi 0, %s39
      %s26 = sphi 0, %s35
      %s27 = sphi 0, %s24
      %s28 = sphi 0, %s25
      %s29 = sphi 0, %s26
      %s30 = sphi 0, %s27
      %s31 = sphi 0, %s28
      %s32 = sphi 0, %s29
      %s48 = sphi 0, %s50
      %s51 = sphi 0, %s48
      %s52 = sphi 0, %s51
      %s68 = sphi 0, %s52
      %s72 = sphi 0, %s72
      %s74 = sphi 0, %s72
      %s75 = sphi 0, %s74
      %s89 = sphi 0, %s75
      %s93 = sphi 0, %s93
      %s95 = sphi 0, %s93
      %s96 = sphi 0, %s95
      %s110 = sphi 0, %s96
      %s114 = sphi 0, %s114
      %s116 = sphi 0, %s114
      %s117 = sphi 0, %s116
      %s131 = sphi 0, %s117
      %s135 = sphi 0, %s135
      %s137 = sphi 0, %s135
      %s138 = sphi 0, %s137
      %s152 = sphi 0, %s138
      %s158 = sphi 0, %s160
      %s161 = sphi 0, %s158
      %s162 = sphi 0, %s161
      %s178 = sphi 0, %s162
      %s184 = sphi 0, %s186
      %s187 = sphi 0, %s184
      %s188 = sphi 0, %s187
      %s204 = sphi 0, %s188
      %s212 = sphi 0, %s214
      %s215 = sphi 0, %s212
      %s216 = sphi 0, %s215
      %s232 = sphi 0, %s216
      %s240 = sphi 0, %s242
      %s243 = sphi 0, %s240
      %s244 = sphi 0, %s243
      %s260 = sphi 0, %s244
      %s268 = sphi 0, %s270
      %s271 = sphi 0, %s268
      %s272 = sphi 0, %s271
      %s288 = sphi 0, %s272
      %s296 = sphi 0, %s298
      %s299 = sphi 0, %s296
      %s300 = sphi 0, %s299
      %s316 = sphi 0, %s300
    $region4: #{tnet_forward.6} parent=1 // loop_header_branch
      %20 = sbr.rel (%p18) target = $region8
    $region5: #{tnet_forward.6} parent=1 // loop_body
      %s22 = ssub.s32 %s17, 1
      %s23 = ssub.s32 %s17, 2
      %s33 = sadd.s32 1, %s26
      %p34 = scmp.ge.s32.totalorder %s33, 4
      %s35 = scalar_select %p34, 0, %s33
      %s36 = sadd.s32 1, %s25
      %s37 = scalar_select %p34, %s36, %s25
      %p38 = scmp.ge.s32.totalorder %s37, 2
      %s39 = scalar_select %p38, 0, %s37
      %s40 = sadd.s32 1, %s24
      %s41 = scalar_select %p38, %s40, %s24
      %p42 = scmp.ge.s32.totalorder %s41, 4
      %s43 = scalar_select %p42, 0, %s41
      %s44 = ssub.s32 %s24, %s43
      %s45 = ssub.s32 %s26, %s35
      %s46 = sor.u32 %s44, %s45
      %p47 = scmp.eq.s32.totalorder %s46, 0
      %s49 = sadd.s32 %s48, 1
      %s50 = scalar_select %p47, %s48, %s49
      %p53 = pneg %p47
      %p54 = scmp.eq.s32.totalorder %s17, 31
      %p55 = por %p53, %p54
      %p56 = scmp.ne.s32.totalorder %s48, %s51
      %p57 = scmp.eq.s32.totalorder %s17, 0
      %p58 = por %p56, %p57
      %p59 = scmp.ne.s32.totalorder %s48, %s51
      %p60 = scmp.eq.s32.totalorder %s22, 31
      %p61 = por %p59, %p60
      %p62 = scmp.ne.s32.totalorder %s51, %s52
      %p63 = scmp.eq.s32.totalorder %s22, 0
      %p64 = por %p62, %p63
      %p65 = scmp.ne.s32.totalorder %s51, %s52
      %p66 = scmp.eq.s32.totalorder %s23, 31
      %p67 = por %p65, %p66
      %p69 = scmp.ne.s32.totalorder %s52, %s68
      %p70 = scmp.eq.s32.totalorder %s23, 0
      %p71 = por %p69, %p70
      %s73 = sadd.s32 %s72, 1
      %p76 = scmp.eq.s32.totalorder %s17, 31
      %p77 = scmp.ne.s32.totalorder %s72, %s74
      %p78 = scmp.eq.s32.totalorder %s17, 0
      %p79 = por %p77, %p78
      %p80 = scmp.ne.s32.totalorder %s72, %s74
      %p81 = scmp.eq.s32.totalorder %s22, 31
      %p82 = por %p80, %p81
      %p83 = scmp.ne.s32.totalorder %s74, %s75
      %p84 = scmp.eq.s32.totalorder %s22, 0
      %p85 = por %p83, %p84
      %p86 = scmp.ne.s32.totalorder %s74, %s75
      %p87 = scmp.eq.s32.totalorder %s23, 31
      %p88 = por %p86, %p87
      %p90 = scmp.ne.s32.totalorder %s75, %s89
      %p91 = scmp.eq.s32.totalorder %s23, 0
      %p92 = por %p90, %p91
      %s94 = sadd.s32 %s93, 1
      %p97 = scmp.eq.s32.totalorder %s17, 31
      %p98 = scmp.ne.s32.totalorder %s93, %s95
      %p99 = scmp.eq.s32.totalorder %s17, 0
      %p100 = por %p98, %p99
      %p101 = scmp.ne.s32.totalorder %s93, %s95
      %p102 = scmp.eq.s32.totalorder %s22, 31
      %p103 = por %p101, %p102
      %p104 = scmp.ne.s32.totalorder %s95, %s96
      %p105 = scmp.eq.s32.totalorder %s22, 0
      %p106 = por %p104, %p105
      %p107 = scmp.ne.s32.totalorder %s95, %s96
      %p108 = scmp.eq.s32.totalorder %s23, 31
      %p109 = por %p107, %p108
      %p111 = scmp.ne.s32.totalorder %s96, %s110
      %p112 = scmp.eq.s32.totalorder %s23, 0
      %p113 = por %p111, %p112
      %s115 = sadd.s32 %s114, 1
      %p118 = scmp.eq.s32.totalorder %s17, 31
      %p119 = scmp.ne.s32.totalorder %s114, %s116
      %p120 = scmp.eq.s32.totalorder %s17, 0
      %p121 = por %p119, %p120
      %p122 = scmp.ne.s32.totalorder %s114, %s116
      %p123 = scmp.eq.s32.totalorder %s22, 31
      %p124 = por %p122, %p123
      %p125 = scmp.ne.s32.totalorder %s116, %s117
      %p126 = scmp.eq.s32.totalorder %s22, 0
      %p127 = por %p125, %p126
      %p128 = scmp.ne.s32.totalorder %s116, %s117
      %p129 = scmp.eq.s32.totalorder %s23, 31
      %p130 = por %p128, %p129
      %p132 = scmp.ne.s32.totalorder %s117, %s131
      %p133 = scmp.eq.s32.totalorder %s23, 0
      %p134 = por %p132, %p133
      %s136 = sadd.s32 %s135, 1
      %p139 = scmp.eq.s32.totalorder %s17, 31
      %p140 = scmp.ne.s32.totalorder %s135, %s137
      %p141 = scmp.eq.s32.totalorder %s17, 0
      %p142 = por %p140, %p141
      %p143 = scmp.ne.s32.totalorder %s135, %s137
      %p144 = scmp.eq.s32.totalorder %s22, 31
      %p145 = por %p143, %p144
      %p146 = scmp.ne.s32.totalorder %s137, %s138
      %p147 = scmp.eq.s32.totalorder %s22, 0
      %p148 = por %p146, %p147
      %p149 = scmp.ne.s32.totalorder %s137, %s138
      %p150 = scmp.eq.s32.totalorder %s23, 31
      %p151 = por %p149, %p150
      %p153 = scmp.ne.s32.totalorder %s138, %s152
      %p154 = scmp.eq.s32.totalorder %s23, 0
      %p155 = por %p153, %p154
      %s156 = ssub.s32 %s25, %s39
      %p157 = scmp.eq.s32.totalorder %s156, 0
      %s159 = sadd.s32 %s158, 1
      %s160 = scalar_select %p157, %s158, %s159
      %p163 = pneg %p157
      %p164 = scmp.eq.s32.totalorder %s17, 31
      %p165 = por %p163, %p164
      %p166 = scmp.ne.s32.totalorder %s158, %s161
      %p167 = scmp.eq.s32.totalorder %s17, 0
      %p168 = por %p166, %p167
      %p169 = scmp.ne.s32.totalorder %s158, %s161
      %p170 = scmp.eq.s32.totalorder %s22, 31
      %p171 = por %p169, %p170
      %p172 = scmp.ne.s32.totalorder %s161, %s162
      %p173 = scmp.eq.s32.totalorder %s22, 0
      %p174 = por %p172, %p173
      %p175 = scmp.ne.s32.totalorder %s161, %s162
      %p176 = scmp.eq.s32.totalorder %s23, 31
      %p177 = por %p175, %p176
      %p179 = scmp.ne.s32.totalorder %s162, %s178
      %p180 = scmp.eq.s32.totalorder %s23, 0
      %p181 = por %p179, %p180
      %s182 = ssub.s32 %s25, %s39
      %p183 = scmp.eq.s32.totalorder %s182, 0
      %s185 = sadd.s32 %s184, 1
      %s186 = scalar_select %p183, %s184, %s185
      %p189 = pneg %p183
      %p190 = scmp.eq.s32.totalorder %s17, 31
      %p191 = por %p189, %p190
      %p192 = scmp.ne.s32.totalorder %s184, %s187
      %p193 = scmp.eq.s32.totalorder %s17, 0
      %p194 = por %p192, %p193
      %p195 = scmp.ne.s32.totalorder %s184, %s187
      %p196 = scmp.eq.s32.totalorder %s22, 31
      %p197 = por %p195, %p196
      %p198 = scmp.ne.s32.totalorder %s187, %s188
      %p199 = scmp.eq.s32.totalorder %s22, 0
      %p200 = por %p198, %p199
      %p201 = scmp.ne.s32.totalorder %s187, %s188
      %p202 = scmp.eq.s32.totalorder %s23, 31
      %p203 = por %p201, %p202
      %p205 = scmp.ne.s32.totalorder %s188, %s204
      %p206 = scmp.eq.s32.totalorder %s23, 0
      %p207 = por %p205, %p206
      %s208 = ssub.s32 %s24, %s43
      %s209 = ssub.s32 %s25, %s39
      %s210 = sor.u32 %s208, %s209
      %p211 = scmp.eq.s32.totalorder %s210, 0
      %s213 = sadd.s32 %s212, 1
      %s214 = scalar_select %p211, %s212, %s213
      %p217 = pneg %p211
      %p218 = scmp.eq.s32.totalorder %s17, 31
      %p219 = por %p217, %p218
      %p220 = scmp.ne.s32.totalorder %s212, %s215
      %p221 = scmp.eq.s32.totalorder %s17, 0
      %p222 = por %p220, %p221
      %p223 = scmp.ne.s32.totalorder %s212, %s215
      %p224 = scmp.eq.s32.totalorder %s22, 31
      %p225 = por %p223, %p224
      %p226 = scmp.ne.s32.totalorder %s215, %s216
      %p227 = scmp.eq.s32.totalorder %s22, 0
      %p228 = por %p226, %p227
      %p229 = scmp.ne.s32.totalorder %s215, %s216
      %p230 = scmp.eq.s32.totalorder %s23, 31
      %p231 = por %p229, %p230
      %p233 = scmp.ne.s32.totalorder %s216, %s232
      %p234 = scmp.eq.s32.totalorder %s23, 0
      %p235 = por %p233, %p234
      %s236 = ssub.s32 %s24, %s43
      %s237 = ssub.s32 %s25, %s39
      %s238 = sor.u32 %s236, %s237
      %p239 = scmp.eq.s32.totalorder %s238, 0
      %s241 = sadd.s32 %s240, 1
      %s242 = scalar_select %p239, %s240, %s241
      %p245 = pneg %p239
      %p246 = scmp.eq.s32.totalorder %s17, 31
      %p247 = por %p245, %p246
      %p248 = scmp.ne.s32.totalorder %s240, %s243
      %p249 = scmp.eq.s32.totalorder %s17, 0
      %p250 = por %p248, %p249
      %p251 = scmp.ne.s32.totalorder %s240, %s243
      %p252 = scmp.eq.s32.totalorder %s22, 31
      %p253 = por %p251, %p252
      %p254 = scmp.ne.s32.totalorder %s243, %s244
      %p255 = scmp.eq.s32.totalorder %s22, 0
      %p256 = por %p254, %p255
      %p257 = scmp.ne.s32.totalorder %s243, %s244
      %p258 = scmp.eq.s32.totalorder %s23, 31
      %p259 = por %p257, %p258
      %p261 = scmp.ne.s32.totalorder %s244, %s260
      %p262 = scmp.eq.s32.totalorder %s23, 0
      %p263 = por %p261, %p262
      %s264 = ssub.s32 %s24, %s43
      %s265 = ssub.s32 %s25, %s39
      %s266 = sor.u32 %s264, %s265
      %p267 = scmp.eq.s32.totalorder %s266, 0
      %s269 = sadd.s32 %s268, 1
      %s270 = scalar_select %p267, %s268, %s269
      %p273 = pneg %p267
      %p274 = scmp.eq.s32.totalorder %s17, 31
      %p275 = por %p273, %p274
      %p276 = scmp.ne.s32.totalorder %s268, %s271
      %p277 = scmp.eq.s32.totalorder %s17, 0
      %p278 = por %p276, %p277
      %p279 = scmp.ne.s32.totalorder %s268, %s271
      %p280 = scmp.eq.s32.totalorder %s22, 31
      %p281 = por %p279, %p280
      %p282 = scmp.ne.s32.totalorder %s271, %s272
      %p283 = scmp.eq.s32.totalorder %s22, 0
      %p284 = por %p282, %p283
      %p285 = scmp.ne.s32.totalorder %s271, %s272
      %p286 = scmp.eq.s32.totalorder %s23, 31
      %p287 = por %p285, %p286
      %p289 = scmp.ne.s32.totalorder %s272, %s288
      %p290 = scmp.eq.s32.totalorder %s23, 0
      %p291 = por %p289, %p290
      %s292 = ssub.s32 %s24, %s43
      %s293 = ssub.s32 %s25, %s39
      %s294 = sor.u32 %s292, %s293
      %p295 = scmp.eq.s32.totalorder %s294, 0
      %s297 = sadd.s32 %s296, 1
      %s298 = scalar_select %p295, %s296, %s297
      %p301 = pneg %p295
      %p302 = scmp.eq.s32.totalorder %s17, 31
      %p303 = por %p301, %p302
      %p304 = scmp.ne.s32.totalorder %s296, %s299
      %p305 = scmp.eq.s32.totalorder %s17, 0
      %p306 = por %p304, %p305
      %p307 = scmp.ne.s32.totalorder %s296, %s299
      %p308 = scmp.eq.s32.totalorder %s22, 31
      %p309 = por %p307, %p308
      %p310 = scmp.ne.s32.totalorder %s299, %s300
      %p311 = scmp.eq.s32.totalorder %s22, 0
      %p312 = por %p310, %p311
      %p313 = scmp.ne.s32.totalorder %s299, %s300
      %p314 = scmp.eq.s32.totalorder %s23, 31
      %p315 = por %p313, %p314
      %p317 = scmp.ne.s32.totalorder %s300, %s316
      %p318 = scmp.eq.s32.totalorder %s23, 0
      %p319 = por %p317, %p318
      %p320 = scmp.le.s32.totalorder 1, %s17
      %p321 = scmp.lt.s32.totalorder %s17, 33
      %p322 = pnand %p320, %p321
      %p323 = pneg %p322
      // Predicated region
      $region9: #{tnet_forward.6} parent=5 // pred_check
        _
      $region10: #{tnet_forward.6} parent=5 // pred_check_branch
        %325 = sbr.rel (%p322) target = $region12
      $region11: #{tnet_forward.6} parent=5 // pred_region
        %s326 = ssub.s32 %s17, 1
        // Predicated region
        $region13: #{tnet_forward.6} parent=11 // pred_check
          %p327 = pneg %p85
        $region14: #{tnet_forward.6} parent=11 // pred_check_branch
          %329 = sbr.rel (%p327) target = $region16
        $region15: #{tnet_forward.6} parent=11 // pred_region
          _
        $region16: #{tnet_forward.6} parent=11 // pred_fallthru
          _
        // Predicated region
        $region17: #{tnet_forward.6} parent=11 // pred_check
          %p330 = pneg %p106
        $region18: #{tnet_forward.6} parent=11 // pred_check_branch
          %332 = sbr.rel (%p330) target = $region20
        $region19: #{tnet_forward.6} parent=11 // pred_region
          _
        $region20: #{tnet_forward.6} parent=11 // pred_fallthru
          _
        // Predicated region
        $region21: #{tnet_forward.6} parent=11 // pred_check
          %p333 = pneg %p127
        $region22: #{tnet_forward.6} parent=11 // pred_check_branch
          %335 = sbr.rel (%p333) target = $region24
        $region23: #{tnet_forward.6} parent=11 // pred_region
          _
        $region24: #{tnet_forward.6} parent=11 // pred_fallthru
          _
        // Predicated region
        $region25: #{tnet_forward.6} parent=11 // pred_check
          %p336 = pneg %p148
        $region26: #{tnet_forward.6} parent=11 // pred_check_branch
          %338 = sbr.rel (%p336) target = $region28
        $region27: #{tnet_forward.6} parent=11 // pred_region
          _
        $region28: #{tnet_forward.6} parent=11 // pred_fallthru
          _
      $region12: #{tnet_forward.6} parent=5 // pred_fallthru
        _
      %p339 = scmp.lt.s32.totalorder %s17, 32
      // Predicated region
      $region29: #{tnet_forward.6} parent=5 // pred_check
        %p340 = pneg %p339
      $region30: #{tnet_forward.6} parent=5 // pred_check_branch
        %342 = sbr.rel (%p340) target = $region32
      $region31: #{tnet_forward.6} parent=5 // pred_region
        // Predicated region
        $region33: #{tnet_forward.6} parent=31 // pred_check
          %p343 = pneg %p58
        $region34: #{tnet_forward.6} parent=31 // pred_check_branch
          %345 = sbr.rel (%p343) target = $region36
        $region35: #{tnet_forward.6} parent=31 // pred_region
          %s346 = smul.u32 8, %s26
          %p347 = scmp.lt.s32.totalorder %s24, 3
          %s348 = scalar_select %p347, %s24, 3
          %p349 = scmp.lt.s32.totalorder %s346, 31
          %s350 = scalar_select %p349, %s346, 31
          %s351 = smul.addr %s348, 32
          %s352 = sadd.s32 %s350, %s351
          %s353 = smul.addr %s352, 4
          %s354 = scalar_lea.vmem %s0, %s353
          %s355 = smul.u32 8, %s26
        $region36: #{tnet_forward.6} parent=31 // pred_fallthru
          _
        // Predicated region
        $region37: #{tnet_forward.6} parent=31 // pred_check
          %p356 = pneg %p168
        $region38: #{tnet_forward.6} parent=31 // pred_check_branch
          %358 = sbr.rel (%p356) target = $region40
        $region39: #{tnet_forward.6} parent=31 // pred_region
          %s359 = sand.u32 %s158, 1
          %s360 = sand.u32 %s158, 1
          %s361 = smul.addr %s360, 256
          %s362 = scalar_lea.vmem [#allocation2], %s361
          %s363 = smul.u32 4, %s25
          %s364 = smul.addr %s363, 4
          %s365 = scalar_lea.vmem %s5, %s364
          // Predicated region
          $region41: #{tnet_forward.6} parent=39 // pred_check
            _
          $region42: #{tnet_forward.6} parent=39 // pred_check_branch
            %367 = sbr.rel (0) target = $region44
          $region43: #{tnet_forward.6} parent=39 // pred_region
            // Predicated region
            $region45: #{tnet_forward.6} parent=43 // pred_check
              _
            $region46: #{tnet_forward.6} parent=43 // pred_check_branch
              %369 = sbr.rel (0) target = $region48
            $region47: #{tnet_forward.6} parent=43 // pred_region
              loop: start=0, step=1, limit=1
              $region49: #{tnet_forward.6} parent=47 // loop_pre_header
                _
              $region50: #{tnet_forward.6} parent=47 // loop_header
                %s371 = sphi 0, %s375
                %p372 = scmp.ge.s32.totalorder %s371, 1
                %s376 = sphi %s365, %s365
                %s377 = sphi %s362, %s362
              $region51: #{tnet_forward.6} parent=47 // loop_header_branch
                %374 = sbr.rel (%p372) target = $region55
              $region52: #{tnet_forward.6} parent=47 // loop_body
                %v378 = vld [vmem:[%s376] sm:$0xff]
                %379 = vst [vmem:[%s377] sm:$0xff] %v378
                %v380 = vld [vmem:[%s376 + $0x8] sm:$0xff]
                %381 = vst [vmem:[%s377 + $0x8] sm:$0xff] %v380
                %v382 = vld [vmem:[%s376 + $0x20] sm:$0xff]
                %383 = vst [vmem:[%s377 + $0x10] sm:$0xff] %v382
                %v384 = vld [vmem:[%s376 + $0x28] sm:$0xff]
                %385 = vst [vmem:[%s377 + $0x18] sm:$0xff] %v384
                %v386 = vld [vmem:[%s376 + $0x40] sm:$0xff]
                %387 = vst [vmem:[%s377 + $0x20] sm:$0xff] %v386
                %v388 = vld [vmem:[%s376 + $0x48] sm:$0xff]
                %389 = vst [vmem:[%s377 + $0x28] sm:$0xff] %v388
                %v390 = vld [vmem:[%s376 + $0x60] sm:$0xff]
                %391 = vst [vmem:[%s377 + $0x30] sm:$0xff] %v390
                %v392 = vld [vmem:[%s376 + $0x68] sm:$0xff]
                %393 = vst [vmem:[%s377 + $0x38] sm:$0xff] %v392
                %v394 = vld [vmem:[%s376 + $0x80] sm:$0xff]
                %395 = vst [vmem:[%s377 + $0x40] sm:$0xff] %v394
                %v396 = vld [vmem:[%s376 + $0x88] sm:$0xff]
                %397 = vst [vmem:[%s377 + $0x48] sm:$0xff] %v396
                %v398 = vld [vmem:[%s376 + $0xa0] sm:$0xff]
                %399 = vst [vmem:[%s377 + $0x50] sm:$0xff] %v398
                %v400 = vld [vmem:[%s376 + $0xa8] sm:$0xff]
                %401 = vst [vmem:[%s377 + $0x58] sm:$0xff] %v400
                %v402 = vld [vmem:[%s376 + $0xc0] sm:$0xff]
                %403 = vst [vmem:[%s377 + $0x60] sm:$0xff] %v402
                %v404 = vld [vmem:[%s376 + $0xc8] sm:$0xff]
                %405 = vst [vmem:[%s377 + $0x68] sm:$0xff] %v404
                %v406 = vld [vmem:[%s376 + $0xe0] sm:$0xff]
                %407 = vst [vmem:[%s377 + $0x70] sm:$0xff] %v406
                %v408 = vld [vmem:[%s376 + $0xe8] sm:$0xff]
                %409 = vst [vmem:[%s377 + $0x78] sm:$0xff] %v408
                %v410 = vld [vmem:[%s376 + $0x100] sm:$0xff]
                %411 = vst [vmem:[%s377 + $0x80] sm:$0xff] %v410
                %v412 = vld [vmem:[%s376 + $0x108] sm:$0xff]
                %413 = vst [vmem:[%s377 + $0x88] sm:$0xff] %v412
                %v414 = vld [vmem:[%s376 + $0x120] sm:$0xff]
                %415 = vst [vmem:[%s377 + $0x90] sm:$0xff] %v414
                %v416 = vld [vmem:[%s376 + $0x128] sm:$0xff]
                %417 = vst [vmem:[%s377 + $0x98] sm:$0xff] %v416
                %v418 = vld [vmem:[%s376 + $0x140] sm:$0xff]
                %419 = vst [vmem:[%s377 + $0xa0] sm:$0xff] %v418
                %v420 = vld [vmem:[%s376 + $0x148] sm:$0xff]
                %421 = vst [vmem:[%s377 + $0xa8] sm:$0xff] %v420
                %v422 = vld [vmem:[%s376 + $0x160] sm:$0xff]
                %423 = vst [vmem:[%s377 + $0xb0] sm:$0xff] %v422
                %v424 = vld [vmem:[%s376 + $0x168] sm:$0xff]
                %425 = vst [vmem:[%s377 + $0xb8] sm:$0xff] %v424
                %v426 = vld [vmem:[%s376 + $0x180] sm:$0xff]
                %427 = vst [vmem:[%s377 + $0xc0] sm:$0xff] %v426
                %v428 = vld [vmem:[%s376 + $0x188] sm:$0xff]
                %429 = vst [vmem:[%s377 + $0xc8] sm:$0xff] %v428
                %v430 = vld [vmem:[%s376 + $0x1a0] sm:$0xff]
                %431 = vst [vmem:[%s377 + $0xd0] sm:$0xff] %v430
                %v432 = vld [vmem:[%s376 + $0x1a8] sm:$0xff]
                %433 = vst [vmem:[%s377 + $0xd8] sm:$0xff] %v432
                %v434 = vld [vmem:[%s376 + $0x1c0] sm:$0xff]
                %435 = vst [vmem:[%s377 + $0xe0] sm:$0xff] %v434
                %v436 = vld [vmem:[%s376 + $0x1c8] sm:$0xff]
                %437 = vst [vmem:[%s377 + $0xe8] sm:$0xff] %v436
                %v438 = vld [vmem:[%s376 + $0x1e0] sm:$0xff]
                %439 = vst [vmem:[%s377 + $0xf0] sm:$0xff] %v438
                %v440 = vld [vmem:[%s376 + $0x1e8] sm:$0xff]
                %441 = vst [vmem:[%s377 + $0xf8] sm:$0xff] %v440
              $region53: #{tnet_forward.6} parent=47 // loop_footer
                %s375 = sadd.s32 1, %s371
              $region54: #{tnet_forward.6} parent=47 // loop_footer_branch
                %370 = sbr.rel target = $region50
              $region55: #{tnet_forward.6} parent=47 // loop_exit
                _
            $region48: #{tnet_forward.6} parent=43 // pred_fallthru
              _
            // Predicated region
            $region56: #{tnet_forward.6} parent=43 // pred_check
              _
            $region57: #{tnet_forward.6} parent=43 // pred_check_branch
              %443 = sbr.rel target = $region59
            $region58: #{tnet_forward.6} parent=43 // pred_region
              _
            $region59: #{tnet_forward.6} parent=43 // pred_fallthru
              _
          $region44: #{tnet_forward.6} parent=39 // pred_fallthru
            _
          %444 = vnop
        $region40: #{tnet_forward.6} parent=31 // pred_fallthru
          _
        // Predicated region
        $region60: #{tnet_forward.6} parent=31 // pred_check
          %p445 = pneg %p194
        $region61: #{tnet_forward.6} parent=31 // pred_check_branch
          %447 = sbr.rel (%p445) target = $region63
        $region62: #{tnet_forward.6} parent=31 // pred_region
          %s448 = smul.u32 4, %s25
          %p449 = scmp.lt.s32.totalorder %s448, 7
          %s450 = scalar_select %p449, %s448, 7
          %s451 = scalar_lea.vmem %s6, %s450
          %s452 = smul.u32 4, %s25
        $region63: #{tnet_forward.6} parent=31 // pred_fallthru
          _
      $region32: #{tnet_forward.6} parent=5 // pred_fallthru
        _
      %p453 = scmp.le.s32.totalorder 1, %s17
      %p454 = scmp.lt.s32.totalorder %s17, 33
      %p455 = pnand %p453, %p454
      %p456 = pneg %p455
      // Predicated region
      $region64: #{tnet_forward.6} parent=5 // pred_check
        _
      $region65: #{tnet_forward.6} parent=5 // pred_check_branch
        %458 = sbr.rel (%p455) target = $region67
      $region66: #{tnet_forward.6} parent=5 // pred_region
        %s459 = ssub.s32 %s17, 1
        %s460 = sand.u32 %s161, 1
        %s461 = sand.u32 %s161, 1
        %s462 = smul.addr %s461, 256
        %s463 = scalar_lea.vmem [#allocation2], %s462
        // Predicated region
        $region68: #{tnet_forward.6} parent=66 // pred_check
          %p464 = pneg %p174
        $region69: #{tnet_forward.6} parent=66 // pred_check_branch
          %466 = sbr.rel (%p464) target = $region71
        $region70: #{tnet_forward.6} parent=66 // pred_region
          _
        $region71: #{tnet_forward.6} parent=66 // pred_fallthru
          _
        %s467 = smul.u32 8, %s29
        %p468 = scmp.lt.s32.totalorder %s27, 3
        %s469 = scalar_select %p468, %s27, 3
        %p470 = scmp.lt.s32.totalorder %s467, 31
        %s471 = scalar_select %p470, %s467, 31
        %s472 = smul.addr %s469, 32
        %s473 = sadd.s32 %s471, %s472
        %s474 = smul.addr %s473, 4
        %s475 = scalar_lea.vmem %s0, %s474
        %p476 = pneg %p64
        %p477 = pneg %p61
        %p478 = pneg %p85
        %p479 = pneg %p82
        %p480 = pneg %p106
        %p481 = pneg %p103
        %p482 = pneg %p127
        %p483 = pneg %p124
        %p484 = pneg %p148
        %p485 = pneg %p145
        %s486 = sand.u32 %s161, 1
        %s487 = sand.u32 %s161, 1
        %s488 = smul.addr %s487, 256
        %s489 = scalar_lea.vmem [#allocation2], %s488
        %p490 = pneg %p174
        %p491 = pneg %p171
        %s492 = smul.u32 4, %s28
        %p493 = scmp.lt.s32.totalorder %s492, 7
        %s494 = scalar_select %p493, %s492, 7
        %s495 = scalar_lea.vmem %s6, %s494
        %p496 = pneg %p200
        %p497 = pneg %p197
        %p498 = pneg %p228
        %p499 = pneg %p225
        %s500 = smul.u32 4, %s28
        %p501 = scmp.lt.s32.totalorder %s27, 3
        %s502 = scalar_select %p501, %s27, 3
        %p503 = scmp.lt.s32.totalorder %s500, 7
        %s504 = scalar_select %p503, %s500, 7
        %s505 = smul.addr %s502, 8
        %s506 = sadd.s32 %s504, %s505
        %s507 = scalar_lea.vmem %s7, %s506
        %p508 = pneg %p256
        %p509 = pneg %p253
        %s510 = smul.u32 4, %s28
        %p511 = scmp.lt.s32.totalorder %s27, 3
        %s512 = scalar_select %p511, %s27, 3
        %p513 = scmp.lt.s32.totalorder %s510, 7
        %s514 = scalar_select %p513, %s510, 7
        %s515 = smul.addr %s512, 8
        %s516 = sadd.s32 %s514, %s515
        %s517 = scalar_lea.vmem %s8, %s516
        %p518 = pneg %p284
        %p519 = pneg %p281
        %s520 = smul.u32 4, %s28
        %p521 = scmp.lt.s32.totalorder %s27, 3
        %s522 = scalar_select %p521, %s27, 3
        %p523 = scmp.lt.s32.totalorder %s520, 7
        %s524 = scalar_select %p523, %s520, 7
        %s525 = smul.addr %s522, 8
        %s526 = sadd.s32 %s524, %s525
        %s527 = scalar_lea.vmem %s9, %s526
        %p528 = pneg %p312
        %p529 = pneg %p309
        %s530 = smul.u32 4, %s28
        %p531 = scmp.lt.s32.totalorder %s27, 3
        %s532 = scalar_select %p531, %s27, 3
        %p533 = scmp.lt.s32.totalorder %s530, 7
        %s534 = scalar_select %p533, %s530, 7
        %s535 = smul.addr %s532, 8
        %s536 = sadd.s32 %s534, %s535
        %s537 = scalar_lea.vmem %s10, %s536
        %s538 = smul.u32 8, %s29
        %p539 = scmp.lt.s32.totalorder %s27, 3
        %s540 = scalar_select %p539, %s27, 3
        %p541 = scmp.lt.s32.totalorder %s538, 31
        %s542 = scalar_select %p541, %s538, 31
        %s543 = smul.addr %s540, 32
        %s544 = sadd.s32 %s542, %s543
        %s545 = smul.addr %s544, 4
        %s546 = scalar_lea.vmem %s0, %s545
        %s547 = smul.u32 8, %s29
        %s548 = smul.u32 4, %s28
        %s549 = smul.u32 4, %s28
        %p550 = scmp.lt.s32.totalorder %s549, 7
        %s551 = scalar_select %p550, %s549, 7
        %s552 = scalar_lea.vmem %s6, %s551
        %s553 = smul.u32 4, %s28
        %s554 = smul.u32 4, %s28
        %p555 = scmp.lt.s32.totalorder %s27, 3
        %s556 = scalar_select %p555, %s27, 3
        %p557 = scmp.lt.s32.totalorder %s554, 7
        %s558 = scalar_select %p557, %s554, 7
        %s559 = smul.addr %s556, 8
        %s560 = sadd.s32 %s558, %s559
        %s561 = scalar_lea.vmem %s7, %s560
        %s562 = smul.u32 4, %s28
        %s563 = smul.u32 4, %s28
        %p564 = scmp.lt.s32.totalorder %s27, 3
        %s565 = scalar_select %p564, %s27, 3
        %p566 = scmp.lt.s32.totalorder %s563, 7
        %s567 = scalar_select %p566, %s563, 7
        %s568 = smul.addr %s565, 8
        %s569 = sadd.s32 %s567, %s568
        %s570 = scalar_lea.vmem %s8, %s569
        %s571 = smul.u32 4, %s28
        %s572 = smul.u32 4, %s28
        %p573 = scmp.lt.s32.totalorder %s27, 3
        %s574 = scalar_select %p573, %s27, 3
        %p575 = scmp.lt.s32.totalorder %s572, 7
        %s576 = scalar_select %p575, %s572, 7
        %s577 = smul.addr %s574, 8
        %s578 = sadd.s32 %s576, %s577
        %s579 = scalar_lea.vmem %s9, %s578
        %s580 = smul.u32 4, %s28
        %s581 = smul.u32 4, %s28
        %p582 = scmp.lt.s32.totalorder %s27, 3
        %s583 = scalar_select %p582, %s27, 3
        %p584 = scmp.lt.s32.totalorder %s581, 7
        %s585 = scalar_select %p584, %s581, 7
        %s586 = smul.addr %s583, 8
        %s587 = sadd.s32 %s585, %s586
        %s588 = scalar_lea.vmem %s10, %s587
        %s589 = smul.u32 4, %s28
        %v591 = vld [vmem:[%s546] sm:$0xf]
        %v592 = vld [vmem:[%s546 + $0x4] sm:$0xf]
        %v593 = vld [vmem:[%s546 + $0x8] sm:$0xf]
        %v594 = vld [vmem:[%s546 + $0xc] sm:$0xf]
        %v595 = vld [vmem:[%s546 + $0x10] sm:$0xf]
        %v596 = vld [vmem:[%s546 + $0x14] sm:$0xf]
        %v597 = vld [vmem:[%s546 + $0x18] sm:$0xf]
        %v598 = vld [vmem:[%s546 + $0x1c] sm:$0xf]
        %v599 = vld [vmem:[%s1] sm:$0xf]
        %v600 = vld [vmem:[%s2] sm:$0x1]
        %v602 = vlaneseq
        %v603 = vshrl.u32 %v602, 7
        %v604 = vsub.s32 0, %v603
        %v605 = vrot.slane %v600, %v604
        %v615 = vunpack.c.l.b16 %v591
        %v616 = vunpack.c.l.b16 %v592
        %v617 = vunpack.c.l.b16 %v593
        %v618 = vunpack.c.l.b16 %v594
        %v619 = vunpack.c.l.b16 %v595
        %v620 = vunpack.c.l.b16 %v596
        %v621 = vunpack.c.l.b16 %v597
        %v622 = vunpack.c.l.b16 %v598
        %v623 = vpack.c.b16 %v616, %v615
        %v624 = vpack.c.b16 %v618, %v617
        %v625 = vpack.c.b16 %v620, %v619
        %v626 = vpack.c.b16 %v622, %v621
        %vm627 = vcmask 64512
        %v629 = vsel %vm627, %v623, 0
        %v632 = vsel %vm627, %v624, 0
        %v635 = vsel %vm627, %v625, 0
        %v638 = vsel %vm627, %v626, 0
        %vm640 = vcmask 1043456
        %v642 = vsel %vm640, %v599, 0
        %644 = vmatprep.subr.bf16.mxu0 0
        %645 = vmatpush1.bf16.msra.mxu0 %v642
        %646 = vmatprep.subr.bf16.mxu0 0
        %647 = vmatpush1.bf16.msra.mxu0 0
        %648 = vmatprep.subr.bf16.mxu0 0
        %649 = vmatpush1.bf16.msra.mxu0 0
        %650 = vmatprep.subr.bf16.mxu0 0
        %651 = vmatpush1.bf16.msra.mxu0 0
        %652 = vmatprep.subr.bf16.mxu0 0
        %653 = vmatpush1.bf16.msra.mxu0 0
        %654 = vmatprep.subr.bf16.mxu0 0
        %655 = vmatpush1.bf16.msra.mxu0 0
        %656 = vmatprep.subr.bf16.mxu0 0
        %657 = vmatpush1.bf16.msra.mxu0 0
        %658 = vmatprep.subr.bf16.mxu0 0
        %659 = vmatpush1.bf16.msra.mxu0 0
        %660 = vmatprep.subr.bf16.mxu0 0
        %661 = vmatpush1.bf16.msra.mxu0 0
        %662 = vmatprep.subr.bf16.mxu0 0
        %663 = vmatpush1.bf16.msra.mxu0 0
        %664 = vmatprep.subr.bf16.mxu0 0
        %665 = vmatpush1.bf16.msra.mxu0 0
        %666 = vmatprep.subr.bf16.mxu0 0
        %667 = vmatpush1.bf16.msra.mxu0 0
        %668 = vmatprep.subr.bf16.mxu0 0
        %669 = vmatpush1.bf16.msra.mxu0 0
        %670 = vmatprep.subr.bf16.mxu0 0
        %671 = vmatpush1.bf16.msra.mxu0 0
        %672 = vmatprep.subr.bf16.mxu0 0
        %673 = vmatpush1.bf16.msra.mxu0 0
        %674 = vmatprep.subr.bf16.mxu0 0
        %675 = vmatpush1.bf16.msra.mxu0 0
        %676 = vmatprep.mubr.bf16.mxu0 0
        %677 = vmatmul.mubr.bf16.gmra.mrb[0].mxu0 %v629
        %v678 = vpop.f32.mrb[0].mxu0
        %v679 = vadd.f32 %v605, %v678
        %v680 = vpop.f32.mrb[0].mxu0
        %v681 = vpop.f32.mrb[0].mxu0
        %v682 = vadd.f32 %v605, %v681
        %v683 = vpop.f32.mrb[0].mxu0
        %684 = vmatprep.mubr.bf16.mxu0 0
        %685 = vmatmul.mubr.bf16.gmra.mrb[0].mxu0 %v632
        %v686 = vpop.f32.mrb[0].mxu0
        %v687 = vadd.f32 %v605, %v686
        %v688 = vpop.f32.mrb[0].mxu0
        %v689 = vpop.f32.mrb[0].mxu0
        %v690 = vadd.f32 %v605, %v689
        %v691 = vpop.f32.mrb[0].mxu0
        %692 = vmatprep.mubr.bf16.mxu0 0
        %693 = vmatmul.mubr.bf16.gmra.mrb[0].mxu0 %v635
        %v694 = vpop.f32.mrb[0].mxu0
        %v695 = vadd.f32 %v605, %v694
        %v696 = vpop.f32.mrb[0].mxu0
        %v697 = vpop.f32.mrb[0].mxu0
        %v698 = vadd.f32 %v605, %v697
        %v699 = vpop.f32.mrb[0].mxu0
        %700 = vmatprep.mubr.bf16.mxu0 0
        %701 = vmatmul.mubr.bf16.gmra.mrb[0].mxu0 %v638
        %v702 = vpop.f32.mrb[0].mxu0
        %v703 = vadd.f32 %v605, %v702
        %v704 = vpop.f32.mrb[0].mxu0
        %v705 = vpop.f32.mrb[0].mxu0
        %v706 = vadd.f32 %v605, %v705
        %v707 = vpop.f32.mrb[0].mxu0
        %708 = vdwg.mxu0
        %v709 = vmax.f32 %v679, 0.0
        %v710 = vmax.f32 %v682, 0.0
        %v711 = vmax.f32 %v687, 0.0
        %v712 = vmax.f32 %v690, 0.0
        %v713 = vmax.f32 %v695, 0.0
        %v714 = vmax.f32 %v698, 0.0
        %v715 = vmax.f32 %v703, 0.0
        %v716 = vmax.f32 %v706, 0.0
        %v717 = vpack.c.bf16 %v710, %v709
        %v718 = vpack.c.bf16 %v712, %v711
        %v719 = vpack.c.bf16 %v714, %v713
        %v720 = vpack.c.bf16 %v716, %v715
        %v721 = vld [vmem:[%s3] sm:$0xf]
        %v722 = vld [vmem:[%s3 + $0x4] sm:$0xf]
        %v723 = vld [vmem:[%s3 + $0x8] sm:$0xf]
        %v724 = vld [vmem:[%s3 + $0xc] sm:$0xf]
        %v725 = vld [vmem:[%s3 + $0x10] sm:$0xf]
        %v726 = vld [vmem:[%s3 + $0x14] sm:$0xf]
        %v727 = vld [vmem:[%s3 + $0x18] sm:$0xf]
        %v728 = vld [vmem:[%s3 + $0x1c] sm:$0xf]
        %v729 = vld [vmem:[%s4] sm:$0x1]
        %v731 = vlaneseq
        %v732 = vshrl.u32 %v731, 7
        %v733 = vsub.s32 0, %v732
        %v734 = vrot.slane %v729, %v733
        %v744 = vunpack.c.l.b16 %v721
        %v745 = vunpack.c.l.b16 %v722
        %v746 = vunpack.c.l.b16 %v723
        %v747 = vunpack.c.l.b16 %v724
        %v748 = vunpack.c.l.b16 %v725
        %v749 = vunpack.c.l.b16 %v726
        %v750 = vunpack.c.l.b16 %v727
        %v751 = vunpack.c.l.b16 %v728
        %v752 = vpack.c.b16 %v745, %v744
        %v753 = vpack.c.b16 %v747, %v746
        %v754 = vpack.c.b16 %v749, %v748
        %v755 = vpack.c.b16 %v751, %v750
        %vm760 = vcmask 523264
        %v762 = vsel %vm760, %v717, 0
        %v765 = vsel %vm760, %v718, 0
        %v768 = vsel %vm760, %v719, 0
        %v771 = vsel %vm760, %v720, 0
        %773 = vmatprep.subr.bf16.mxu0 0
        %774 = vmatpush1.bf16.msra.mxu0 %v752
        %775 = vmatprep.subr.bf16.mxu0 0
        %776 = vmatpush1.bf16.msra.mxu0 %v753
        %777 = vmatprep.subr.bf16.mxu0 0
        %778 = vmatpush1.bf16.msra.mxu0 %v754
        %779 = vmatprep.subr.bf16.mxu0 0
        %780 = vmatpush1.bf16.msra.mxu0 %v755
        %781 = vmatprep.subr.bf16.mxu0 0
        %782 = vmatpush1.bf16.msra.mxu0 0
        %783 = vmatprep.subr.bf16.mxu0 0
        %784 = vmatpush1.bf16.msra.mxu0 0
        %785 = vmatprep.subr.bf16.mxu0 0
        %786 = vmatpush1.bf16.msra.mxu0 0
        %787 = vmatprep.subr.bf16.mxu0 0
        %788 = vmatpush1.bf16.msra.mxu0 0
        %789 = vmatprep.subr.bf16.mxu0 0
        %790 = vmatpush1.bf16.msra.mxu0 0
        %791 = vmatprep.subr.bf16.mxu0 0
        %792 = vmatpush1.bf16.msra.mxu0 0
        %793 = vmatprep.subr.bf16.mxu0 0
        %794 = vmatpush1.bf16.msra.mxu0 0
        %795 = vmatprep.subr.bf16.mxu0 0
        %796 = vmatpush1.bf16.msra.mxu0 0
        %797 = vmatprep.subr.bf16.mxu0 0
        %798 = vmatpush1.bf16.msra.mxu0 0
        %799 = vmatprep.subr.bf16.mxu0 0
        %800 = vmatpush1.bf16.msra.mxu0 0
        %801 = vmatprep.subr.bf16.mxu0 0
        %802 = vmatpush1.bf16.msra.mxu0 0
        %803 = vmatprep.subr.bf16.mxu0 0
        %804 = vmatpush1.bf16.msra.mxu0 0
        %805 = vmatprep.mubr.bf16.mxu0 0
        %806 = vmatmul.mubr.bf16.gmra.mrb[0].mxu0 %v762
        %v807 = vpop.f32.mrb[0].mxu0
        %v808 = vadd.f32 %v734, %v807
        %v809 = vpop.f32.mrb[0].mxu0
        %v810 = vpop.f32.mrb[0].mxu0
        %v811 = vadd.f32 %v734, %v810
        %v812 = vpop.f32.mrb[0].mxu0
        %813 = vmatprep.mubr.bf16.mxu0 0
        %814 = vmatmul.mubr.bf16.gmra.mrb[0].mxu0 %v765
        %v815 = vpop.f32.mrb[0].mxu0
        %v816 = vadd.f32 %v734, %v815
        %v817 = vpop.f32.mrb[0].mxu0
        %v818 = vpop.f32.mrb[0].mxu0
        %v819 = vadd.f32 %v734, %v818
        %v820 = vpop.f32.mrb[0].mxu0
        %821 = vmatprep.mubr.bf16.mxu0 0
        %822 = vmatmul.mubr.bf16.gmra.mrb[0].mxu0 %v768
        %v823 = vpop.f32.mrb[0].mxu0
        %v824 = vadd.f32 %v734, %v823
        %v825 = vpop.f32.mrb[0].mxu0
        %v826 = vpop.f32.mrb[0].mxu0
        %v827 = vadd.f32 %v734, %v826
        %v828 = vpop.f32.mrb[0].mxu0
        %829 = vmatprep.mubr.bf16.mxu0 0
        %830 = vmatmul.mubr.bf16.gmra.mrb[0].mxu0 %v771
        %v831 = vpop.f32.mrb[0].mxu0
        %v832 = vadd.f32 %v734, %v831
        %v833 = vpop.f32.mrb[0].mxu0
        %v834 = vpop.f32.mrb[0].mxu0
        %v835 = vadd.f32 %v734, %v834
        %v836 = vpop.f32.mrb[0].mxu0
        %837 = vdwg.mxu0
        %v838 = vmax.f32 %v808, 0.0
        %v839 = vmax.f32 %v811, 0.0
        %v840 = vmax.f32 %v816, 0.0
        %v841 = vmax.f32 %v819, 0.0
        %v842 = vmax.f32 %v824, 0.0
        %v843 = vmax.f32 %v827, 0.0
        %v844 = vmax.f32 %v832, 0.0
        %v845 = vmax.f32 %v835, 0.0
        %v846 = vpack.c.bf16 %v839, %v838
        %v847 = vpack.c.bf16 %v841, %v840
        %v848 = vpack.c.bf16 %v843, %v842
        %v849 = vpack.c.bf16 %v845, %v844
        %v850 = vld [vmem:[%s463] sm:$0xff]
        %v851 = vld [vmem:[%s463 + $0x8] sm:$0xff]
        %v852 = vld [vmem:[%s463 + $0x10] sm:$0xff]
        %v853 = vld [vmem:[%s463 + $0x18] sm:$0xff]
        %v854 = vld [vmem:[%s463 + $0x20] sm:$0xff]
        %v855 = vld [vmem:[%s463 + $0x28] sm:$0xff]
        %v856 = vld [vmem:[%s463 + $0x30] sm:$0xff]
        %v857 = vld [vmem:[%s463 + $0x38] sm:$0xff]
        %v858 = vld [vmem:[%s463 + $0x40] sm:$0xff]
        %v859 = vld [vmem:[%s463 + $0x48] sm:$0xff]
        %v860 = vld [vmem:[%s463 + $0x50] sm:$0xff]
        %v861 = vld [vmem:[%s463 + $0x58] sm:$0xff]
        %v862 = vld [vmem:[%s463 + $0x60] sm:$0xff]
        %v863 = vld [vmem:[%s463 + $0x68] sm:$0xff]
        %v864 = vld [vmem:[%s463 + $0x70] sm:$0xff]
        %v865 = vld [vmem:[%s463 + $0x78] sm:$0xff]
        %v866 = vld [vmem:[%s463 + $0x80] sm:$0xff]
        %v867 = vld [vmem:[%s463 + $0x88] sm:$0xff]
        %v868 = vld [vmem:[%s463 + $0x90] sm:$0xff]
        %v869 = vld [vmem:[%s463 + $0x98] sm:$0xff]
        %v870 = vld [vmem:[%s463 + $0xa0] sm:$0xff]
        %v871 = vld [vmem:[%s463 + $0xa8] sm:$0xff]
        %v872 = vld [vmem:[%s463 + $0xb0] sm:$0xff]
        %v873 = vld [vmem:[%s463 + $0xb8] sm:$0xff]
        %v874 = vld [vmem:[%s463 + $0xc0] sm:$0xff]
        %v875 = vld [vmem:[%s463 + $0xc8] sm:$0xff]
        %v876 = vld [vmem:[%s463 + $0xd0] sm:$0xff]
        %v877 = vld [vmem:[%s463 + $0xd8] sm:$0xff]
        %v878 = vld [vmem:[%s463 + $0xe0] sm:$0xff]
        %v879 = vld [vmem:[%s463 + $0xe8] sm:$0xff]
        %v880 = vld [vmem:[%s463 + $0xf0] sm:$0xff]
        %v881 = vld [vmem:[%s463 + $0xf8] sm:$0xff]
        %v882 = vld [vmem:[%s552] sm:$0xf]
        %v884 = vlaneseq
        %v885 = vshrl.u32 %v884, 7
        %v886 = vsub.s32 0, %v885
        %v887 = vrot.slane %v882, %v886
        %v888 = vlaneseq
        %v889 = vshrl.u32 %v888, 7
        %v890 = vsub.s32 1, %v889
        %v891 = vrot.slane %v882, %v890
        %v892 = vlaneseq
        %v893 = vshrl.u32 %v892, 7
        %v894 = vsub.s32 2, %v893
        %v895 = vrot.slane %v882, %v894
        %v896 = vlaneseq
        %v897 = vshrl.u32 %v896, 7
        %v898 = vsub.s32 3, %v897
        %v899 = vrot.slane %v882, %v898
        %v936 = vunpack.c.l.b16 %v850
        %v937 = vunpack.c.h.b16 %v850
        %v938 = vunpack.c.l.b16 %v851
        %v939 = vunpack.c.h.b16 %v851
        %v940 = vunpack.c.l.b16 %v852
        %v941 = vunpack.c.h.b16 %v852
        %v942 = vunpack.c.l.b16 %v853
        %v943 = vunpack.c.h.b16 %v853
        %v944 = vunpack.c.l.b16 %v854
        %v945 = vunpack.c.h.b16 %v854
        %v946 = vunpack.c.l.b16 %v855
        %v947 = vunpack.c.h.b16 %v855
        %v948 = vunpack.c.l.b16 %v856
        %v949 = vunpack.c.h.b16 %v856
        %v950 = vunpack.c.l.b16 %v857
        %v951 = vunpack.c.h.b16 %v857
        %v952 = vunpack.c.l.b16 %v858
        %v953 = vunpack.c.h.b16 %v858
        %v954 = vunpack.c.l.b16 %v859
        %v955 = vunpack.c.h.b16 %v859
        %v956 = vunpack.c.l.b16 %v860
        %v957 = vunpack.c.h.b16 %v860
        %v958 = vunpack.c.l.b16 %v861
        %v959 = vunpack.c.h.b16 %v861
        %v960 = vunpack.c.l.b16 %v862
        %v961 = vunpack.c.h.b16 %v862
        %v962 = vunpack.c.l.b16 %v863
        %v963 = vunpack.c.h.b16 %v863
        %v964 = vunpack.c.l.b16 %v864
        %v965 = vunpack.c.h.b16 %v864
        %v966 = vunpack.c.l.b16 %v865
        %v967 = vunpack.c.h.b16 %v865
        %v968 = vunpack.c.l.b16 %v866
        %v969 = vunpack.c.h.b16 %v866
        %v970 = vunpack.c.l.b16 %v867
        %v971 = vunpack.c.h.b16 %v867
        %v972 = vunpack.c.l.b16 %v868
        %v973 = vunpack.c.h.b16 %v868
        %v974 = vunpack.c.l.b16 %v869
        %v975 = vunpack.c.h.b16 %v869
        %v976 = vunpack.c.l.b16 %v870
        %v977 = vunpack.c.h.b16 %v870
        %v978 = vunpack.c.l.b16 %v871
        %v979 = vunpack.c.h.b16 %v871
        %v980 = vunpack.c.l.b16 %v872
        %v981 = vunpack.c.h.b16 %v872
        %v982 = vunpack.c.l.b16 %v873
        %v983 = vunpack.c.h.b16 %v873
        %v984 = vunpack.c.l.b16 %v874
        %v985 = vunpack.c.h.b16 %v874
        %v986 = vunpack.c.l.b16 %v875
        %v987 = vunpack.c.h.b16 %v875
        %v988 = vunpack.c.l.b16 %v876
        %v989 = vunpack.c.h.b16 %v876
        %v990 = vunpack.c.l.b16 %v877
        %v991 = vunpack.c.h.b16 %v877
        %v992 = vunpack.c.l.b16 %v878
        %v993 = vunpack.c.h.b16 %v878
        %v994 = vunpack.c.l.b16 %v879
        %v995 = vunpack.c.h.b16 %v879
        %v996 = vunpack.c.l.b16 %v880
        %v997 = vunpack.c.h.b16 %v880
        %v998 = vunpack.c.l.b16 %v881
        %v999 = vunpack.c.h.b16 %v881
        %v1000 = vpack.c.b16 %v940, %v936
        %v1001 = vpack.c.b16 %v941, %v937
        %v1002 = vpack.c.b16 %v942, %v938
        %v1003 = vpack.c.b16 %v943, %v939
        %v1004 = vpack.c.b16 %v948, %v944
        %v1005 = vpack.c.b16 %v949, %v945
        %v1006 = vpack.c.b16 %v950, %v946
        %v1007 = vpack.c.b16 %v951, %v947
        %v1008 = vpack.c.b16 %v956, %v952
        %v1009 = vpack.c.b16 %v957, %v953
        %v1010 = vpack.c.b16 %v958, %v954
        %v1011 = vpack.c.b16 %v959, %v955
        %v1012 = vpack.c.b16 %v964, %v960
        %v1013 = vpack.c.b16 %v965, %v961
        %v1014 = vpack.c.b16 %v966, %v962
        %v1015 = vpack.c.b16 %v967, %v963
        %v1016 = vpack.c.b16 %v972, %v968
        %v1017 = vpack.c.b16 %v973, %v969
        %v1018 = vpack.c.b16 %v974, %v970
        %v1019 = vpack.c.b16 %v975, %v971
        %v1020 = vpack.c.b16 %v980, %v976
        %v1021 = vpack.c.b16 %v981, %v977
        %v1022 = vpack.c.b16 %v982, %v978
        %v1023 = vpack.c.b16 %v983, %v979
        %v1024 = vpack.c.b16 %v988, %v984
        %v1025 = vpack.c.b16 %v989, %v985
        %v1026 = vpack.c.b16 %v990, %v986
        %v1027 = vpack.c.b16 %v991, %v987
        %v1028 = vpack.c.b16 %v996, %v992
        %v1029 = vpack.c.b16 %v997, %v993
        %v1030 = vpack.c.b16 %v998, %v994
        %v1031 = vpack.c.b16 %v999, %v995
        %1064 = vmatprep.subr.bf16.mxu0 %v1001
        %1065 = vmatpush1.bf16.msra.mxu0 %v1000
        %1066 = vmatprep.subr.bf16.mxu0 %v1005
        %1067 = vmatpush1.bf16.msra.mxu0 %v1004
        %1068 = vmatprep.subr.bf16.mxu0 %v1009
        %1069 = vmatpush1.bf16.msra.mxu0 %v1008
        %1070 = vmatprep.subr.bf16.mxu0 %v1013
        %1071 = vmatpush1.bf16.msra.mxu0 %v1012
        %1072 = vmatprep.subr.bf16.mxu0 %v1017
        %1073 = vmatpush1.bf16.msra.mxu0 %v1016
        %1074 = vmatprep.subr.bf16.mxu0 %v1021
        %1075 = vmatpush1.bf16.msra.mxu0 %v1020
        %1076 = vmatprep.subr.bf16.mxu0 %v1025
        %1077 = vmatpush1.bf16.msra.mxu0 %v1024
        %1078 = vmatprep.subr.bf16.mxu0 %v1029
        %1079 = vmatpush1.bf16.msra.mxu0 %v1028
        %1080 = vmatprep.subr.bf16.mxu0 0
        %1081 = vmatpush1.bf16.msra.mxu0 0
        %1082 = vmatprep.subr.bf16.mxu0 0
        %1083 = vmatpush1.bf16.msra.mxu0 0
        %1084 = vmatprep.subr.bf16.mxu0 0
        %1085 = vmatpush1.bf16.msra.mxu0 0
        %1086 = vmatprep.subr.bf16.mxu0 0
        %1087 = vmatpush1.bf16.msra.mxu0 0
        %1088 = vmatprep.subr.bf16.mxu0 0
        %1089 = vmatpush1.bf16.msra.mxu0 0
        %1090 = vmatprep.subr.bf16.mxu0 0
        %1091 = vmatpush1.bf16.msra.mxu0 0
        %1092 = vmatprep.subr.bf16.mxu0 0
        %1093 = vmatpush1.bf16.msra.mxu0 0
        %1094 = vmatprep.subr.bf16.mxu0 0
        %1095 = vmatpush1.bf16.msra.mxu0 0
        %1096 = vmatprep.mubr.bf16.mxu0 0
        %1097 = vmatmul.mubr.bf16.gmra.mrb[0].mxu0 %v846
        %v1098 = vpop.f32.mrb[0].mxu0
        %v1099 = vadd.f32 %v887, %v1098
        %v1100 = vpop.f32.mrb[0].mxu0
        %v1101 = vadd.f32 %v891, %v1100
        %v1102 = vpop.f32.mrb[0].mxu0
        %v1103 = vadd.f32 %v887, %v1102
        %v1104 = vpop.f32.mrb[0].mxu0
        %v1105 = vadd.f32 %v891, %v1104
        %1106 = vmatprep.mubr.bf16.mxu0 0
        %1107 = vmatmul.mubr.bf16.gmra.mrb[0].mxu0 %v847
        %v1108 = vpop.f32.mrb[0].mxu0
        %v1109 = vadd.f32 %v887, %v1108
        %v1110 = vpop.f32.mrb[0].mxu0
        %v1111 = vadd.f32 %v891, %v1110
        %v1112 = vpop.f32.mrb[0].mxu0
        %v1113 = vadd.f32 %v887, %v1112
        %v1114 = vpop.f32.mrb[0].mxu0
        %v1115 = vadd.f32 %v891, %v1114
        %1116 = vmatprep.mubr.bf16.mxu0 0
        %1117 = vmatmul.mubr.bf16.gmra.mrb[0].mxu0 %v848
        %v1118 = vpop.f32.mrb[0].mxu0
        %v1119 = vadd.f32 %v887, %v1118
        %v1120 = vpop.f32.mrb[0].mxu0
        %v1121 = vadd.f32 %v891, %v1120
        %v1122 = vpop.f32.mrb[0].mxu0
        %v1123 = vadd.f32 %v887, %v1122
        %v1124 = vpop.f32.mrb[0].mxu0
        %v1125 = vadd.f32 %v891, %v1124
        %1126 = vmatprep.mubr.bf16.mxu0 0
        %1127 = vmatmul.mubr.bf16.gmra.mrb[0].mxu0 %v849
        %v1128 = vpop.f32.mrb[0].mxu0
        %v1129 = vadd.f32 %v887, %v1128
        %v1130 = vpop.f32.mrb[0].mxu0
        %v1131 = vadd.f32 %v891, %v1130
        %v1132 = vpop.f32.mrb[0].mxu0
        %v1133 = vadd.f32 %v887, %v1132
        %v1134 = vpop.f32.mrb[0].mxu0
        %v1135 = vadd.f32 %v891, %v1134
        %1136 = vdwg.mxu0
        %1137 = vmatprep.subr.bf16.mxu0 %v1003
        %1138 = vmatpush1.bf16.msra.mxu0 %v1002
        %1139 = vmatprep.subr.bf16.mxu0 %v1007
        %1140 = vmatpush1.bf16.msra.mxu0 %v1006
        %1141 = vmatprep.subr.bf16.mxu0 %v1011
        %1142 = vmatpush1.bf16.msra.mxu0 %v1010
        %1143 = vmatprep.subr.bf16.mxu0 %v1015
        %1144 = vmatpush1.bf16.msra.mxu0 %v1014
        %1145 = vmatprep.subr.bf16.mxu0 %v1019
        %1146 = vmatpush1.bf16.msra.mxu0 %v1018
        %1147 = vmatprep.subr.bf16.mxu0 %v1023
        %1148 = vmatpush1.bf16.msra.mxu0 %v1022
        %1149 = vmatprep.subr.bf16.mxu0 %v1027
        %1150 = vmatpush1.bf16.msra.mxu0 %v1026
        %1151 = vmatprep.subr.bf16.mxu0 %v1031
        %1152 = vmatpush1.bf16.msra.mxu0 %v1030
        %1153 = vmatprep.subr.bf16.mxu0 0
        %1154 = vmatpush1.bf16.msra.mxu0 0
        %1155 = vmatprep.subr.bf16.mxu0 0
        %1156 = vmatpush1.bf16.msra.mxu0 0
        %1157 = vmatprep.subr.bf16.mxu0 0
        %1158 = vmatpush1.bf16.msra.mxu0 0
        %1159 = vmatprep.subr.bf16.mxu0 0
        %1160 = vmatpush1.bf16.msra.mxu0 0
        %1161 = vmatprep.subr.bf16.mxu0 0
        %1162 = vmatpush1.bf16.msra.mxu0 0
        %1163 = vmatprep.subr.bf16.mxu0 0
        %1164 = vmatpush1.bf16.msra.mxu0 0
        %1165 = vmatprep.subr.bf16.mxu0 0
        %1166 = vmatpush1.bf16.msra.mxu0 0
        %1167 = vmatprep.subr.bf16.mxu0 0
        %1168 = vmatpush1.bf16.msra.mxu0 0
        %1169 = vmatprep.mubr.bf16.mxu0 0
        %1170 = vmatmul.mubr.bf16.gmra.mrb[0].mxu0 %v846
        %v1171 = vpop.f32.mrb[0].mxu0
        %v1172 = vadd.f32 %v895, %v1171
        %v1173 = vpop.f32.mrb[0].mxu0
        %v1174 = vadd.f32 %v899, %v1173
        %v1175 = vpop.f32.mrb[0].mxu0
        %v1176 = vadd.f32 %v895, %v1175
        %v1177 = vpop.f32.mrb[0].mxu0
        %v1178 = vadd.f32 %v899, %v1177
        %1179 = vmatprep.mubr.bf16.mxu0 0
        %1180 = vmatmul.mubr.bf16.gmra.mrb[0].mxu0 %v847
        %v1181 = vpop.f32.mrb[0].mxu0
        %v1182 = vadd.f32 %v895, %v1181
        %v1183 = vpop.f32.mrb[0].mxu0
        %v1184 = vadd.f32 %v899, %v1183
        %v1185 = vpop.f32.mrb[0].mxu0
        %v1186 = vadd.f32 %v895, %v1185
        %v1187 = vpop.f32.mrb[0].mxu0
        %v1188 = vadd.f32 %v899, %v1187
        %1189 = vmatprep.mubr.bf16.mxu0 0
        %1190 = vmatmul.mubr.bf16.gmra.mrb[0].mxu0 %v848
        %v1191 = vpop.f32.mrb[0].mxu0
        %v1192 = vadd.f32 %v895, %v1191
        %v1193 = vpop.f32.mrb[0].mxu0
        %v1194 = vadd.f32 %v899, %v1193
        %v1195 = vpop.f32.mrb[0].mxu0
        %v1196 = vadd.f32 %v895, %v1195
        %v1197 = vpop.f32.mrb[0].mxu0
        %v1198 = vadd.f32 %v899, %v1197
        %1199 = vmatprep.mubr.bf16.mxu0 0
        %1200 = vmatmul.mubr.bf16.gmra.mrb[0].mxu0 %v849
        %v1201 = vpop.f32.mrb[0].mxu0
        %v1202 = vadd.f32 %v895, %v1201
        %v1203 = vpop.f32.mrb[0].mxu0
        %v1204 = vadd.f32 %v899, %v1203
        %v1205 = vpop.f32.mrb[0].mxu0
        %v1206 = vadd.f32 %v895, %v1205
        %v1207 = vpop.f32.mrb[0].mxu0
        %v1208 = vadd.f32 %v899, %v1207
        %1209 = vdwg.mxu0
        %v1210 = vmax.f32 %v1099, 0.0
        %v1211 = vmax.f32 %v1101, 0.0
        %v1212 = vmax.f32 %v1172, 0.0
        %v1213 = vmax.f32 %v1174, 0.0
        %v1214 = vmax.f32 %v1103, 0.0
        %v1215 = vmax.f32 %v1105, 0.0
        %v1216 = vmax.f32 %v1176, 0.0
        %v1217 = vmax.f32 %v1178, 0.0
        %v1218 = vmax.f32 %v1109, 0.0
        %v1219 = vmax.f32 %v1111, 0.0
        %v1220 = vmax.f32 %v1182, 0.0
        %v1221 = vmax.f32 %v1184, 0.0
        %v1222 = vmax.f32 %v1113, 0.0
        %v1223 = vmax.f32 %v1115, 0.0
        %v1224 = vmax.f32 %v1186, 0.0
        %v1225 = vmax.f32 %v1188, 0.0
        %v1226 = vmax.f32 %v1119, 0.0
        %v1227 = vmax.f32 %v1121, 0.0
        %v1228 = vmax.f32 %v1192, 0.0
        %v1229 = vmax.f32 %v1194, 0.0
        %v1230 = vmax.f32 %v1123, 0.0
        %v1231 = vmax.f32 %v1125, 0.0
        %v1232 = vmax.f32 %v1196, 0.0
        %v1233 = vmax.f32 %v1198, 0.0
        %v1234 = vmax.f32 %v1129, 0.0
        %v1235 = vmax.f32 %v1131, 0.0
        %v1236 = vmax.f32 %v1202, 0.0
        %v1237 = vmax.f32 %v1204, 0.0
        %v1238 = vmax.f32 %v1133, 0.0
        %v1239 = vmax.f32 %v1135, 0.0
        %v1240 = vmax.f32 %v1206, 0.0
        %v1241 = vmax.f32 %v1208, 0.0
        %s1242 = smul.u32 %s29, 64
        %v1243 = vlaneseq
        %v1244 = vand.u32 %v1243, 127
        %v1245 = vstv %s1242
        %v1246 = vadd.s32 %v1244, %v1245
        %vm1247 = vcmp.lt.s32.totalorder %v1246, 200
        %v1248 = vsel %vm1247, 1, 0
        %v1249 = vcvt.s32.f32 %v1248
        %v1250 = vlaneseq
        %v1251 = vshrl.u32 %v1250, 7
        %v1252 = vadd.s32 %v1251, 8
        %v1253 = vadd.s32 %v1251, 16
        %v1254 = vadd.s32 %v1251, 24
        %v1255 = vadd.s32 %v1251, 32
        %v1256 = vadd.s32 %v1251, 40
        %v1257 = vadd.s32 %v1251, 48
        %v1258 = vadd.s32 %v1251, 56
        %v1259 = vadd.s32 %v1251, %v1245
        %v1260 = vadd.s32 %v1252, %v1245
        %v1261 = vadd.s32 %v1253, %v1245
        %v1262 = vadd.s32 %v1254, %v1245
        %v1263 = vadd.s32 %v1255, %v1245
        %v1264 = vadd.s32 %v1256, %v1245
        %v1265 = vadd.s32 %v1257, %v1245
        %v1266 = vadd.s32 %v1258, %v1245
        %vm1267 = vcmp.lt.s32.totalorder %v1259, 200
        %vm1268 = vcmp.lt.s32.totalorder %v1260, 200
        %vm1269 = vcmp.lt.s32.totalorder %v1261, 200
        %vm1270 = vcmp.lt.s32.totalorder %v1262, 200
        %vm1271 = vcmp.lt.s32.totalorder %v1263, 200
        %vm1272 = vcmp.lt.s32.totalorder %v1264, 200
        %vm1273 = vcmp.lt.s32.totalorder %v1265, 200
        %vm1274 = vcmp.lt.s32.totalorder %v1266, 200
        %v1276 = vsel %vm760, %v1249, 0
        %1278 = vmatprep.subr.mxu0 %v1211
        %1279 = vmatpush1.msra.mxu0 %v1210
        %1280 = vmatprep.subr.mxu0 %v1215
        %1281 = vmatpush1.msra.mxu0 %v1214
        %1282 = vmatprep.subr.mxu0 %v1219
        %1283 = vmatpush1.msra.mxu0 %v1218
        %1284 = vmatprep.subr.mxu0 %v1223
        %1285 = vmatpush1.msra.mxu0 %v1222
        %1286 = vmatprep.subr.mxu0 %v1227
        %1287 = vmatpush1.msra.mxu0 %v1226
        %1288 = vmatprep.subr.mxu0 %v1231
        %1289 = vmatpush1.msra.mxu0 %v1230
        %1290 = vmatprep.subr.mxu0 %v1235
        %1291 = vmatpush1.msra.mxu0 %v1234
        %1292 = vmatprep.subr.mxu0 %v1239
        %1293 = vmatpush1.msra.mxu0 %v1238
        %1294 = vmatprep.subr.mxu0 0.0
        %1295 = vmatpush1.msra.mxu0 0.0
        %1296 = vmatprep.subr.mxu0 0.0
        %1297 = vmatpush1.msra.mxu0 0.0
        %1298 = vmatprep.subr.mxu0 0.0
        %1299 = vmatpush1.msra.mxu0 0.0
        %1300 = vmatprep.subr.mxu0 0.0
        %1301 = vmatpush1.msra.mxu0 0.0
        %1302 = vmatprep.subr.mxu0 0.0
        %1303 = vmatpush1.msra.mxu0 0.0
        %1304 = vmatprep.subr.mxu0 0.0
        %1305 = vmatpush1.msra.mxu0 0.0
        %1306 = vmatprep.subr.mxu0 0.0
        %1307 = vmatpush1.msra.mxu0 0.0
        %1308 = vmatprep.subr.mxu0 0.0
        %1309 = vmatpush1.msra.mxu0 0.0
        %1310 = vmatprep.subr.mxu0 0.0
        %1311 = vmatpush1.msra.mxu0 0.0
        %1312 = vmatprep.subr.mxu0 0.0
        %1313 = vmatpush1.msra.mxu0 0.0
        %1314 = vmatprep.subr.mxu0 0.0
        %1315 = vmatpush1.msra.mxu0 0.0
        %1316 = vmatprep.subr.mxu0 0.0
        %1317 = vmatpush1.msra.mxu0 0.0
        %1318 = vmatprep.subr.mxu0 0.0
        %1319 = vmatpush1.msra.mxu0 0.0
        %1320 = vmatprep.subr.mxu0 0.0
        %1321 = vmatpush1.msra.mxu0 0.0
        %1322 = vmatprep.subr.mxu0 0.0
        %1323 = vmatpush1.msra.mxu0 0.0
        %1324 = vmatprep.subr.mxu0 0.0
        %1325 = vmatpush1.msra.mxu0 0.0
        %1326 = vmatprep.subr.mxu0 0.0
        %1327 = vmatpush1.msra.mxu0 0.0
        %1328 = vmatprep.subr.mxu0 0.0
        %1329 = vmatpush1.msra.mxu0 0.0
        %1330 = vmatprep.subr.mxu0 0.0
        %1331 = vmatpush1.msra.mxu0 0.0
        %1332 = vmatprep.subr.mxu0 0.0
        %1333 = vmatpush1.msra.mxu0 0.0
        %1334 = vmatprep.subr.mxu0 0.0
        %1335 = vmatpush1.msra.mxu0 0.0
        %1336 = vmatprep.subr.mxu0 0.0
        %1337 = vmatpush1.msra.mxu0 0.0
        %1338 = vmatprep.subr.mxu0 0.0
        %1339 = vmatpush1.msra.mxu0 0.0
        %1340 = vmatprep.subr.mxu0 0.0
        %1341 = vmatpush1.msra.mxu0 0.0
        %1342 = vmatprep.mubr.f32.mxu0 0.0
        %1343 = vmatmul.mubr.f32.gmra.mrb[0].mxu0 %v1276
        %v1344 = vpop.f32.mrb[0].mxu0
        %v1345 = vadd.f32 0.0, %v1344
        %v1346 = vpop.f32.mrb[0].mxu0
        %v1347 = vadd.f32 0.0, %v1346
        %1348 = vdwg.mxu0
        %1349 = vmatprep.subr.mxu0 %v1213
        %1350 = vmatpush1.msra.mxu0 %v1212
        %1351 = vmatprep.subr.mxu0 %v1217
        %1352 = vmatpush1.msra.mxu0 %v1216
        %1353 = vmatprep.subr.mxu0 %v1221
        %1354 = vmatpush1.msra.mxu0 %v1220
        %1355 = vmatprep.subr.mxu0 %v1225
        %1356 = vmatpush1.msra.mxu0 %v1224
        %1357 = vmatprep.subr.mxu0 %v1229
        %1358 = vmatpush1.msra.mxu0 %v1228
        %1359 = vmatprep.subr.mxu0 %v1233
        %1360 = vmatpush1.msra.mxu0 %v1232
        %1361 = vmatprep.subr.mxu0 %v1237
        %1362 = vmatpush1.msra.mxu0 %v1236
        %1363 = vmatprep.subr.mxu0 %v1241
        %1364 = vmatpush1.msra.mxu0 %v1240
        %1365 = vmatprep.subr.mxu0 0.0
        %1366 = vmatpush1.msra.mxu0 0.0
        %1367 = vmatprep.subr.mxu0 0.0
        %1368 = vmatpush1.msra.mxu0 0.0
        %1369 = vmatprep.subr.mxu0 0.0
        %1370 = vmatpush1.msra.mxu0 0.0
        %1371 = vmatprep.subr.mxu0 0.0
        %1372 = vmatpush1.msra.mxu0 0.0
        %1373 = vmatprep.subr.mxu0 0.0
        %1374 = vmatpush1.msra.mxu0 0.0
        %1375 = vmatprep.subr.mxu0 0.0
        %1376 = vmatpush1.msra.mxu0 0.0
        %1377 = vmatprep.subr.mxu0 0.0
        %1378 = vmatpush1.msra.mxu0 0.0
        %1379 = vmatprep.subr.mxu0 0.0
        %1380 = vmatpush1.msra.mxu0 0.0
        %1381 = vmatprep.subr.mxu0 0.0
        %1382 = vmatpush1.msra.mxu0 0.0
        %1383 = vmatprep.subr.mxu0 0.0
        %1384 = vmatpush1.msra.mxu0 0.0
        %1385 = vmatprep.subr.mxu0 0.0
        %1386 = vmatpush1.msra.mxu0 0.0
        %1387 = vmatprep.subr.mxu0 0.0
        %1388 = vmatpush1.msra.mxu0 0.0
        %1389 = vmatprep.subr.mxu0 0.0
        %1390 = vmatpush1.msra.mxu0 0.0
        %1391 = vmatprep.subr.mxu0 0.0
        %1392 = vmatpush1.msra.mxu0 0.0
        %1393 = vmatprep.subr.mxu0 0.0
        %1394 = vmatpush1.msra.mxu0 0.0
        %1395 = vmatprep.subr.mxu0 0.0
        %1396 = vmatpush1.msra.mxu0 0.0
        %1397 = vmatprep.subr.mxu0 0.0
        %1398 = vmatpush1.msra.mxu0 0.0
        %1399 = vmatprep.subr.mxu0 0.0
        %1400 = vmatpush1.msra.mxu0 0.0
        %1401 = vmatprep.subr.mxu0 0.0
        %1402 = vmatpush1.msra.mxu0 0.0
        %1403 = vmatprep.subr.mxu0 0.0
        %1404 = vmatpush1.msra.mxu0 0.0
        %1405 = vmatprep.subr.mxu0 0.0
        %1406 = vmatpush1.msra.mxu0 0.0
        %1407 = vmatprep.subr.mxu0 0.0
        %1408 = vmatpush1.msra.mxu0 0.0
        %1409 = vmatprep.subr.mxu0 0.0
        %1410 = vmatpush1.msra.mxu0 0.0
        %1411 = vmatprep.subr.mxu0 0.0
        %1412 = vmatpush1.msra.mxu0 0.0
        %1413 = vmatprep.mubr.f32.mxu0 0.0
        %1414 = vmatmul.mubr.f32.gmra.mrb[0].mxu0 %v1276
        %v1415 = vpop.f32.mrb[0].mxu0
        %v1416 = vadd.f32 0.0, %v1415
        %v1417 = vpop.f32.mrb[0].mxu0
        %v1418 = vadd.f32 0.0, %v1417
        %1419 = vdwg.mxu0
        %v1420 = vmul.f32 %v1210, %v1210
        %v1421 = vmul.f32 %v1211, %v1211
        %v1422 = vmul.f32 %v1212, %v1212
        %v1423 = vmul.f32 %v1213, %v1213
        %v1424 = vmul.f32 %v1214, %v1214
        %v1425 = vmul.f32 %v1215, %v1215
        %v1426 = vmul.f32 %v1216, %v1216
        %v1427 = vmul.f32 %v1217, %v1217
        %v1428 = vmul.f32 %v1218, %v1218
        %v1429 = vmul.f32 %v1219, %v1219
        %v1430 = vmul.f32 %v1220, %v1220
        %v1431 = vmul.f32 %v1221, %v1221
        %v1432 = vmul.f32 %v1222, %v1222
        %v1433 = vmul.f32 %v1223, %v1223
        %v1434 = vmul.f32 %v1224, %v1224
        %v1435 = vmul.f32 %v1225, %v1225
        %v1436 = vmul.f32 %v1226, %v1226
        %v1437 = vmul.f32 %v1227, %v1227
        %v1438 = vmul.f32 %v1228, %v1228
        %v1439 = vmul.f32 %v1229, %v1229
        %v1440 = vmul.f32 %v1230, %v1230
        %v1441 = vmul.f32 %v1231, %v1231
        %v1442 = vmul.f32 %v1232, %v1232
        %v1443 = vmul.f32 %v1233, %v1233
        %v1444 = vmul.f32 %v1234, %v1234
        %v1445 = vmul.f32 %v1235, %v1235
        %v1446 = vmul.f32 %v1236, %v1236
        %v1447 = vmul.f32 %v1237, %v1237
        %v1448 = vmul.f32 %v1238, %v1238
        %v1449 = vmul.f32 %v1239, %v1239
        %v1450 = vmul.f32 %v1240, %v1240
        %v1451 = vmul.f32 %v1241, %v1241
        %1452 = vmatprep.subr.mxu0 %v1421
        %1453 = vmatpush1.msra.mxu0 %v1420
        %1454 = vmatprep.subr.mxu0 %v1425
        %1455 = vmatpush1.msra.mxu0 %v1424
        %1456 = vmatprep.subr.mxu0 %v1429
        %1457 = vmatpush1.msra.mxu0 %v1428
        %1458 = vmatprep.subr.mxu0 %v1433
        %1459 = vmatpush1.msra.mxu0 %v1432
        %1460 = vmatprep.subr.mxu0 %v1437
        %1461 = vmatpush1.msra.mxu0 %v1436
        %1462 = vmatprep.subr.mxu0 %v1441
        %1463 = vmatpush1.msra.mxu0 %v1440
        %1464 = vmatprep.subr.mxu0 %v1445
        %1465 = vmatpush1.msra.mxu0 %v1444
        %1466 = vmatprep.subr.mxu0 %v1449
        %1467 = vmatpush1.msra.mxu0 %v1448
        %1468 = vmatprep.subr.mxu0 0.0
        %1469 = vmatpush1.msra.mxu0 0.0
        %1470 = vmatprep.subr.mxu0 0.0
        %1471 = vmatpush1.msra.mxu0 0.0
        %1472 = vmatprep.subr.mxu0 0.0
        %1473 = vmatpush1.msra.mxu0 0.0
        %1474 = vmatprep.subr.mxu0 0.0
        %1475 = vmatpush1.msra.mxu0 0.0
        %1476 = vmatprep.subr.mxu0 0.0
        %1477 = vmatpush1.msra.mxu0 0.0
        %1478 = vmatprep.subr.mxu0 0.0
        %1479 = vmatpush1.msra.mxu0 0.0
        %1480 = vmatprep.subr.mxu0 0.0
        %1481 = vmatpush1.msra.mxu0 0.0
        %1482 = vmatprep.subr.mxu0 0.0
        %1483 = vmatpush1.msra.mxu0 0.0
        %1484 = vmatprep.subr.mxu0 0.0
        %1485 = vmatpush1.msra.mxu0 0.0
        %1486 = vmatprep.subr.mxu0 0.0
        %1487 = vmatpush1.msra.mxu0 0.0
        %1488 = vmatprep.subr.mxu0 0.0
        %1489 = vmatpush1.msra.mxu0 0.0
        %1490 = vmatprep.subr.mxu0 0.0
        %1491 = vmatpush1.msra.mxu0 0.0
        %1492 = vmatprep.subr.mxu0 0.0
        %1493 = vmatpush1.msra.mxu0 0.0
        %1494 = vmatprep.subr.mxu0 0.0
        %1495 = vmatpush1.msra.mxu0 0.0
        %1496 = vmatprep.subr.mxu0 0.0
        %1497 = vmatpush1.msra.mxu0 0.0
        %1498 = vmatprep.subr.mxu0 0.0
        %1499 = vmatpush1.msra.mxu0 0.0
        %1500 = vmatprep.subr.mxu0 0.0
        %1501 = vmatpush1.msra.mxu0 0.0
        %1502 = vmatprep.subr.mxu0 0.0
        %1503 = vmatpush1.msra.mxu0 0.0
        %1504 = vmatprep.subr.mxu0 0.0
        %1505 = vmatpush1.msra.mxu0 0.0
        %1506 = vmatprep.subr.mxu0 0.0
        %1507 = vmatpush1.msra.mxu0 0.0
        %1508 = vmatprep.subr.mxu0 0.0
        %1509 = vmatpush1.msra.mxu0 0.0
        %1510 = vmatprep.subr.mxu0 0.0
        %1511 = vmatpush1.msra.mxu0 0.0
        %1512 = vmatprep.subr.mxu0 0.0
        %1513 = vmatpush1.msra.mxu0 0.0
        %1514 = vmatprep.subr.mxu0 0.0
        %1515 = vmatpush1.msra.mxu0 0.0
        %1516 = vmatprep.mubr.f32.mxu0 0.0
        %1517 = vmatmul.mubr.f32.gmra.mrb[0].mxu0 %v1276
        %v1518 = vpop.f32.mrb[0].mxu0
        %v1519 = vadd.f32 0.0, %v1518
        %v1520 = vpop.f32.mrb[0].mxu0
        %v1521 = vadd.f32 0.0, %v1520
        %1522 = vdwg.mxu0
        %1523 = vmatprep.subr.mxu0 %v1423
        %1524 = vmatpush1.msra.mxu0 %v1422
        %1525 = vmatprep.subr.mxu0 %v1427
        %1526 = vmatpush1.msra.mxu0 %v1426
        %1527 = vmatprep.subr.mxu0 %v1431
        %1528 = vmatpush1.msra.mxu0 %v1430
        %1529 = vmatprep.subr.mxu0 %v1435
        %1530 = vmatpush1.msra.mxu0 %v1434
        %1531 = vmatprep.subr.mxu0 %v1439
        %1532 = vmatpush1.msra.mxu0 %v1438
        %1533 = vmatprep.subr.mxu0 %v1443
        %1534 = vmatpush1.msra.mxu0 %v1442
        %1535 = vmatprep.subr.mxu0 %v1447
        %1536 = vmatpush1.msra.mxu0 %v1446
        %1537 = vmatprep.subr.mxu0 %v1451
        %1538 = vmatpush1.msra.mxu0 %v1450
        %1539 = vmatprep.subr.mxu0 0.0
        %1540 = vmatpush1.msra.mxu0 0.0
        %1541 = vmatprep.subr.mxu0 0.0
        %1542 = vmatpush1.msra.mxu0 0.0
        %1543 = vmatprep.subr.mxu0 0.0
        %1544 = vmatpush1.msra.mxu0 0.0
        %1545 = vmatprep.subr.mxu0 0.0
        %1546 = vmatpush1.msra.mxu0 0.0
        %1547 = vmatprep.subr.mxu0 0.0
        %1548 = vmatpush1.msra.mxu0 0.0
        %1549 = vmatprep.subr.mxu0 0.0
        %1550 = vmatpush1.msra.mxu0 0.0
        %1551 = vmatprep.subr.mxu0 0.0
        %1552 = vmatpush1.msra.mxu0 0.0
        %1553 = vmatprep.subr.mxu0 0.0
        %1554 = vmatpush1.msra.mxu0 0.0
        %1555 = vmatprep.subr.mxu0 0.0
        %1556 = vmatpush1.msra.mxu0 0.0
        %1557 = vmatprep.subr.mxu0 0.0
        %1558 = vmatpush1.msra.mxu0 0.0
        %1559 = vmatprep.subr.mxu0 0.0
        %1560 = vmatpush1.msra.mxu0 0.0
        %1561 = vmatprep.subr.mxu0 0.0
        %1562 = vmatpush1.msra.mxu0 0.0
        %1563 = vmatprep.subr.mxu0 0.0
        %1564 = vmatpush1.msra.mxu0 0.0
        %1565 = vmatprep.subr.mxu0 0.0
        %1566 = vmatpush1.msra.mxu0 0.0
        %1567 = vmatprep.subr.mxu0 0.0
        %1568 = vmatpush1.msra.mxu0 0.0
        %1569 = vmatprep.subr.mxu0 0.0
        %1570 = vmatpush1.msra.mxu0 0.0
        %1571 = vmatprep.subr.mxu0 0.0
        %1572 = vmatpush1.msra.mxu0 0.0
        %1573 = vmatprep.subr.mxu0 0.0
        %1574 = vmatpush1.msra.mxu0 0.0
        %1575 = vmatprep.subr.mxu0 0.0
        %1576 = vmatpush1.msra.mxu0 0.0
        %1577 = vmatprep.subr.mxu0 0.0
        %1578 = vmatpush1.msra.mxu0 0.0
        %1579 = vmatprep.subr.mxu0 0.0
        %1580 = vmatpush1.msra.mxu0 0.0
        %1581 = vmatprep.subr.mxu0 0.0
        %1582 = vmatpush1.msra.mxu0 0.0
        %1583 = vmatprep.subr.mxu0 0.0
        %1584 = vmatpush1.msra.mxu0 0.0
        %1585 = vmatprep.subr.mxu0 0.0
        %1586 = vmatpush1.msra.mxu0 0.0
        %1587 = vmatprep.mubr.f32.mxu0 0.0
        %1588 = vmatmul.mubr.f32.gmra.mrb[0].mxu0 %v1276
        %v1589 = vpop.f32.mrb[0].mxu0
        %v1590 = vadd.f32 0.0, %v1589
        %v1591 = vpop.f32.mrb[0].mxu0
        %v1592 = vadd.f32 0.0, %v1591
        %1593 = vdwg.mxu0
        %v1594 = vsel %vm1267, 1, 0
        %v1595 = vsel %vm1268, 1, 0
        %v1596 = vsel %vm1269, 1, 0
        %v1597 = vsel %vm1270, 1, 0
        %v1598 = vsel %vm1271, 1, 0
        %v1599 = vsel %vm1272, 1, 0
        %v1600 = vsel %vm1273, 1, 0
        %v1601 = vsel %vm1274, 1, 0
        %vm1602 = vcmp.eq.s32.totalorder %v1594, 1
        %vm1603 = vcmp.eq.s32.totalorder %v1595, 1
        %vm1604 = vcmp.eq.s32.totalorder %v1596, 1
        %vm1605 = vcmp.eq.s32.totalorder %v1597, 1
        %vm1606 = vcmp.eq.s32.totalorder %v1598, 1
        %vm1607 = vcmp.eq.s32.totalorder %v1599, 1
        %vm1608 = vcmp.eq.s32.totalorder %v1600, 1
        %vm1609 = vcmp.eq.s32.totalorder %v1601, 1
        %v1610 = vsel %vm1602, %v1210, -inf
        %v1611 = vsel %vm1602, %v1211, -inf
        %v1612 = vsel %vm1602, %v1212, -inf
        %v1613 = vsel %vm1602, %v1213, -inf
        %v1614 = vsel %vm1603, %v1214, -inf
        %v1615 = vsel %vm1603, %v1215, -inf
        %v1616 = vsel %vm1603, %v1216, -inf
        %v1617 = vsel %vm1603, %v1217, -inf
        %v1618 = vsel %vm1604, %v1218, -inf
        %v1619 = vsel %vm1604, %v1219, -inf
        %v1620 = vsel %vm1604, %v1220, -inf
        %v1621 = vsel %vm1604, %v1221, -inf
        %v1622 = vsel %vm1605, %v1222, -inf
        %v1623 = vsel %vm1605, %v1223, -inf
        %v1624 = vsel %vm1605, %v1224, -inf
        %v1625 = vsel %vm1605, %v1225, -inf
        %v1626 = vsel %vm1606, %v1226, -inf
        %v1627 = vsel %vm1606, %v1227, -inf
        %v1628 = vsel %vm1606, %v1228, -inf
        %v1629 = vsel %vm1606, %v1229, -inf
        %v1630 = vsel %vm1607, %v1230, -inf
        %v1631 = vsel %vm1607, %v1231, -inf
        %v1632 = vsel %vm1607, %v1232, -inf
        %v1633 = vsel %vm1607, %v1233, -inf
        %v1634 = vsel %vm1608, %v1234, -inf
        %v1635 = vsel %vm1608, %v1235, -inf
        %v1636 = vsel %vm1608, %v1236, -inf
        %v1637 = vsel %vm1608, %v1237, -inf
        %v1638 = vsel %vm1609, %v1238, -inf
        %v1639 = vsel %vm1609, %v1239, -inf
        %v1640 = vsel %vm1609, %v1240, -inf
        %v1641 = vsel %vm1609, %v1241, -inf
        %v1642 = vmax.f32 %v1610, %v1614
        %v1643 = vmax.f32 %v1642, %v1618
        %v1644 = vmax.f32 %v1643, %v1622
        %v1645 = vmax.f32 %v1644, %v1626
        %v1646 = vmax.f32 %v1645, %v1630
        %v1647 = vmax.f32 %v1646, %v1634
        %v1648 = vmax.f32 %v1647, %v1638
        %v1649 = vrot.slane %v1648, 4
        %v1650 = vmax.f32 %v1648, %v1649
        %v1651 = vrot.slane %v1650, 2
        %v1652 = vmax.f32 %v1650, %v1651
        %v1653 = vrot.slane %v1652, 1
        %v1654 = vmax.f32 %v1652, %v1653
        %v1655 = vmax.f32 %v1611, %v1615
        %v1656 = vmax.f32 %v1655, %v1619
        %v1657 = vmax.f32 %v1656, %v1623
        %v1658 = vmax.f32 %v1657, %v1627
        %v1659 = vmax.f32 %v1658, %v1631
        %v1660 = vmax.f32 %v1659, %v1635
        %v1661 = vmax.f32 %v1660, %v1639
        %v1662 = vrot.slane %v1661, 4
        %v1663 = vmax.f32 %v1661, %v1662
        %v1664 = vrot.slane %v1663, 2
        %v1665 = vmax.f32 %v1663, %v1664
        %v1666 = vrot.slane %v1665, 1
        %v1667 = vmax.f32 %v1665, %v1666
        %v1668 = vmax.f32 %v1612, %v1616
        %v1669 = vmax.f32 %v1668, %v1620
        %v1670 = vmax.f32 %v1669, %v1624
        %v1671 = vmax.f32 %v1670, %v1628
        %v1672 = vmax.f32 %v1671, %v1632
        %v1673 = vmax.f32 %v1672, %v1636
        %v1674 = vmax.f32 %v1673, %v1640
        %v1675 = vrot.slane %v1674, 4
        %v1676 = vmax.f32 %v1674, %v1675
        %v1677 = vrot.slane %v1676, 2
        %v1678 = vmax.f32 %v1676, %v1677
        %v1679 = vrot.slane %v1678, 1
        %v1680 = vmax.f32 %v1678, %v1679
        %v1681 = vmax.f32 %v1613, %v1617
        %v1682 = vmax.f32 %v1681, %v1621
        %v1683 = vmax.f32 %v1682, %v1625
        %v1684 = vmax.f32 %v1683, %v1629
        %v1685 = vmax.f32 %v1684, %v1633
        %v1686 = vmax.f32 %v1685, %v1637
        %v1687 = vmax.f32 %v1686, %v1641
        %v1688 = vrot.slane %v1687, 4
        %v1689 = vmax.f32 %v1687, %v1688
        %v1690 = vrot.slane %v1689, 2
        %v1691 = vmax.f32 %v1689, %v1690
        %v1692 = vrot.slane %v1691, 1
        %v1693 = vmax.f32 %v1691, %v1692
        %v1694 = vsel %vm1602, %v1210, inf
        %v1695 = vsel %vm1602, %v1211, inf
        %v1696 = vsel %vm1602, %v1212, inf
        %v1697 = vsel %vm1602, %v1213, inf
        %v1698 = vsel %vm1603, %v1214, inf
        %v1699 = vsel %vm1603, %v1215, inf
        %v1700 = vsel %vm1603, %v1216, inf
        %v1701 = vsel %vm1603, %v1217, inf
        %v1702 = vsel %vm1604, %v1218, inf
        %v1703 = vsel %vm1604, %v1219, inf
        %v1704 = vsel %vm1604, %v1220, inf
        %v1705 = vsel %vm1604, %v1221, inf
        %v1706 = vsel %vm1605, %v1222, inf
        %v1707 = vsel %vm1605, %v1223, inf
        %v1708 = vsel %vm1605, %v1224, inf
        %v1709 = vsel %vm1605, %v1225, inf
        %v1710 = vsel %vm1606, %v1226, inf
        %v1711 = vsel %vm1606, %v1227, inf
        %v1712 = vsel %vm1606, %v1228, inf
        %v1713 = vsel %vm1606, %v1229, inf
        %v1714 = vsel %vm1607, %v1230, inf
        %v1715 = vsel %vm1607, %v1231, inf
        %v1716 = vsel %vm1607, %v1232, inf
        %v1717 = vsel %vm1607, %v1233, inf
        %v1718 = vsel %vm1608, %v1234, inf
        %v1719 = vsel %vm1608, %v1235, inf
        %v1720 = vsel %vm1608, %v1236, inf
        %v1721 = vsel %vm1608, %v1237, inf
        %v1722 = vsel %vm1609, %v1238, inf
        %v1723 = vsel %vm1609, %v1239, inf
        %v1724 = vsel %vm1609, %v1240, inf
        %v1725 = vsel %vm1609, %v1241, inf
        %v1726 = vmin.f32 %v1694, %v1698
        %v1727 = vmin.f32 %v1726, %v1702
        %v1728 = vmin.f32 %v1727, %v1706
        %v1729 = vmin.f32 %v1728, %v1710
        %v1730 = vmin.f32 %v1729, %v1714
        %v1731 = vmin.f32 %v1730, %v1718
        %v1732 = vmin.f32 %v1731, %v1722
        %v1733 = vrot.slane %v1732, 4
        %v1734 = vmin.f32 %v1732, %v1733
        %v1735 = vrot.slane %v1734, 2
        %v1736 = vmin.f32 %v1734, %v1735
        %v1737 = vrot.slane %v1736, 1
        %v1738 = vmin.f32 %v1736, %v1737
        %v1739 = vmin.f32 %v1695, %v1699
        %v1740 = vmin.f32 %v1739, %v1703
        %v1741 = vmin.f32 %v1740, %v1707
        %v1742 = vmin.f32 %v1741, %v1711
        %v1743 = vmin.f32 %v1742, %v1715
        %v1744 = vmin.f32 %v1743, %v1719
        %v1745 = vmin.f32 %v1744, %v1723
        %v1746 = vrot.slane %v1745, 4
        %v1747 = vmin.f32 %v1745, %v1746
        %v1748 = vrot.slane %v1747, 2
        %v1749 = vmin.f32 %v1747, %v1748
        %v1750 = vrot.slane %v1749, 1
        %v1751 = vmin.f32 %v1749, %v1750
        %v1752 = vmin.f32 %v1696, %v1700
        %v1753 = vmin.f32 %v1752, %v1704
        %v1754 = vmin.f32 %v1753, %v1708
        %v1755 = vmin.f32 %v1754, %v1712
        %v1756 = vmin.f32 %v1755, %v1716
        %v1757 = vmin.f32 %v1756, %v1720
        %v1758 = vmin.f32 %v1757, %v1724
        %v1759 = vrot.slane %v1758, 4
        %v1760 = vmin.f32 %v1758, %v1759
        %v1761 = vrot.slane %v1760, 2
        %v1762 = vmin.f32 %v1760, %v1761
        %v1763 = vrot.slane %v1762, 1
        %v1764 = vmin.f32 %v1762, %v1763
        %v1765 = vmin.f32 %v1697, %v1701
        %v1766 = vmin.f32 %v1765, %v1705
        %v1767 = vmin.f32 %v1766, %v1709
        %v1768 = vmin.f32 %v1767, %v1713
        %v1769 = vmin.f32 %v1768, %v1717
        %v1770 = vmin.f32 %v1769, %v1721
        %v1771 = vmin.f32 %v1770, %v1725
        %v1772 = vrot.slane %v1771, 4
        %v1773 = vmin.f32 %v1771, %v1772
        %v1774 = vrot.slane %v1773, 2
        %v1775 = vmin.f32 %v1773, %v1774
        %v1776 = vrot.slane %v1775, 1
        %v1777 = vmin.f32 %v1775, %v1776
        %p1778 = scmp.eq.s32.totalorder %s29, 0
        // Predicated region
        $region72: #{tnet_forward.6} parent=66 // pred_check
          %p1779 = pneg %p1778
        $region73: #{tnet_forward.6} parent=66 // pred_check_branch
          %1781 = sbr.rel (%p1779) target = $region75
        $region74: #{tnet_forward.6} parent=66 // pred_region
          %v1782 = vlaneseq
          %vm1783 = vcmp.ge.s32.totalorder %v1782, 0
          %vm1784 = vcmp.lt.s32.totalorder %v1782, 512
          %vm1785 = vmand %vm1783, %vm1784
          %1786 = vst.msk [vmem:[%s561] sm:$0xf] %vm1785, -inf
          %1787 = vst.msk [vmem:[%s570] sm:$0xf] %vm1785, inf
          %1788 = vst.msk [vmem:[%s579] sm:$0xf] %vm1785, 0.0
          %1789 = vst.msk [vmem:[%s588] sm:$0xf] %vm1785, 0.0
        $region75: #{tnet_forward.6} parent=66 // pred_fallthru
          _
        %v1790 = vld [vmem:[%s561] sm:$0xf]
        %v1795 = vcombine.low %v1654, %v1667
        %v1796 = vcombine.low %v1680, %v1693
        %v1798 = vunpack.c.l.s4 1966171168
        %v1799 = vunpack.c.0.s8 %v1798
        %v1800 = vlaneseq
        %v1801 = vshrl.u32 %v1800, 7
        %v1802 = vsub.s32 %v1799, %v1801
        %v1803 = vrot.slane %v1795, %v1802
        %v1805 = vunpack.c.l.s4 1966171168
        %v1806 = vunpack.c.0.s8 %v1805
        %v1807 = vlaneseq
        %v1808 = vshrl.u32 %v1807, 7
        %v1809 = vsub.s32 %v1806, %v1808
        %v1810 = vrot.slane %v1796, %v1809
        %v1811 = vcombine.low %v1803, %v1810
        %v1813 = vunpack.c.l.s4 1966171168
        %v1814 = vunpack.c.0.s8 %v1813
        %v1815 = vlaneseq
        %v1816 = vshrl.u32 %v1815, 7
        %v1817 = vsub.s32 %v1814, %v1816
        %v1818 = vrot.slane %v1811, %v1817
        %v1820 = vmax.f32 %v1790, %v1818
        %v1821 = vlaneseq
        %vm1822 = vcmp.ge.s32.totalorder %v1821, 0
        %vm1823 = vcmp.lt.s32.totalorder %v1821, 512
        %vm1824 = vmand %vm1822, %vm1823
        %1825 = vst.msk [vmem:[%s561] sm:$0xf] %vm1824, %v1820
        %v1826 = vld [vmem:[%s570] sm:$0xf]
        %v1831 = vcombine.low %v1738, %v1751
        %v1832 = vcombine.low %v1764, %v1777
        %v1834 = vunpack.c.l.s4 1966171168
        %v1835 = vunpack.c.0.s8 %v1834
        %v1836 = vlaneseq
        %v1837 = vshrl.u32 %v1836, 7
        %v1838 = vsub.s32 %v1835, %v1837
        %v1839 = vrot.slane %v1831, %v1838
        %v1841 = vunpack.c.l.s4 1966171168
        %v1842 = vunpack.c.0.s8 %v1841
        %v1843 = vlaneseq
        %v1844 = vshrl.u32 %v1843, 7
        %v1845 = vsub.s32 %v1842, %v1844
        %v1846 = vrot.slane %v1832, %v1845
        %v1847 = vcombine.low %v1839, %v1846
        %v1849 = vunpack.c.l.s4 1966171168
        %v1850 = vunpack.c.0.s8 %v1849
        %v1851 = vlaneseq
        %v1852 = vshrl.u32 %v1851, 7
        %v1853 = vsub.s32 %v1850, %v1852
        %v1854 = vrot.slane %v1847, %v1853
        %v1856 = vmin.f32 %v1826, %v1854
        %1857 = vst.msk [vmem:[%s570] sm:$0xf] %vm1824, %v1856
        %v1858 = vld [vmem:[%s579] sm:$0xf]
        %v1863 = vcombine.low %v1345, %v1347
        %v1864 = vcombine.low %v1416, %v1418
        %v1866 = vunpack.c.l.s4 1966171168
        %v1867 = vunpack.c.0.s8 %v1866
        %v1868 = vlaneseq
        %v1869 = vshrl.u32 %v1868, 7
        %v1870 = vsub.s32 %v1867, %v1869
        %v1871 = vrot.slane %v1863, %v1870
        %v1873 = vunpack.c.l.s4 1966171168
        %v1874 = vunpack.c.0.s8 %v1873
        %v1875 = vlaneseq
        %v1876 = vshrl.u32 %v1875, 7
        %v1877 = vsub.s32 %v1874, %v1876
        %v1878 = vrot.slane %v1864, %v1877
        %v1879 = vcombine.low %v1871, %v1878
        %v1881 = vunpack.c.l.s4 1966171168
        %v1882 = vunpack.c.0.s8 %v1881
        %v1883 = vlaneseq
        %v1884 = vshrl.u32 %v1883, 7
        %v1885 = vsub.s32 %v1882, %v1884
        %v1886 = vrot.slane %v1879, %v1885
        %v1888 = vadd.f32 %v1858, %v1886
        %1889 = vst.msk [vmem:[%s579] sm:$0xf] %vm1824, %v1888
        %v1890 = vld [vmem:[%s588] sm:$0xf]
        %v1895 = vcombine.low %v1519, %v1521
        %v1896 = vcombine.low %v1590, %v1592
        %v1898 = vunpack.c.l.s4 1966171168
        %v1899 = vunpack.c.0.s8 %v1898
        %v1900 = vlaneseq
        %v1901 = vshrl.u32 %v1900, 7
        %v1902 = vsub.s32 %v1899, %v1901
        %v1903 = vrot.slane %v1895, %v1902
        %v1905 = vunpack.c.l.s4 1966171168
        %v1906 = vunpack.c.0.s8 %v1905
        %v1907 = vlaneseq
        %v1908 = vshrl.u32 %v1907, 7
        %v1909 = vsub.s32 %v1906, %v1908
        %v1910 = vrot.slane %v1896, %v1909
        %v1911 = vcombine.low %v1903, %v1910
        %v1913 = vunpack.c.l.s4 1966171168
        %v1914 = vunpack.c.0.s8 %v1913
        %v1915 = vlaneseq
        %v1916 = vshrl.u32 %v1915, 7
        %v1917 = vsub.s32 %v1914, %v1916
        %v1918 = vrot.slane %v1911, %v1917
        %v1920 = vadd.f32 %v1890, %v1918
        %1921 = vst.msk [vmem:[%s588] sm:$0xf] %vm1824, %v1920
        %s1922 = smul.u32 4, %s28
        %p1923 = scmp.lt.s32.totalorder %s27, 3
        %s1924 = scalar_select %p1923, %s27, 3
        %p1925 = scmp.lt.s32.totalorder %s1922, 7
        %s1926 = scalar_select %p1925, %s1922, 7
        %s1927 = smul.addr %s1924, 8
        %s1928 = sadd.s32 %s1926, %s1927
        %s1929 = scalar_lea.vmem %s7, %s1928
        %s1930 = smul.u32 4, %s28
        %p1931 = scmp.lt.s32.totalorder %s27, 3
        %s1932 = scalar_select %p1931, %s27, 3
        %p1933 = scmp.lt.s32.totalorder %s1930, 7
        %s1934 = scalar_select %p1933, %s1930, 7
        %s1935 = smul.addr %s1932, 8
        %s1936 = sadd.s32 %s1934, %s1935
        %s1937 = scalar_lea.vmem %s8, %s1936
        %s1938 = smul.u32 4, %s28
        %p1939 = scmp.lt.s32.totalorder %s27, 3
        %s1940 = scalar_select %p1939, %s27, 3
        %p1941 = scmp.lt.s32.totalorder %s1938, 7
        %s1942 = scalar_select %p1941, %s1938, 7
        %s1943 = smul.addr %s1940, 8
        %s1944 = sadd.s32 %s1942, %s1943
        %s1945 = scalar_lea.vmem %s9, %s1944
        %s1946 = smul.u32 4, %s28
        %p1947 = scmp.lt.s32.totalorder %s27, 3
        %s1948 = scalar_select %p1947, %s27, 3
        %p1949 = scmp.lt.s32.totalorder %s1946, 7
        %s1950 = scalar_select %p1949, %s1946, 7
        %s1951 = smul.addr %s1948, 8
        %s1952 = sadd.s32 %s1950, %s1951
        %s1953 = scalar_lea.vmem %s10, %s1952
        // Predicated region
        $region76: #{tnet_forward.6} parent=66 // pred_check
          %p1954 = pneg %p225
        $region77: #{tnet_forward.6} parent=66 // pred_check_branch
          %1956 = sbr.rel (%p1954) target = $region79
        $region78: #{tnet_forward.6} parent=66 // pred_region
          %s1957 = smul.u32 4, %s28
        $region79: #{tnet_forward.6} parent=66 // pred_fallthru
          _
        // Predicated region
        $region80: #{tnet_forward.6} parent=66 // pred_check
          %p1958 = pneg %p253
        $region81: #{tnet_forward.6} parent=66 // pred_check_branch
          %1960 = sbr.rel (%p1958) target = $region83
        $region82: #{tnet_forward.6} parent=66 // pred_region
          %s1961 = smul.u32 4, %s28
        $region83: #{tnet_forward.6} parent=66 // pred_fallthru
          _
        // Predicated region
        $region84: #{tnet_forward.6} parent=66 // pred_check
          %p1962 = pneg %p281
        $region85: #{tnet_forward.6} parent=66 // pred_check_branch
          %1964 = sbr.rel (%p1962) target = $region87
        $region86: #{tnet_forward.6} parent=66 // pred_region
          %s1965 = smul.u32 4, %s28
        $region87: #{tnet_forward.6} parent=66 // pred_fallthru
          _
        // Predicated region
        $region88: #{tnet_forward.6} parent=66 // pred_check
          %p1966 = pneg %p309
        $region89: #{tnet_forward.6} parent=66 // pred_check_branch
          %1968 = sbr.rel (%p1966) target = $region91
        $region90: #{tnet_forward.6} parent=66 // pred_region
          %s1969 = smul.u32 4, %s28
        $region91: #{tnet_forward.6} parent=66 // pred_fallthru
          _
      $region67: #{tnet_forward.6} parent=5 // pred_fallthru
        _
      %p1970 = scmp.le.s32.totalorder 2, %s17
      // Predicated region
      $region92: #{tnet_forward.6} parent=5 // pred_check
        %p1971 = pneg %p1970
      $region93: #{tnet_forward.6} parent=5 // pred_check_branch
        %1973 = sbr.rel (%p1971) target = $region95
      $region94: #{tnet_forward.6} parent=5 // pred_region
        %s1974 = ssub.s32 %s17, 2
        // Predicated region
        $region96: #{tnet_forward.6} parent=94 // pred_check
          %p1975 = pneg %p231
        $region97: #{tnet_forward.6} parent=94 // pred_check_branch
          %1977 = sbr.rel (%p1975) target = $region99
        $region98: #{tnet_forward.6} parent=94 // pred_region
          %s1978 = smul.u32 4, %s31
          %p1979 = scmp.lt.s32.totalorder %s30, 3
          %s1980 = scalar_select %p1979, %s30, 3
          %p1981 = scmp.lt.s32.totalorder %s1978, 7
          %s1982 = scalar_select %p1981, %s1978, 7
          %s1983 = smul.addr %s1980, 8
          %s1984 = sadd.s32 %s1982, %s1983
          %s1985 = scalar_lea.vmem %s7, %s1984
        $region99: #{tnet_forward.6} parent=94 // pred_fallthru
          _
        // Predicated region
        $region100: #{tnet_forward.6} parent=94 // pred_check
          %p1986 = pneg %p259
        $region101: #{tnet_forward.6} parent=94 // pred_check_branch
          %1988 = sbr.rel (%p1986) target = $region103
        $region102: #{tnet_forward.6} parent=94 // pred_region
          %s1989 = smul.u32 4, %s31
          %p1990 = scmp.lt.s32.totalorder %s30, 3
          %s1991 = scalar_select %p1990, %s30, 3
          %p1992 = scmp.lt.s32.totalorder %s1989, 7
          %s1993 = scalar_select %p1992, %s1989, 7
          %s1994 = smul.addr %s1991, 8
          %s1995 = sadd.s32 %s1993, %s1994
          %s1996 = scalar_lea.vmem %s8, %s1995
        $region103: #{tnet_forward.6} parent=94 // pred_fallthru
          _
        // Predicated region
        $region104: #{tnet_forward.6} parent=94 // pred_check
          %p1997 = pneg %p287
        $region105: #{tnet_forward.6} parent=94 // pred_check_branch
          %1999 = sbr.rel (%p1997) target = $region107
        $region106: #{tnet_forward.6} parent=94 // pred_region
          %s2000 = smul.u32 4, %s31
          %p2001 = scmp.lt.s32.totalorder %s30, 3
          %s2002 = scalar_select %p2001, %s30, 3
          %p2003 = scmp.lt.s32.totalorder %s2000, 7
          %s2004 = scalar_select %p2003, %s2000, 7
          %s2005 = smul.addr %s2002, 8
          %s2006 = sadd.s32 %s2004, %s2005
          %s2007 = scalar_lea.vmem %s9, %s2006
        $region107: #{tnet_forward.6} parent=94 // pred_fallthru
          _
        // Predicated region
        $region108: #{tnet_forward.6} parent=94 // pred_check
          %p2008 = pneg %p315
        $region109: #{tnet_forward.6} parent=94 // pred_check_branch
          %2010 = sbr.rel (%p2008) target = $region111
        $region110: #{tnet_forward.6} parent=94 // pred_region
          %s2011 = smul.u32 4, %s31
          %p2012 = scmp.lt.s32.totalorder %s30, 3
          %s2013 = scalar_select %p2012, %s30, 3
          %p2014 = scmp.lt.s32.totalorder %s2011, 7
          %s2015 = scalar_select %p2014, %s2011, 7
          %s2016 = smul.addr %s2013, 8
          %s2017 = sadd.s32 %s2015, %s2016
          %s2018 = scalar_lea.vmem %s10, %s2017
        $region111: #{tnet_forward.6} parent=94 // pred_fallthru
          _
      $region95: #{tnet_forward.6} parent=5 // pred_fallthru
        _
    $region6: #{tnet_forward.6} parent=1 // loop_footer
      %s21 = sadd.s32 1, %s17
    $region7: #{tnet_forward.6} parent=1 // loop_footer_branch
      %16 = sbr.rel target = $region3
    $region8: #{tnet_forward.6} parent=1 // loop_exit
      _

// kernel: tnet_forward.7
$region0: #{tnet_forward.7}
  #allocation0 [shape = 'u32[]', space=smem, size = 0x4, offset = 0x4, fixed_abs, tag = 'smem constant byte address 0x4 - core index']
  #allocation1 [shape = 'u32[144,128]{1,0:T(1,128)}', space=vmem, size = 0x12000, scoped, tag = 'internal scratch']
  %s0 = inlined_call_operand.vmem [shape: f32[4,1024], index: 0, kind: input, shape index: {}]
  %s1 = inlined_call_operand.vmem [shape: bf16[1024,512], index: 1, kind: input, shape index: {}]
  %s2 = inlined_call_operand.vmem [shape: f32[1,512], index: 2, kind: input, shape index: {}]
  %s3 = inlined_call_operand.vmem [shape: f32[1,512], index: 3, kind: input, shape index: {}]
  %s4 = inlined_call_operand.vmem [shape: f32[1,512], index: 4, kind: input, shape index: {}]
  %s5 = inlined_call_operand.vmem [shape: bf16[512,256], index: 5, kind: input, shape index: {}]
  %s6 = inlined_call_operand.vmem [shape: f32[1,256], index: 6, kind: input, shape index: {}]
  %s7 = inlined_call_operand.vmem [shape: f32[1,256], index: 7, kind: input, shape index: {}]
  %s8 = inlined_call_operand.vmem [shape: f32[1,256], index: 8, kind: input, shape index: {}]
  %s9 = inlined_call_operand.vmem [shape: bf16[256,9], index: 9, kind: input, shape index: {}]
  %s10 = inlined_call_operand.vmem [shape: f32[1,9], index: 10, kind: input, shape index: {}]
  %s11 = inlined_call_operand.vmem [shape: f32[4,9], index: 11, kind: output, shape index: {}]
  %s12 = sld [smem:[#allocation0]]
  $region54: #{tnet_forward.7} parent=0
    _
  %s14 = ssub.s32 1, %s12
  %s15 = scalar_select 0, %s14, %s12
  // Predicated region
  $region2: #{tnet_forward.7} parent=0 // pred_check
    _
  $region3: #{tnet_forward.7} parent=0 // pred_check_branch
    %17 = sbr.rel (0) target = $region5
  $region4: #{tnet_forward.7} parent=0 // pred_region
    _
  $region5: #{tnet_forward.7} parent=0 // pred_fallthru
    _
  // Predicated region
  $region6: #{tnet_forward.7} parent=0 // pred_check
    _
  $region7: #{tnet_forward.7} parent=0 // pred_check_branch
    %19 = sbr.rel (0) target = $region9
  $region8: #{tnet_forward.7} parent=0 // pred_region
    _
  $region9: #{tnet_forward.7} parent=0 // pred_fallthru
    _
  // Predicated region
  $region10: #{tnet_forward.7} parent=0 // pred_check
    _
  $region11: #{tnet_forward.7} parent=0 // pred_check_branch
    %21 = sbr.rel (0) target = $region13
  $region12: #{tnet_forward.7} parent=0 // pred_region
    _
  $region13: #{tnet_forward.7} parent=0 // pred_fallthru
    _
  // Predicated region
  $region14: #{tnet_forward.7} parent=0 // pred_check
    _
  $region15: #{tnet_forward.7} parent=0 // pred_check_branch
    %23 = sbr.rel (0) target = $region17
  $region16: #{tnet_forward.7} parent=0 // pred_region
    _
  $region17: #{tnet_forward.7} parent=0 // pred_fallthru
    _
  // Predicated region
  $region18: #{tnet_forward.7} parent=0 // pred_check
    _
  $region19: #{tnet_forward.7} parent=0 // pred_check_branch
    %25 = sbr.rel (0) target = $region21
  $region20: #{tnet_forward.7} parent=0 // pred_region
    _
  $region21: #{tnet_forward.7} parent=0 // pred_fallthru
    _
  // Predicated region
  $region22: #{tnet_forward.7} parent=0 // pred_check
    _
  $region23: #{tnet_forward.7} parent=0 // pred_check_branch
    %27 = sbr.rel (0) target = $region25
  $region24: #{tnet_forward.7} parent=0 // pred_region
    _
  $region25: #{tnet_forward.7} parent=0 // pred_fallthru
    _
  // Predicated region
  $region26: #{tnet_forward.7} parent=0 // pred_check
    _
  $region27: #{tnet_forward.7} parent=0 // pred_check_branch
    %29 = sbr.rel (0) target = $region29
  $region28: #{tnet_forward.7} parent=0 // pred_region
    _
  $region29: #{tnet_forward.7} parent=0 // pred_fallthru
    _
  // Predicated region
  $region30: #{tnet_forward.7} parent=0 // pred_check
    _
  $region31: #{tnet_forward.7} parent=0 // pred_check_branch
    %31 = sbr.rel (0) target = $region33
  $region32: #{tnet_forward.7} parent=0 // pred_region
    _
  $region33: #{tnet_forward.7} parent=0 // pred_fallthru
    _
  // Predicated region
  $region34: #{tnet_forward.7} parent=0 // pred_check
    _
  $region35: #{tnet_forward.7} parent=0 // pred_check_branch
    %33 = sbr.rel (0) target = $region37
  $region36: #{tnet_forward.7} parent=0 // pred_region
    _
  $region37: #{tnet_forward.7} parent=0 // pred_fallthru
    _
  // Predicated region
  $region38: #{tnet_forward.7} parent=0 // pred_check
    _
  $region39: #{tnet_forward.7} parent=0 // pred_check_branch
    %35 = sbr.rel (0) target = $region41
  $region40: #{tnet_forward.7} parent=0 // pred_region
    _
  $region41: #{tnet_forward.7} parent=0 // pred_fallthru
    _
  // Predicated region
  $region42: #{tnet_forward.7} parent=0 // pred_check
    _
  $region43: #{tnet_forward.7} parent=0 // pred_check_branch
    %37 = sbr.rel (0) target = $region45
  $region44: #{tnet_forward.7} parent=0 // pred_region
    _
  $region45: #{tnet_forward.7} parent=0 // pred_fallthru
    _
  %v39 = vld [vmem:[%s0] sm:$0xff]
  %v40 = vld [vmem:[%s0 + $0x8] sm:$0xff]
  %v41 = vld [vmem:[%s0 + $0x10] sm:$0xff]
  %v42 = vld [vmem:[%s0 + $0x18] sm:$0xff]
  %v47 = vcombine.high %v39, %v39
  %v48 = vcombine.high %v40, %v40
  %v49 = vcombine.high %v41, %v41
  %v50 = vcombine.high %v42, %v42
  %v55 = vpack.c.bf16 %v39, %v39
  %v56 = vpack.c.bf16 %v47, %v47
  %v57 = vpack.c.bf16 %v40, %v40
  %v58 = vpack.c.bf16 %v48, %v48
  %v59 = vpack.c.bf16 %v41, %v41
  %v60 = vpack.c.bf16 %v49, %v49
  %v61 = vpack.c.bf16 %v42, %v42
  %v62 = vpack.c.bf16 %v50, %v50
  %v63 = vld [vmem:[%s1] sm:$0xff]
  %v64 = vld [vmem:[%s1 + $0x8] sm:$0xff]
  %v65 = vld [vmem:[%s1 + $0x10] sm:$0xff]
  %v66 = vld [vmem:[%s1 + $0x18] sm:$0xff]
  %v67 = vld [vmem:[%s1 + $0x20] sm:$0xff]
  %v68 = vld [vmem:[%s1 + $0x28] sm:$0xff]
  %v69 = vld [vmem:[%s1 + $0x30] sm:$0xff]
  %v70 = vld [vmem:[%s1 + $0x38] sm:$0xff]
  %v71 = vld [vmem:[%s1 + $0x40] sm:$0xff]
  %v72 = vld [vmem:[%s1 + $0x48] sm:$0xff]
  %v73 = vld [vmem:[%s1 + $0x50] sm:$0xff]
  %v74 = vld [vmem:[%s1 + $0x58] sm:$0xff]
  %v75 = vld [vmem:[%s1 + $0x60] sm:$0xff]
  %v76 = vld [vmem:[%s1 + $0x68] sm:$0xff]
  %v77 = vld [vmem:[%s1 + $0x70] sm:$0xff]
  %v78 = vld [vmem:[%s1 + $0x78] sm:$0xff]
  %v79 = vld [vmem:[%s1 + $0x80] sm:$0xff]
  %v80 = vld [vmem:[%s1 + $0x88] sm:$0xff]
  %v81 = vld [vmem:[%s1 + $0x90] sm:$0xff]
  %v82 = vld [vmem:[%s1 + $0x98] sm:$0xff]
  %v83 = vld [vmem:[%s1 + $0xa0] sm:$0xff]
  %v84 = vld [vmem:[%s1 + $0xa8] sm:$0xff]
  %v85 = vld [vmem:[%s1 + $0xb0] sm:$0xff]
  %v86 = vld [vmem:[%s1 + $0xb8] sm:$0xff]
  %v87 = vld [vmem:[%s1 + $0xc0] sm:$0xff]
  %v88 = vld [vmem:[%s1 + $0xc8] sm:$0xff]
  %v89 = vld [vmem:[%s1 + $0xd0] sm:$0xff]
  %v90 = vld [vmem:[%s1 + $0xd8] sm:$0xff]
  %v91 = vld [vmem:[%s1 + $0xe0] sm:$0xff]
  %v92 = vld [vmem:[%s1 + $0xe8] sm:$0xff]
  %v93 = vld [vmem:[%s1 + $0xf0] sm:$0xff]
  %v94 = vld [vmem:[%s1 + $0xf8] sm:$0xff]
  %v95 = vld [vmem:[%s1 + $0x100] sm:$0xff]
  %v96 = vld [vmem:[%s1 + $0x108] sm:$0xff]
  %v97 = vld [vmem:[%s1 + $0x110] sm:$0xff]
  %v98 = vld [vmem:[%s1 + $0x118] sm:$0xff]
  %v99 = vld [vmem:[%s1 + $0x120] sm:$0xff]
  %v100 = vld [vmem:[%s1 + $0x128] sm:$0xff]
  %v101 = vld [vmem:[%s1 + $0x130] sm:$0xff]
  %v102 = vld [vmem:[%s1 + $0x138] sm:$0xff]
  %v103 = vld [vmem:[%s1 + $0x140] sm:$0xff]
  %v104 = vld [vmem:[%s1 + $0x148] sm:$0xff]
  %v105 = vld [vmem:[%s1 + $0x150] sm:$0xff]
  %v106 = vld [vmem:[%s1 + $0x158] sm:$0xff]
  %v107 = vld [vmem:[%s1 + $0x160] sm:$0xff]
  %v108 = vld [vmem:[%s1 + $0x168] sm:$0xff]
  %v109 = vld [vmem:[%s1 + $0x170] sm:$0xff]
  %v110 = vld [vmem:[%s1 + $0x178] sm:$0xff]
  %v111 = vld [vmem:[%s1 + $0x180] sm:$0xff]
  %v112 = vld [vmem:[%s1 + $0x188] sm:$0xff]
  %v113 = vld [vmem:[%s1 + $0x190] sm:$0xff]
  %v114 = vld [vmem:[%s1 + $0x198] sm:$0xff]
  %v115 = vld [vmem:[%s1 + $0x1a0] sm:$0xff]
  %v116 = vld [vmem:[%s1 + $0x1a8] sm:$0xff]
  %v117 = vld [vmem:[%s1 + $0x1b0] sm:$0xff]
  %v118 = vld [vmem:[%s1 + $0x1b8] sm:$0xff]
  %v119 = vld [vmem:[%s1 + $0x1c0] sm:$0xff]
  %v120 = vld [vmem:[%s1 + $0x1c8] sm:$0xff]
  %v121 = vld [vmem:[%s1 + $0x1d0] sm:$0xff]
  %v122 = vld [vmem:[%s1 + $0x1d8] sm:$0xff]
  %v123 = vld [vmem:[%s1 + $0x1e0] sm:$0xff]
  %v124 = vld [vmem:[%s1 + $0x1e8] sm:$0xff]
  %v125 = vld [vmem:[%s1 + $0x1f0] sm:$0xff]
  %v126 = vld [vmem:[%s1 + $0x1f8] sm:$0xff]
  %v127 = vld [vmem:[%s1 + $0x200] sm:$0xff]
  %v128 = vld [vmem:[%s1 + $0x208] sm:$0xff]
  %v129 = vld [vmem:[%s1 + $0x210] sm:$0xff]
  %v130 = vld [vmem:[%s1 + $0x218] sm:$0xff]
  %v131 = vld [vmem:[%s1 + $0x220] sm:$0xff]
  %v132 = vld [vmem:[%s1 + $0x228] sm:$0xff]
  %v133 = vld [vmem:[%s1 + $0x230] sm:$0xff]
  %v134 = vld [vmem:[%s1 + $0x238] sm:$0xff]
  %v135 = vld [vmem:[%s1 + $0x240] sm:$0xff]
  %v136 = vld [vmem:[%s1 + $0x248] sm:$0xff]
  %v137 = vld [vmem:[%s1 + $0x250] sm:$0xff]
  %v138 = vld [vmem:[%s1 + $0x258] sm:$0xff]
  %v139 = vld [vmem:[%s1 + $0x260] sm:$0xff]
  %v140 = vld [vmem:[%s1 + $0x268] sm:$0xff]
  %v141 = vld [vmem:[%s1 + $0x270] sm:$0xff]
  %v142 = vld [vmem:[%s1 + $0x278] sm:$0xff]
  %v143 = vld [vmem:[%s1 + $0x280] sm:$0xff]
  %v144 = vld [vmem:[%s1 + $0x288] sm:$0xff]
  %v145 = vld [vmem:[%s1 + $0x290] sm:$0xff]
  %v146 = vld [vmem:[%s1 + $0x298] sm:$0xff]
  %v147 = vld [vmem:[%s1 + $0x2a0] sm:$0xff]
  %v148 = vld [vmem:[%s1 + $0x2a8] sm:$0xff]
  %v149 = vld [vmem:[%s1 + $0x2b0] sm:$0xff]
  %v150 = vld [vmem:[%s1 + $0x2b8] sm:$0xff]
  %v151 = vld [vmem:[%s1 + $0x2c0] sm:$0xff]
  %v152 = vld [vmem:[%s1 + $0x2c8] sm:$0xff]
  %v153 = vld [vmem:[%s1 + $0x2d0] sm:$0xff]
  %v154 = vld [vmem:[%s1 + $0x2d8] sm:$0xff]
  %v155 = vld [vmem:[%s1 + $0x2e0] sm:$0xff]
  %v156 = vld [vmem:[%s1 + $0x2e8] sm:$0xff]
  %v157 = vld [vmem:[%s1 + $0x2f0] sm:$0xff]
  %v158 = vld [vmem:[%s1 + $0x2f8] sm:$0xff]
  %v159 = vld [vmem:[%s1 + $0x300] sm:$0xff]
  %v160 = vld [vmem:[%s1 + $0x308] sm:$0xff]
  %v161 = vld [vmem:[%s1 + $0x310] sm:$0xff]
  %v162 = vld [vmem:[%s1 + $0x318] sm:$0xff]
  %v163 = vld [vmem:[%s1 + $0x320] sm:$0xff]
  %v164 = vld [vmem:[%s1 + $0x328] sm:$0xff]
  %v165 = vld [vmem:[%s1 + $0x330] sm:$0xff]
  %v166 = vld [vmem:[%s1 + $0x338] sm:$0xff]
  %v167 = vld [vmem:[%s1 + $0x340] sm:$0xff]
  %v168 = vld [vmem:[%s1 + $0x348] sm:$0xff]
  %v169 = vld [vmem:[%s1 + $0x350] sm:$0xff]
  %v170 = vld [vmem:[%s1 + $0x358] sm:$0xff]
  %v171 = vld [vmem:[%s1 + $0x360] sm:$0xff]
  %v172 = vld [vmem:[%s1 + $0x368] sm:$0xff]
  %v173 = vld [vmem:[%s1 + $0x370] sm:$0xff]
  %v174 = vld [vmem:[%s1 + $0x378] sm:$0xff]
  %v175 = vld [vmem:[%s1 + $0x380] sm:$0xff]
  %v176 = vld [vmem:[%s1 + $0x388] sm:$0xff]
  %v177 = vld [vmem:[%s1 + $0x390] sm:$0xff]
  %v178 = vld [vmem:[%s1 + $0x398] sm:$0xff]
  %v179 = vld [vmem:[%s1 + $0x3a0] sm:$0xff]
  %v180 = vld [vmem:[%s1 + $0x3a8] sm:$0xff]
  %v181 = vld [vmem:[%s1 + $0x3b0] sm:$0xff]
  %v182 = vld [vmem:[%s1 + $0x3b8] sm:$0xff]
  %v183 = vld [vmem:[%s1 + $0x3c0] sm:$0xff]
  %v184 = vld [vmem:[%s1 + $0x3c8] sm:$0xff]
  %v185 = vld [vmem:[%s1 + $0x3d0] sm:$0xff]
  %v186 = vld [vmem:[%s1 + $0x3d8] sm:$0xff]
  %v187 = vld [vmem:[%s1 + $0x3e0] sm:$0xff]
  %v188 = vld [vmem:[%s1 + $0x3e8] sm:$0xff]
  %v189 = vld [vmem:[%s1 + $0x3f0] sm:$0xff]
  %v190 = vld [vmem:[%s1 + $0x3f8] sm:$0xff]
  %v191 = vld [vmem:[%s1 + $0x400] sm:$0xff]
  %v192 = vld [vmem:[%s1 + $0x408] sm:$0xff]
  %v193 = vld [vmem:[%s1 + $0x410] sm:$0xff]
  %v194 = vld [vmem:[%s1 + $0x418] sm:$0xff]
  %v195 = vld [vmem:[%s1 + $0x420] sm:$0xff]
  %v196 = vld [vmem:[%s1 + $0x428] sm:$0xff]
  %v197 = vld [vmem:[%s1 + $0x430] sm:$0xff]
  %v198 = vld [vmem:[%s1 + $0x438] sm:$0xff]
  %v199 = vld [vmem:[%s1 + $0x440] sm:$0xff]
  %v200 = vld [vmem:[%s1 + $0x448] sm:$0xff]
  %v201 = vld [vmem:[%s1 + $0x450] sm:$0xff]
  %v202 = vld [vmem:[%s1 + $0x458] sm:$0xff]
  %v203 = vld [vmem:[%s1 + $0x460] sm:$0xff]
  %v204 = vld [vmem:[%s1 + $0x468] sm:$0xff]
  %v205 = vld [vmem:[%s1 + $0x470] sm:$0xff]
  %v206 = vld [vmem:[%s1 + $0x478] sm:$0xff]
  %v207 = vld [vmem:[%s1 + $0x480] sm:$0xff]
  %v208 = vld [vmem:[%s1 + $0x488] sm:$0xff]
  %v209 = vld [vmem:[%s1 + $0x490] sm:$0xff]
  %v210 = vld [vmem:[%s1 + $0x498] sm:$0xff]
  %v211 = vld [vmem:[%s1 + $0x4a0] sm:$0xff]
  %v212 = vld [vmem:[%s1 + $0x4a8] sm:$0xff]
  %v213 = vld [vmem:[%s1 + $0x4b0] sm:$0xff]
  %v214 = vld [vmem:[%s1 + $0x4b8] sm:$0xff]
  %v215 = vld [vmem:[%s1 + $0x4c0] sm:$0xff]
  %v216 = vld [vmem:[%s1 + $0x4c8] sm:$0xff]
  %v217 = vld [vmem:[%s1 + $0x4d0] sm:$0xff]
  %v218 = vld [vmem:[%s1 + $0x4d8] sm:$0xff]
  %v219 = vld [vmem:[%s1 + $0x4e0] sm:$0xff]
  %v220 = vld [vmem:[%s1 + $0x4e8] sm:$0xff]
  %v221 = vld [vmem:[%s1 + $0x4f0] sm:$0xff]
  %v222 = vld [vmem:[%s1 + $0x4f8] sm:$0xff]
  %v223 = vld [vmem:[%s1 + $0x500] sm:$0xff]
  %v224 = vld [vmem:[%s1 + $0x508] sm:$0xff]
  %v225 = vld [vmem:[%s1 + $0x510] sm:$0xff]
  %v226 = vld [vmem:[%s1 + $0x518] sm:$0xff]
  %v227 = vld [vmem:[%s1 + $0x520] sm:$0xff]
  %v228 = vld [vmem:[%s1 + $0x528] sm:$0xff]
  %v229 = vld [vmem:[%s1 + $0x530] sm:$0xff]
  %v230 = vld [vmem:[%s1 + $0x538] sm:$0xff]
  %v231 = vld [vmem:[%s1 + $0x540] sm:$0xff]
  %v232 = vld [vmem:[%s1 + $0x548] sm:$0xff]
  %v233 = vld [vmem:[%s1 + $0x550] sm:$0xff]
  %v234 = vld [vmem:[%s1 + $0x558] sm:$0xff]
  %v235 = vld [vmem:[%s1 + $0x560] sm:$0xff]
  %v236 = vld [vmem:[%s1 + $0x568] sm:$0xff]
  %v237 = vld [vmem:[%s1 + $0x570] sm:$0xff]
  %v238 = vld [vmem:[%s1 + $0x578] sm:$0xff]
  %v239 = vld [vmem:[%s1 + $0x580] sm:$0xff]
  %v240 = vld [vmem:[%s1 + $0x588] sm:$0xff]
  %v241 = vld [vmem:[%s1 + $0x590] sm:$0xff]
  %v242 = vld [vmem:[%s1 + $0x598] sm:$0xff]
  %v243 = vld [vmem:[%s1 + $0x5a0] sm:$0xff]
  %v244 = vld [vmem:[%s1 + $0x5a8] sm:$0xff]
  %v245 = vld [vmem:[%s1 + $0x5b0] sm:$0xff]
  %v246 = vld [vmem:[%s1 + $0x5b8] sm:$0xff]
  %v247 = vld [vmem:[%s1 + $0x5c0] sm:$0xff]
  %v248 = vld [vmem:[%s1 + $0x5c8] sm:$0xff]
  %v249 = vld [vmem:[%s1 + $0x5d0] sm:$0xff]
  %v250 = vld [vmem:[%s1 + $0x5d8] sm:$0xff]
  %v251 = vld [vmem:[%s1 + $0x5e0] sm:$0xff]
  %v252 = vld [vmem:[%s1 + $0x5e8] sm:$0xff]
  %v253 = vld [vmem:[%s1 + $0x5f0] sm:$0xff]
  %v254 = vld [vmem:[%s1 + $0x5f8] sm:$0xff]
  %v255 = vld [vmem:[%s1 + $0x600] sm:$0xff]
  %v256 = vld [vmem:[%s1 + $0x608] sm:$0xff]
  %v257 = vld [vmem:[%s1 + $0x610] sm:$0xff]
  %v258 = vld [vmem:[%s1 + $0x618] sm:$0xff]
  %v259 = vld [vmem:[%s1 + $0x620] sm:$0xff]
  %v260 = vld [vmem:[%s1 + $0x628] sm:$0xff]
  %v261 = vld [vmem:[%s1 + $0x630] sm:$0xff]
  %v262 = vld [vmem:[%s1 + $0x638] sm:$0xff]
  %v263 = vld [vmem:[%s1 + $0x640] sm:$0xff]
  %v264 = vld [vmem:[%s1 + $0x648] sm:$0xff]
  %v265 = vld [vmem:[%s1 + $0x650] sm:$0xff]
  %v266 = vld [vmem:[%s1 + $0x658] sm:$0xff]
  %v267 = vld [vmem:[%s1 + $0x660] sm:$0xff]
  %v268 = vld [vmem:[%s1 + $0x668] sm:$0xff]
  %v269 = vld [vmem:[%s1 + $0x670] sm:$0xff]
  %v270 = vld [vmem:[%s1 + $0x678] sm:$0xff]
  %v271 = vld [vmem:[%s1 + $0x680] sm:$0xff]
  %v272 = vld [vmem:[%s1 + $0x688] sm:$0xff]
  %v273 = vld [vmem:[%s1 + $0x690] sm:$0xff]
  %v274 = vld [vmem:[%s1 + $0x698] sm:$0xff]
  %v275 = vld [vmem:[%s1 + $0x6a0] sm:$0xff]
  %v276 = vld [vmem:[%s1 + $0x6a8] sm:$0xff]
  %v277 = vld [vmem:[%s1 + $0x6b0] sm:$0xff]
  %v278 = vld [vmem:[%s1 + $0x6b8] sm:$0xff]
  %v279 = vld [vmem:[%s1 + $0x6c0] sm:$0xff]
  %v280 = vld [vmem:[%s1 + $0x6c8] sm:$0xff]
  %v281 = vld [vmem:[%s1 + $0x6d0] sm:$0xff]
  %v282 = vld [vmem:[%s1 + $0x6d8] sm:$0xff]
  %v283 = vld [vmem:[%s1 + $0x6e0] sm:$0xff]
  %v284 = vld [vmem:[%s1 + $0x6e8] sm:$0xff]
  %v285 = vld [vmem:[%s1 + $0x6f0] sm:$0xff]
  %v286 = vld [vmem:[%s1 + $0x6f8] sm:$0xff]
  %v287 = vld [vmem:[%s1 + $0x700] sm:$0xff]
  %v288 = vld [vmem:[%s1 + $0x708] sm:$0xff]
  %v289 = vld [vmem:[%s1 + $0x710] sm:$0xff]
  %v290 = vld [vmem:[%s1 + $0x718] sm:$0xff]
  %v291 = vld [vmem:[%s1 + $0x720] sm:$0xff]
  %v292 = vld [vmem:[%s1 + $0x728] sm:$0xff]
  %v293 = vld [vmem:[%s1 + $0x730] sm:$0xff]
  %v294 = vld [vmem:[%s1 + $0x738] sm:$0xff]
  %v295 = vld [vmem:[%s1 + $0x740] sm:$0xff]
  %v296 = vld [vmem:[%s1 + $0x748] sm:$0xff]
  %v297 = vld [vmem:[%s1 + $0x750] sm:$0xff]
  %v298 = vld [vmem:[%s1 + $0x758] sm:$0xff]
  %v299 = vld [vmem:[%s1 + $0x760] sm:$0xff]
  %v300 = vld [vmem:[%s1 + $0x768] sm:$0xff]
  %v301 = vld [vmem:[%s1 + $0x770] sm:$0xff]
  %v302 = vld [vmem:[%s1 + $0x778] sm:$0xff]
  %v303 = vld [vmem:[%s1 + $0x780] sm:$0xff]
  %v304 = vld [vmem:[%s1 + $0x788] sm:$0xff]
  %v305 = vld [vmem:[%s1 + $0x790] sm:$0xff]
  %v306 = vld [vmem:[%s1 + $0x798] sm:$0xff]
  %v307 = vld [vmem:[%s1 + $0x7a0] sm:$0xff]
  %v308 = vld [vmem:[%s1 + $0x7a8] sm:$0xff]
  %v309 = vld [vmem:[%s1 + $0x7b0] sm:$0xff]
  %v310 = vld [vmem:[%s1 + $0x7b8] sm:$0xff]
  %v311 = vld [vmem:[%s1 + $0x7c0] sm:$0xff]
  %v312 = vld [vmem:[%s1 + $0x7c8] sm:$0xff]
  %v313 = vld [vmem:[%s1 + $0x7d0] sm:$0xff]
  %v314 = vld [vmem:[%s1 + $0x7d8] sm:$0xff]
  %v315 = vld [vmem:[%s1 + $0x7e0] sm:$0xff]
  %v316 = vld [vmem:[%s1 + $0x7e8] sm:$0xff]
  %v317 = vld [vmem:[%s1 + $0x7f0] sm:$0xff]
  %v318 = vld [vmem:[%s1 + $0x7f8] sm:$0xff]
  %v319 = vld [vmem:[%s2] sm:$0xf]
  %v321 = vlaneseq
  %v322 = vshrl.u32 %v321, 7
  %v323 = vsub.s32 0, %v322
  %v324 = vrot.slane %v319, %v323
  %v325 = vlaneseq
  %v326 = vshrl.u32 %v325, 7
  %v327 = vsub.s32 1, %v326
  %v328 = vrot.slane %v319, %v327
  %v329 = vlaneseq
  %v330 = vshrl.u32 %v329, 7
  %v331 = vsub.s32 2, %v330
  %v332 = vrot.slane %v319, %v331
  %v333 = vlaneseq
  %v334 = vshrl.u32 %v333, 7
  %v335 = vsub.s32 3, %v334
  %v336 = vrot.slane %v319, %v335
  %v597 = vunpack.c.l.b16 %v63
  %v598 = vunpack.c.h.b16 %v63
  %v599 = vunpack.c.l.b16 %v64
  %v600 = vunpack.c.h.b16 %v64
  %v601 = vunpack.c.l.b16 %v65
  %v602 = vunpack.c.h.b16 %v65
  %v603 = vunpack.c.l.b16 %v66
  %v604 = vunpack.c.h.b16 %v66
  %v605 = vunpack.c.l.b16 %v67
  %v606 = vunpack.c.h.b16 %v67
  %v607 = vunpack.c.l.b16 %v68
  %v608 = vunpack.c.h.b16 %v68
  %v609 = vunpack.c.l.b16 %v69
  %v610 = vunpack.c.h.b16 %v69
  %v611 = vunpack.c.l.b16 %v70
  %v612 = vunpack.c.h.b16 %v70
  %v613 = vunpack.c.l.b16 %v71
  %v614 = vunpack.c.h.b16 %v71
  %v615 = vunpack.c.l.b16 %v72
  %v616 = vunpack.c.h.b16 %v72
  %v617 = vunpack.c.l.b16 %v73
  %v618 = vunpack.c.h.b16 %v73
  %v619 = vunpack.c.l.b16 %v74
  %v620 = vunpack.c.h.b16 %v74
  %v621 = vunpack.c.l.b16 %v75
  %v622 = vunpack.c.h.b16 %v75
  %v623 = vunpack.c.l.b16 %v76
  %v624 = vunpack.c.h.b16 %v76
  %v625 = vunpack.c.l.b16 %v77
  %v626 = vunpack.c.h.b16 %v77
  %v627 = vunpack.c.l.b16 %v78
  %v628 = vunpack.c.h.b16 %v78
  %v629 = vunpack.c.l.b16 %v79
  %v630 = vunpack.c.h.b16 %v79
  %v631 = vunpack.c.l.b16 %v80
  %v632 = vunpack.c.h.b16 %v80
  %v633 = vunpack.c.l.b16 %v81
  %v634 = vunpack.c.h.b16 %v81
  %v635 = vunpack.c.l.b16 %v82
  %v636 = vunpack.c.h.b16 %v82
  %v637 = vunpack.c.l.b16 %v83
  %v638 = vunpack.c.h.b16 %v83
  %v639 = vunpack.c.l.b16 %v84
  %v640 = vunpack.c.h.b16 %v84
  %v641 = vunpack.c.l.b16 %v85
  %v642 = vunpack.c.h.b16 %v85
  %v643 = vunpack.c.l.b16 %v86
  %v644 = vunpack.c.h.b16 %v86
  %v645 = vunpack.c.l.b16 %v87
  %v646 = vunpack.c.h.b16 %v87
  %v647 = vunpack.c.l.b16 %v88
  %v648 = vunpack.c.h.b16 %v88
  %v649 = vunpack.c.l.b16 %v89
  %v650 = vunpack.c.h.b16 %v89
  %v651 = vunpack.c.l.b16 %v90
  %v652 = vunpack.c.h.b16 %v90
  %v653 = vunpack.c.l.b16 %v91
  %v654 = vunpack.c.h.b16 %v91
  %v655 = vunpack.c.l.b16 %v92
  %v656 = vunpack.c.h.b16 %v92
  %v657 = vunpack.c.l.b16 %v93
  %v658 = vunpack.c.h.b16 %v93
  %v659 = vunpack.c.l.b16 %v94
  %v660 = vunpack.c.h.b16 %v94
  %v661 = vunpack.c.l.b16 %v95
  %v662 = vunpack.c.h.b16 %v95
  %v663 = vunpack.c.l.b16 %v96
  %v664 = vunpack.c.h.b16 %v96
  %v665 = vunpack.c.l.b16 %v97
  %v666 = vunpack.c.h.b16 %v97
  %v667 = vunpack.c.l.b16 %v98
  %v668 = vunpack.c.h.b16 %v98
  %v669 = vunpack.c.l.b16 %v99
  %v670 = vunpack.c.h.b16 %v99
  %v671 = vunpack.c.l.b16 %v100
  %v672 = vunpack.c.h.b16 %v100
  %v673 = vunpack.c.l.b16 %v101
  %v674 = vunpack.c.h.b16 %v101
  %v675 = vunpack.c.l.b16 %v102
  %v676 = vunpack.c.h.b16 %v102
  %v677 = vunpack.c.l.b16 %v103
  %v678 = vunpack.c.h.b16 %v103
  %v679 = vunpack.c.l.b16 %v104
  %v680 = vunpack.c.h.b16 %v104
  %v681 = vunpack.c.l.b16 %v105
  %v682 = vunpack.c.h.b16 %v105
  %v683 = vunpack.c.l.b16 %v106
  %v684 = vunpack.c.h.b16 %v106
  %v685 = vunpack.c.l.b16 %v107
  %v686 = vunpack.c.h.b16 %v107
  %v687 = vunpack.c.l.b16 %v108
  %v688 = vunpack.c.h.b16 %v108
  %v689 = vunpack.c.l.b16 %v109
  %v690 = vunpack.c.h.b16 %v109
  %v691 = vunpack.c.l.b16 %v110
  %v692 = vunpack.c.h.b16 %v110
  %v693 = vunpack.c.l.b16 %v111
  %v694 = vunpack.c.h.b16 %v111
  %v695 = vunpack.c.l.b16 %v112
  %v696 = vunpack.c.h.b16 %v112
  %v697 = vunpack.c.l.b16 %v113
  %v698 = vunpack.c.h.b16 %v113
  %v699 = vunpack.c.l.b16 %v114
  %v700 = vunpack.c.h.b16 %v114
  %v701 = vunpack.c.l.b16 %v115
  %v702 = vunpack.c.h.b16 %v115
  %v703 = vunpack.c.l.b16 %v116
  %v704 = vunpack.c.h.b16 %v116
  %v705 = vunpack.c.l.b16 %v117
  %v706 = vunpack.c.h.b16 %v117
  %v707 = vunpack.c.l.b16 %v118
  %v708 = vunpack.c.h.b16 %v118
  %v709 = vunpack.c.l.b16 %v119
  %v710 = vunpack.c.h.b16 %v119
  %v711 = vunpack.c.l.b16 %v120
  %v712 = vunpack.c.h.b16 %v120
  %v713 = vunpack.c.l.b16 %v121
  %v714 = vunpack.c.h.b16 %v121
  %v715 = vunpack.c.l.b16 %v122
  %v716 = vunpack.c.h.b16 %v122
  %v717 = vunpack.c.l.b16 %v123
  %v718 = vunpack.c.h.b16 %v123
  %v719 = vunpack.c.l.b16 %v124
  %v720 = vunpack.c.h.b16 %v124
  %v721 = vunpack.c.l.b16 %v125
  %v722 = vunpack.c.h.b16 %v125
  %v723 = vunpack.c.l.b16 %v126
  %v724 = vunpack.c.h.b16 %v126
  %v725 = vunpack.c.l.b16 %v127
  %v726 = vunpack.c.h.b16 %v127
  %v727 = vunpack.c.l.b16 %v128
  %v728 = vunpack.c.h.b16 %v128
  %v729 = vunpack.c.l.b16 %v129
  %v730 = vunpack.c.h.b16 %v129
  %v731 = vunpack.c.l.b16 %v130
  %v732 = vunpack.c.h.b16 %v130
  %v733 = vunpack.c.l.b16 %v131
  %v734 = vunpack.c.h.b16 %v131
  %v735 = vunpack.c.l.b16 %v132
  %v736 = vunpack.c.h.b16 %v132
  %v737 = vunpack.c.l.b16 %v133
  %v738 = vunpack.c.h.b16 %v133
  %v739 = vunpack.c.l.b16 %v134
  %v740 = vunpack.c.h.b16 %v134
  %v741 = vunpack.c.l.b16 %v135
  %v742 = vunpack.c.h.b16 %v135
  %v743 = vunpack.c.l.b16 %v136
  %v744 = vunpack.c.h.b16 %v136
  %v745 = vunpack.c.l.b16 %v137
  %v746 = vunpack.c.h.b16 %v137
  %v747 = vunpack.c.l.b16 %v138
  %v748 = vunpack.c.h.b16 %v138
  %v749 = vunpack.c.l.b16 %v139
  %v750 = vunpack.c.h.b16 %v139
  %v751 = vunpack.c.l.b16 %v140
  %v752 = vunpack.c.h.b16 %v140
  %v753 = vunpack.c.l.b16 %v141
  %v754 = vunpack.c.h.b16 %v141
  %v755 = vunpack.c.l.b16 %v142
  %v756 = vunpack.c.h.b16 %v142
  %v757 = vunpack.c.l.b16 %v143
  %v758 = vunpack.c.h.b16 %v143
  %v759 = vunpack.c.l.b16 %v144
  %v760 = vunpack.c.h.b16 %v144
  %v761 = vunpack.c.l.b16 %v145
  %v762 = vunpack.c.h.b16 %v145
  %v763 = vunpack.c.l.b16 %v146
  %v764 = vunpack.c.h.b16 %v146
  %v765 = vunpack.c.l.b16 %v147
  %v766 = vunpack.c.h.b16 %v147
  %v767 = vunpack.c.l.b16 %v148
  %v768 = vunpack.c.h.b16 %v148
  %v769 = vunpack.c.l.b16 %v149
  %v770 = vunpack.c.h.b16 %v149
  %v771 = vunpack.c.l.b16 %v150
  %v772 = vunpack.c.h.b16 %v150
  %v773 = vunpack.c.l.b16 %v151
  %v774 = vunpack.c.h.b16 %v151
  %v775 = vunpack.c.l.b16 %v152
  %v776 = vunpack.c.h.b16 %v152
  %v777 = vunpack.c.l.b16 %v153
  %v778 = vunpack.c.h.b16 %v153
  %v779 = vunpack.c.l.b16 %v154
  %v780 = vunpack.c.h.b16 %v154
  %v781 = vunpack.c.l.b16 %v155
  %v782 = vunpack.c.h.b16 %v155
  %v783 = vunpack.c.l.b16 %v156
  %v784 = vunpack.c.h.b16 %v156
  %v785 = vunpack.c.l.b16 %v157
  %v786 = vunpack.c.h.b16 %v157
  %v787 = vunpack.c.l.b16 %v158
  %v788 = vunpack.c.h.b16 %v158
  %v789 = vunpack.c.l.b16 %v159
  %v790 = vunpack.c.h.b16 %v159
  %v791 = vunpack.c.l.b16 %v160
  %v792 = vunpack.c.h.b16 %v160
  %v793 = vunpack.c.l.b16 %v161
  %v794 = vunpack.c.h.b16 %v161
  %v795 = vunpack.c.l.b16 %v162
  %v796 = vunpack.c.h.b16 %v162
  %v797 = vunpack.c.l.b16 %v163
  %v798 = vunpack.c.h.b16 %v163
  %v799 = vunpack.c.l.b16 %v164
  %v800 = vunpack.c.h.b16 %v164
  %v801 = vunpack.c.l.b16 %v165
  %v802 = vunpack.c.h.b16 %v165
  %v803 = vunpack.c.l.b16 %v166
  %v804 = vunpack.c.h.b16 %v166
  %v805 = vunpack.c.l.b16 %v167
  %v806 = vunpack.c.h.b16 %v167
  %v807 = vunpack.c.l.b16 %v168
  %v808 = vunpack.c.h.b16 %v168
  %v809 = vunpack.c.l.b16 %v169
  %v810 = vunpack.c.h.b16 %v169
  %v811 = vunpack.c.l.b16 %v170
  %v812 = vunpack.c.h.b16 %v170
  %v813 = vunpack.c.l.b16 %v171
  %v814 = vunpack.c.h.b16 %v171
  %v815 = vunpack.c.l.b16 %v172
  %v816 = vunpack.c.h.b16 %v172
  %v817 = vunpack.c.l.b16 %v173
  %v818 = vunpack.c.h.b16 %v173
  %v819 = vunpack.c.l.b16 %v174
  %v820 = vunpack.c.h.b16 %v174
  %v821 = vunpack.c.l.b16 %v175
  %v822 = vunpack.c.h.b16 %v175
  %v823 = vunpack.c.l.b16 %v176
  %v824 = vunpack.c.h.b16 %v176
  %v825 = vunpack.c.l.b16 %v177
  %v826 = vunpack.c.h.b16 %v177
  %v827 = vunpack.c.l.b16 %v178
  %v828 = vunpack.c.h.b16 %v178
  %v829 = vunpack.c.l.b16 %v179
  %v830 = vunpack.c.h.b16 %v179
  %v831 = vunpack.c.l.b16 %v180
  %v832 = vunpack.c.h.b16 %v180
  %v833 = vunpack.c.l.b16 %v181
  %v834 = vunpack.c.h.b16 %v181
  %v835 = vunpack.c.l.b16 %v182
  %v836 = vunpack.c.h.b16 %v182
  %v837 = vunpack.c.l.b16 %v183
  %v838 = vunpack.c.h.b16 %v183
  %v839 = vunpack.c.l.b16 %v184
  %v840 = vunpack.c.h.b16 %v184
  %v841 = vunpack.c.l.b16 %v185
  %v842 = vunpack.c.h.b16 %v185
  %v843 = vunpack.c.l.b16 %v186
  %v844 = vunpack.c.h.b16 %v186
  %v845 = vunpack.c.l.b16 %v187
  %v846 = vunpack.c.h.b16 %v187
  %v847 = vunpack.c.l.b16 %v188
  %v848 = vunpack.c.h.b16 %v188
  %v849 = vunpack.c.l.b16 %v189
  %v850 = vunpack.c.h.b16 %v189
  %v851 = vunpack.c.l.b16 %v190
  %v852 = vunpack.c.h.b16 %v190
  %v853 = vunpack.c.l.b16 %v191
  %v854 = vunpack.c.h.b16 %v191
  %v855 = vunpack.c.l.b16 %v192
  %v856 = vunpack.c.h.b16 %v192
  %v857 = vunpack.c.l.b16 %v193
  %v858 = vunpack.c.h.b16 %v193
  %v859 = vunpack.c.l.b16 %v194
  %v860 = vunpack.c.h.b16 %v194
  %v861 = vunpack.c.l.b16 %v195
  %v862 = vunpack.c.h.b16 %v195
  %v863 = vunpack.c.l.b16 %v196
  %v864 = vunpack.c.h.b16 %v196
  %v865 = vunpack.c.l.b16 %v197
  %v866 = vunpack.c.h.b16 %v197
  %v867 = vunpack.c.l.b16 %v198
  %v868 = vunpack.c.h.b16 %v198
  %v869 = vunpack.c.l.b16 %v199
  %v870 = vunpack.c.h.b16 %v199
  %v871 = vunpack.c.l.b16 %v200
  %v872 = vunpack.c.h.b16 %v200
  %v873 = vunpack.c.l.b16 %v201
  %v874 = vunpack.c.h.b16 %v201
  %v875 = vunpack.c.l.b16 %v202
  %v876 = vunpack.c.h.b16 %v202
  %v877 = vunpack.c.l.b16 %v203
  %v878 = vunpack.c.h.b16 %v203
  %v879 = vunpack.c.l.b16 %v204
  %v880 = vunpack.c.h.b16 %v204
  %v881 = vunpack.c.l.b16 %v205
  %v882 = vunpack.c.h.b16 %v205
  %v883 = vunpack.c.l.b16 %v206
  %v884 = vunpack.c.h.b16 %v206
  %v885 = vunpack.c.l.b16 %v207
  %v886 = vunpack.c.h.b16 %v207
  %v887 = vunpack.c.l.b16 %v208
  %v888 = vunpack.c.h.b16 %v208
  %v889 = vunpack.c.l.b16 %v209
  %v890 = vunpack.c.h.b16 %v209
  %v891 = vunpack.c.l.b16 %v210
  %v892 = vunpack.c.h.b16 %v210
  %v893 = vunpack.c.l.b16 %v211
  %v894 = vunpack.c.h.b16 %v211
  %v895 = vunpack.c.l.b16 %v212
  %v896 = vunpack.c.h.b16 %v212
  %v897 = vunpack.c.l.b16 %v213
  %v898 = vunpack.c.h.b16 %v213
  %v899 = vunpack.c.l.b16 %v214
  %v900 = vunpack.c.h.b16 %v214
  %v901 = vunpack.c.l.b16 %v215
  %v902 = vunpack.c.h.b16 %v215
  %v903 = vunpack.c.l.b16 %v216
  %v904 = vunpack.c.h.b16 %v216
  %v905 = vunpack.c.l.b16 %v217
  %v906 = vunpack.c.h.b16 %v217
  %v907 = vunpack.c.l.b16 %v218
  %v908 = vunpack.c.h.b16 %v218
  %v909 = vunpack.c.l.b16 %v219
  %v910 = vunpack.c.h.b16 %v219
  %v911 = vunpack.c.l.b16 %v220
  %v912 = vunpack.c.h.b16 %v220
  %v913 = vunpack.c.l.b16 %v221
  %v914 = vunpack.c.h.b16 %v221
  %v915 = vunpack.c.l.b16 %v222
  %v916 = vunpack.c.h.b16 %v222
  %v917 = vunpack.c.l.b16 %v223
  %v918 = vunpack.c.h.b16 %v223
  %v919 = vunpack.c.l.b16 %v224
  %v920 = vunpack.c.h.b16 %v224
  %v921 = vunpack.c.l.b16 %v225
  %v922 = vunpack.c.h.b16 %v225
  %v923 = vunpack.c.l.b16 %v226
  %v924 = vunpack.c.h.b16 %v226
  %v925 = vunpack.c.l.b16 %v227
  %v926 = vunpack.c.h.b16 %v227
  %v927 = vunpack.c.l.b16 %v228
  %v928 = vunpack.c.h.b16 %v228
  %v929 = vunpack.c.l.b16 %v229
  %v930 = vunpack.c.h.b16 %v229
  %v931 = vunpack.c.l.b16 %v230
  %v932 = vunpack.c.h.b16 %v230
  %v933 = vunpack.c.l.b16 %v231
  %v934 = vunpack.c.h.b16 %v231
  %v935 = vunpack.c.l.b16 %v232
  %v936 = vunpack.c.h.b16 %v232
  %v937 = vunpack.c.l.b16 %v233
  %v938 = vunpack.c.h.b16 %v233
  %v939 = vunpack.c.l.b16 %v234
  %v940 = vunpack.c.h.b16 %v234
  %v941 = vunpack.c.l.b16 %v235
  %v942 = vunpack.c.h.b16 %v235
  %v943 = vunpack.c.l.b16 %v236
  %v944 = vunpack.c.h.b16 %v236
  %v945 = vunpack.c.l.b16 %v237
  %v946 = vunpack.c.h.b16 %v237
  %v947 = vunpack.c.l.b16 %v238
  %v948 = vunpack.c.h.b16 %v238
  %v949 = vunpack.c.l.b16 %v239
  %v950 = vunpack.c.h.b16 %v239
  %v951 = vunpack.c.l.b16 %v240
  %v952 = vunpack.c.h.b16 %v240
  %v953 = vunpack.c.l.b16 %v241
  %v954 = vunpack.c.h.b16 %v241
  %v955 = vunpack.c.l.b16 %v242
  %v956 = vunpack.c.h.b16 %v242
  %v957 = vunpack.c.l.b16 %v243
  %v958 = vunpack.c.h.b16 %v243
  %v959 = vunpack.c.l.b16 %v244
  %v960 = vunpack.c.h.b16 %v244
  %v961 = vunpack.c.l.b16 %v245
  %v962 = vunpack.c.h.b16 %v245
  %v963 = vunpack.c.l.b16 %v246
  %v964 = vunpack.c.h.b16 %v246
  %v965 = vunpack.c.l.b16 %v247
  %v966 = vunpack.c.h.b16 %v247
  %v967 = vunpack.c.l.b16 %v248
  %v968 = vunpack.c.h.b16 %v248
  %v969 = vunpack.c.l.b16 %v249
  %v970 = vunpack.c.h.b16 %v249
  %v971 = vunpack.c.l.b16 %v250
  %v972 = vunpack.c.h.b16 %v250
  %v973 = vunpack.c.l.b16 %v251
  %v974 = vunpack.c.h.b16 %v251
  %v975 = vunpack.c.l.b16 %v252
  %v976 = vunpack.c.h.b16 %v252
  %v977 = vunpack.c.l.b16 %v253
  %v978 = vunpack.c.h.b16 %v253
  %v979 = vunpack.c.l.b16 %v254
  %v980 = vunpack.c.h.b16 %v254
  %v981 = vunpack.c.l.b16 %v255
  %v982 = vunpack.c.h.b16 %v255
  %v983 = vunpack.c.l.b16 %v256
  %v984 = vunpack.c.h.b16 %v256
  %v985 = vunpack.c.l.b16 %v257
  %v986 = vunpack.c.h.b16 %v257
  %v987 = vunpack.c.l.b16 %v258
  %v988 = vunpack.c.h.b16 %v258
  %v989 = vunpack.c.l.b16 %v259
  %v990 = vunpack.c.h.b16 %v259
  %v991 = vunpack.c.l.b16 %v260
  %v992 = vunpack.c.h.b16 %v260
  %v993 = vunpack.c.l.b16 %v261
  %v994 = vunpack.c.h.b16 %v261
  %v995 = vunpack.c.l.b16 %v262
  %v996 = vunpack.c.h.b16 %v262
  %v997 = vunpack.c.l.b16 %v263
  %v998 = vunpack.c.h.b16 %v263
  %v999 = vunpack.c.l.b16 %v264
  %v1000 = vunpack.c.h.b16 %v264
  %v1001 = vunpack.c.l.b16 %v265
  %v1002 = vunpack.c.h.b16 %v265
  %v1003 = vunpack.c.l.b16 %v266
  %v1004 = vunpack.c.h.b16 %v266
  %v1005 = vunpack.c.l.b16 %v267
  %v1006 = vunpack.c.h.b16 %v267
  %v1007 = vunpack.c.l.b16 %v268
  %v1008 = vunpack.c.h.b16 %v268
  %v1009 = vunpack.c.l.b16 %v269
  %v1010 = vunpack.c.h.b16 %v269
  %v1011 = vunpack.c.l.b16 %v270
  %v1012 = vunpack.c.h.b16 %v270
  %v1013 = vunpack.c.l.b16 %v271
  %v1014 = vunpack.c.h.b16 %v271
  %v1015 = vunpack.c.l.b16 %v272
  %v1016 = vunpack.c.h.b16 %v272
  %v1017 = vunpack.c.l.b16 %v273
  %v1018 = vunpack.c.h.b16 %v273
  %v1019 = vunpack.c.l.b16 %v274
  %v1020 = vunpack.c.h.b16 %v274
  %v1021 = vunpack.c.l.b16 %v275
  %v1022 = vunpack.c.h.b16 %v275
  %v1023 = vunpack.c.l.b16 %v276
  %v1024 = vunpack.c.h.b16 %v276
  %v1025 = vunpack.c.l.b16 %v277
  %v1026 = vunpack.c.h.b16 %v277
  %v1027 = vunpack.c.l.b16 %v278
  %v1028 = vunpack.c.h.b16 %v278
  %v1029 = vunpack.c.l.b16 %v279
  %v1030 = vunpack.c.h.b16 %v279
  %v1031 = vunpack.c.l.b16 %v280
  %v1032 = vunpack.c.h.b16 %v280
  %v1033 = vunpack.c.l.b16 %v281
  %v1034 = vunpack.c.h.b16 %v281
  %v1035 = vunpack.c.l.b16 %v282
  %v1036 = vunpack.c.h.b16 %v282
  %v1037 = vunpack.c.l.b16 %v283
  %v1038 = vunpack.c.h.b16 %v283
  %v1039 = vunpack.c.l.b16 %v284
  %v1040 = vunpack.c.h.b16 %v284
  %v1041 = vunpack.c.l.b16 %v285
  %v1042 = vunpack.c.h.b16 %v285
  %v1043 = vunpack.c.l.b16 %v286
  %v1044 = vunpack.c.h.b16 %v286
  %v1045 = vunpack.c.l.b16 %v287
  %v1046 = vunpack.c.h.b16 %v287
  %v1047 = vunpack.c.l.b16 %v288
  %v1048 = vunpack.c.h.b16 %v288
  %v1049 = vunpack.c.l.b16 %v289
  %v1050 = vunpack.c.h.b16 %v289
  %v1051 = vunpack.c.l.b16 %v290
  %v1052 = vunpack.c.h.b16 %v290
  %v1053 = vunpack.c.l.b16 %v291
  %v1054 = vunpack.c.h.b16 %v291
  %v1055 = vunpack.c.l.b16 %v292
  %v1056 = vunpack.c.h.b16 %v292
  %v1057 = vunpack.c.l.b16 %v293
  %v1058 = vunpack.c.h.b16 %v293
  %v1059 = vunpack.c.l.b16 %v294
  %v1060 = vunpack.c.h.b16 %v294
  %v1061 = vunpack.c.l.b16 %v295
  %v1062 = vunpack.c.h.b16 %v295
  %v1063 = vunpack.c.l.b16 %v296
  %v1064 = vunpack.c.h.b16 %v296
  %v1065 = vunpack.c.l.b16 %v297
  %v1066 = vunpack.c.h.b16 %v297
  %v1067 = vunpack.c.l.b16 %v298
  %v1068 = vunpack.c.h.b16 %v298
  %v1069 = vunpack.c.l.b16 %v299
  %v1070 = vunpack.c.h.b16 %v299
  %v1071 = vunpack.c.l.b16 %v300
  %v1072 = vunpack.c.h.b16 %v300
  %v1073 = vunpack.c.l.b16 %v301
  %v1074 = vunpack.c.h.b16 %v301
  %v1075 = vunpack.c.l.b16 %v302
  %v1076 = vunpack.c.h.b16 %v302
  %v1077 = vunpack.c.l.b16 %v303
  %v1078 = vunpack.c.h.b16 %v303
  %v1079 = vunpack.c.l.b16 %v304
  %v1080 = vunpack.c.h.b16 %v304
  %v1081 = vunpack.c.l.b16 %v305
  %v1082 = vunpack.c.h.b16 %v305
  %v1083 = vunpack.c.l.b16 %v306
  %v1084 = vunpack.c.h.b16 %v306
  %v1085 = vunpack.c.l.b16 %v307
  %v1086 = vunpack.c.h.b16 %v307
  %v1087 = vunpack.c.l.b16 %v308
  %v1088 = vunpack.c.h.b16 %v308
  %v1089 = vunpack.c.l.b16 %v309
  %v1090 = vunpack.c.h.b16 %v309
  %v1091 = vunpack.c.l.b16 %v310
  %v1092 = vunpack.c.h.b16 %v310
  %v1093 = vunpack.c.l.b16 %v311
  %v1094 = vunpack.c.h.b16 %v311
  %v1095 = vunpack.c.l.b16 %v312
  %v1096 = vunpack.c.h.b16 %v312
  %v1097 = vunpack.c.l.b16 %v313
  %v1098 = vunpack.c.h.b16 %v313
  %v1099 = vunpack.c.l.b16 %v314
  %v1100 = vunpack.c.h.b16 %v314
  %v1101 = vunpack.c.l.b16 %v315
  %v1102 = vunpack.c.h.b16 %v315
  %v1103 = vunpack.c.l.b16 %v316
  %v1104 = vunpack.c.h.b16 %v316
  %v1105 = vunpack.c.l.b16 %v317
  %v1106 = vunpack.c.h.b16 %v317
  %v1107 = vunpack.c.l.b16 %v318
  %v1108 = vunpack.c.h.b16 %v318
  %v1109 = vpack.c.b16 %v601, %v597
  %v1110 = vpack.c.b16 %v602, %v598
  %v1111 = vpack.c.b16 %v603, %v599
  %v1112 = vpack.c.b16 %v604, %v600
  %v1113 = vpack.c.b16 %v609, %v605
  %v1114 = vpack.c.b16 %v610, %v606
  %v1115 = vpack.c.b16 %v611, %v607
  %v1116 = vpack.c.b16 %v612, %v608
  %v1117 = vpack.c.b16 %v617, %v613
  %v1118 = vpack.c.b16 %v618, %v614
  %v1119 = vpack.c.b16 %v619, %v615
  %v1120 = vpack.c.b16 %v620, %v616
  %v1121 = vpack.c.b16 %v625, %v621
  %v1122 = vpack.c.b16 %v626, %v622
  %v1123 = vpack.c.b16 %v627, %v623
  %v1124 = vpack.c.b16 %v628, %v624
  %v1125 = vpack.c.b16 %v633, %v629
  %v1126 = vpack.c.b16 %v634, %v630
  %v1127 = vpack.c.b16 %v635, %v631
  %v1128 = vpack.c.b16 %v636, %v632
  %v1129 = vpack.c.b16 %v641, %v637
  %v1130 = vpack.c.b16 %v642, %v638
  %v1131 = vpack.c.b16 %v643, %v639
  %v1132 = vpack.c.b16 %v644, %v640
  %v1133 = vpack.c.b16 %v649, %v645
  %v1134 = vpack.c.b16 %v650, %v646
  %v1135 = vpack.c.b16 %v651, %v647
  %v1136 = vpack.c.b16 %v652, %v648
  %v1137 = vpack.c.b16 %v657, %v653
  %v1138 = vpack.c.b16 %v658, %v654
  %v1139 = vpack.c.b16 %v659, %v655
  %v1140 = vpack.c.b16 %v660, %v656
  %v1141 = vpack.c.b16 %v665, %v661
  %v1142 = vpack.c.b16 %v666, %v662
  %v1143 = vpack.c.b16 %v667, %v663
  %v1144 = vpack.c.b16 %v668, %v664
  %v1145 = vpack.c.b16 %v673, %v669
  %v1146 = vpack.c.b16 %v674, %v670
  %v1147 = vpack.c.b16 %v675, %v671
  %v1148 = vpack.c.b16 %v676, %v672
  %v1149 = vpack.c.b16 %v681, %v677
  %v1150 = vpack.c.b16 %v682, %v678
  %v1151 = vpack.c.b16 %v683, %v679
  %v1152 = vpack.c.b16 %v684, %v680
  %v1153 = vpack.c.b16 %v689, %v685
  %v1154 = vpack.c.b16 %v690, %v686
  %v1155 = vpack.c.b16 %v691, %v687
  %v1156 = vpack.c.b16 %v692, %v688
  %v1157 = vpack.c.b16 %v697, %v693
  %v1158 = vpack.c.b16 %v698, %v694
  %v1159 = vpack.c.b16 %v699, %v695
  %v1160 = vpack.c.b16 %v700, %v696
  %v1161 = vpack.c.b16 %v705, %v701
  %v1162 = vpack.c.b16 %v706, %v702
  %v1163 = vpack.c.b16 %v707, %v703
  %v1164 = vpack.c.b16 %v708, %v704
  %v1165 = vpack.c.b16 %v713, %v709
  %v1166 = vpack.c.b16 %v714, %v710
  %v1167 = vpack.c.b16 %v715, %v711
  %v1168 = vpack.c.b16 %v716, %v712
  %v1169 = vpack.c.b16 %v721, %v717
  %v1170 = vpack.c.b16 %v722, %v718
  %v1171 = vpack.c.b16 %v723, %v719
  %v1172 = vpack.c.b16 %v724, %v720
  %v1173 = vpack.c.b16 %v729, %v725
  %v1174 = vpack.c.b16 %v730, %v726
  %v1175 = vpack.c.b16 %v731, %v727
  %v1176 = vpack.c.b16 %v732, %v728
  %v1177 = vpack.c.b16 %v737, %v733
  %v1178 = vpack.c.b16 %v738, %v734
  %v1179 = vpack.c.b16 %v739, %v735
  %v1180 = vpack.c.b16 %v740, %v736
  %v1181 = vpack.c.b16 %v745, %v741
  %v1182 = vpack.c.b16 %v746, %v742
  %v1183 = vpack.c.b16 %v747, %v743
  %v1184 = vpack.c.b16 %v748, %v744
  %v1185 = vpack.c.b16 %v753, %v749
  %v1186 = vpack.c.b16 %v754, %v750
  %v1187 = vpack.c.b16 %v755, %v751
  %v1188 = vpack.c.b16 %v756, %v752
  %v1189 = vpack.c.b16 %v761, %v757
  %v1190 = vpack.c.b16 %v762, %v758
  %v1191 = vpack.c.b16 %v763, %v759
  %v1192 = vpack.c.b16 %v764, %v760
  %v1193 = vpack.c.b16 %v769, %v765
  %v1194 = vpack.c.b16 %v770, %v766
  %v1195 = vpack.c.b16 %v771, %v767
  %v1196 = vpack.c.b16 %v772, %v768
  %v1197 = vpack.c.b16 %v777, %v773
  %v1198 = vpack.c.b16 %v778, %v774
  %v1199 = vpack.c.b16 %v779, %v775
  %v1200 = vpack.c.b16 %v780, %v776
  %v1201 = vpack.c.b16 %v785, %v781
  %v1202 = vpack.c.b16 %v786, %v782
  %v1203 = vpack.c.b16 %v787, %v783
  %v1204 = vpack.c.b16 %v788, %v784
  %v1205 = vpack.c.b16 %v793, %v789
  %v1206 = vpack.c.b16 %v794, %v790
  %v1207 = vpack.c.b16 %v795, %v791
  %v1208 = vpack.c.b16 %v796, %v792
  %v1209 = vpack.c.b16 %v801, %v797
  %v1210 = vpack.c.b16 %v802, %v798
  %v1211 = vpack.c.b16 %v803, %v799
  %v1212 = vpack.c.b16 %v804, %v800
  %v1213 = vpack.c.b16 %v809, %v805
  %v1214 = vpack.c.b16 %v810, %v806
  %v1215 = vpack.c.b16 %v811, %v807
  %v1216 = vpack.c.b16 %v812, %v808
  %v1217 = vpack.c.b16 %v817, %v813
  %v1218 = vpack.c.b16 %v818, %v814
  %v1219 = vpack.c.b16 %v819, %v815
  %v1220 = vpack.c.b16 %v820, %v816
  %v1221 = vpack.c.b16 %v825, %v821
  %v1222 = vpack.c.b16 %v826, %v822
  %v1223 = vpack.c.b16 %v827, %v823
  %v1224 = vpack.c.b16 %v828, %v824
  %v1225 = vpack.c.b16 %v833, %v829
  %v1226 = vpack.c.b16 %v834, %v830
  %v1227 = vpack.c.b16 %v835, %v831
  %v1228 = vpack.c.b16 %v836, %v832
  %v1229 = vpack.c.b16 %v841, %v837
  %v1230 = vpack.c.b16 %v842, %v838
  %v1231 = vpack.c.b16 %v843, %v839
  %v1232 = vpack.c.b16 %v844, %v840
  %v1233 = vpack.c.b16 %v849, %v845
  %v1234 = vpack.c.b16 %v850, %v846
  %v1235 = vpack.c.b16 %v851, %v847
  %v1236 = vpack.c.b16 %v852, %v848
  %v1237 = vpack.c.b16 %v857, %v853
  %v1238 = vpack.c.b16 %v858, %v854
  %v1239 = vpack.c.b16 %v859, %v855
  %v1240 = vpack.c.b16 %v860, %v856
  %v1241 = vpack.c.b16 %v865, %v861
  %v1242 = vpack.c.b16 %v866, %v862
  %v1243 = vpack.c.b16 %v867, %v863
  %v1244 = vpack.c.b16 %v868, %v864
  %v1245 = vpack.c.b16 %v873, %v869
  %v1246 = vpack.c.b16 %v874, %v870
  %v1247 = vpack.c.b16 %v875, %v871
  %v1248 = vpack.c.b16 %v876, %v872
  %v1249 = vpack.c.b16 %v881, %v877
  %v1250 = vpack.c.b16 %v882, %v878
  %v1251 = vpack.c.b16 %v883, %v879
  %v1252 = vpack.c.b16 %v884, %v880
  %v1253 = vpack.c.b16 %v889, %v885
  %v1254 = vpack.c.b16 %v890, %v886
  %v1255 = vpack.c.b16 %v891, %v887
  %v1256 = vpack.c.b16 %v892, %v888
  %v1257 = vpack.c.b16 %v897, %v893
  %v1258 = vpack.c.b16 %v898, %v894
  %v1259 = vpack.c.b16 %v899, %v895
  %v1260 = vpack.c.b16 %v900, %v896
  %v1261 = vpack.c.b16 %v905, %v901
  %v1262 = vpack.c.b16 %v906, %v902
  %v1263 = vpack.c.b16 %v907, %v903
  %v1264 = vpack.c.b16 %v908, %v904
  %v1265 = vpack.c.b16 %v913, %v909
  %v1266 = vpack.c.b16 %v914, %v910
  %v1267 = vpack.c.b16 %v915, %v911
  %v1268 = vpack.c.b16 %v916, %v912
  %v1269 = vpack.c.b16 %v921, %v917
  %v1270 = vpack.c.b16 %v922, %v918
  %v1271 = vpack.c.b16 %v923, %v919
  %v1272 = vpack.c.b16 %v924, %v920
  %v1273 = vpack.c.b16 %v929, %v925
  %v1274 = vpack.c.b16 %v930, %v926
  %v1275 = vpack.c.b16 %v931, %v927
  %v1276 = vpack.c.b16 %v932, %v928
  %v1277 = vpack.c.b16 %v937, %v933
  %v1278 = vpack.c.b16 %v938, %v934
  %v1279 = vpack.c.b16 %v939, %v935
  %v1280 = vpack.c.b16 %v940, %v936
  %v1281 = vpack.c.b16 %v945, %v941
  %v1282 = vpack.c.b16 %v946, %v942
  %v1283 = vpack.c.b16 %v947, %v943
  %v1284 = vpack.c.b16 %v948, %v944
  %v1285 = vpack.c.b16 %v953, %v949
  %v1286 = vpack.c.b16 %v954, %v950
  %v1287 = vpack.c.b16 %v955, %v951
  %v1288 = vpack.c.b16 %v956, %v952
  %v1289 = vpack.c.b16 %v961, %v957
  %v1290 = vpack.c.b16 %v962, %v958
  %v1291 = vpack.c.b16 %v963, %v959
  %v1292 = vpack.c.b16 %v964, %v960
  %v1293 = vpack.c.b16 %v969, %v965
  %v1294 = vpack.c.b16 %v970, %v966
  %v1295 = vpack.c.b16 %v971, %v967
  %v1296 = vpack.c.b16 %v972, %v968
  %v1297 = vpack.c.b16 %v977, %v973
  %v1298 = vpack.c.b16 %v978, %v974
  %v1299 = vpack.c.b16 %v979, %v975
  %v1300 = vpack.c.b16 %v980, %v976
  %v1301 = vpack.c.b16 %v985, %v981
  %v1302 = vpack.c.b16 %v986, %v982
  %v1303 = vpack.c.b16 %v987, %v983
  %v1304 = vpack.c.b16 %v988, %v984
  %v1305 = vpack.c.b16 %v993, %v989
  %v1306 = vpack.c.b16 %v994, %v990
  %v1307 = vpack.c.b16 %v995, %v991
  %v1308 = vpack.c.b16 %v996, %v992
  %v1309 = vpack.c.b16 %v1001, %v997
  %v1310 = vpack.c.b16 %v1002, %v998
  %v1311 = vpack.c.b16 %v1003, %v999
  %v1312 = vpack.c.b16 %v1004, %v1000
  %v1313 = vpack.c.b16 %v1009, %v1005
  %v1314 = vpack.c.b16 %v1010, %v1006
  %v1315 = vpack.c.b16 %v1011, %v1007
  %v1316 = vpack.c.b16 %v1012, %v1008
  %v1317 = vpack.c.b16 %v1017, %v1013
  %v1318 = vpack.c.b16 %v1018, %v1014
  %v1319 = vpack.c.b16 %v1019, %v1015
  %v1320 = vpack.c.b16 %v1020, %v1016
  %v1321 = vpack.c.b16 %v1025, %v1021
  %v1322 = vpack.c.b16 %v1026, %v1022
  %v1323 = vpack.c.b16 %v1027, %v1023
  %v1324 = vpack.c.b16 %v1028, %v1024
  %v1325 = vpack.c.b16 %v1033, %v1029
  %v1326 = vpack.c.b16 %v1034, %v1030
  %v1327 = vpack.c.b16 %v1035, %v1031
  %v1328 = vpack.c.b16 %v1036, %v1032
  %v1329 = vpack.c.b16 %v1041, %v1037
  %v1330 = vpack.c.b16 %v1042, %v1038
  %v1331 = vpack.c.b16 %v1043, %v1039
  %v1332 = vpack.c.b16 %v1044, %v1040
  %v1333 = vpack.c.b16 %v1049, %v1045
  %v1334 = vpack.c.b16 %v1050, %v1046
  %v1335 = vpack.c.b16 %v1051, %v1047
  %v1336 = vpack.c.b16 %v1052, %v1048
  %v1337 = vpack.c.b16 %v1057, %v1053
  %v1338 = vpack.c.b16 %v1058, %v1054
  %v1339 = vpack.c.b16 %v1059, %v1055
  %v1340 = vpack.c.b16 %v1060, %v1056
  %v1341 = vpack.c.b16 %v1065, %v1061
  %v1342 = vpack.c.b16 %v1066, %v1062
  %v1343 = vpack.c.b16 %v1067, %v1063
  %v1344 = vpack.c.b16 %v1068, %v1064
  %v1345 = vpack.c.b16 %v1073, %v1069
  %v1346 = vpack.c.b16 %v1074, %v1070
  %v1347 = vpack.c.b16 %v1075, %v1071
  %v1348 = vpack.c.b16 %v1076, %v1072
  %v1349 = vpack.c.b16 %v1081, %v1077
  %v1350 = vpack.c.b16 %v1082, %v1078
  %v1351 = vpack.c.b16 %v1083, %v1079
  %v1352 = vpack.c.b16 %v1084, %v1080
  %v1353 = vpack.c.b16 %v1089, %v1085
  %v1354 = vpack.c.b16 %v1090, %v1086
  %v1355 = vpack.c.b16 %v1091, %v1087
  %v1356 = vpack.c.b16 %v1092, %v1088
  %v1357 = vpack.c.b16 %v1097, %v1093
  %v1358 = vpack.c.b16 %v1098, %v1094
  %v1359 = vpack.c.b16 %v1099, %v1095
  %v1360 = vpack.c.b16 %v1100, %v1096
  %v1361 = vpack.c.b16 %v1105, %v1101
  %v1362 = vpack.c.b16 %v1106, %v1102
  %v1363 = vpack.c.b16 %v1107, %v1103
  %v1364 = vpack.c.b16 %v1108, %v1104
  %1621 = vmatprep.subr.bf16.mxu0 %v1110
  %1622 = vmatpush1.bf16.msra.mxu0 %v1109
  %1623 = vmatprep.subr.bf16.mxu0 %v1114
  %1624 = vmatpush1.bf16.msra.mxu0 %v1113
  %1625 = vmatprep.subr.bf16.mxu0 %v1118
  %1626 = vmatpush1.bf16.msra.mxu0 %v1117
  %1627 = vmatprep.subr.bf16.mxu0 %v1122
  %1628 = vmatpush1.bf16.msra.mxu0 %v1121
  %1629 = vmatprep.subr.bf16.mxu0 %v1126
  %1630 = vmatpush1.bf16.msra.mxu0 %v1125
  %1631 = vmatprep.subr.bf16.mxu0 %v1130
  %1632 = vmatpush1.bf16.msra.mxu0 %v1129
  %1633 = vmatprep.subr.bf16.mxu0 %v1134
  %1634 = vmatpush1.bf16.msra.mxu0 %v1133
  %1635 = vmatprep.subr.bf16.mxu0 %v1138
  %1636 = vmatpush1.bf16.msra.mxu0 %v1137
  %1637 = vmatprep.subr.bf16.mxu0 %v1142
  %1638 = vmatpush1.bf16.msra.mxu0 %v1141
  %1639 = vmatprep.subr.bf16.mxu0 %v1146
  %1640 = vmatpush1.bf16.msra.mxu0 %v1145
  %1641 = vmatprep.subr.bf16.mxu0 %v1150
  %1642 = vmatpush1.bf16.msra.mxu0 %v1149
  %1643 = vmatprep.subr.bf16.mxu0 %v1154
  %1644 = vmatpush1.bf16.msra.mxu0 %v1153
  %1645 = vmatprep.subr.bf16.mxu0 %v1158
  %1646 = vmatpush1.bf16.msra.mxu0 %v1157
  %1647 = vmatprep.subr.bf16.mxu0 %v1162
  %1648 = vmatpush1.bf16.msra.mxu0 %v1161
  %1649 = vmatprep.subr.bf16.mxu0 %v1166
  %1650 = vmatpush1.bf16.msra.mxu0 %v1165
  %1651 = vmatprep.subr.bf16.mxu0 %v1170
  %1652 = vmatpush1.bf16.msra.mxu0 %v1169
  %1653 = vmatprep.mubr.bf16.mxu0 %v56
  %1654 = vmatmul.mubr.bf16.gmra.mrb[0].mxu0 %v55
  %v1655 = vpop.f32.mrb[0].mxu0
  %v1656 = vadd.f32 %v324, %v1655
  %v1657 = vpop.f32.mrb[0].mxu0
  %v1658 = vadd.f32 %v328, %v1657
  %v1659 = vpop.f32.mrb[0].mxu0
  %v1660 = vpop.f32.mrb[0].mxu0
  %1661 = vdwg.mxu0
  %1662 = vmatprep.subr.bf16.mxu0 %v1174
  %1663 = vmatpush1.bf16.msra.mxu0 %v1173
  %1664 = vmatprep.subr.bf16.mxu0 %v1178
  %1665 = vmatpush1.bf16.msra.mxu0 %v1177
  %1666 = vmatprep.subr.bf16.mxu0 %v1182
  %1667 = vmatpush1.bf16.msra.mxu0 %v1181
  %1668 = vmatprep.subr.bf16.mxu0 %v1186
  %1669 = vmatpush1.bf16.msra.mxu0 %v1185
  %1670 = vmatprep.subr.bf16.mxu0 %v1190
  %1671 = vmatpush1.bf16.msra.mxu0 %v1189
  %1672 = vmatprep.subr.bf16.mxu0 %v1194
  %1673 = vmatpush1.bf16.msra.mxu0 %v1193
  %1674 = vmatprep.subr.bf16.mxu0 %v1198
  %1675 = vmatpush1.bf16.msra.mxu0 %v1197
  %1676 = vmatprep.subr.bf16.mxu0 %v1202
  %1677 = vmatpush1.bf16.msra.mxu0 %v1201
  %1678 = vmatprep.subr.bf16.mxu0 %v1206
  %1679 = vmatpush1.bf16.msra.mxu0 %v1205
  %1680 = vmatprep.subr.bf16.mxu0 %v1210
  %1681 = vmatpush1.bf16.msra.mxu0 %v1209
  %1682 = vmatprep.subr.bf16.mxu0 %v1214
  %1683 = vmatpush1.bf16.msra.mxu0 %v1213
  %1684 = vmatprep.subr.bf16.mxu0 %v1218
  %1685 = vmatpush1.bf16.msra.mxu0 %v1217
  %1686 = vmatprep.subr.bf16.mxu0 %v1222
  %1687 = vmatpush1.bf16.msra.mxu0 %v1221
  %1688 = vmatprep.subr.bf16.mxu0 %v1226
  %1689 = vmatpush1.bf16.msra.mxu0 %v1225
  %1690 = vmatprep.subr.bf16.mxu0 %v1230
  %1691 = vmatpush1.bf16.msra.mxu0 %v1229
  %1692 = vmatprep.subr.bf16.mxu0 %v1234
  %1693 = vmatpush1.bf16.msra.mxu0 %v1233
  %1694 = vmatprep.mubr.bf16.mxu0 %v58
  %1695 = vmatmul.mubr.bf16.gmra.mrb[0].mxu0 %v57
  %v1696 = vpop.f32.mrb[0].mxu0
  %v1697 = vadd.f32 %v1656, %v1696
  %v1698 = vpop.f32.mrb[0].mxu0
  %v1699 = vadd.f32 %v1658, %v1698
  %v1700 = vpop.f32.mrb[0].mxu0
  %v1701 = vpop.f32.mrb[0].mxu0
  %1702 = vdwg.mxu0
  %1703 = vmatprep.subr.bf16.mxu0 %v1238
  %1704 = vmatpush1.bf16.msra.mxu0 %v1237
  %1705 = vmatprep.subr.bf16.mxu0 %v1242
  %1706 = vmatpush1.bf16.msra.mxu0 %v1241
  %1707 = vmatprep.subr.bf16.mxu0 %v1246
  %1708 = vmatpush1.bf16.msra.mxu0 %v1245
  %1709 = vmatprep.subr.bf16.mxu0 %v1250
  %1710 = vmatpush1.bf16.msra.mxu0 %v1249
  %1711 = vmatprep.subr.bf16.mxu0 %v1254
  %1712 = vmatpush1.bf16.msra.mxu0 %v1253
  %1713 = vmatprep.subr.bf16.mxu0 %v1258
  %1714 = vmatpush1.bf16.msra.mxu0 %v1257
  %1715 = vmatprep.subr.bf16.mxu0 %v1262
  %1716 = vmatpush1.bf16.msra.mxu0 %v1261
  %1717 = vmatprep.subr.bf16.mxu0 %v1266
  %1718 = vmatpush1.bf16.msra.mxu0 %v1265
  %1719 = vmatprep.subr.bf16.mxu0 %v1270
  %1720 = vmatpush1.bf16.msra.mxu0 %v1269
  %1721 = vmatprep.subr.bf16.mxu0 %v1274
  %1722 = vmatpush1.bf16.msra.mxu0 %v1273
  %1723 = vmatprep.subr.bf16.mxu0 %v1278
  %1724 = vmatpush1.bf16.msra.mxu0 %v1277
  %1725 = vmatprep.subr.bf16.mxu0 %v1282
  %1726 = vmatpush1.bf16.msra.mxu0 %v1281
  %1727 = vmatprep.subr.bf16.mxu0 %v1286
  %1728 = vmatpush1.bf16.msra.mxu0 %v1285
  %1729 = vmatprep.subr.bf16.mxu0 %v1290
  %1730 = vmatpush1.bf16.msra.mxu0 %v1289
  %1731 = vmatprep.subr.bf16.mxu0 %v1294
  %1732 = vmatpush1.bf16.msra.mxu0 %v1293
  %1733 = vmatprep.subr.bf16.mxu0 %v1298
  %1734 = vmatpush1.bf16.msra.mxu0 %v1297
  %1735 = vmatprep.mubr.bf16.mxu0 %v60
  %1736 = vmatmul.mubr.bf16.gmra.mrb[0].mxu0 %v59
  %v1737 = vpop.f32.mrb[0].mxu0
  %v1738 = vadd.f32 %v1697, %v1737
  %v1739 = vpop.f32.mrb[0].mxu0
  %v1740 = vadd.f32 %v1699, %v1739
  %v1741 = vpop.f32.mrb[0].mxu0
  %v1742 = vpop.f32.mrb[0].mxu0
  %1743 = vdwg.mxu0
  %1744 = vmatprep.subr.bf16.mxu0 %v1302
  %1745 = vmatpush1.bf16.msra.mxu0 %v1301
  %1746 = vmatprep.subr.bf16.mxu0 %v1306
  %1747 = vmatpush1.bf16.msra.mxu0 %v1305
  %1748 = vmatprep.subr.bf16.mxu0 %v1310
  %1749 = vmatpush1.bf16.msra.mxu0 %v1309
  %1750 = vmatprep.subr.bf16.mxu0 %v1314
  %1751 = vmatpush1.bf16.msra.mxu0 %v1313
  %1752 = vmatprep.subr.bf16.mxu0 %v1318
  %1753 = vmatpush1.bf16.msra.mxu0 %v1317
  %1754 = vmatprep.subr.bf16.mxu0 %v1322
  %1755 = vmatpush1.bf16.msra.mxu0 %v1321
  %1756 = vmatprep.subr.bf16.mxu0 %v1326
  %1757 = vmatpush1.bf16.msra.mxu0 %v1325
  %1758 = vmatprep.subr.bf16.mxu0 %v1330
  %1759 = vmatpush1.bf16.msra.mxu0 %v1329
  %1760 = vmatprep.subr.bf16.mxu0 %v1334
  %1761 = vmatpush1.bf16.msra.mxu0 %v1333
  %1762 = vmatprep.subr.bf16.mxu0 %v1338
  %1763 = vmatpush1.bf16.msra.mxu0 %v1337
  %1764 = vmatprep.subr.bf16.mxu0 %v1342
  %1765 = vmatpush1.bf16.msra.mxu0 %v1341
  %1766 = vmatprep.subr.bf16.mxu0 %v1346
  %1767 = vmatpush1.bf16.msra.mxu0 %v1345
  %1768 = vmatprep.subr.bf16.mxu0 %v1350
  %1769 = vmatpush1.bf16.msra.mxu0 %v1349
  %1770 = vmatprep.subr.bf16.mxu0 %v1354
  %1771 = vmatpush1.bf16.msra.mxu0 %v1353
  %1772 = vmatprep.subr.bf16.mxu0 %v1358
  %1773 = vmatpush1.bf16.msra.mxu0 %v1357
  %1774 = vmatprep.subr.bf16.mxu0 %v1362
  %1775 = vmatpush1.bf16.msra.mxu0 %v1361
  %1776 = vmatprep.mubr.bf16.mxu0 %v62
  %1777 = vmatmul.mubr.bf16.gmra.mrb[0].mxu0 %v61
  %v1778 = vpop.f32.mrb[0].mxu0
  %v1779 = vadd.f32 %v1738, %v1778
  %v1780 = vpop.f32.mrb[0].mxu0
  %v1781 = vadd.f32 %v1740, %v1780
  %v1782 = vpop.f32.mrb[0].mxu0
  %v1783 = vpop.f32.mrb[0].mxu0
  %1784 = vdwg.mxu0
  %1785 = vmatprep.subr.bf16.mxu0 %v1112
  %1786 = vmatpush1.bf16.msra.mxu0 %v1111
  %1787 = vmatprep.subr.bf16.mxu0 %v1116
  %1788 = vmatpush1.bf16.msra.mxu0 %v1115
  %1789 = vmatprep.subr.bf16.mxu0 %v1120
  %1790 = vmatpush1.bf16.msra.mxu0 %v1119
  %1791 = vmatprep.subr.bf16.mxu0 %v1124
  %1792 = vmatpush1.bf16.msra.mxu0 %v1123
  %1793 = vmatprep.subr.bf16.mxu0 %v1128
  %1794 = vmatpush1.bf16.msra.mxu0 %v1127
  %1795 = vmatprep.subr.bf16.mxu0 %v1132
  %1796 = vmatpush1.bf16.msra.mxu0 %v1131
  %1797 = vmatprep.subr.bf16.mxu0 %v1136
  %1798 = vmatpush1.bf16.msra.mxu0 %v1135
  %1799 = vmatprep.subr.bf16.mxu0 %v1140
  %1800 = vmatpush1.bf16.msra.mxu0 %v1139
  %1801 = vmatprep.subr.bf16.mxu0 %v1144
  %1802 = vmatpush1.bf16.msra.mxu0 %v1143
  %1803 = vmatprep.subr.bf16.mxu0 %v1148
  %1804 = vmatpush1.bf16.msra.mxu0 %v1147
  %1805 = vmatprep.subr.bf16.mxu0 %v1152
  %1806 = vmatpush1.bf16.msra.mxu0 %v1151
  %1807 = vmatprep.subr.bf16.mxu0 %v1156
  %1808 = vmatpush1.bf16.msra.mxu0 %v1155
  %1809 = vmatprep.subr.bf16.mxu0 %v1160
  %1810 = vmatpush1.bf16.msra.mxu0 %v1159
  %1811 = vmatprep.subr.bf16.mxu0 %v1164
  %1812 = vmatpush1.bf16.msra.mxu0 %v1163
  %1813 = vmatprep.subr.bf16.mxu0 %v1168
  %1814 = vmatpush1.bf16.msra.mxu0 %v1167
  %1815 = vmatprep.subr.bf16.mxu0 %v1172
  %1816 = vmatpush1.bf16.msra.mxu0 %v1171
  %1817 = vmatprep.mubr.bf16.mxu0 %v56
  %1818 = vmatmul.mubr.bf16.gmra.mrb[0].mxu0 %v55
  %v1819 = vpop.f32.mrb[0].mxu0
  %v1820 = vadd.f32 %v332, %v1819
  %v1821 = vpop.f32.mrb[0].mxu0
  %v1822 = vadd.f32 %v336, %v1821
  %v1823 = vpop.f32.mrb[0].mxu0
  %v1824 = vpop.f32.mrb[0].mxu0
  %1825 = vdwg.mxu0
  %1826 = vmatprep.subr.bf16.mxu0 %v1176
  %1827 = vmatpush1.bf16.msra.mxu0 %v1175
  %1828 = vmatprep.subr.bf16.mxu0 %v1180
  %1829 = vmatpush1.bf16.msra.mxu0 %v1179
  %1830 = vmatprep.subr.bf16.mxu0 %v1184
  %1831 = vmatpush1.bf16.msra.mxu0 %v1183
  %1832 = vmatprep.subr.bf16.mxu0 %v1188
  %1833 = vmatpush1.bf16.msra.mxu0 %v1187
  %1834 = vmatprep.subr.bf16.mxu0 %v1192
  %1835 = vmatpush1.bf16.msra.mxu0 %v1191
  %1836 = vmatprep.subr.bf16.mxu0 %v1196
  %1837 = vmatpush1.bf16.msra.mxu0 %v1195
  %1838 = vmatprep.subr.bf16.mxu0 %v1200
  %1839 = vmatpush1.bf16.msra.mxu0 %v1199
  %1840 = vmatprep.subr.bf16.mxu0 %v1204
  %1841 = vmatpush1.bf16.msra.mxu0 %v1203
  %1842 = vmatprep.subr.bf16.mxu0 %v1208
  %1843 = vmatpush1.bf16.msra.mxu0 %v1207
  %1844 = vmatprep.subr.bf16.mxu0 %v1212
  %1845 = vmatpush1.bf16.msra.mxu0 %v1211
  %1846 = vmatprep.subr.bf16.mxu0 %v1216
  %1847 = vmatpush1.bf16.msra.mxu0 %v1215
  %1848 = vmatprep.subr.bf16.mxu0 %v1220
  %1849 = vmatpush1.bf16.msra.mxu0 %v1219
  %1850 = vmatprep.subr.bf16.mxu0 %v1224
  %1851 = vmatpush1.bf16.msra.mxu0 %v1223
  %1852 = vmatprep.subr.bf16.mxu0 %v1228
  %1853 = vmatpush1.bf16.msra.mxu0 %v1227
  %1854 = vmatprep.subr.bf16.mxu0 %v1232
  %1855 = vmatpush1.bf16.msra.mxu0 %v1231
  %1856 = vmatprep.subr.bf16.mxu0 %v1236
  %1857 = vmatpush1.bf16.msra.mxu0 %v1235
  %1858 = vmatprep.mubr.bf16.mxu0 %v58
  %1859 = vmatmul.mubr.bf16.gmra.mrb[0].mxu0 %v57
  %v1860 = vpop.f32.mrb[0].mxu0
  %v1861 = vadd.f32 %v1820, %v1860
  %v1862 = vpop.f32.mrb[0].mxu0
  %v1863 = vadd.f32 %v1822, %v1862
  %v1864 = vpop.f32.mrb[0].mxu0
  %v1865 = vpop.f32.mrb[0].mxu0
  %1866 = vdwg.mxu0
  %1867 = vmatprep.subr.bf16.mxu0 %v1240
  %1868 = vmatpush1.bf16.msra.mxu0 %v1239
  %1869 = vmatprep.subr.bf16.mxu0 %v1244
  %1870 = vmatpush1.bf16.msra.mxu0 %v1243
  %1871 = vmatprep.subr.bf16.mxu0 %v1248
  %1872 = vmatpush1.bf16.msra.mxu0 %v1247
  %1873 = vmatprep.subr.bf16.mxu0 %v1252
  %1874 = vmatpush1.bf16.msra.mxu0 %v1251
  %1875 = vmatprep.subr.bf16.mxu0 %v1256
  %1876 = vmatpush1.bf16.msra.mxu0 %v1255
  %1877 = vmatprep.subr.bf16.mxu0 %v1260
  %1878 = vmatpush1.bf16.msra.mxu0 %v1259
  %1879 = vmatprep.subr.bf16.mxu0 %v1264
  %1880 = vmatpush1.bf16.msra.mxu0 %v1263
  %1881 = vmatprep.subr.bf16.mxu0 %v1268
  %1882 = vmatpush1.bf16.msra.mxu0 %v1267
  %1883 = vmatprep.subr.bf16.mxu0 %v1272
  %1884 = vmatpush1.bf16.msra.mxu0 %v1271
  %1885 = vmatprep.subr.bf16.mxu0 %v1276
  %1886 = vmatpush1.bf16.msra.mxu0 %v1275
  %1887 = vmatprep.subr.bf16.mxu0 %v1280
  %1888 = vmatpush1.bf16.msra.mxu0 %v1279
  %1889 = vmatprep.subr.bf16.mxu0 %v1284
  %1890 = vmatpush1.bf16.msra.mxu0 %v1283
  %1891 = vmatprep.subr.bf16.mxu0 %v1288
  %1892 = vmatpush1.bf16.msra.mxu0 %v1287
  %1893 = vmatprep.subr.bf16.mxu0 %v1292
  %1894 = vmatpush1.bf16.msra.mxu0 %v1291
  %1895 = vmatprep.subr.bf16.mxu0 %v1296
  %1896 = vmatpush1.bf16.msra.mxu0 %v1295
  %1897 = vmatprep.subr.bf16.mxu0 %v1300
  %1898 = vmatpush1.bf16.msra.mxu0 %v1299
  %1899 = vmatprep.mubr.bf16.mxu0 %v60
  %1900 = vmatmul.mubr.bf16.gmra.mrb[0].mxu0 %v59
  %v1901 = vpop.f32.mrb[0].mxu0
  %v1902 = vadd.f32 %v1861, %v1901
  %v1903 = vpop.f32.mrb[0].mxu0
  %v1904 = vadd.f32 %v1863, %v1903
  %v1905 = vpop.f32.mrb[0].mxu0
  %v1906 = vpop.f32.mrb[0].mxu0
  %1907 = vdwg.mxu0
  %1908 = vmatprep.subr.bf16.mxu0 %v1304
  %1909 = vmatpush1.bf16.msra.mxu0 %v1303
  %1910 = vmatprep.subr.bf16.mxu0 %v1308
  %1911 = vmatpush1.bf16.msra.mxu0 %v1307
  %1912 = vmatprep.subr.bf16.mxu0 %v1312
  %1913 = vmatpush1.bf16.msra.mxu0 %v1311
  %1914 = vmatprep.subr.bf16.mxu0 %v1316
  %1915 = vmatpush1.bf16.msra.mxu0 %v1315
  %1916 = vmatprep.subr.bf16.mxu0 %v1320
  %1917 = vmatpush1.bf16.msra.mxu0 %v1319
  %1918 = vmatprep.subr.bf16.mxu0 %v1324
  %1919 = vmatpush1.bf16.msra.mxu0 %v1323
  %1920 = vmatprep.subr.bf16.mxu0 %v1328
  %1921 = vmatpush1.bf16.msra.mxu0 %v1327
  %1922 = vmatprep.subr.bf16.mxu0 %v1332
  %1923 = vmatpush1.bf16.msra.mxu0 %v1331
  %1924 = vmatprep.subr.bf16.mxu0 %v1336
  %1925 = vmatpush1.bf16.msra.mxu0 %v1335
  %1926 = vmatprep.subr.bf16.mxu0 %v1340
  %1927 = vmatpush1.bf16.msra.mxu0 %v1339
  %1928 = vmatprep.subr.bf16.mxu0 %v1344
  %1929 = vmatpush1.bf16.msra.mxu0 %v1343
  %1930 = vmatprep.subr.bf16.mxu0 %v1348
  %1931 = vmatpush1.bf16.msra.mxu0 %v1347
  %1932 = vmatprep.subr.bf16.mxu0 %v1352
  %1933 = vmatpush1.bf16.msra.mxu0 %v1351
  %1934 = vmatprep.subr.bf16.mxu0 %v1356
  %1935 = vmatpush1.bf16.msra.mxu0 %v1355
  %1936 = vmatprep.subr.bf16.mxu0 %v1360
  %1937 = vmatpush1.bf16.msra.mxu0 %v1359
  %1938 = vmatprep.subr.bf16.mxu0 %v1364
  %1939 = vmatpush1.bf16.msra.mxu0 %v1363
  %1940 = vmatprep.mubr.bf16.mxu0 %v62
  %1941 = vmatmul.mubr.bf16.gmra.mrb[0].mxu0 %v61
  %v1942 = vpop.f32.mrb[0].mxu0
  %v1943 = vadd.f32 %v1902, %v1942
  %v1944 = vpop.f32.mrb[0].mxu0
  %v1945 = vadd.f32 %v1904, %v1944
  %v1946 = vpop.f32.mrb[0].mxu0
  %v1947 = vpop.f32.mrb[0].mxu0
  %1948 = vdwg.mxu0
  %v1949 = vmax.f32 %v1779, 0.0
  %v1950 = vmax.f32 %v1781, 0.0
  %v1951 = vmax.f32 %v1943, 0.0
  %v1952 = vmax.f32 %v1945, 0.0
  %vm1953 = vcmask 1043456
  %v1954 = vsel %vm1953, %v1949, 0.0
  %v1955 = vrot.slane %v1954, 4
  %v1956 = vadd.f32 %v1954, %v1955
  %v1957 = vrot.slane %v1956, 2
  %v1958 = vadd.f32 %v1956, %v1957
  %v1959 = vrot.slane %v1958, 1
  %v1960 = vadd.f32 %v1958, %v1959
  %v1961 = vsel %vm1953, %v1950, 0.0
  %v1962 = vrot.slane %v1961, 4
  %v1963 = vadd.f32 %v1961, %v1962
  %v1964 = vrot.slane %v1963, 2
  %v1965 = vadd.f32 %v1963, %v1964
  %v1966 = vrot.slane %v1965, 1
  %v1967 = vadd.f32 %v1965, %v1966
  %v1968 = vsel %vm1953, %v1951, 0.0
  %v1969 = vrot.slane %v1968, 4
  %v1970 = vadd.f32 %v1968, %v1969
  %v1971 = vrot.slane %v1970, 2
  %v1972 = vadd.f32 %v1970, %v1971
  %v1973 = vrot.slane %v1972, 1
  %v1974 = vadd.f32 %v1972, %v1973
  %v1975 = vsel %vm1953, %v1952, 0.0
  %v1976 = vrot.slane %v1975, 4
  %v1977 = vadd.f32 %v1975, %v1976
  %v1978 = vrot.slane %v1977, 2
  %v1979 = vadd.f32 %v1977, %v1978
  %v1980 = vrot.slane %v1979, 1
  %v1981 = vadd.f32 %v1979, %v1980
  %v1982 = vrcp.pop 4.0
  %v1983 = vmul.f32 %v1960, %v1982
  %v1984 = vmul.f32 %v1967, %v1982
  %v1985 = vmul.f32 %v1974, %v1982
  %v1986 = vmul.f32 %v1981, %v1982
  %v1987 = vsub.f32 %v1949, %v1983
  %v1988 = vsub.f32 %v1950, %v1984
  %v1989 = vsub.f32 %v1951, %v1985
  %v1990 = vsub.f32 %v1952, %v1986
  %v1991 = vmul.f32 %v1987, %v1987
  %v1992 = vmul.f32 %v1988, %v1988
  %v1993 = vmul.f32 %v1989, %v1989
  %v1994 = vmul.f32 %v1990, %v1990
  %v1995 = vsel %vm1953, %v1991, 0.0
  %v1996 = vrot.slane %v1995, 4
  %v1997 = vadd.f32 %v1995, %v1996
  %v1998 = vrot.slane %v1997, 2
  %v1999 = vadd.f32 %v1997, %v1998
  %v2000 = vrot.slane %v1999, 1
  %v2001 = vadd.f32 %v1999, %v2000
  %v2002 = vsel %vm1953, %v1992, 0.0
  %v2003 = vrot.slane %v2002, 4
  %v2004 = vadd.f32 %v2002, %v2003
  %v2005 = vrot.slane %v2004, 2
  %v2006 = vadd.f32 %v2004, %v2005
  %v2007 = vrot.slane %v2006, 1
  %v2008 = vadd.f32 %v2006, %v2007
  %v2009 = vsel %vm1953, %v1993, 0.0
  %v2010 = vrot.slane %v2009, 4
  %v2011 = vadd.f32 %v2009, %v2010
  %v2012 = vrot.slane %v2011, 2
  %v2013 = vadd.f32 %v2011, %v2012
  %v2014 = vrot.slane %v2013, 1
  %v2015 = vadd.f32 %v2013, %v2014
  %v2016 = vsel %vm1953, %v1994, 0.0
  %v2017 = vrot.slane %v2016, 4
  %v2018 = vadd.f32 %v2016, %v2017
  %v2019 = vrot.slane %v2018, 2
  %v2020 = vadd.f32 %v2018, %v2019
  %v2021 = vrot.slane %v2020, 1
  %v2022 = vadd.f32 %v2020, %v2021
  %v2023 = vmul.f32 %v2001, %v1982
  %v2024 = vmul.f32 %v2008, %v1982
  %v2025 = vmul.f32 %v2015, %v1982
  %v2026 = vmul.f32 %v2022, %v1982
  %v2027 = vadd.f32 %v2023, 1e-05
  %v2028 = vadd.f32 %v2024, 1e-05
  %v2029 = vadd.f32 %v2025, 1e-05
  %v2030 = vadd.f32 %v2026, 1e-05
  %v2031 = vrsqrt.pop %v2027
  %v2032 = vrsqrt.pop %v2028
  %v2033 = vrsqrt.pop %v2029
  %v2034 = vrsqrt.pop %v2030
  %v2035 = vmul.f32 %v1987, %v2031
  %v2036 = vmul.f32 %v1988, %v2032
  %v2037 = vmul.f32 %v1989, %v2033
  %v2038 = vmul.f32 %v1990, %v2034
  %v2039 = vld [vmem:[%s3] sm:$0xf]
  %v2041 = vlaneseq
  %v2042 = vshrl.u32 %v2041, 7
  %v2043 = vsub.s32 0, %v2042
  %v2044 = vrot.slane %v2039, %v2043
  %v2045 = vlaneseq
  %v2046 = vshrl.u32 %v2045, 7
  %v2047 = vsub.s32 1, %v2046
  %v2048 = vrot.slane %v2039, %v2047
  %v2049 = vlaneseq
  %v2050 = vshrl.u32 %v2049, 7
  %v2051 = vsub.s32 2, %v2050
  %v2052 = vrot.slane %v2039, %v2051
  %v2053 = vlaneseq
  %v2054 = vshrl.u32 %v2053, 7
  %v2055 = vsub.s32 3, %v2054
  %v2056 = vrot.slane %v2039, %v2055
  %v2061 = vmul.f32 %v2035, %v2044
  %v2062 = vmul.f32 %v2036, %v2048
  %v2063 = vmul.f32 %v2037, %v2052
  %v2064 = vmul.f32 %v2038, %v2056
  %v2065 = vld [vmem:[%s4] sm:$0xf]
  %v2067 = vlaneseq
  %v2068 = vshrl.u32 %v2067, 7
  %v2069 = vsub.s32 0, %v2068
  %v2070 = vrot.slane %v2065, %v2069
  %v2071 = vlaneseq
  %v2072 = vshrl.u32 %v2071, 7
  %v2073 = vsub.s32 1, %v2072
  %v2074 = vrot.slane %v2065, %v2073
  %v2075 = vlaneseq
  %v2076 = vshrl.u32 %v2075, 7
  %v2077 = vsub.s32 2, %v2076
  %v2078 = vrot.slane %v2065, %v2077
  %v2079 = vlaneseq
  %v2080 = vshrl.u32 %v2079, 7
  %v2081 = vsub.s32 3, %v2080
  %v2082 = vrot.slane %v2065, %v2081
  %v2087 = vadd.f32 %v2061, %v2070
  %v2088 = vadd.f32 %v2062, %v2074
  %v2089 = vadd.f32 %v2063, %v2078
  %v2090 = vadd.f32 %v2064, %v2082
  %v2091 = vpack.c.bf16 %v2087, %v2087
  %v2092 = vpack.c.bf16 %v2088, %v2088
  %v2093 = vpack.c.bf16 %v2089, %v2089
  %v2094 = vpack.c.bf16 %v2090, %v2090
  %v2095 = vld [vmem:[%s5] sm:$0xff]
  %v2096 = vld [vmem:[%s5 + $0x8] sm:$0xff]
  %v2097 = vld [vmem:[%s5 + $0x10] sm:$0xff]
  %v2098 = vld [vmem:[%s5 + $0x18] sm:$0xff]
  %v2099 = vld [vmem:[%s5 + $0x20] sm:$0xff]
  %v2100 = vld [vmem:[%s5 + $0x28] sm:$0xff]
  %v2101 = vld [vmem:[%s5 + $0x30] sm:$0xff]
  %v2102 = vld [vmem:[%s5 + $0x38] sm:$0xff]
  %v2103 = vld [vmem:[%s5 + $0x40] sm:$0xff]
  %v2104 = vld [vmem:[%s5 + $0x48] sm:$0xff]
  %v2105 = vld [vmem:[%s5 + $0x50] sm:$0xff]
  %v2106 = vld [vmem:[%s5 + $0x58] sm:$0xff]
  %v2107 = vld [vmem:[%s5 + $0x60] sm:$0xff]
  %v2108 = vld [vmem:[%s5 + $0x68] sm:$0xff]
  %v2109 = vld [vmem:[%s5 + $0x70] sm:$0xff]
  %v2110 = vld [vmem:[%s5 + $0x78] sm:$0xff]
  %v2111 = vld [vmem:[%s5 + $0x80] sm:$0xff]
  %v2112 = vld [vmem:[%s5 + $0x88] sm:$0xff]
  %v2113 = vld [vmem:[%s5 + $0x90] sm:$0xff]
  %v2114 = vld [vmem:[%s5 + $0x98] sm:$0xff]
  %v2115 = vld [vmem:[%s5 + $0xa0] sm:$0xff]
  %v2116 = vld [vmem:[%s5 + $0xa8] sm:$0xff]
  %v2117 = vld [vmem:[%s5 + $0xb0] sm:$0xff]
  %v2118 = vld [vmem:[%s5 + $0xb8] sm:$0xff]
  %v2119 = vld [vmem:[%s5 + $0xc0] sm:$0xff]
  %v2120 = vld [vmem:[%s5 + $0xc8] sm:$0xff]
  %v2121 = vld [vmem:[%s5 + $0xd0] sm:$0xff]
  %v2122 = vld [vmem:[%s5 + $0xd8] sm:$0xff]
  %v2123 = vld [vmem:[%s5 + $0xe0] sm:$0xff]
  %v2124 = vld [vmem:[%s5 + $0xe8] sm:$0xff]
  %v2125 = vld [vmem:[%s5 + $0xf0] sm:$0xff]
  %v2126 = vld [vmem:[%s5 + $0xf8] sm:$0xff]
  %v2127 = vld [vmem:[%s5 + $0x100] sm:$0xff]
  %v2128 = vld [vmem:[%s5 + $0x108] sm:$0xff]
  %v2129 = vld [vmem:[%s5 + $0x110] sm:$0xff]
  %v2130 = vld [vmem:[%s5 + $0x118] sm:$0xff]
  %v2131 = vld [vmem:[%s5 + $0x120] sm:$0xff]
  %v2132 = vld [vmem:[%s5 + $0x128] sm:$0xff]
  %v2133 = vld [vmem:[%s5 + $0x130] sm:$0xff]
  %v2134 = vld [vmem:[%s5 + $0x138] sm:$0xff]
  %v2135 = vld [vmem:[%s5 + $0x140] sm:$0xff]
  %v2136 = vld [vmem:[%s5 + $0x148] sm:$0xff]
  %v2137 = vld [vmem:[%s5 + $0x150] sm:$0xff]
  %v2138 = vld [vmem:[%s5 + $0x158] sm:$0xff]
  %v2139 = vld [vmem:[%s5 + $0x160] sm:$0xff]
  %v2140 = vld [vmem:[%s5 + $0x168] sm:$0xff]
  %v2141 = vld [vmem:[%s5 + $0x170] sm:$0xff]
  %v2142 = vld [vmem:[%s5 + $0x178] sm:$0xff]
  %v2143 = vld [vmem:[%s5 + $0x180] sm:$0xff]
  %v2144 = vld [vmem:[%s5 + $0x188] sm:$0xff]
  %v2145 = vld [vmem:[%s5 + $0x190] sm:$0xff]
  %v2146 = vld [vmem:[%s5 + $0x198] sm:$0xff]
  %v2147 = vld [vmem:[%s5 + $0x1a0] sm:$0xff]
  %v2148 = vld [vmem:[%s5 + $0x1a8] sm:$0xff]
  %v2149 = vld [vmem:[%s5 + $0x1b0] sm:$0xff]
  %v2150 = vld [vmem:[%s5 + $0x1b8] sm:$0xff]
  %v2151 = vld [vmem:[%s5 + $0x1c0] sm:$0xff]
  %v2152 = vld [vmem:[%s5 + $0x1c8] sm:$0xff]
  %v2153 = vld [vmem:[%s5 + $0x1d0] sm:$0xff]
  %v2154 = vld [vmem:[%s5 + $0x1d8] sm:$0xff]
  %v2155 = vld [vmem:[%s5 + $0x1e0] sm:$0xff]
  %v2156 = vld [vmem:[%s5 + $0x1e8] sm:$0xff]
  %v2157 = vld [vmem:[%s5 + $0x1f0] sm:$0xff]
  %v2158 = vld [vmem:[%s5 + $0x1f8] sm:$0xff]
  %v2159 = vld [vmem:[%s6] sm:$0x3]
  %v2161 = vlaneseq
  %v2162 = vshrl.u32 %v2161, 7
  %v2163 = vsub.s32 0, %v2162
  %v2164 = vrot.slane %v2159, %v2163
  %v2165 = vlaneseq
  %v2166 = vshrl.u32 %v2165, 7
  %v2167 = vsub.s32 1, %v2166
  %v2168 = vrot.slane %v2159, %v2167
  %v2235 = vunpack.c.l.b16 %v2095
  %v2236 = vunpack.c.h.b16 %v2095
  %v2237 = vunpack.c.l.b16 %v2096
  %v2238 = vunpack.c.h.b16 %v2096
  %v2239 = vunpack.c.l.b16 %v2097
  %v2240 = vunpack.c.h.b16 %v2097
  %v2241 = vunpack.c.l.b16 %v2098
  %v2242 = vunpack.c.h.b16 %v2098
  %v2243 = vunpack.c.l.b16 %v2099
  %v2244 = vunpack.c.h.b16 %v2099
  %v2245 = vunpack.c.l.b16 %v2100
  %v2246 = vunpack.c.h.b16 %v2100
  %v2247 = vunpack.c.l.b16 %v2101
  %v2248 = vunpack.c.h.b16 %v2101
  %v2249 = vunpack.c.l.b16 %v2102
  %v2250 = vunpack.c.h.b16 %v2102
  %v2251 = vunpack.c.l.b16 %v2103
  %v2252 = vunpack.c.h.b16 %v2103
  %v2253 = vunpack.c.l.b16 %v2104
  %v2254 = vunpack.c.h.b16 %v2104
  %v2255 = vunpack.c.l.b16 %v2105
  %v2256 = vunpack.c.h.b16 %v2105
  %v2257 = vunpack.c.l.b16 %v2106
  %v2258 = vunpack.c.h.b16 %v2106
  %v2259 = vunpack.c.l.b16 %v2107
  %v2260 = vunpack.c.h.b16 %v2107
  %v2261 = vunpack.c.l.b16 %v2108
  %v2262 = vunpack.c.h.b16 %v2108
  %v2263 = vunpack.c.l.b16 %v2109
  %v2264 = vunpack.c.h.b16 %v2109
  %v2265 = vunpack.c.l.b16 %v2110
  %v2266 = vunpack.c.h.b16 %v2110
  %v2267 = vunpack.c.l.b16 %v2111
  %v2268 = vunpack.c.h.b16 %v2111
  %v2269 = vunpack.c.l.b16 %v2112
  %v2270 = vunpack.c.h.b16 %v2112
  %v2271 = vunpack.c.l.b16 %v2113
  %v2272 = vunpack.c.h.b16 %v2113
  %v2273 = vunpack.c.l.b16 %v2114
  %v2274 = vunpack.c.h.b16 %v2114
  %v2275 = vunpack.c.l.b16 %v2115
  %v2276 = vunpack.c.h.b16 %v2115
  %v2277 = vunpack.c.l.b16 %v2116
  %v2278 = vunpack.c.h.b16 %v2116
  %v2279 = vunpack.c.l.b16 %v2117
  %v2280 = vunpack.c.h.b16 %v2117
  %v2281 = vunpack.c.l.b16 %v2118
  %v2282 = vunpack.c.h.b16 %v2118
  %v2283 = vunpack.c.l.b16 %v2119
  %v2284 = vunpack.c.h.b16 %v2119
  %v2285 = vunpack.c.l.b16 %v2120
  %v2286 = vunpack.c.h.b16 %v2120
  %v2287 = vunpack.c.l.b16 %v2121
  %v2288 = vunpack.c.h.b16 %v2121
  %v2289 = vunpack.c.l.b16 %v2122
  %v2290 = vunpack.c.h.b16 %v2122
  %v2291 = vunpack.c.l.b16 %v2123
  %v2292 = vunpack.c.h.b16 %v2123
  %v2293 = vunpack.c.l.b16 %v2124
  %v2294 = vunpack.c.h.b16 %v2124
  %v2295 = vunpack.c.l.b16 %v2125
  %v2296 = vunpack.c.h.b16 %v2125
  %v2297 = vunpack.c.l.b16 %v2126
  %v2298 = vunpack.c.h.b16 %v2126
  %v2299 = vunpack.c.l.b16 %v2127
  %v2300 = vunpack.c.h.b16 %v2127
  %v2301 = vunpack.c.l.b16 %v2128
  %v2302 = vunpack.c.h.b16 %v2128
  %v2303 = vunpack.c.l.b16 %v2129
  %v2304 = vunpack.c.h.b16 %v2129
  %v2305 = vunpack.c.l.b16 %v2130
  %v2306 = vunpack.c.h.b16 %v2130
  %v2307 = vunpack.c.l.b16 %v2131
  %v2308 = vunpack.c.h.b16 %v2131
  %v2309 = vunpack.c.l.b16 %v2132
  %v2310 = vunpack.c.h.b16 %v2132
  %v2311 = vunpack.c.l.b16 %v2133
  %v2312 = vunpack.c.h.b16 %v2133
  %v2313 = vunpack.c.l.b16 %v2134
  %v2314 = vunpack.c.h.b16 %v2134
  %v2315 = vunpack.c.l.b16 %v2135
  %v2316 = vunpack.c.h.b16 %v2135
  %v2317 = vunpack.c.l.b16 %v2136
  %v2318 = vunpack.c.h.b16 %v2136
  %v2319 = vunpack.c.l.b16 %v2137
  %v2320 = vunpack.c.h.b16 %v2137
  %v2321 = vunpack.c.l.b16 %v2138
  %v2322 = vunpack.c.h.b16 %v2138
  %v2323 = vunpack.c.l.b16 %v2139
  %v2324 = vunpack.c.h.b16 %v2139
  %v2325 = vunpack.c.l.b16 %v2140
  %v2326 = vunpack.c.h.b16 %v2140
  %v2327 = vunpack.c.l.b16 %v2141
  %v2328 = vunpack.c.h.b16 %v2141
  %v2329 = vunpack.c.l.b16 %v2142
  %v2330 = vunpack.c.h.b16 %v2142
  %v2331 = vunpack.c.l.b16 %v2143
  %v2332 = vunpack.c.h.b16 %v2143
  %v2333 = vunpack.c.l.b16 %v2144
  %v2334 = vunpack.c.h.b16 %v2144
  %v2335 = vunpack.c.l.b16 %v2145
  %v2336 = vunpack.c.h.b16 %v2145
  %v2337 = vunpack.c.l.b16 %v2146
  %v2338 = vunpack.c.h.b16 %v2146
  %v2339 = vunpack.c.l.b16 %v2147
  %v2340 = vunpack.c.h.b16 %v2147
  %v2341 = vunpack.c.l.b16 %v2148
  %v2342 = vunpack.c.h.b16 %v2148
  %v2343 = vunpack.c.l.b16 %v2149
  %v2344 = vunpack.c.h.b16 %v2149
  %v2345 = vunpack.c.l.b16 %v2150
  %v2346 = vunpack.c.h.b16 %v2150
  %v2347 = vunpack.c.l.b16 %v2151
  %v2348 = vunpack.c.h.b16 %v2151
  %v2349 = vunpack.c.l.b16 %v2152
  %v2350 = vunpack.c.h.b16 %v2152
  %v2351 = vunpack.c.l.b16 %v2153
  %v2352 = vunpack.c.h.b16 %v2153
  %v2353 = vunpack.c.l.b16 %v2154
  %v2354 = vunpack.c.h.b16 %v2154
  %v2355 = vunpack.c.l.b16 %v2155
  %v2356 = vunpack.c.h.b16 %v2155
  %v2357 = vunpack.c.l.b16 %v2156
  %v2358 = vunpack.c.h.b16 %v2156
  %v2359 = vunpack.c.l.b16 %v2157
  %v2360 = vunpack.c.h.b16 %v2157
  %v2361 = vunpack.c.l.b16 %v2158
  %v2362 = vunpack.c.h.b16 %v2158
  %v2363 = vpack.c.b16 %v2237, %v2235
  %v2364 = vpack.c.b16 %v2238, %v2236
  %v2365 = vpack.c.b16 %v2241, %v2239
  %v2366 = vpack.c.b16 %v2242, %v2240
  %v2367 = vpack.c.b16 %v2245, %v2243
  %v2368 = vpack.c.b16 %v2246, %v2244
  %v2369 = vpack.c.b16 %v2249, %v2247
  %v2370 = vpack.c.b16 %v2250, %v2248
  %v2371 = vpack.c.b16 %v2253, %v2251
  %v2372 = vpack.c.b16 %v2254, %v2252
  %v2373 = vpack.c.b16 %v2257, %v2255
  %v2374 = vpack.c.b16 %v2258, %v2256
  %v2375 = vpack.c.b16 %v2261, %v2259
  %v2376 = vpack.c.b16 %v2262, %v2260
  %v2377 = vpack.c.b16 %v2265, %v2263
  %v2378 = vpack.c.b16 %v2266, %v2264
  %v2379 = vpack.c.b16 %v2269, %v2267
  %v2380 = vpack.c.b16 %v2270, %v2268
  %v2381 = vpack.c.b16 %v2273, %v2271
  %v2382 = vpack.c.b16 %v2274, %v2272
  %v2383 = vpack.c.b16 %v2277, %v2275
  %v2384 = vpack.c.b16 %v2278, %v2276
  %v2385 = vpack.c.b16 %v2281, %v2279
  %v2386 = vpack.c.b16 %v2282, %v2280
  %v2387 = vpack.c.b16 %v2285, %v2283
  %v2388 = vpack.c.b16 %v2286, %v2284
  %v2389 = vpack.c.b16 %v2289, %v2287
  %v2390 = vpack.c.b16 %v2290, %v2288
  %v2391 = vpack.c.b16 %v2293, %v2291
  %v2392 = vpack.c.b16 %v2294, %v2292
  %v2393 = vpack.c.b16 %v2297, %v2295
  %v2394 = vpack.c.b16 %v2298, %v2296
  %v2395 = vpack.c.b16 %v2301, %v2299
  %v2396 = vpack.c.b16 %v2302, %v2300
  %v2397 = vpack.c.b16 %v2305, %v2303
  %v2398 = vpack.c.b16 %v2306, %v2304
  %v2399 = vpack.c.b16 %v2309, %v2307
  %v2400 = vpack.c.b16 %v2310, %v2308
  %v2401 = vpack.c.b16 %v2313, %v2311
  %v2402 = vpack.c.b16 %v2314, %v2312
  %v2403 = vpack.c.b16 %v2317, %v2315
  %v2404 = vpack.c.b16 %v2318, %v2316
  %v2405 = vpack.c.b16 %v2321, %v2319
  %v2406 = vpack.c.b16 %v2322, %v2320
  %v2407 = vpack.c.b16 %v2325, %v2323
  %v2408 = vpack.c.b16 %v2326, %v2324
  %v2409 = vpack.c.b16 %v2329, %v2327
  %v2410 = vpack.c.b16 %v2330, %v2328
  %v2411 = vpack.c.b16 %v2333, %v2331
  %v2412 = vpack.c.b16 %v2334, %v2332
  %v2413 = vpack.c.b16 %v2337, %v2335
  %v2414 = vpack.c.b16 %v2338, %v2336
  %v2415 = vpack.c.b16 %v2341, %v2339
  %v2416 = vpack.c.b16 %v2342, %v2340
  %v2417 = vpack.c.b16 %v2345, %v2343
  %v2418 = vpack.c.b16 %v2346, %v2344
  %v2419 = vpack.c.b16 %v2349, %v2347
  %v2420 = vpack.c.b16 %v2350, %v2348
  %v2421 = vpack.c.b16 %v2353, %v2351
  %v2422 = vpack.c.b16 %v2354, %v2352
  %v2423 = vpack.c.b16 %v2357, %v2355
  %v2424 = vpack.c.b16 %v2358, %v2356
  %v2425 = vpack.c.b16 %v2361, %v2359
  %v2426 = vpack.c.b16 %v2362, %v2360
  %2491 = vmatprep.subr.bf16.mxu0 %v2364
  %2492 = vmatpush1.bf16.msra.mxu0 %v2363
  %2493 = vmatprep.subr.bf16.mxu0 %v2366
  %2494 = vmatpush1.bf16.msra.mxu0 %v2365
  %2495 = vmatprep.subr.bf16.mxu0 %v2368
  %2496 = vmatpush1.bf16.msra.mxu0 %v2367
  %2497 = vmatprep.subr.bf16.mxu0 %v2370
  %2498 = vmatpush1.bf16.msra.mxu0 %v2369
  %2499 = vmatprep.subr.bf16.mxu0 %v2372
  %2500 = vmatpush1.bf16.msra.mxu0 %v2371
  %2501 = vmatprep.subr.bf16.mxu0 %v2374
  %2502 = vmatpush1.bf16.msra.mxu0 %v2373
  %2503 = vmatprep.subr.bf16.mxu0 %v2376
  %2504 = vmatpush1.bf16.msra.mxu0 %v2375
  %2505 = vmatprep.subr.bf16.mxu0 %v2378
  %2506 = vmatpush1.bf16.msra.mxu0 %v2377
  %2507 = vmatprep.subr.bf16.mxu0 %v2380
  %2508 = vmatpush1.bf16.msra.mxu0 %v2379
  %2509 = vmatprep.subr.bf16.mxu0 %v2382
  %2510 = vmatpush1.bf16.msra.mxu0 %v2381
  %2511 = vmatprep.subr.bf16.mxu0 %v2384
  %2512 = vmatpush1.bf16.msra.mxu0 %v2383
  %2513 = vmatprep.subr.bf16.mxu0 %v2386
  %2514 = vmatpush1.bf16.msra.mxu0 %v2385
  %2515 = vmatprep.subr.bf16.mxu0 %v2388
  %2516 = vmatpush1.bf16.msra.mxu0 %v2387
  %2517 = vmatprep.subr.bf16.mxu0 %v2390
  %2518 = vmatpush1.bf16.msra.mxu0 %v2389
  %2519 = vmatprep.subr.bf16.mxu0 %v2392
  %2520 = vmatpush1.bf16.msra.mxu0 %v2391
  %2521 = vmatprep.subr.bf16.mxu0 %v2394
  %2522 = vmatpush1.bf16.msra.mxu0 %v2393
  %2523 = vmatprep.mubr.bf16.mxu0 %v2092
  %2524 = vmatmul.mubr.bf16.gmra.mrb[0].mxu0 %v2091
  %v2525 = vpop.f32.mrb[0].mxu0
  %v2526 = vadd.f32 %v2164, %v2525
  %v2527 = vpop.f32.mrb[0].mxu0
  %v2528 = vadd.f32 %v2168, %v2527
  %v2529 = vpop.f32.mrb[0].mxu0
  %v2530 = vpop.f32.mrb[0].mxu0
  %2531 = vdwg.mxu0
  %2532 = vmatprep.subr.bf16.mxu0 %v2396
  %2533 = vmatpush1.bf16.msra.mxu0 %v2395
  %2534 = vmatprep.subr.bf16.mxu0 %v2398
  %2535 = vmatpush1.bf16.msra.mxu0 %v2397
  %2536 = vmatprep.subr.bf16.mxu0 %v2400
  %2537 = vmatpush1.bf16.msra.mxu0 %v2399
  %2538 = vmatprep.subr.bf16.mxu0 %v2402
  %2539 = vmatpush1.bf16.msra.mxu0 %v2401
  %2540 = vmatprep.subr.bf16.mxu0 %v2404
  %2541 = vmatpush1.bf16.msra.mxu0 %v2403
  %2542 = vmatprep.subr.bf16.mxu0 %v2406
  %2543 = vmatpush1.bf16.msra.mxu0 %v2405
  %2544 = vmatprep.subr.bf16.mxu0 %v2408
  %2545 = vmatpush1.bf16.msra.mxu0 %v2407
  %2546 = vmatprep.subr.bf16.mxu0 %v2410
  %2547 = vmatpush1.bf16.msra.mxu0 %v2409
  %2548 = vmatprep.subr.bf16.mxu0 %v2412
  %2549 = vmatpush1.bf16.msra.mxu0 %v2411
  %2550 = vmatprep.subr.bf16.mxu0 %v2414
  %2551 = vmatpush1.bf16.msra.mxu0 %v2413
  %2552 = vmatprep.subr.bf16.mxu0 %v2416
  %2553 = vmatpush1.bf16.msra.mxu0 %v2415
  %2554 = vmatprep.subr.bf16.mxu0 %v2418
  %2555 = vmatpush1.bf16.msra.mxu0 %v2417
  %2556 = vmatprep.subr.bf16.mxu0 %v2420
  %2557 = vmatpush1.bf16.msra.mxu0 %v2419
  %2558 = vmatprep.subr.bf16.mxu0 %v2422
  %2559 = vmatpush1.bf16.msra.mxu0 %v2421
  %2560 = vmatprep.subr.bf16.mxu0 %v2424
  %2561 = vmatpush1.bf16.msra.mxu0 %v2423
  %2562 = vmatprep.subr.bf16.mxu0 %v2426
  %2563 = vmatpush1.bf16.msra.mxu0 %v2425
  %2564 = vmatprep.mubr.bf16.mxu0 %v2094
  %2565 = vmatmul.mubr.bf16.gmra.mrb[0].mxu0 %v2093
  %v2566 = vpop.f32.mrb[0].mxu0
  %v2567 = vadd.f32 %v2526, %v2566
  %v2568 = vpop.f32.mrb[0].mxu0
  %v2569 = vadd.f32 %v2528, %v2568
  %v2570 = vpop.f32.mrb[0].mxu0
  %v2571 = vpop.f32.mrb[0].mxu0
  %2572 = vdwg.mxu0
  %v2573 = vmax.f32 %v2567, 0.0
  %v2574 = vmax.f32 %v2569, 0.0
  %v2575 = vsel %vm1953, %v2573, 0.0
  %v2576 = vrot.slane %v2575, 4
  %v2577 = vadd.f32 %v2575, %v2576
  %v2578 = vrot.slane %v2577, 2
  %v2579 = vadd.f32 %v2577, %v2578
  %v2580 = vrot.slane %v2579, 1
  %v2581 = vadd.f32 %v2579, %v2580
  %v2582 = vsel %vm1953, %v2574, 0.0
  %v2583 = vrot.slane %v2582, 4
  %v2584 = vadd.f32 %v2582, %v2583
  %v2585 = vrot.slane %v2584, 2
  %v2586 = vadd.f32 %v2584, %v2585
  %v2587 = vrot.slane %v2586, 1
  %v2588 = vadd.f32 %v2586, %v2587
  %v2589 = vmul.f32 %v2581, %v1982
  %v2590 = vmul.f32 %v2588, %v1982
  %v2591 = vsub.f32 %v2573, %v2589
  %v2592 = vsub.f32 %v2574, %v2590
  %v2593 = vmul.f32 %v2591, %v2591
  %v2594 = vmul.f32 %v2592, %v2592
  %v2595 = vsel %vm1953, %v2593, 0.0
  %v2596 = vrot.slane %v2595, 4
  %v2597 = vadd.f32 %v2595, %v2596
  %v2598 = vrot.slane %v2597, 2
  %v2599 = vadd.f32 %v2597, %v2598
  %v2600 = vrot.slane %v2599, 1
  %v2601 = vadd.f32 %v2599, %v2600
  %v2602 = vsel %vm1953, %v2594, 0.0
  %v2603 = vrot.slane %v2602, 4
  %v2604 = vadd.f32 %v2602, %v2603
  %v2605 = vrot.slane %v2604, 2
  %v2606 = vadd.f32 %v2604, %v2605
  %v2607 = vrot.slane %v2606, 1
  %v2608 = vadd.f32 %v2606, %v2607
  %v2609 = vmul.f32 %v2601, %v1982
  %v2610 = vmul.f32 %v2608, %v1982
  %v2611 = vadd.f32 %v2609, 1e-05
  %v2612 = vadd.f32 %v2610, 1e-05
  %v2613 = vrsqrt.pop %v2611
  %v2614 = vrsqrt.pop %v2612
  %v2615 = vmul.f32 %v2591, %v2613
  %v2616 = vmul.f32 %v2592, %v2614
  %v2617 = vld [vmem:[%s7] sm:$0x3]
  %v2619 = vlaneseq
  %v2620 = vshrl.u32 %v2619, 7
  %v2621 = vsub.s32 0, %v2620
  %v2622 = vrot.slane %v2617, %v2621
  %v2623 = vlaneseq
  %v2624 = vshrl.u32 %v2623, 7
  %v2625 = vsub.s32 1, %v2624
  %v2626 = vrot.slane %v2617, %v2625
  %v2629 = vmul.f32 %v2615, %v2622
  %v2630 = vmul.f32 %v2616, %v2626
  %v2631 = vld [vmem:[%s8] sm:$0x3]
  %v2633 = vlaneseq
  %v2634 = vshrl.u32 %v2633, 7
  %v2635 = vsub.s32 0, %v2634
  %v2636 = vrot.slane %v2631, %v2635
  %v2637 = vlaneseq
  %v2638 = vshrl.u32 %v2637, 7
  %v2639 = vsub.s32 1, %v2638
  %v2640 = vrot.slane %v2631, %v2639
  %v2643 = vadd.f32 %v2629, %v2636
  %v2644 = vadd.f32 %v2630, %v2640
  %v2645 = vpack.c.bf16 %v2643, %v2643
  %v2646 = vpack.c.bf16 %v2644, %v2644
  %v2647 = vld [vmem:[%s9] sm:$0xf]
  %v2648 = vld [vmem:[%s9 + $0x4] sm:$0xf]
  %v2649 = vld [vmem:[%s9 + $0x8] sm:$0xf]
  %v2650 = vld [vmem:[%s9 + $0xc] sm:$0xf]
  %v2651 = vld [vmem:[%s9 + $0x10] sm:$0xf]
  %v2652 = vld [vmem:[%s9 + $0x14] sm:$0xf]
  %v2653 = vld [vmem:[%s9 + $0x18] sm:$0xf]
  %v2654 = vld [vmem:[%s9 + $0x1c] sm:$0xf]
  %v2655 = vld [vmem:[%s9 + $0x20] sm:$0xf]
  %v2656 = vld [vmem:[%s9 + $0x24] sm:$0xf]
  %v2657 = vld [vmem:[%s9 + $0x28] sm:$0xf]
  %v2658 = vld [vmem:[%s9 + $0x2c] sm:$0xf]
  %v2659 = vld [vmem:[%s9 + $0x30] sm:$0xf]
  %v2660 = vld [vmem:[%s9 + $0x34] sm:$0xf]
  %v2661 = vld [vmem:[%s9 + $0x38] sm:$0xf]
  %v2662 = vld [vmem:[%s9 + $0x3c] sm:$0xf]
  %v2663 = vld [vmem:[%s9 + $0x40] sm:$0xf]
  %v2664 = vld [vmem:[%s9 + $0x44] sm:$0xf]
  %v2665 = vld [vmem:[%s9 + $0x48] sm:$0xf]
  %v2666 = vld [vmem:[%s9 + $0x4c] sm:$0xf]
  %v2667 = vld [vmem:[%s9 + $0x50] sm:$0xf]
  %v2668 = vld [vmem:[%s9 + $0x54] sm:$0xf]
  %v2669 = vld [vmem:[%s9 + $0x58] sm:$0xf]
  %v2670 = vld [vmem:[%s9 + $0x5c] sm:$0xf]
  %v2671 = vld [vmem:[%s9 + $0x60] sm:$0xf]
  %v2672 = vld [vmem:[%s9 + $0x64] sm:$0xf]
  %v2673 = vld [vmem:[%s9 + $0x68] sm:$0xf]
  %v2674 = vld [vmem:[%s9 + $0x6c] sm:$0xf]
  %v2675 = vld [vmem:[%s9 + $0x70] sm:$0xf]
  %v2676 = vld [vmem:[%s9 + $0x74] sm:$0xf]
  %v2677 = vld [vmem:[%s9 + $0x78] sm:$0xf]
  %v2678 = vld [vmem:[%s9 + $0x7c] sm:$0xf]
  %v2679 = vld [vmem:[%s10] sm:$0x1]
  %v2681 = vlaneseq
  %v2682 = vshrl.u32 %v2681, 7
  %v2683 = vsub.s32 0, %v2682
  %v2684 = vrot.slane %v2679, %v2683
  %v2718 = vunpack.c.l.b16 %v2647
  %v2719 = vunpack.c.l.b16 %v2648
  %v2720 = vunpack.c.l.b16 %v2649
  %v2721 = vunpack.c.l.b16 %v2650
  %v2722 = vunpack.c.l.b16 %v2651
  %v2723 = vunpack.c.l.b16 %v2652
  %v2724 = vunpack.c.l.b16 %v2653
  %v2725 = vunpack.c.l.b16 %v2654
  %v2726 = vunpack.c.l.b16 %v2655
  %v2727 = vunpack.c.l.b16 %v2656
  %v2728 = vunpack.c.l.b16 %v2657
  %v2729 = vunpack.c.l.b16 %v2658
  %v2730 = vunpack.c.l.b16 %v2659
  %v2731 = vunpack.c.l.b16 %v2660
  %v2732 = vunpack.c.l.b16 %v2661
  %v2733 = vunpack.c.l.b16 %v2662
  %v2734 = vunpack.c.l.b16 %v2663
  %v2735 = vunpack.c.l.b16 %v2664
  %v2736 = vunpack.c.l.b16 %v2665
  %v2737 = vunpack.c.l.b16 %v2666
  %v2738 = vunpack.c.l.b16 %v2667
  %v2739 = vunpack.c.l.b16 %v2668
  %v2740 = vunpack.c.l.b16 %v2669
  %v2741 = vunpack.c.l.b16 %v2670
  %v2742 = vunpack.c.l.b16 %v2671
  %v2743 = vunpack.c.l.b16 %v2672
  %v2744 = vunpack.c.l.b16 %v2673
  %v2745 = vunpack.c.l.b16 %v2674
  %v2746 = vunpack.c.l.b16 %v2675
  %v2747 = vunpack.c.l.b16 %v2676
  %v2748 = vunpack.c.l.b16 %v2677
  %v2749 = vunpack.c.l.b16 %v2678
  %v2750 = vpack.c.b16 %v2719, %v2718
  %v2751 = vpack.c.b16 %v2721, %v2720
  %v2752 = vpack.c.b16 %v2723, %v2722
  %v2753 = vpack.c.b16 %v2725, %v2724
  %v2754 = vpack.c.b16 %v2727, %v2726
  %v2755 = vpack.c.b16 %v2729, %v2728
  %v2756 = vpack.c.b16 %v2731, %v2730
  %v2757 = vpack.c.b16 %v2733, %v2732
  %v2758 = vpack.c.b16 %v2735, %v2734
  %v2759 = vpack.c.b16 %v2737, %v2736
  %v2760 = vpack.c.b16 %v2739, %v2738
  %v2761 = vpack.c.b16 %v2741, %v2740
  %v2762 = vpack.c.b16 %v2743, %v2742
  %v2763 = vpack.c.b16 %v2745, %v2744
  %v2764 = vpack.c.b16 %v2747, %v2746
  %v2765 = vpack.c.b16 %v2749, %v2748
  %2782 = vmatprep.subr.bf16.mxu0 0
  %2783 = vmatpush1.bf16.msra.mxu0 %v2750
  %2784 = vmatprep.subr.bf16.mxu0 0
  %2785 = vmatpush1.bf16.msra.mxu0 %v2751
  %2786 = vmatprep.subr.bf16.mxu0 0
  %2787 = vmatpush1.bf16.msra.mxu0 %v2752
  %2788 = vmatprep.subr.bf16.mxu0 0
  %2789 = vmatpush1.bf16.msra.mxu0 %v2753
  %2790 = vmatprep.subr.bf16.mxu0 0
  %2791 = vmatpush1.bf16.msra.mxu0 %v2754
  %2792 = vmatprep.subr.bf16.mxu0 0
  %2793 = vmatpush1.bf16.msra.mxu0 %v2755
  %2794 = vmatprep.subr.bf16.mxu0 0
  %2795 = vmatpush1.bf16.msra.mxu0 %v2756
  %2796 = vmatprep.subr.bf16.mxu0 0
  %2797 = vmatpush1.bf16.msra.mxu0 %v2757
  %2798 = vmatprep.subr.bf16.mxu0 0
  %2799 = vmatpush1.bf16.msra.mxu0 %v2758
  %2800 = vmatprep.subr.bf16.mxu0 0
  %2801 = vmatpush1.bf16.msra.mxu0 %v2759
  %2802 = vmatprep.subr.bf16.mxu0 0
  %2803 = vmatpush1.bf16.msra.mxu0 %v2760
  %2804 = vmatprep.subr.bf16.mxu0 0
  %2805 = vmatpush1.bf16.msra.mxu0 %v2761
  %2806 = vmatprep.subr.bf16.mxu0 0
  %2807 = vmatpush1.bf16.msra.mxu0 %v2762
  %2808 = vmatprep.subr.bf16.mxu0 0
  %2809 = vmatpush1.bf16.msra.mxu0 %v2763
  %2810 = vmatprep.subr.bf16.mxu0 0
  %2811 = vmatpush1.bf16.msra.mxu0 %v2764
  %2812 = vmatprep.subr.bf16.mxu0 0
  %2813 = vmatpush1.bf16.msra.mxu0 %v2765
  %2814 = vmatprep.mubr.bf16.mxu0 %v2646
  %2815 = vmatmul.mubr.bf16.gmra.mrb[0].mxu0 %v2645
  %v2816 = vpop.f32.mrb[0].mxu0
  %v2817 = vadd.f32 %v2684, %v2816
  %v2818 = vpop.f32.mrb[0].mxu0
  %v2819 = vpop.f32.mrb[0].mxu0
  %v2820 = vpop.f32.mrb[0].mxu0
  %2821 = vdwg.mxu0
  %vm2822 = vcmask 68608
  %2823 = vst.msk [vmem:[%s11] sm:$0xf] %vm2822, %v2817
  // Predicated region
  $region46: #{tnet_forward.7} parent=0 // pred_check
    _
  $region47: #{tnet_forward.7} parent=0 // pred_check_branch
    %2825 = sbr.rel (0) target = $region49
  $region48: #{tnet_forward.7} parent=0 // pred_region
    _
  $region49: #{tnet_forward.7} parent=0 // pred_fallthru
    _
  // Predicated region
  $region50: #{tnet_forward.7} parent=0 // pred_check
    _
  $region51: #{tnet_forward.7} parent=0 // pred_check_branch
    %2827 = sbr.rel (0) target = $region53
  $region52: #{tnet_forward.7} parent=0 // pred_region
    _
  $region53: #{tnet_forward.7} parent=0 // pred_fallthru
    _

</llo_original>
